<compile_context>
chip_gen: v7x
topology: tpu7x:2x2x1
jax: 0.10.0
libtpu: 0.0.40
codegen_flags: <defaults>
</compile_context>

<pallas_src>
import functools

import jax
import jax.numpy as jnp
from jax import lax
from jax.experimental import pallas as pl
from jax.experimental.pallas import tpu as pltpu

BN_EPS = 1e-5


# ------------------------------ fused kernel ------------------------------- #

def _basic_block_kernel(x_ref, w1_ref, w2_ref, ws_ref, bn_ref, o_ref,
                        xpad_s, buf_s, mpad_s,
                        *, H, W, Cin, Cout, pool, project):
    """One batch element per grid step; everything stays in VMEM.

    x_ref:  (1, H, W, Cin)           input tile (NHWC)
    w1_ref: (3, 3, Cin, Cout)        conv1 weights (HWIO)
    w2_ref: (3, 3, Cout, Cout)       conv2 weights (HWIO)
    ws_ref: (Cin, Cout)              1x1 shortcut weights
    bn_ref: (6, Cout)                rows: s1, b1, s2, b2, ss, sb (folded BN)
    o_ref:  (1, Ho, Wo, Cout)        output tile (NHWC)
    xpad_s: (H+2, W+2, Cin)  VMEM    zero-padded input
    buf_s:  (H, W, Cout)     VMEM    pre-pool staging buffer
    mpad_s: (Ho+2, Wo+2, Cout) VMEM  zero-padded conv2 input
    """
    f32 = jnp.float32
    Ho, Wo = (H // 2, W // 2) if pool else (H, W)

    # Folded BN rows, loaded once (hoisted out of all tap loops).
    s1, b1 = bn_ref[0:1, :], bn_ref[1:2, :]
    s2, b2 = bn_ref[2:3, :], bn_ref[3:4, :]
    ss, sb = bn_ref[4:5, :], bn_ref[5:6, :]

    def conv3x3_bn(src_ref, w_ref, hh, ww, cc, scale, bias):
        # 3x3 / stride 1 / pad 1 conv as 9 tap matmuls on VMEM-resident data.
        acc = jnp.zeros((hh * ww, Cout), f32)
        for kh in range(3):
            for kw in range(3):
                tap = src_ref[kh:kh + hh, kw:kw + ww, :].reshape(hh * ww, cc)
                acc = acc + jnp.dot(tap, w_ref[kh, kw],
                                    preferred_element_type=f32)
        return (acc * scale + bias).reshape(hh, ww, Cout)

    def pool2x2(ref):
        # 2x2 / stride 2 max-pool via strided VMEM reads.
        a = ref[pl.ds(0, Ho, 2), pl.ds(0, Wo, 2), :]
        b = ref[pl.ds(0, Ho, 2), pl.ds(1, Wo, 2), :]
        c = ref[pl.ds(1, Ho, 2), pl.ds(0, Wo, 2), :]
        d = ref[pl.ds(1, Ho, 2), pl.ds(1, Wo, 2), :]
        return jnp.maximum(jnp.maximum(a, b), jnp.maximum(c, d))

    # ---- conv1 + bn1 (+ pool1) + relu1 ----
    xpad_s[...] = jnp.zeros_like(xpad_s)
    xpad_s[1:H + 1, 1:W + 1, :] = x_ref[0]
    c1 = conv3x3_bn(xpad_s, w1_ref, H, W, Cin, s1, b1)        # (H, W, Cout)
    if pool:
        buf_s[...] = c1
        act1 = jnp.maximum(pool2x2(buf_s), 0.0)               # (Ho, Wo, Cout)
    else:
        act1 = jnp.maximum(c1, 0.0)

    # ---- conv2 + bn2 ----
    mpad_s[...] = jnp.zeros_like(mpad_s)
    mpad_s[1:Ho + 1, 1:Wo + 1, :] = act1
    out2 = conv3x3_bn(mpad_s, w2_ref, Ho, Wo, Cout, s2, b2)   # (Ho, Wo, Cout)

    # ---- shortcut: optional 1x1 projection (VPU MAC) + sbn, optional smax ----
    xin = x_ref[0]                                            # (H, W, Cin)
    if project:
        sc = jnp.zeros((H, W, Cout), f32)
        for ci in range(Cin):                                 # 1x1 conv on VPU
            sc = sc + xin[:, :, ci:ci + 1] * ws_ref[ci:ci + 1, :]
        sc = sc * ss + sb
    else:
        sc = xin.astype(f32)                                  # identity (Cin==Cout)
    if pool:
        buf_s[...] = sc
        sc = pool2x2(buf_s)                                   # (Ho, Wo, Cout)

    # ---- residual add + relu ----
    o_ref[0] = jnp.maximum(out2 + sc, 0.0).astype(o_ref.dtype)


# ------------------------------ glue / wrapper ------------------------------ #

def fold_bn(p):
    """Inference-mode BatchNorm folded to per-channel (scale, bias)."""
    scale = p["gamma"] / jnp.sqrt(p["var"] + BN_EPS)
    bias = p["beta"] - p["mean"] * scale
    return scale, bias


def basic_block_forward(x_nchw, params, *, in_planes, planes, stride,
                        force_projection_with_stride=True):
    assert stride in (1, 2)           # layers_t.MaxPool(stride) == 2x2 pool here
    N, Cin, H, W = x_nchw.shape
    assert Cin == in_planes
    if stride != 1:
        assert H % 2 == 0 and W % 2 == 0
    Cout = planes
    Ho, Wo = (H // stride, W // stride)
    pool = stride != 1
    project = (in_planes != planes) or (force_projection_with_stride
                                        and stride != 1)

    x = jnp.transpose(x_nchw, (0, 2, 3, 1)).astype(jnp.float32)   # NCHW -> NHWC

    s1, b1 = fold_bn(params["bn1"])
    s2, b2 = fold_bn(params["bn2"])
    if project:
        ss, sb = fold_bn(params["sbn"])
        ws = params["ws"].astype(jnp.float32)
    else:
        ss = jnp.ones((planes,), jnp.float32)
        sb = jnp.zeros((planes,), jnp.float32)
        ws = jnp.zeros((in_planes, planes), jnp.float32)
    bn = jnp.stack([s1, b1, s2, b2, ss, sb], axis=0).astype(jnp.float32)

    kernel = functools.partial(_basic_block_kernel, H=H, W=W, Cin=Cin,
                               Cout=Cout, pool=pool, project=project)

    y_nhwc = pl.pallas_call(
        kernel,
        out_shape=jax.ShapeDtypeStruct((N, Ho, Wo, Cout), jnp.float32),
        grid=(N,),
        in_specs=[
            pl.BlockSpec((1, H, W, Cin), lambda n: (n, 0, 0, 0)),
            pl.BlockSpec((3, 3, Cin, Cout), lambda n: (0, 0, 0, 0)),
            pl.BlockSpec((3, 3, Cout, Cout), lambda n: (0, 0, 0, 0)),
            pl.BlockSpec((Cin, Cout), lambda n: (0, 0)),
            pl.BlockSpec((6, Cout), lambda n: (0, 0)),
        ],
        out_specs=pl.BlockSpec((1, Ho, Wo, Cout), lambda n: (n, 0, 0, 0)),
        scratch_shapes=[
            pltpu.VMEM((H + 2, W + 2, Cin), jnp.float32),   # padded input
            pltpu.VMEM((H, W, Cout), jnp.float32),          # pre-pool staging
            pltpu.VMEM((Ho + 2, Wo + 2, Cout), jnp.float32),  # padded conv2 in
        ],
        compiler_params=pltpu.CompilerParams(
            dimension_semantics=("parallel",)),
    )(x, params["w1"].astype(jnp.float32), params["w2"].astype(jnp.float32),
      ws, bn)

    return jnp.transpose(y_nhwc, (0, 3, 1, 2))                # NHWC -> NCHW


# ------------------------- pure-JAX reference model ------------------------ #

def reference_forward(x_nchw, params, *, in_planes, planes, stride,
                      force_projection_with_stride=True):
    x = jnp.transpose(x_nchw, (0, 2, 3, 1)).astype(jnp.float32)

    def conv(v, w, pad):
        return lax.conv_general_dilated(
            v, w, (1, 1), [(pad, pad), (pad, pad)],
            dimension_numbers=("NHWC", "HWIO", "NHWC"))

    def bn(v, p):
        s, b = fold_bn(p)
        return v * s + b

    def pool(v):
        return lax.reduce_window(v, -jnp.inf, lax.max,
                                 (1, 2, 2, 1), (1, 2, 2, 1), "VALID")

    out = bn(conv(x, params["w1"], 1), params["bn1"])
    if stride != 1:
        out = pool(out)
    out = jax.nn.relu(out)
    out = bn(conv(out, params["w2"], 1), params["bn2"])

    tmp = x
    if (in_planes != planes) or (force_projection_with_stride and stride != 1):
        tmp = bn(conv(tmp, params["ws"].reshape(1, 1, in_planes, planes), 0),
                 params["sbn"])
    if stride != 1:
        tmp = pool(tmp)
    out = jax.nn.relu(out + tmp)
    return jnp.transpose(out, (0, 3, 1, 2))


# --------------------------------- params ---------------------------------- #

def init_params(key, in_planes, planes, k):
    ks = jax.random.split(key, 15)

    def bn_params(k1, k2, k3, k4, c):
        return dict(
            gamma=1.0 + 0.1 * jax.random.normal(k1, (c,), jnp.float32),
            beta=0.1 * jax.random.normal(k2, (c,), jnp.float32),
            mean=0.1 * jax.random.normal(k3, (c,), jnp.float32),
            var=jax.random.uniform(k4, (c,), jnp.float32, 0.5, 1.5),
        )

    return dict(
        w1=0.2 * jax.random.normal(ks[0], (k, k, in_planes, planes), jnp.float32),
        w2=0.2 * jax.random.normal(ks[1], (k, k, planes, planes), jnp.float32),
        ws=0.2 * jax.random.normal(ks[2], (in_planes, planes), jnp.float32),
        bn1=bn_params(ks[3], ks[4], ks[5], ks[6], planes),
        bn2=bn_params(ks[7], ks[8], ks[9], ks[10], planes),
        sbn=bn_params(ks[11], ks[12], ks[13], ks[14], planes),
    )


# ----------------------------------- main ----------------------------------- #

if __name__ == "__main__":
    N, Cin, H, W = 2, 4, 16, 16
    planes, ksize, stride = 8, 3, 2

    key = jax.random.PRNGKey(0)
    params = init_params(key, Cin, planes, ksize)
    x = jax.random.normal(jax.random.fold_in(key, 99), (N, Cin, H, W),
                          jnp.float32)

    out = basic_block_forward(x, params, in_planes=Cin, planes=planes,
                              stride=stride, force_projection_with_stride=True)
    out = jax.block_until_ready(out)

    ref = reference_forward(x, params, in_planes=Cin, planes=planes,
                            stride=stride, force_projection_with_stride=True)
    assert out.shape == (N, planes, H // stride, W // stride), out.shape
    if not jnp.allclose(out, ref, atol=1e-4, rtol=1e-4):
        raise AssertionError("Pallas BasicBlock output mismatch vs reference")
    print("KERNEL_OK")
</pallas_src>

<mosaic_0001>
module attributes {stable_mosaic.version = 11 : i64} {
  func.func @_basic_block_kernel(%arg0: i32, %arg1: memref<1x16x16x4xf32, #tpu.memory_space<vmem>>, %arg2: memref<3x3x4x8xf32, #tpu.memory_space<vmem>>, %arg3: memref<3x3x8x8xf32, #tpu.memory_space<vmem>>, %arg4: memref<4x8xf32, #tpu.memory_space<vmem>>, %arg5: memref<6x8xf32, #tpu.memory_space<vmem>>, %arg6: memref<1x8x8x8xf32, #tpu.memory_space<vmem>>, %arg7: memref<18x18x4xf32, #tpu.memory_space<vmem>>, %arg8: memref<16x16x8xf32, #tpu.memory_space<vmem>>, %arg9: memref<10x10x8xf32, #tpu.memory_space<vmem>>) attributes {dimension_semantics = [#tpu.dimension_semantics<parallel>], iteration_bounds = array<i64: 2>, scalar_prefetch = 0 : i64, scratch_operands = 3 : i64, tpu.core_type = #tpu.core_type<tc>, window_params = [{transform_indices = @transform_0, window_bounds = array<i64: 1, 16, 16, 4>}, {pipeline_mode = #tpu.pipeline_mode<synchronous>, transform_indices = @transform_1, window_bounds = array<i64: 3, 3, 4, 8>}, {pipeline_mode = #tpu.pipeline_mode<synchronous>, transform_indices = @transform_2, window_bounds = array<i64: 3, 3, 8, 8>}, {pipeline_mode = #tpu.pipeline_mode<synchronous>, transform_indices = @transform_3, window_bounds = array<i64: 4, 8>}, {pipeline_mode = #tpu.pipeline_mode<synchronous>, transform_indices = @transform_4, window_bounds = array<i64: 6, 8>}, {transform_indices = @transform_5, window_bounds = array<i64: 1, 8, 8, 8>}]} {
    %c0 = arith.constant 0 : index
    %c0_0 = arith.constant 0 : index
    %0 = vector.load %arg5[%c0, %c0_0] : memref<6x8xf32, #tpu.memory_space<vmem>>, vector<1x8xf32>
    %c1 = arith.constant 1 : index
    %c0_1 = arith.constant 0 : index
    %1 = vector.load %arg5[%c1, %c0_1] : memref<6x8xf32, #tpu.memory_space<vmem>>, vector<1x8xf32>
    %c2 = arith.constant 2 : index
    %c0_2 = arith.constant 0 : index
    %2 = vector.load %arg5[%c2, %c0_2] : memref<6x8xf32, #tpu.memory_space<vmem>>, vector<1x8xf32>
    %c3 = arith.constant 3 : index
    %c0_3 = arith.constant 0 : index
    %3 = vector.load %arg5[%c3, %c0_3] : memref<6x8xf32, #tpu.memory_space<vmem>>, vector<1x8xf32>
    %c4 = arith.constant 4 : index
    %c0_4 = arith.constant 0 : index
    %4 = vector.load %arg5[%c4, %c0_4] : memref<6x8xf32, #tpu.memory_space<vmem>>, vector<1x8xf32>
    %c5 = arith.constant 5 : index
    %c0_5 = arith.constant 0 : index
    %5 = vector.load %arg5[%c5, %c0_5] : memref<6x8xf32, #tpu.memory_space<vmem>>, vector<1x8xf32>
    %cst = arith.constant 0.000000e+00 : f32
    %6 = vector.broadcast %cst : f32 to vector<18x18x4xf32>
    %c0_6 = arith.constant 0 : index
    %c0_7 = arith.constant 0 : index
    %c0_8 = arith.constant 0 : index
    %7 = vector.load %arg7[%c0_6, %c0_7, %c0_8] : memref<18x18x4xf32, #tpu.memory_space<vmem>>, vector<18x18x4xf32>
    tpu.vector_store %arg7[%c0_6, %c0_7, %c0_8], %6 {strides = array<i32>} : memref<18x18x4xf32, #tpu.memory_space<vmem>>, vector<18x18x4xf32>,
    %c0_9 = arith.constant 0 : index
    %c0_10 = arith.constant 0 : index
    %c0_11 = arith.constant 0 : index
    %c0_12 = arith.constant 0 : index
    %8 = vector.load %arg1[%c0_9, %c0_10, %c0_11, %c0_12] : memref<1x16x16x4xf32, #tpu.memory_space<vmem>>, vector<1x16x16x4xf32>
    %9 = vector.shape_cast %8 : vector<1x16x16x4xf32> to vector<16x16x4xf32>
    %c1_13 = arith.constant 1 : index
    %c1_14 = arith.constant 1 : index
    %c0_15 = arith.constant 0 : index
    %10 = vector.load %arg7[%c1_13, %c1_14, %c0_15] : memref<18x18x4xf32, #tpu.memory_space<vmem>>, vector<16x16x4xf32>
    tpu.vector_store %arg7[%c1_13, %c1_14, %c0_15], %9 {strides = array<i32>} : memref<18x18x4xf32, #tpu.memory_space<vmem>>, vector<16x16x4xf32>,
    %cst_16 = arith.constant 0.000000e+00 : f32
    %11 = vector.broadcast %cst_16 : f32 to vector<256x8xf32>
    %c0_17 = arith.constant 0 : index
    %c0_18 = arith.constant 0 : index
    %c0_19 = arith.constant 0 : index
    %12 = vector.load %arg7[%c0_17, %c0_18, %c0_19] : memref<18x18x4xf32, #tpu.memory_space<vmem>>, vector<16x16x4xf32>
    %13 = vector.shape_cast %12 : vector<16x16x4xf32> to vector<256x4xf32>
    %c0_20 = arith.constant 0 : index
    %c0_21 = arith.constant 0 : index
    %c0_22 = arith.constant 0 : index
    %c0_23 = arith.constant 0 : index
    %14 = vector.load %arg2[%c0_20, %c0_21, %c0_22, %c0_23] : memref<3x3x4x8xf32, #tpu.memory_space<vmem>>, vector<1x1x4x8xf32>
    %15 = vector.shape_cast %14 : vector<1x1x4x8xf32> to vector<4x8xf32>
    %cst_24 = arith.constant dense<0.000000e+00> : vector<256x8xf32>
    %16 = tpu.matmul %13, %15, %cst_24 {dimension_numbers = #tpu.dot_dimension_numbers<[1], [0], [0], [1], [0, 0, 1, 1], [], []>} : vector<256x4xf32>, vector<4x8xf32>, vector<256x8xf32> -> vector<256x8xf32>
    %17 = arith.addf %11, %16 : vector<256x8xf32>
    %c0_25 = arith.constant 0 : index
    %c1_26 = arith.constant 1 : index
    %c0_27 = arith.constant 0 : index
    %18 = vector.load %arg7[%c0_25, %c1_26, %c0_27] : memref<18x18x4xf32, #tpu.memory_space<vmem>>, vector<16x16x4xf32>
    %19 = vector.shape_cast %18 : vector<16x16x4xf32> to vector<256x4xf32>
    %c0_28 = arith.constant 0 : index
    %c1_29 = arith.constant 1 : index
    %c0_30 = arith.constant 0 : index
    %c0_31 = arith.constant 0 : index
    %20 = vector.load %arg2[%c0_28, %c1_29, %c0_30, %c0_31] : memref<3x3x4x8xf32, #tpu.memory_space<vmem>>, vector<1x1x4x8xf32>
    %21 = vector.shape_cast %20 : vector<1x1x4x8xf32> to vector<4x8xf32>
    %cst_32 = arith.constant dense<0.000000e+00> : vector<256x8xf32>
    %22 = tpu.matmul %19, %21, %cst_32 {dimension_numbers = #tpu.dot_dimension_numbers<[1], [0], [0], [1], [0, 0, 1, 1], [], []>} : vector<256x4xf32>, vector<4x8xf32>, vector<256x8xf32> -> vector<256x8xf32>
    %23 = arith.addf %17, %22 : vector<256x8xf32>
    %c0_33 = arith.constant 0 : index
    %c2_34 = arith.constant 2 : index
    %c0_35 = arith.constant 0 : index
    %24 = vector.load %arg7[%c0_33, %c2_34, %c0_35] : memref<18x18x4xf32, #tpu.memory_space<vmem>>, vector<16x16x4xf32>
    %25 = vector.shape_cast %24 : vector<16x16x4xf32> to vector<256x4xf32>
    %c0_36 = arith.constant 0 : index
    %c2_37 = arith.constant 2 : index
    %c0_38 = arith.constant 0 : index
    %c0_39 = arith.constant 0 : index
    %26 = vector.load %arg2[%c0_36, %c2_37, %c0_38, %c0_39] : memref<3x3x4x8xf32, #tpu.memory_space<vmem>>, vector<1x1x4x8xf32>
    %27 = vector.shape_cast %26 : vector<1x1x4x8xf32> to vector<4x8xf32>
    %cst_40 = arith.constant dense<0.000000e+00> : vector<256x8xf32>
    %28 = tpu.matmul %25, %27, %cst_40 {dimension_numbers = #tpu.dot_dimension_numbers<[1], [0], [0], [1], [0, 0, 1, 1], [], []>} : vector<256x4xf32>, vector<4x8xf32>, vector<256x8xf32> -> vector<256x8xf32>
    %29 = arith.addf %23, %28 : vector<256x8xf32>
    %c1_41 = arith.constant 1 : index
    %c0_42 = arith.constant 0 : index
    %c0_43 = arith.constant 0 : index
    %30 = vector.load %arg7[%c1_41, %c0_42, %c0_43] : memref<18x18x4xf32, #tpu.memory_space<vmem>>, vector<16x16x4xf32>
    %31 = vector.shape_cast %30 : vector<16x16x4xf32> to vector<256x4xf32>
    %c1_44 = arith.constant 1 : index
    %c0_45 = arith.constant 0 : index
    %c0_46 = arith.constant 0 : index
    %c0_47 = arith.constant 0 : index
    %32 = vector.load %arg2[%c1_44, %c0_45, %c0_46, %c0_47] : memref<3x3x4x8xf32, #tpu.memory_space<vmem>>, vector<1x1x4x8xf32>
    %33 = vector.shape_cast %32 : vector<1x1x4x8xf32> to vector<4x8xf32>
    %cst_48 = arith.constant dense<0.000000e+00> : vector<256x8xf32>
    %34 = tpu.matmul %31, %33, %cst_48 {dimension_numbers = #tpu.dot_dimension_numbers<[1], [0], [0], [1], [0, 0, 1, 1], [], []>} : vector<256x4xf32>, vector<4x8xf32>, vector<256x8xf32> -> vector<256x8xf32>
    %35 = arith.addf %29, %34 : vector<256x8xf32>
    %c1_49 = arith.constant 1 : index
    %c1_50 = arith.constant 1 : index
    %c0_51 = arith.constant 0 : index
    %36 = vector.load %arg7[%c1_49, %c1_50, %c0_51] : memref<18x18x4xf32, #tpu.memory_space<vmem>>, vector<16x16x4xf32>
    %37 = vector.shape_cast %36 : vector<16x16x4xf32> to vector<256x4xf32>
    %c1_52 = arith.constant 1 : index
    %c1_53 = arith.constant 1 : index
    %c0_54 = arith.constant 0 : index
    %c0_55 = arith.constant 0 : index
    %38 = vector.load %arg2[%c1_52, %c1_53, %c0_54, %c0_55] : memref<3x3x4x8xf32, #tpu.memory_space<vmem>>, vector<1x1x4x8xf32>
    %39 = vector.shape_cast %38 : vector<1x1x4x8xf32> to vector<4x8xf32>
    %cst_56 = arith.constant dense<0.000000e+00> : vector<256x8xf32>
    %40 = tpu.matmul %37, %39, %cst_56 {dimension_numbers = #tpu.dot_dimension_numbers<[1], [0], [0], [1], [0, 0, 1, 1], [], []>} : vector<256x4xf32>, vector<4x8xf32>, vector<256x8xf32> -> vector<256x8xf32>
    %41 = arith.addf %35, %40 : vector<256x8xf32>
    %c1_57 = arith.constant 1 : index
    %c2_58 = arith.constant 2 : index
    %c0_59 = arith.constant 0 : index
    %42 = vector.load %arg7[%c1_57, %c2_58, %c0_59] : memref<18x18x4xf32, #tpu.memory_space<vmem>>, vector<16x16x4xf32>
    %43 = vector.shape_cast %42 : vector<16x16x4xf32> to vector<256x4xf32>
    %c1_60 = arith.constant 1 : index
    %c2_61 = arith.constant 2 : index
    %c0_62 = arith.constant 0 : index
    %c0_63 = arith.constant 0 : index
    %44 = vector.load %arg2[%c1_60, %c2_61, %c0_62, %c0_63] : memref<3x3x4x8xf32, #tpu.memory_space<vmem>>, vector<1x1x4x8xf32>
    %45 = vector.shape_cast %44 : vector<1x1x4x8xf32> to vector<4x8xf32>
    %cst_64 = arith.constant dense<0.000000e+00> : vector<256x8xf32>
    %46 = tpu.matmul %43, %45, %cst_64 {dimension_numbers = #tpu.dot_dimension_numbers<[1], [0], [0], [1], [0, 0, 1, 1], [], []>} : vector<256x4xf32>, vector<4x8xf32>, vector<256x8xf32> -> vector<256x8xf32>
    %47 = arith.addf %41, %46 : vector<256x8xf32>
    %c2_65 = arith.constant 2 : index
    %c0_66 = arith.constant 0 : index
    %c0_67 = arith.constant 0 : index
    %48 = vector.load %arg7[%c2_65, %c0_66, %c0_67] : memref<18x18x4xf32, #tpu.memory_space<vmem>>, vector<16x16x4xf32>
    %49 = vector.shape_cast %48 : vector<16x16x4xf32> to vector<256x4xf32>
    %c2_68 = arith.constant 2 : index
    %c0_69 = arith.constant 0 : index
    %c0_70 = arith.constant 0 : index
    %c0_71 = arith.constant 0 : index
    %50 = vector.load %arg2[%c2_68, %c0_69, %c0_70, %c0_71] : memref<3x3x4x8xf32, #tpu.memory_space<vmem>>, vector<1x1x4x8xf32>
    %51 = vector.shape_cast %50 : vector<1x1x4x8xf32> to vector<4x8xf32>
    %cst_72 = arith.constant dense<0.000000e+00> : vector<256x8xf32>
    %52 = tpu.matmul %49, %51, %cst_72 {dimension_numbers = #tpu.dot_dimension_numbers<[1], [0], [0], [1], [0, 0, 1, 1], [], []>} : vector<256x4xf32>, vector<4x8xf32>, vector<256x8xf32> -> vector<256x8xf32>
    %53 = arith.addf %47, %52 : vector<256x8xf32>
    %c2_73 = arith.constant 2 : index
    %c1_74 = arith.constant 1 : index
    %c0_75 = arith.constant 0 : index
    %54 = vector.load %arg7[%c2_73, %c1_74, %c0_75] : memref<18x18x4xf32, #tpu.memory_space<vmem>>, vector<16x16x4xf32>
    %55 = vector.shape_cast %54 : vector<16x16x4xf32> to vector<256x4xf32>
    %c2_76 = arith.constant 2 : index
    %c1_77 = arith.constant 1 : index
    %c0_78 = arith.constant 0 : index
    %c0_79 = arith.constant 0 : index
    %56 = vector.load %arg2[%c2_76, %c1_77, %c0_78, %c0_79] : memref<3x3x4x8xf32, #tpu.memory_space<vmem>>, vector<1x1x4x8xf32>
    %57 = vector.shape_cast %56 : vector<1x1x4x8xf32> to vector<4x8xf32>
    %cst_80 = arith.constant dense<0.000000e+00> : vector<256x8xf32>
    %58 = tpu.matmul %55, %57, %cst_80 {dimension_numbers = #tpu.dot_dimension_numbers<[1], [0], [0], [1], [0, 0, 1, 1], [], []>} : vector<256x4xf32>, vector<4x8xf32>, vector<256x8xf32> -> vector<256x8xf32>
    %59 = arith.addf %53, %58 : vector<256x8xf32>
    %c2_81 = arith.constant 2 : index
    %c2_82 = arith.constant 2 : index
    %c0_83 = arith.constant 0 : index
    %60 = vector.load %arg7[%c2_81, %c2_82, %c0_83] : memref<18x18x4xf32, #tpu.memory_space<vmem>>, vector<16x16x4xf32>
    %61 = vector.shape_cast %60 : vector<16x16x4xf32> to vector<256x4xf32>
    %c2_84 = arith.constant 2 : index
    %c2_85 = arith.constant 2 : index
    %c0_86 = arith.constant 0 : index
    %c0_87 = arith.constant 0 : index
    %62 = vector.load %arg2[%c2_84, %c2_85, %c0_86, %c0_87] : memref<3x3x4x8xf32, #tpu.memory_space<vmem>>, vector<1x1x4x8xf32>
    %63 = vector.shape_cast %62 : vector<1x1x4x8xf32> to vector<4x8xf32>
    %cst_88 = arith.constant dense<0.000000e+00> : vector<256x8xf32>
    %64 = tpu.matmul %61, %63, %cst_88 {dimension_numbers = #tpu.dot_dimension_numbers<[1], [0], [0], [1], [0, 0, 1, 1], [], []>} : vector<256x4xf32>, vector<4x8xf32>, vector<256x8xf32> -> vector<256x8xf32>
    %65 = arith.addf %59, %64 : vector<256x8xf32>
    %66 = vector.broadcast %0 : vector<1x8xf32> to vector<256x8xf32>
    %67 = arith.mulf %65, %66 : vector<256x8xf32>
    %68 = vector.broadcast %1 : vector<1x8xf32> to vector<256x8xf32>
    %69 = arith.addf %67, %68 : vector<256x8xf32>
    %70 = vector.shape_cast %69 : vector<256x8xf32> to vector<16x16x8xf32>
    %c0_89 = arith.constant 0 : index
    %c0_90 = arith.constant 0 : index
    %c0_91 = arith.constant 0 : index
    %71 = vector.load %arg8[%c0_89, %c0_90, %c0_91] : memref<16x16x8xf32, #tpu.memory_space<vmem>>, vector<16x16x8xf32>
    tpu.vector_store %arg8[%c0_89, %c0_90, %c0_91], %70 {strides = array<i32>} : memref<16x16x8xf32, #tpu.memory_space<vmem>>, vector<16x16x8xf32>,
    %c0_92 = arith.constant 0 : index
    %c0_93 = arith.constant 0 : index
    %c0_94 = arith.constant 0 : index
    %72 = tpu.strided_load %arg8[%c0_92, %c0_93, %c0_94] {strides = array<i32: 2, 2, 1>} : memref<16x16x8xf32, #tpu.memory_space<vmem>>, vector<8x8x8xf32>
    %c0_95 = arith.constant 0 : index
    %c1_96 = arith.constant 1 : index
    %c0_97 = arith.constant 0 : index
    %73 = tpu.strided_load %arg8[%c0_95, %c1_96, %c0_97] {strides = array<i32: 2, 2, 1>} : memref<16x16x8xf32, #tpu.memory_space<vmem>>, vector<8x8x8xf32>
    %c1_98 = arith.constant 1 : index
    %c0_99 = arith.constant 0 : index
    %c0_100 = arith.constant 0 : index
    %74 = tpu.strided_load %arg8[%c1_98, %c0_99, %c0_100] {strides = array<i32: 2, 2, 1>} : memref<16x16x8xf32, #tpu.memory_space<vmem>>, vector<8x8x8xf32>
    %c1_101 = arith.constant 1 : index
    %c1_102 = arith.constant 1 : index
    %c0_103 = arith.constant 0 : index
    %75 = tpu.strided_load %arg8[%c1_101, %c1_102, %c0_103] {strides = array<i32: 2, 2, 1>} : memref<16x16x8xf32, #tpu.memory_space<vmem>>, vector<8x8x8xf32>
    %76 = arith.maximumf %72, %73 : vector<8x8x8xf32>
    %77 = arith.maximumf %74, %75 : vector<8x8x8xf32>
    %78 = arith.maximumf %76, %77 : vector<8x8x8xf32>
    %cst_104 = arith.constant 0.000000e+00 : f32
    %79 = vector.broadcast %cst_104 : f32 to vector<8x8x8xf32>
    %80 = arith.maximumf %78, %79 : vector<8x8x8xf32>
    %cst_105 = arith.constant 0.000000e+00 : f32
    %81 = vector.broadcast %cst_105 : f32 to vector<10x10x8xf32>
    %c0_106 = arith.constant 0 : index
    %c0_107 = arith.constant 0 : index
    %c0_108 = arith.constant 0 : index
    %82 = vector.load %arg9[%c0_106, %c0_107, %c0_108] : memref<10x10x8xf32, #tpu.memory_space<vmem>>, vector<10x10x8xf32>
    tpu.vector_store %arg9[%c0_106, %c0_107, %c0_108], %81 {strides = array<i32>} : memref<10x10x8xf32, #tpu.memory_space<vmem>>, vector<10x10x8xf32>,
    %c1_109 = arith.constant 1 : index
    %c1_110 = arith.constant 1 : index
    %c0_111 = arith.constant 0 : index
    %83 = vector.load %arg9[%c1_109, %c1_110, %c0_111] : memref<10x10x8xf32, #tpu.memory_space<vmem>>, vector<8x8x8xf32>
    tpu.vector_store %arg9[%c1_109, %c1_110, %c0_111], %80 {strides = array<i32>} : memref<10x10x8xf32, #tpu.memory_space<vmem>>, vector<8x8x8xf32>,
    %cst_112 = arith.constant 0.000000e+00 : f32
    %84 = vector.broadcast %cst_112 : f32 to vector<64x8xf32>
    %c0_113 = arith.constant 0 : index
    %c0_114 = arith.constant 0 : index
    %c0_115 = arith.constant 0 : index
    %85 = vector.load %arg9[%c0_113, %c0_114, %c0_115] : memref<10x10x8xf32, #tpu.memory_space<vmem>>, vector<8x8x8xf32>
    %86 = vector.shape_cast %85 : vector<8x8x8xf32> to vector<64x8xf32>
    %c0_116 = arith.constant 0 : index
    %c0_117 = arith.constant 0 : index
    %c0_118 = arith.constant 0 : index
    %c0_119 = arith.constant 0 : index
    %87 = vector.load %arg3[%c0_116, %c0_117, %c0_118, %c0_119] : memref<3x3x8x8xf32, #tpu.memory_space<vmem>>, vector<1x1x8x8xf32>
    %88 = vector.shape_cast %87 : vector<1x1x8x8xf32> to vector<8x8xf32>
    %cst_120 = arith.constant dense<0.000000e+00> : vector<64x8xf32>
    %89 = tpu.matmul %86, %88, %cst_120 {dimension_numbers = #tpu.dot_dimension_numbers<[1], [0], [0], [1], [0, 0, 1, 1], [], []>} : vector<64x8xf32>, vector<8x8xf32>, vector<64x8xf32> -> vector<64x8xf32>
    %90 = arith.addf %84, %89 : vector<64x8xf32>
    %c0_121 = arith.constant 0 : index
    %c1_122 = arith.constant 1 : index
    %c0_123 = arith.constant 0 : index
    %91 = vector.load %arg9[%c0_121, %c1_122, %c0_123] : memref<10x10x8xf32, #tpu.memory_space<vmem>>, vector<8x8x8xf32>
    %92 = vector.shape_cast %91 : vector<8x8x8xf32> to vector<64x8xf32>
    %c0_124 = arith.constant 0 : index
    %c1_125 = arith.constant 1 : index
    %c0_126 = arith.constant 0 : index
    %c0_127 = arith.constant 0 : index
    %93 = vector.load %arg3[%c0_124, %c1_125, %c0_126, %c0_127] : memref<3x3x8x8xf32, #tpu.memory_space<vmem>>, vector<1x1x8x8xf32>
    %94 = vector.shape_cast %93 : vector<1x1x8x8xf32> to vector<8x8xf32>
    %cst_128 = arith.constant dense<0.000000e+00> : vector<64x8xf32>
    %95 = tpu.matmul %92, %94, %cst_128 {dimension_numbers = #tpu.dot_dimension_numbers<[1], [0], [0], [1], [0, 0, 1, 1], [], []>} : vector<64x8xf32>, vector<8x8xf32>, vector<64x8xf32> -> vector<64x8xf32>
    %96 = arith.addf %90, %95 : vector<64x8xf32>
    %c0_129 = arith.constant 0 : index
    %c2_130 = arith.constant 2 : index
    %c0_131 = arith.constant 0 : index
    %97 = vector.load %arg9[%c0_129, %c2_130, %c0_131] : memref<10x10x8xf32, #tpu.memory_space<vmem>>, vector<8x8x8xf32>
    %98 = vector.shape_cast %97 : vector<8x8x8xf32> to vector<64x8xf32>
    %c0_132 = arith.constant 0 : index
    %c2_133 = arith.constant 2 : index
    %c0_134 = arith.constant 0 : index
    %c0_135 = arith.constant 0 : index
    %99 = vector.load %arg3[%c0_132, %c2_133, %c0_134, %c0_135] : memref<3x3x8x8xf32, #tpu.memory_space<vmem>>, vector<1x1x8x8xf32>
    %100 = vector.shape_cast %99 : vector<1x1x8x8xf32> to vector<8x8xf32>
    %cst_136 = arith.constant dense<0.000000e+00> : vector<64x8xf32>
    %101 = tpu.matmul %98, %100, %cst_136 {dimension_numbers = #tpu.dot_dimension_numbers<[1], [0], [0], [1], [0, 0, 1, 1], [], []>} : vector<64x8xf32>, vector<8x8xf32>, vector<64x8xf32> -> vector<64x8xf32>
    %102 = arith.addf %96, %101 : vector<64x8xf32>
    %c1_137 = arith.constant 1 : index
    %c0_138 = arith.constant 0 : index
    %c0_139 = arith.constant 0 : index
    %103 = vector.load %arg9[%c1_137, %c0_138, %c0_139] : memref<10x10x8xf32, #tpu.memory_space<vmem>>, vector<8x8x8xf32>
    %104 = vector.shape_cast %103 : vector<8x8x8xf32> to vector<64x8xf32>
    %c1_140 = arith.constant 1 : index
    %c0_141 = arith.constant 0 : index
    %c0_142 = arith.constant 0 : index
    %c0_143 = arith.constant 0 : index
    %105 = vector.load %arg3[%c1_140, %c0_141, %c0_142, %c0_143] : memref<3x3x8x8xf32, #tpu.memory_space<vmem>>, vector<1x1x8x8xf32>
    %106 = vector.shape_cast %105 : vector<1x1x8x8xf32> to vector<8x8xf32>
    %cst_144 = arith.constant dense<0.000000e+00> : vector<64x8xf32>
    %107 = tpu.matmul %104, %106, %cst_144 {dimension_numbers = #tpu.dot_dimension_numbers<[1], [0], [0], [1], [0, 0, 1, 1], [], []>} : vector<64x8xf32>, vector<8x8xf32>, vector<64x8xf32> -> vector<64x8xf32>
    %108 = arith.addf %102, %107 : vector<64x8xf32>
    %c1_145 = arith.constant 1 : index
    %c1_146 = arith.constant 1 : index
    %c0_147 = arith.constant 0 : index
    %109 = vector.load %arg9[%c1_145, %c1_146, %c0_147] : memref<10x10x8xf32, #tpu.memory_space<vmem>>, vector<8x8x8xf32>
    %110 = vector.shape_cast %109 : vector<8x8x8xf32> to vector<64x8xf32>
    %c1_148 = arith.constant 1 : index
    %c1_149 = arith.constant 1 : index
    %c0_150 = arith.constant 0 : index
    %c0_151 = arith.constant 0 : index
    %111 = vector.load %arg3[%c1_148, %c1_149, %c0_150, %c0_151] : memref<3x3x8x8xf32, #tpu.memory_space<vmem>>, vector<1x1x8x8xf32>
    %112 = vector.shape_cast %111 : vector<1x1x8x8xf32> to vector<8x8xf32>
    %cst_152 = arith.constant dense<0.000000e+00> : vector<64x8xf32>
    %113 = tpu.matmul %110, %112, %cst_152 {dimension_numbers = #tpu.dot_dimension_numbers<[1], [0], [0], [1], [0, 0, 1, 1], [], []>} : vector<64x8xf32>, vector<8x8xf32>, vector<64x8xf32> -> vector<64x8xf32>
    %114 = arith.addf %108, %113 : vector<64x8xf32>
    %c1_153 = arith.constant 1 : index
    %c2_154 = arith.constant 2 : index
    %c0_155 = arith.constant 0 : index
    %115 = vector.load %arg9[%c1_153, %c2_154, %c0_155] : memref<10x10x8xf32, #tpu.memory_space<vmem>>, vector<8x8x8xf32>
    %116 = vector.shape_cast %115 : vector<8x8x8xf32> to vector<64x8xf32>
    %c1_156 = arith.constant 1 : index
    %c2_157 = arith.constant 2 : index
    %c0_158 = arith.constant 0 : index
    %c0_159 = arith.constant 0 : index
    %117 = vector.load %arg3[%c1_156, %c2_157, %c0_158, %c0_159] : memref<3x3x8x8xf32, #tpu.memory_space<vmem>>, vector<1x1x8x8xf32>
    %118 = vector.shape_cast %117 : vector<1x1x8x8xf32> to vector<8x8xf32>
    %cst_160 = arith.constant dense<0.000000e+00> : vector<64x8xf32>
    %119 = tpu.matmul %116, %118, %cst_160 {dimension_numbers = #tpu.dot_dimension_numbers<[1], [0], [0], [1], [0, 0, 1, 1], [], []>} : vector<64x8xf32>, vector<8x8xf32>, vector<64x8xf32> -> vector<64x8xf32>
    %120 = arith.addf %114, %119 : vector<64x8xf32>
    %c2_161 = arith.constant 2 : index
    %c0_162 = arith.constant 0 : index
    %c0_163 = arith.constant 0 : index
    %121 = vector.load %arg9[%c2_161, %c0_162, %c0_163] : memref<10x10x8xf32, #tpu.memory_space<vmem>>, vector<8x8x8xf32>
    %122 = vector.shape_cast %121 : vector<8x8x8xf32> to vector<64x8xf32>
    %c2_164 = arith.constant 2 : index
    %c0_165 = arith.constant 0 : index
    %c0_166 = arith.constant 0 : index
    %c0_167 = arith.constant 0 : index
    %123 = vector.load %arg3[%c2_164, %c0_165, %c0_166, %c0_167] : memref<3x3x8x8xf32, #tpu.memory_space<vmem>>, vector<1x1x8x8xf32>
    %124 = vector.shape_cast %123 : vector<1x1x8x8xf32> to vector<8x8xf32>
    %cst_168 = arith.constant dense<0.000000e+00> : vector<64x8xf32>
    %125 = tpu.matmul %122, %124, %cst_168 {dimension_numbers = #tpu.dot_dimension_numbers<[1], [0], [0], [1], [0, 0, 1, 1], [], []>} : vector<64x8xf32>, vector<8x8xf32>, vector<64x8xf32> -> vector<64x8xf32>
    %126 = arith.addf %120, %125 : vector<64x8xf32>
    %c2_169 = arith.constant 2 : index
    %c1_170 = arith.constant 1 : index
    %c0_171 = arith.constant 0 : index
    %127 = vector.load %arg9[%c2_169, %c1_170, %c0_171] : memref<10x10x8xf32, #tpu.memory_space<vmem>>, vector<8x8x8xf32>
    %128 = vector.shape_cast %127 : vector<8x8x8xf32> to vector<64x8xf32>
    %c2_172 = arith.constant 2 : index
    %c1_173 = arith.constant 1 : index
    %c0_174 = arith.constant 0 : index
    %c0_175 = arith.constant 0 : index
    %129 = vector.load %arg3[%c2_172, %c1_173, %c0_174, %c0_175] : memref<3x3x8x8xf32, #tpu.memory_space<vmem>>, vector<1x1x8x8xf32>
    %130 = vector.shape_cast %129 : vector<1x1x8x8xf32> to vector<8x8xf32>
    %cst_176 = arith.constant dense<0.000000e+00> : vector<64x8xf32>
    %131 = tpu.matmul %128, %130, %cst_176 {dimension_numbers = #tpu.dot_dimension_numbers<[1], [0], [0], [1], [0, 0, 1, 1], [], []>} : vector<64x8xf32>, vector<8x8xf32>, vector<64x8xf32> -> vector<64x8xf32>
    %132 = arith.addf %126, %131 : vector<64x8xf32>
    %c2_177 = arith.constant 2 : index
    %c2_178 = arith.constant 2 : index
    %c0_179 = arith.constant 0 : index
    %133 = vector.load %arg9[%c2_177, %c2_178, %c0_179] : memref<10x10x8xf32, #tpu.memory_space<vmem>>, vector<8x8x8xf32>
    %134 = vector.shape_cast %133 : vector<8x8x8xf32> to vector<64x8xf32>
    %c2_180 = arith.constant 2 : index
    %c2_181 = arith.constant 2 : index
    %c0_182 = arith.constant 0 : index
    %c0_183 = arith.constant 0 : index
    %135 = vector.load %arg3[%c2_180, %c2_181, %c0_182, %c0_183] : memref<3x3x8x8xf32, #tpu.memory_space<vmem>>, vector<1x1x8x8xf32>
    %136 = vector.shape_cast %135 : vector<1x1x8x8xf32> to vector<8x8xf32>
    %cst_184 = arith.constant dense<0.000000e+00> : vector<64x8xf32>
    %137 = tpu.matmul %134, %136, %cst_184 {dimension_numbers = #tpu.dot_dimension_numbers<[1], [0], [0], [1], [0, 0, 1, 1], [], []>} : vector<64x8xf32>, vector<8x8xf32>, vector<64x8xf32> -> vector<64x8xf32>
    %138 = arith.addf %132, %137 : vector<64x8xf32>
    %139 = vector.broadcast %2 : vector<1x8xf32> to vector<64x8xf32>
    %140 = arith.mulf %138, %139 : vector<64x8xf32>
    %141 = vector.broadcast %3 : vector<1x8xf32> to vector<64x8xf32>
    %142 = arith.addf %140, %141 : vector<64x8xf32>
    %143 = vector.shape_cast %142 : vector<64x8xf32> to vector<8x8x8xf32>
    %c0_185 = arith.constant 0 : index
    %c0_186 = arith.constant 0 : index
    %c0_187 = arith.constant 0 : index
    %c0_188 = arith.constant 0 : index
    %144 = vector.load %arg1[%c0_185, %c0_186, %c0_187, %c0_188] : memref<1x16x16x4xf32, #tpu.memory_space<vmem>>, vector<1x16x16x4xf32>
    %145 = vector.shape_cast %144 : vector<1x16x16x4xf32> to vector<16x16x4xf32>
    %cst_189 = arith.constant 0.000000e+00 : f32
    %146 = vector.broadcast %cst_189 : f32 to vector<16x16x8xf32>
    %147 = vector.extract_strided_slice %145 {offsets = [0, 0, 0], sizes = [16, 16, 1], strides = [1, 1, 1]} : vector<16x16x4xf32> to vector<16x16x1xf32>
    %c0_190 = arith.constant 0 : index
    %c0_191 = arith.constant 0 : index
    %148 = vector.load %arg4[%c0_190, %c0_191] : memref<4x8xf32, #tpu.memory_space<vmem>>, vector<1x8xf32>
    %149 = vector.shape_cast %148 : vector<1x8xf32> to vector<1x1x8xf32>
    %150 = vector.broadcast %147 : vector<16x16x1xf32> to vector<16x16x8xf32>
    %151 = vector.broadcast %149 : vector<1x1x8xf32> to vector<16x16x8xf32>
    %152 = arith.mulf %150, %151 : vector<16x16x8xf32>
    %153 = arith.addf %146, %152 : vector<16x16x8xf32>
    %154 = vector.extract_strided_slice %145 {offsets = [0, 0, 1], sizes = [16, 16, 1], strides = [1, 1, 1]} : vector<16x16x4xf32> to vector<16x16x1xf32>
    %c1_192 = arith.constant 1 : index
    %c0_193 = arith.constant 0 : index
    %155 = vector.load %arg4[%c1_192, %c0_193] : memref<4x8xf32, #tpu.memory_space<vmem>>, vector<1x8xf32>
    %156 = vector.shape_cast %155 : vector<1x8xf32> to vector<1x1x8xf32>
    %157 = vector.broadcast %154 : vector<16x16x1xf32> to vector<16x16x8xf32>
    %158 = vector.broadcast %156 : vector<1x1x8xf32> to vector<16x16x8xf32>
    %159 = arith.mulf %157, %158 : vector<16x16x8xf32>
    %160 = arith.addf %153, %159 : vector<16x16x8xf32>
    %161 = vector.extract_strided_slice %145 {offsets = [0, 0, 2], sizes = [16, 16, 1], strides = [1, 1, 1]} : vector<16x16x4xf32> to vector<16x16x1xf32>
    %c2_194 = arith.constant 2 : index
    %c0_195 = arith.constant 0 : index
    %162 = vector.load %arg4[%c2_194, %c0_195] : memref<4x8xf32, #tpu.memory_space<vmem>>, vector<1x8xf32>
    %163 = vector.shape_cast %162 : vector<1x8xf32> to vector<1x1x8xf32>
    %164 = vector.broadcast %161 : vector<16x16x1xf32> to vector<16x16x8xf32>
    %165 = vector.broadcast %163 : vector<1x1x8xf32> to vector<16x16x8xf32>
    %166 = arith.mulf %164, %165 : vector<16x16x8xf32>
    %167 = arith.addf %160, %166 : vector<16x16x8xf32>
    %168 = vector.extract_strided_slice %145 {offsets = [0, 0, 3], sizes = [16, 16, 1], strides = [1, 1, 1]} : vector<16x16x4xf32> to vector<16x16x1xf32>
    %c3_196 = arith.constant 3 : index
    %c0_197 = arith.constant 0 : index
    %169 = vector.load %arg4[%c3_196, %c0_197] : memref<4x8xf32, #tpu.memory_space<vmem>>, vector<1x8xf32>
    %170 = vector.shape_cast %169 : vector<1x8xf32> to vector<1x1x8xf32>
    %171 = vector.broadcast %168 : vector<16x16x1xf32> to vector<16x16x8xf32>
    %172 = vector.broadcast %170 : vector<1x1x8xf32> to vector<16x16x8xf32>
    %173 = arith.mulf %171, %172 : vector<16x16x8xf32>
    %174 = arith.addf %167, %173 : vector<16x16x8xf32>
    %175 = vector.shape_cast %4 : vector<1x8xf32> to vector<1x1x8xf32>
    %176 = vector.broadcast %175 : vector<1x1x8xf32> to vector<16x16x8xf32>
    %177 = arith.mulf %174, %176 : vector<16x16x8xf32>
    %178 = vector.shape_cast %5 : vector<1x8xf32> to vector<1x1x8xf32>
    %179 = vector.broadcast %178 : vector<1x1x8xf32> to vector<16x16x8xf32>
    %180 = arith.addf %177, %179 : vector<16x16x8xf32>
    %c0_198 = arith.constant 0 : index
    %c0_199 = arith.constant 0 : index
    %c0_200 = arith.constant 0 : index
    %181 = vector.load %arg8[%c0_198, %c0_199, %c0_200] : memref<16x16x8xf32, #tpu.memory_space<vmem>>, vector<16x16x8xf32>
    tpu.vector_store %arg8[%c0_198, %c0_199, %c0_200], %180 {strides = array<i32>} : memref<16x16x8xf32, #tpu.memory_space<vmem>>, vector<16x16x8xf32>,
    %c0_201 = arith.constant 0 : index
    %c0_202 = arith.constant 0 : index
    %c0_203 = arith.constant 0 : index
    %182 = tpu.strided_load %arg8[%c0_201, %c0_202, %c0_203] {strides = array<i32: 2, 2, 1>} : memref<16x16x8xf32, #tpu.memory_space<vmem>>, vector<8x8x8xf32>
    %c0_204 = arith.constant 0 : index
    %c1_205 = arith.constant 1 : index
    %c0_206 = arith.constant 0 : index
    %183 = tpu.strided_load %arg8[%c0_204, %c1_205, %c0_206] {strides = array<i32: 2, 2, 1>} : memref<16x16x8xf32, #tpu.memory_space<vmem>>, vector<8x8x8xf32>
    %c1_207 = arith.constant 1 : index
    %c0_208 = arith.constant 0 : index
    %c0_209 = arith.constant 0 : index
    %184 = tpu.strided_load %arg8[%c1_207, %c0_208, %c0_209] {strides = array<i32: 2, 2, 1>} : memref<16x16x8xf32, #tpu.memory_space<vmem>>, vector<8x8x8xf32>
    %c1_210 = arith.constant 1 : index
    %c1_211 = arith.constant 1 : index
    %c0_212 = arith.constant 0 : index
    %185 = tpu.strided_load %arg8[%c1_210, %c1_211, %c0_212] {strides = array<i32: 2, 2, 1>} : memref<16x16x8xf32, #tpu.memory_space<vmem>>, vector<8x8x8xf32>
    %186 = arith.maximumf %182, %183 : vector<8x8x8xf32>
    %187 = arith.maximumf %184, %185 : vector<8x8x8xf32>
    %188 = arith.maximumf %186, %187 : vector<8x8x8xf32>
    %189 = arith.addf %143, %188 : vector<8x8x8xf32>
    %cst_213 = arith.constant 0.000000e+00 : f32
    %190 = vector.broadcast %cst_213 : f32 to vector<8x8x8xf32>
    %191 = arith.maximumf %189, %190 : vector<8x8x8xf32>
    %c0_214 = arith.constant 0 : index
    %c0_215 = arith.constant 0 : index
    %c0_216 = arith.constant 0 : index
    %c0_217 = arith.constant 0 : index
    %192 = vector.load %arg6[%c0_214, %c0_215, %c0_216, %c0_217] : memref<1x8x8x8xf32, #tpu.memory_space<vmem>>, vector<1x8x8x8xf32>
    %193 = vector.shape_cast %192 : vector<1x8x8x8xf32> to vector<8x8x8xf32>
    %194 = vector.shape_cast %191 : vector<8x8x8xf32> to vector<1x8x8x8xf32>
    tpu.vector_store %arg6[%c0_214, %c0_215, %c0_216, %c0_217], %194 {strides = array<i32>} : memref<1x8x8x8xf32, #tpu.memory_space<vmem>>, vector<1x8x8x8xf32>,
    return
  }
  func.func @transform_0(%arg0: i32) -> (i32, i32, i32, i32) {
    %c0_i32 = arith.constant 0 : i32
    %c0_i32_0 = arith.constant 0 : i32
    %c0_i32_1 = arith.constant 0 : i32
    %c0_i32_2 = arith.constant 0 : i32
    return %arg0, %c0_i32, %c0_i32_0, %c0_i32_1 : i32, i32, i32, i32
  }
  func.func @transform_1(%arg0: i32) -> (i32, i32, i32, i32) {
    %c0_i32 = arith.constant 0 : i32
    %c0_i32_0 = arith.constant 0 : i32
    %c0_i32_1 = arith.constant 0 : i32
    %c0_i32_2 = arith.constant 0 : i32
    %c0_i32_3 = arith.constant 0 : i32
    return %c0_i32, %c0_i32_0, %c0_i32_1, %c0_i32_2 : i32, i32, i32, i32
  }
  func.func @transform_2(%arg0: i32) -> (i32, i32, i32, i32) {
    %c0_i32 = arith.constant 0 : i32
    %c0_i32_0 = arith.constant 0 : i32
    %c0_i32_1 = arith.constant 0 : i32
    %c0_i32_2 = arith.constant 0 : i32
    %c0_i32_3 = arith.constant 0 : i32
    return %c0_i32, %c0_i32_0, %c0_i32_1, %c0_i32_2 : i32, i32, i32, i32
  }
  func.func @transform_3(%arg0: i32) -> (i32, i32) {
    %c0_i32 = arith.constant 0 : i32
    %c0_i32_0 = arith.constant 0 : i32
    %c0_i32_1 = arith.constant 0 : i32
    return %c0_i32, %c0_i32_0 : i32, i32
  }
  func.func @transform_4(%arg0: i32) -> (i32, i32) {
    %c0_i32 = arith.constant 0 : i32
    %c0_i32_0 = arith.constant 0 : i32
    %c0_i32_1 = arith.constant 0 : i32
    return %c0_i32, %c0_i32_0 : i32, i32
  }
  func.func @transform_5(%arg0: i32) -> (i32, i32, i32, i32) {
    %c0_i32 = arith.constant 0 : i32
    %c0_i32_0 = arith.constant 0 : i32
    %c0_i32_1 = arith.constant 0 : i32
    %c0_i32_2 = arith.constant 0 : i32
    return %arg0, %c0_i32, %c0_i32_0, %c0_i32_1 : i32, i32, i32, i32
  }
}

</mosaic_0001>

<llo_original>
// kernel: tpu_custom_call.1
$region0: #{tpu_custom_call.1}
  #allocation0 [shape = 'u32[]', space=smem, size = 0x4, offset = 0x4, fixed_abs, tag = 'smem constant byte address 0x4 - core index']
  #allocation1 [shape = 'u32[144,128]{1,0:T(1,128)}', space=vmem, size = 0x12000, scoped, tag = 'internal scratch']
  #allocation2 [shape = 'f32[18,18,4]{2,1,0:T(8,128)}', space=vmem, size = 0x36000, scoped, tag = 'scratch operand']
  #allocation3 [shape = 'f32[16,16,8]{2,1,0:T(8,128)}', space=vmem, size = 0x20000, scoped, tag = 'scratch operand']
  #allocation4 [shape = 'f32[10,10,8]{2,1,0:T(8,128)}', space=vmem, size = 0x14000, scoped, tag = 'scratch operand']
  %s0 = inlined_call_operand.vmem [shape: f32[2,16,16,4], index: 0, kind: input, shape index: {}]
  %s1 = inlined_call_operand.vmem [shape: f32[3,3,4,8], index: 1, kind: input, shape index: {}]
  %s2 = inlined_call_operand.vmem [shape: f32[3,3,8,8], index: 2, kind: input, shape index: {}]
  %s3 = inlined_call_operand.vmem [shape: f32[4,8], index: 3, kind: input, shape index: {}]
  %s4 = inlined_call_operand.vmem [shape: f32[6,8], index: 4, kind: input, shape index: {}]
  %s5 = inlined_call_operand.hbm [shape: f32[2,8,8,8], index: 5, kind: output, shape index: {}]
  %s6 = sld [smem:[#allocation0]]
  $region53: #{tpu_custom_call.1} parent=0
    _
  %s8 = ssub.s32 1, %s6
  %s9 = scalar_select 0, %s8, %s6
  $region1: #{tpu_custom_call.1} parent=0
    #allocation5 [shape = 'u8[65536]{0}', space=vmem, size = 0x10000, scoped, tag = 'output window, operand 0']
    #allocation6 [shape = 's32[2]{0}', space=sflag, size = 0x8, scoped, tag = 'scoped memory for tpu_custom_call.1']
    %10 = vsyncpa [#allocation6], 0
    %s11 = scalar_lea.sflag [#allocation6], 1
    %12 = vsyncpa %s11, 0
    loop: start=0, step=1, limit=4
    $region2: #{tpu_custom_call.1} parent=1 // loop_pre_header
      _
    $region3: #{tpu_custom_call.1} parent=1 // loop_header
      %s14 = sphi 0, %s18
      %p15 = scmp.ge.s32.totalorder %s14, 4
      %s24 = sphi 0, %s26
      %s27 = sphi 0, %s24
      %s28 = sphi 0, %s27
      %s44 = sphi 0, %s28
      %s48 = sphi 0, %s48
      %s50 = sphi 0, %s48
      %s51 = sphi 0, %s50
      %s65 = sphi 0, %s51
      %s69 = sphi 0, %s69
      %s71 = sphi 0, %s69
      %s72 = sphi 0, %s71
      %s86 = sphi 0, %s72
      %s90 = sphi 0, %s90
      %s92 = sphi 0, %s90
      %s93 = sphi 0, %s92
      %s107 = sphi 0, %s93
      %s111 = sphi 0, %s111
      %s113 = sphi 0, %s111
      %s114 = sphi 0, %s113
      %s128 = sphi 0, %s114
      %s134 = sphi 0, %s136
      %s137 = sphi 0, %s134
      %s138 = sphi 0, %s137
      %s154 = sphi 0, %s138
    $region4: #{tpu_custom_call.1} parent=1 // loop_header_branch
      %17 = sbr.rel (%p15) target = $region8
    $region5: #{tpu_custom_call.1} parent=1 // loop_body
      %s19 = ssub.s32 %s14, 1
      %s20 = ssub.s32 %s14, 2
      %s21 = sadd.s32 %s14, 1
      %s22 = ssub.s32 %s14, %s21
      %p23 = scmp.eq.s32.totalorder %s22, 0
      %s25 = sadd.s32 %s24, 1
      %s26 = scalar_select %p23, %s24, %s25
      %p29 = pneg %p23
      %p30 = scmp.eq.s32.totalorder %s14, 1
      %p31 = por %p29, %p30
      %p32 = scmp.ne.s32.totalorder %s24, %s27
      %p33 = scmp.eq.s32.totalorder %s14, 0
      %p34 = por %p32, %p33
      %p35 = scmp.ne.s32.totalorder %s24, %s27
      %p36 = scmp.eq.s32.totalorder %s19, 1
      %p37 = por %p35, %p36
      %p38 = scmp.ne.s32.totalorder %s27, %s28
      %p39 = scmp.eq.s32.totalorder %s19, 0
      %p40 = por %p38, %p39
      %p41 = scmp.ne.s32.totalorder %s27, %s28
      %p42 = scmp.eq.s32.totalorder %s20, 1
      %p43 = por %p41, %p42
      %p45 = scmp.ne.s32.totalorder %s28, %s44
      %p46 = scmp.eq.s32.totalorder %s20, 0
      %p47 = por %p45, %p46
      %s49 = sadd.s32 %s48, 1
      %p52 = scmp.eq.s32.totalorder %s14, 1
      %p53 = scmp.ne.s32.totalorder %s48, %s50
      %p54 = scmp.eq.s32.totalorder %s14, 0
      %p55 = por %p53, %p54
      %p56 = scmp.ne.s32.totalorder %s48, %s50
      %p57 = scmp.eq.s32.totalorder %s19, 1
      %p58 = por %p56, %p57
      %p59 = scmp.ne.s32.totalorder %s50, %s51
      %p60 = scmp.eq.s32.totalorder %s19, 0
      %p61 = por %p59, %p60
      %p62 = scmp.ne.s32.totalorder %s50, %s51
      %p63 = scmp.eq.s32.totalorder %s20, 1
      %p64 = por %p62, %p63
      %p66 = scmp.ne.s32.totalorder %s51, %s65
      %p67 = scmp.eq.s32.totalorder %s20, 0
      %p68 = por %p66, %p67
      %s70 = sadd.s32 %s69, 1
      %p73 = scmp.eq.s32.totalorder %s14, 1
      %p74 = scmp.ne.s32.totalorder %s69, %s71
      %p75 = scmp.eq.s32.totalorder %s14, 0
      %p76 = por %p74, %p75
      %p77 = scmp.ne.s32.totalorder %s69, %s71
      %p78 = scmp.eq.s32.totalorder %s19, 1
      %p79 = por %p77, %p78
      %p80 = scmp.ne.s32.totalorder %s71, %s72
      %p81 = scmp.eq.s32.totalorder %s19, 0
      %p82 = por %p80, %p81
      %p83 = scmp.ne.s32.totalorder %s71, %s72
      %p84 = scmp.eq.s32.totalorder %s20, 1
      %p85 = por %p83, %p84
      %p87 = scmp.ne.s32.totalorder %s72, %s86
      %p88 = scmp.eq.s32.totalorder %s20, 0
      %p89 = por %p87, %p88
      %s91 = sadd.s32 %s90, 1
      %p94 = scmp.eq.s32.totalorder %s14, 1
      %p95 = scmp.ne.s32.totalorder %s90, %s92
      %p96 = scmp.eq.s32.totalorder %s14, 0
      %p97 = por %p95, %p96
      %p98 = scmp.ne.s32.totalorder %s90, %s92
      %p99 = scmp.eq.s32.totalorder %s19, 1
      %p100 = por %p98, %p99
      %p101 = scmp.ne.s32.totalorder %s92, %s93
      %p102 = scmp.eq.s32.totalorder %s19, 0
      %p103 = por %p101, %p102
      %p104 = scmp.ne.s32.totalorder %s92, %s93
      %p105 = scmp.eq.s32.totalorder %s20, 1
      %p106 = por %p104, %p105
      %p108 = scmp.ne.s32.totalorder %s93, %s107
      %p109 = scmp.eq.s32.totalorder %s20, 0
      %p110 = por %p108, %p109
      %s112 = sadd.s32 %s111, 1
      %p115 = scmp.eq.s32.totalorder %s14, 1
      %p116 = scmp.ne.s32.totalorder %s111, %s113
      %p117 = scmp.eq.s32.totalorder %s14, 0
      %p118 = por %p116, %p117
      %p119 = scmp.ne.s32.totalorder %s111, %s113
      %p120 = scmp.eq.s32.totalorder %s19, 1
      %p121 = por %p119, %p120
      %p122 = scmp.ne.s32.totalorder %s113, %s114
      %p123 = scmp.eq.s32.totalorder %s19, 0
      %p124 = por %p122, %p123
      %p125 = scmp.ne.s32.totalorder %s113, %s114
      %p126 = scmp.eq.s32.totalorder %s20, 1
      %p127 = por %p125, %p126
      %p129 = scmp.ne.s32.totalorder %s114, %s128
      %p130 = scmp.eq.s32.totalorder %s20, 0
      %p131 = por %p129, %p130
      %s132 = ssub.s32 %s14, %s21
      %p133 = scmp.eq.s32.totalorder %s132, 0
      %s135 = sadd.s32 %s134, 1
      %s136 = scalar_select %p133, %s134, %s135
      %p139 = pneg %p133
      %p140 = scmp.eq.s32.totalorder %s14, 1
      %p141 = por %p139, %p140
      %p142 = scmp.ne.s32.totalorder %s134, %s137
      %p143 = scmp.eq.s32.totalorder %s14, 0
      %p144 = por %p142, %p143
      %p145 = scmp.ne.s32.totalorder %s134, %s137
      %p146 = scmp.eq.s32.totalorder %s19, 1
      %p147 = por %p145, %p146
      %p148 = scmp.ne.s32.totalorder %s137, %s138
      %p149 = scmp.eq.s32.totalorder %s19, 0
      %p150 = por %p148, %p149
      %p151 = scmp.ne.s32.totalorder %s137, %s138
      %p152 = scmp.eq.s32.totalorder %s20, 1
      %p153 = por %p151, %p152
      %p155 = scmp.ne.s32.totalorder %s138, %s154
      %p156 = scmp.eq.s32.totalorder %s20, 0
      %p157 = por %p155, %p156
      %p158 = scmp.le.s32.totalorder 1, %s14
      %p159 = scmp.lt.s32.totalorder %s14, 3
      %p160 = pnand %p158, %p159
      %p161 = pneg %p160
      // Predicated region
      $region9: #{tpu_custom_call.1} parent=5 // pred_check
        _
      $region10: #{tpu_custom_call.1} parent=5 // pred_check_branch
        %163 = sbr.rel (%p160) target = $region12
      $region11: #{tpu_custom_call.1} parent=5 // pred_region
        %s164 = ssub.s32 %s14, 1
        // Predicated region
        $region13: #{tpu_custom_call.1} parent=11 // pred_check
          %p165 = pneg %p61
        $region14: #{tpu_custom_call.1} parent=11 // pred_check_branch
          %167 = sbr.rel (%p165) target = $region16
        $region15: #{tpu_custom_call.1} parent=11 // pred_region
          _
        $region16: #{tpu_custom_call.1} parent=11 // pred_fallthru
          _
        // Predicated region
        $region17: #{tpu_custom_call.1} parent=11 // pred_check
          %p168 = pneg %p82
        $region18: #{tpu_custom_call.1} parent=11 // pred_check_branch
          %170 = sbr.rel (%p168) target = $region20
        $region19: #{tpu_custom_call.1} parent=11 // pred_region
          _
        $region20: #{tpu_custom_call.1} parent=11 // pred_fallthru
          _
        // Predicated region
        $region21: #{tpu_custom_call.1} parent=11 // pred_check
          %p171 = pneg %p103
        $region22: #{tpu_custom_call.1} parent=11 // pred_check_branch
          %173 = sbr.rel (%p171) target = $region24
        $region23: #{tpu_custom_call.1} parent=11 // pred_region
          _
        $region24: #{tpu_custom_call.1} parent=11 // pred_fallthru
          _
        // Predicated region
        $region25: #{tpu_custom_call.1} parent=11 // pred_check
          %p174 = pneg %p124
        $region26: #{tpu_custom_call.1} parent=11 // pred_check_branch
          %176 = sbr.rel (%p174) target = $region28
        $region27: #{tpu_custom_call.1} parent=11 // pred_region
          _
        $region28: #{tpu_custom_call.1} parent=11 // pred_fallthru
          _
      $region12: #{tpu_custom_call.1} parent=5 // pred_fallthru
        _
      %p177 = scmp.lt.s32.totalorder %s14, 2
      // Predicated region
      $region29: #{tpu_custom_call.1} parent=5 // pred_check
        %p178 = pneg %p177
      $region30: #{tpu_custom_call.1} parent=5 // pred_check_branch
        %180 = sbr.rel (%p178) target = $region32
      $region31: #{tpu_custom_call.1} parent=5 // pred_region
        // Predicated region
        $region33: #{tpu_custom_call.1} parent=31 // pred_check
          %p181 = pneg %p34
        $region34: #{tpu_custom_call.1} parent=31 // pred_check_branch
          %183 = sbr.rel (%p181) target = $region36
        $region35: #{tpu_custom_call.1} parent=31 // pred_region
          %p184 = scmp.lt.s32.totalorder %s14, 1
          %s185 = scalar_select %p184, %s14, 1
          %s186 = smul.addr %s185, 32
          %s187 = smul.addr %s186, 8
          %s188 = scalar_lea.vmem %s0, %s187
        $region36: #{tpu_custom_call.1} parent=31 // pred_fallthru
          _
      $region32: #{tpu_custom_call.1} parent=5 // pred_fallthru
        _
      %p189 = scmp.le.s32.totalorder 1, %s14
      %p190 = scmp.lt.s32.totalorder %s14, 3
      %p191 = pnand %p189, %p190
      %p192 = pneg %p191
      // Predicated region
      $region37: #{tpu_custom_call.1} parent=5 // pred_check
        _
      $region38: #{tpu_custom_call.1} parent=5 // pred_check_branch
        %194 = sbr.rel (%p191) target = $region40
      $region39: #{tpu_custom_call.1} parent=5 // pred_region
        %s195 = ssub.s32 %s14, 1
        %p196 = scmp.lt.s32.totalorder %s19, 1
        %s197 = scalar_select %p196, %s19, 1
        %s198 = smul.addr %s197, 32
        %s199 = smul.addr %s198, 8
        %s200 = scalar_lea.vmem %s0, %s199
        %p201 = pneg %p40
        %p202 = pneg %p37
        %p203 = pneg %p61
        %p204 = pneg %p58
        %p205 = pneg %p82
        %p206 = pneg %p79
        %p207 = pneg %p103
        %p208 = pneg %p100
        %p209 = pneg %p124
        %p210 = pneg %p121
        %p211 = pneg %p150
        %p212 = pneg %p147
        %s213 = sand.u32 %s137, 1
        %s214 = scalar_lea.sflag [#allocation6], %s213
        %s215 = sand.u32 %s137, 1
        %s216 = smul.addr %s215, 64
        %s217 = scalar_lea.vmem [#allocation5], %s216
        %p218 = scmp.lt.s32.totalorder %s19, 1
        %s219 = scalar_select %p218, %s19, 1
        %s220 = smul.addr %s219, 32
        %s221 = smul.addr %s220, 8
        %s222 = scalar_lea.vmem %s0, %s221
        %v223 = vld [vmem:[%s4] sm:$0x1]
        %v224 = vld [vmem:[%s4 + $0x1] sm:$0x1]
        %v225 = vld [vmem:[%s4 + $0x2] sm:$0x1]
        %v226 = vld [vmem:[%s4 + $0x3] sm:$0x1]
        %v227 = vld [vmem:[%s4 + $0x4] sm:$0x1]
        %v228 = vld [vmem:[%s4 + $0x5] sm:$0x1]
        %vm229 = vcmask 31744
        %230 = vst.msk [vmem:[#allocation2] sm:$0xff] %vm229, 0.0
        %231 = vst.msk [vmem:[#allocation2 + $0x8] sm:$0xff] %vm229, 0.0
        %vm232 = vcmask 25600
        %233 = vst.msk [vmem:[#allocation2 + $0x10] sm:$0x3] %vm232, 0.0
        %234 = vst.msk [vmem:[#allocation2 + $0x18] sm:$0xff] %vm229, 0.0
        %235 = vst.msk [vmem:[#allocation2 + $0x20] sm:$0xff] %vm229, 0.0
        %236 = vst.msk [vmem:[#allocation2 + $0x28] sm:$0x3] %vm232, 0.0
        %237 = vst.msk [vmem:[#allocation2 + $0x30] sm:$0xff] %vm229, 0.0
        %238 = vst.msk [vmem:[#allocation2 + $0x38] sm:$0xff] %vm229, 0.0
        %239 = vst.msk [vmem:[#allocation2 + $0x40] sm:$0x3] %vm232, 0.0
        %240 = vst.msk [vmem:[#allocation2 + $0x48] sm:$0xff] %vm229, 0.0
        %241 = vst.msk [vmem:[#allocation2 + $0x50] sm:$0xff] %vm229, 0.0
        %242 = vst.msk [vmem:[#allocation2 + $0x58] sm:$0x3] %vm232, 0.0
        %243 = vst.msk [vmem:[#allocation2 + $0x60] sm:$0xff] %vm229, 0.0
        %244 = vst.msk [vmem:[#allocation2 + $0x68] sm:$0xff] %vm229, 0.0
        %245 = vst.msk [vmem:[#allocation2 + $0x70] sm:$0x3] %vm232, 0.0
        %246 = vst.msk [vmem:[#allocation2 + $0x78] sm:$0xff] %vm229, 0.0
        %247 = vst.msk [vmem:[#allocation2 + $0x80] sm:$0xff] %vm229, 0.0
        %248 = vst.msk [vmem:[#allocation2 + $0x88] sm:$0x3] %vm232, 0.0
        %249 = vst.msk [vmem:[#allocation2 + $0x90] sm:$0xff] %vm229, 0.0
        %250 = vst.msk [vmem:[#allocation2 + $0x98] sm:$0xff] %vm229, 0.0
        %251 = vst.msk [vmem:[#allocation2 + $0xa0] sm:$0x3] %vm232, 0.0
        %252 = vst.msk [vmem:[#allocation2 + $0xa8] sm:$0xff] %vm229, 0.0
        %253 = vst.msk [vmem:[#allocation2 + $0xb0] sm:$0xff] %vm229, 0.0
        %254 = vst.msk [vmem:[#allocation2 + $0xb8] sm:$0x3] %vm232, 0.0
        %255 = vst.msk [vmem:[#allocation2 + $0xc0] sm:$0xff] %vm229, 0.0
        %256 = vst.msk [vmem:[#allocation2 + $0xc8] sm:$0xff] %vm229, 0.0
        %257 = vst.msk [vmem:[#allocation2 + $0xd0] sm:$0x3] %vm232, 0.0
        %258 = vst.msk [vmem:[#allocation2 + $0xd8] sm:$0xff] %vm229, 0.0
        %259 = vst.msk [vmem:[#allocation2 + $0xe0] sm:$0xff] %vm229, 0.0
        %260 = vst.msk [vmem:[#allocation2 + $0xe8] sm:$0x3] %vm232, 0.0
        %261 = vst.msk [vmem:[#allocation2 + $0xf0] sm:$0xff] %vm229, 0.0
        %262 = vst.msk [vmem:[#allocation2 + $0xf8] sm:$0xff] %vm229, 0.0
        %263 = vst.msk [vmem:[#allocation2 + $0x100] sm:$0x3] %vm232, 0.0
        %264 = vst.msk [vmem:[#allocation2 + $0x108] sm:$0xff] %vm229, 0.0
        %265 = vst.msk [vmem:[#allocation2 + $0x110] sm:$0xff] %vm229, 0.0
        %266 = vst.msk [vmem:[#allocation2 + $0x118] sm:$0x3] %vm232, 0.0
        %267 = vst.msk [vmem:[#allocation2 + $0x120] sm:$0xff] %vm229, 0.0
        %268 = vst.msk [vmem:[#allocation2 + $0x128] sm:$0xff] %vm229, 0.0
        %269 = vst.msk [vmem:[#allocation2 + $0x130] sm:$0x3] %vm232, 0.0
        %270 = vst.msk [vmem:[#allocation2 + $0x138] sm:$0xff] %vm229, 0.0
        %271 = vst.msk [vmem:[#allocation2 + $0x140] sm:$0xff] %vm229, 0.0
        %272 = vst.msk [vmem:[#allocation2 + $0x148] sm:$0x3] %vm232, 0.0
        %273 = vst.msk [vmem:[#allocation2 + $0x150] sm:$0xff] %vm229, 0.0
        %274 = vst.msk [vmem:[#allocation2 + $0x158] sm:$0xff] %vm229, 0.0
        %275 = vst.msk [vmem:[#allocation2 + $0x160] sm:$0x3] %vm232, 0.0
        %276 = vst.msk [vmem:[#allocation2 + $0x168] sm:$0xff] %vm229, 0.0
        %277 = vst.msk [vmem:[#allocation2 + $0x170] sm:$0xff] %vm229, 0.0
        %278 = vst.msk [vmem:[#allocation2 + $0x178] sm:$0x3] %vm232, 0.0
        %279 = vst.msk [vmem:[#allocation2 + $0x180] sm:$0xff] %vm229, 0.0
        %280 = vst.msk [vmem:[#allocation2 + $0x188] sm:$0xff] %vm229, 0.0
        %281 = vst.msk [vmem:[#allocation2 + $0x190] sm:$0x3] %vm232, 0.0
        %282 = vst.msk [vmem:[#allocation2 + $0x198] sm:$0xff] %vm229, 0.0
        %283 = vst.msk [vmem:[#allocation2 + $0x1a0] sm:$0xff] %vm229, 0.0
        %284 = vst.msk [vmem:[#allocation2 + $0x1a8] sm:$0x3] %vm232, 0.0
        %v285 = vld [vmem:[%s222] sm:$0xff]
        %v286 = vld [vmem:[%s222 + $0x8] sm:$0xff]
        %v287 = vld [vmem:[%s222 + $0x10] sm:$0xff]
        %v288 = vld [vmem:[%s222 + $0x18] sm:$0xff]
        %v289 = vld [vmem:[%s222 + $0x20] sm:$0xff]
        %v290 = vld [vmem:[%s222 + $0x28] sm:$0xff]
        %v291 = vld [vmem:[%s222 + $0x30] sm:$0xff]
        %v292 = vld [vmem:[%s222 + $0x38] sm:$0xff]
        %v293 = vld [vmem:[%s222 + $0x40] sm:$0xff]
        %v294 = vld [vmem:[%s222 + $0x48] sm:$0xff]
        %v295 = vld [vmem:[%s222 + $0x50] sm:$0xff]
        %v296 = vld [vmem:[%s222 + $0x58] sm:$0xff]
        %v297 = vld [vmem:[%s222 + $0x60] sm:$0xff]
        %v298 = vld [vmem:[%s222 + $0x68] sm:$0xff]
        %v299 = vld [vmem:[%s222 + $0x70] sm:$0xff]
        %v300 = vld [vmem:[%s222 + $0x78] sm:$0xff]
        %v301 = vld [vmem:[%s222 + $0x80] sm:$0xff]
        %v302 = vld [vmem:[%s222 + $0x88] sm:$0xff]
        %v303 = vld [vmem:[%s222 + $0x90] sm:$0xff]
        %v304 = vld [vmem:[%s222 + $0x98] sm:$0xff]
        %v305 = vld [vmem:[%s222 + $0xa0] sm:$0xff]
        %v306 = vld [vmem:[%s222 + $0xa8] sm:$0xff]
        %v307 = vld [vmem:[%s222 + $0xb0] sm:$0xff]
        %v308 = vld [vmem:[%s222 + $0xb8] sm:$0xff]
        %v309 = vld [vmem:[%s222 + $0xc0] sm:$0xff]
        %v310 = vld [vmem:[%s222 + $0xc8] sm:$0xff]
        %v311 = vld [vmem:[%s222 + $0xd0] sm:$0xff]
        %v312 = vld [vmem:[%s222 + $0xd8] sm:$0xff]
        %v313 = vld [vmem:[%s222 + $0xe0] sm:$0xff]
        %v314 = vld [vmem:[%s222 + $0xe8] sm:$0xff]
        %v315 = vld [vmem:[%s222 + $0xf0] sm:$0xff]
        %v316 = vld [vmem:[%s222 + $0xf8] sm:$0xff]
        %s317 = scalar_lea.vmem [#allocation2], 24
        %318 = vst.msk [vmem:[%s317 + $0x1] sm:$0xff] %vm229, %v285
        %319 = vst.msk [vmem:[%s317 + $0x9] sm:$0xff] %vm229, %v286
        %320 = vst.msk [vmem:[%s317 + $0x19] sm:$0xff] %vm229, %v287
        %321 = vst.msk [vmem:[%s317 + $0x21] sm:$0xff] %vm229, %v288
        %322 = vst.msk [vmem:[%s317 + $0x31] sm:$0xff] %vm229, %v289
        %323 = vst.msk [vmem:[%s317 + $0x39] sm:$0xff] %vm229, %v290
        %324 = vst.msk [vmem:[%s317 + $0x49] sm:$0xff] %vm229, %v291
        %325 = vst.msk [vmem:[%s317 + $0x51] sm:$0xff] %vm229, %v292
        %326 = vst.msk [vmem:[%s317 + $0x61] sm:$0xff] %vm229, %v293
        %327 = vst.msk [vmem:[%s317 + $0x69] sm:$0xff] %vm229, %v294
        %328 = vst.msk [vmem:[%s317 + $0x79] sm:$0xff] %vm229, %v295
        %329 = vst.msk [vmem:[%s317 + $0x81] sm:$0xff] %vm229, %v296
        %330 = vst.msk [vmem:[%s317 + $0x91] sm:$0xff] %vm229, %v297
        %331 = vst.msk [vmem:[%s317 + $0x99] sm:$0xff] %vm229, %v298
        %332 = vst.msk [vmem:[%s317 + $0xa9] sm:$0xff] %vm229, %v299
        %333 = vst.msk [vmem:[%s317 + $0xb1] sm:$0xff] %vm229, %v300
        %334 = vst.msk [vmem:[%s317 + $0xc1] sm:$0xff] %vm229, %v301
        %335 = vst.msk [vmem:[%s317 + $0xc9] sm:$0xff] %vm229, %v302
        %336 = vst.msk [vmem:[%s317 + $0xd9] sm:$0xff] %vm229, %v303
        %337 = vst.msk [vmem:[%s317 + $0xe1] sm:$0xff] %vm229, %v304
        %338 = vst.msk [vmem:[%s317 + $0xf1] sm:$0xff] %vm229, %v305
        %339 = vst.msk [vmem:[%s317 + $0xf9] sm:$0xff] %vm229, %v306
        %340 = vst.msk [vmem:[%s317 + $0x109] sm:$0xff] %vm229, %v307
        %341 = vst.msk [vmem:[%s317 + $0x111] sm:$0xff] %vm229, %v308
        %342 = vst.msk [vmem:[%s317 + $0x121] sm:$0xff] %vm229, %v309
        %343 = vst.msk [vmem:[%s317 + $0x129] sm:$0xff] %vm229, %v310
        %344 = vst.msk [vmem:[%s317 + $0x139] sm:$0xff] %vm229, %v311
        %345 = vst.msk [vmem:[%s317 + $0x141] sm:$0xff] %vm229, %v312
        %346 = vst.msk [vmem:[%s317 + $0x151] sm:$0xff] %vm229, %v313
        %347 = vst.msk [vmem:[%s317 + $0x159] sm:$0xff] %vm229, %v314
        %348 = vst.msk [vmem:[%s317 + $0x169] sm:$0xff] %vm229, %v315
        %349 = vst.msk [vmem:[%s317 + $0x171] sm:$0xff] %vm229, %v316
        %v350 = vld [vmem:[#allocation2] sm:$0xff]
        %v351 = vld [vmem:[#allocation2 + $0x8] sm:$0xff]
        %v352 = vld [vmem:[#allocation2 + $0x18] sm:$0xff]
        %v353 = vld [vmem:[#allocation2 + $0x20] sm:$0xff]
        %v354 = vld [vmem:[#allocation2 + $0x30] sm:$0xff]
        %v355 = vld [vmem:[#allocation2 + $0x38] sm:$0xff]
        %v356 = vld [vmem:[#allocation2 + $0x48] sm:$0xff]
        %v357 = vld [vmem:[#allocation2 + $0x50] sm:$0xff]
        %v358 = vld [vmem:[#allocation2 + $0x60] sm:$0xff]
        %v359 = vld [vmem:[#allocation2 + $0x68] sm:$0xff]
        %v360 = vld [vmem:[#allocation2 + $0x78] sm:$0xff]
        %v361 = vld [vmem:[#allocation2 + $0x80] sm:$0xff]
        %v362 = vld [vmem:[#allocation2 + $0x90] sm:$0xff]
        %v363 = vld [vmem:[#allocation2 + $0x98] sm:$0xff]
        %v364 = vld [vmem:[#allocation2 + $0xa8] sm:$0xff]
        %v365 = vld [vmem:[#allocation2 + $0xb0] sm:$0xff]
        %v366 = vld [vmem:[#allocation2 + $0xc0] sm:$0xff]
        %v367 = vld [vmem:[#allocation2 + $0xc8] sm:$0xff]
        %v368 = vld [vmem:[#allocation2 + $0xd8] sm:$0xff]
        %v369 = vld [vmem:[#allocation2 + $0xe0] sm:$0xff]
        %v370 = vld [vmem:[#allocation2 + $0xf0] sm:$0xff]
        %v371 = vld [vmem:[#allocation2 + $0xf8] sm:$0xff]
        %v372 = vld [vmem:[#allocation2 + $0x108] sm:$0xff]
        %v373 = vld [vmem:[#allocation2 + $0x110] sm:$0xff]
        %v374 = vld [vmem:[#allocation2 + $0x120] sm:$0xff]
        %v375 = vld [vmem:[#allocation2 + $0x128] sm:$0xff]
        %v376 = vld [vmem:[#allocation2 + $0x138] sm:$0xff]
        %v377 = vld [vmem:[#allocation2 + $0x140] sm:$0xff]
        %v378 = vld [vmem:[#allocation2 + $0x150] sm:$0xff]
        %v379 = vld [vmem:[#allocation2 + $0x158] sm:$0xff]
        %v380 = vld [vmem:[#allocation2 + $0x168] sm:$0xff]
        %v381 = vld [vmem:[#allocation2 + $0x170] sm:$0xff]
        %v382 = vld [vmem:[%s1] sm:$0xf]
        %v383 = vld [vmem:[#allocation2 + $0x1] sm:$0xff]
        %v384 = vld [vmem:[#allocation2 + $0x9] sm:$0xff]
        %v385 = vld [vmem:[#allocation2 + $0x19] sm:$0xff]
        %v386 = vld [vmem:[#allocation2 + $0x21] sm:$0xff]
        %v387 = vld [vmem:[#allocation2 + $0x31] sm:$0xff]
        %v388 = vld [vmem:[#allocation2 + $0x39] sm:$0xff]
        %v389 = vld [vmem:[#allocation2 + $0x49] sm:$0xff]
        %v390 = vld [vmem:[#allocation2 + $0x51] sm:$0xff]
        %v391 = vld [vmem:[#allocation2 + $0x61] sm:$0xff]
        %v392 = vld [vmem:[#allocation2 + $0x69] sm:$0xff]
        %v393 = vld [vmem:[#allocation2 + $0x79] sm:$0xff]
        %v394 = vld [vmem:[#allocation2 + $0x81] sm:$0xff]
        %v395 = vld [vmem:[#allocation2 + $0x91] sm:$0xff]
        %v396 = vld [vmem:[#allocation2 + $0x99] sm:$0xff]
        %v397 = vld [vmem:[#allocation2 + $0xa9] sm:$0xff]
        %v398 = vld [vmem:[#allocation2 + $0xb1] sm:$0xff]
        %v399 = vld [vmem:[#allocation2 + $0xc1] sm:$0xff]
        %v400 = vld [vmem:[#allocation2 + $0xc9] sm:$0xff]
        %v401 = vld [vmem:[#allocation2 + $0xd9] sm:$0xff]
        %v402 = vld [vmem:[#allocation2 + $0xe1] sm:$0xff]
        %v403 = vld [vmem:[#allocation2 + $0xf1] sm:$0xff]
        %v404 = vld [vmem:[#allocation2 + $0xf9] sm:$0xff]
        %v405 = vld [vmem:[#allocation2 + $0x109] sm:$0xff]
        %v406 = vld [vmem:[#allocation2 + $0x111] sm:$0xff]
        %v407 = vld [vmem:[#allocation2 + $0x121] sm:$0xff]
        %v408 = vld [vmem:[#allocation2 + $0x129] sm:$0xff]
        %v409 = vld [vmem:[#allocation2 + $0x139] sm:$0xff]
        %v410 = vld [vmem:[#allocation2 + $0x141] sm:$0xff]
        %v411 = vld [vmem:[#allocation2 + $0x151] sm:$0xff]
        %v412 = vld [vmem:[#allocation2 + $0x159] sm:$0xff]
        %v413 = vld [vmem:[#allocation2 + $0x169] sm:$0xff]
        %v414 = vld [vmem:[#allocation2 + $0x171] sm:$0xff]
        %s415 = scalar_lea.vmem %s1, 4
        %v416 = vld [vmem:[%s415] sm:$0xf]
        %v418 = vsel %vm229, %v383, 0
        %v421 = vsel %vm229, %v384, 0
        %v424 = vsel %vm229, %v385, 0
        %v427 = vsel %vm229, %v386, 0
        %v430 = vsel %vm229, %v387, 0
        %v433 = vsel %vm229, %v388, 0
        %v436 = vsel %vm229, %v389, 0
        %v439 = vsel %vm229, %v390, 0
        %v442 = vsel %vm229, %v391, 0
        %v445 = vsel %vm229, %v392, 0
        %v448 = vsel %vm229, %v393, 0
        %v451 = vsel %vm229, %v394, 0
        %v454 = vsel %vm229, %v395, 0
        %v457 = vsel %vm229, %v396, 0
        %v460 = vsel %vm229, %v397, 0
        %v463 = vsel %vm229, %v398, 0
        %v466 = vsel %vm229, %v399, 0
        %v469 = vsel %vm229, %v400, 0
        %v472 = vsel %vm229, %v401, 0
        %v475 = vsel %vm229, %v402, 0
        %v478 = vsel %vm229, %v403, 0
        %v481 = vsel %vm229, %v404, 0
        %v484 = vsel %vm229, %v405, 0
        %v487 = vsel %vm229, %v406, 0
        %v490 = vsel %vm229, %v407, 0
        %v493 = vsel %vm229, %v408, 0
        %v496 = vsel %vm229, %v409, 0
        %v499 = vsel %vm229, %v410, 0
        %v502 = vsel %vm229, %v411, 0
        %v505 = vsel %vm229, %v412, 0
        %v508 = vsel %vm229, %v413, 0
        %v511 = vsel %vm229, %v414, 0
        %vm513 = vcmask 1043456
        %v515 = vsel %vm513, %v416, 0
        %517 = vmatprep.subr.mxu0 0.0
        %518 = vmatpush1.msra.mxu0 %v515
        %519 = vmatprep.subr.mxu0 0.0
        %520 = vmatpush1.msra.mxu0 0.0
        %521 = vmatprep.subr.mxu0 0.0
        %522 = vmatpush1.msra.mxu0 0.0
        %523 = vmatprep.subr.mxu0 0.0
        %524 = vmatpush1.msra.mxu0 0.0
        %525 = vmatprep.subr.mxu0 0.0
        %526 = vmatpush1.msra.mxu0 0.0
        %527 = vmatprep.subr.mxu0 0.0
        %528 = vmatpush1.msra.mxu0 0.0
        %529 = vmatprep.subr.mxu0 0.0
        %530 = vmatpush1.msra.mxu0 0.0
        %531 = vmatprep.subr.mxu0 0.0
        %532 = vmatpush1.msra.mxu0 0.0
        %533 = vmatprep.subr.mxu0 0.0
        %534 = vmatpush1.msra.mxu0 0.0
        %535 = vmatprep.subr.mxu0 0.0
        %536 = vmatpush1.msra.mxu0 0.0
        %537 = vmatprep.subr.mxu0 0.0
        %538 = vmatpush1.msra.mxu0 0.0
        %539 = vmatprep.subr.mxu0 0.0
        %540 = vmatpush1.msra.mxu0 0.0
        %541 = vmatprep.subr.mxu0 0.0
        %542 = vmatpush1.msra.mxu0 0.0
        %543 = vmatprep.subr.mxu0 0.0
        %544 = vmatpush1.msra.mxu0 0.0
        %545 = vmatprep.subr.mxu0 0.0
        %546 = vmatpush1.msra.mxu0 0.0
        %547 = vmatprep.subr.mxu0 0.0
        %548 = vmatpush1.msra.mxu0 0.0
        %549 = vmatprep.subr.mxu0 0.0
        %550 = vmatpush1.msra.mxu0 0.0
        %551 = vmatprep.subr.mxu0 0.0
        %552 = vmatpush1.msra.mxu0 0.0
        %553 = vmatprep.subr.mxu0 0.0
        %554 = vmatpush1.msra.mxu0 0.0
        %555 = vmatprep.subr.mxu0 0.0
        %556 = vmatpush1.msra.mxu0 0.0
        %557 = vmatprep.subr.mxu0 0.0
        %558 = vmatpush1.msra.mxu0 0.0
        %559 = vmatprep.subr.mxu0 0.0
        %560 = vmatpush1.msra.mxu0 0.0
        %561 = vmatprep.subr.mxu0 0.0
        %562 = vmatpush1.msra.mxu0 0.0
        %563 = vmatprep.subr.mxu0 0.0
        %564 = vmatpush1.msra.mxu0 0.0
        %565 = vmatprep.subr.mxu0 0.0
        %566 = vmatpush1.msra.mxu0 0.0
        %567 = vmatprep.subr.mxu0 0.0
        %568 = vmatpush1.msra.mxu0 0.0
        %569 = vmatprep.subr.mxu0 0.0
        %570 = vmatpush1.msra.mxu0 0.0
        %571 = vmatprep.subr.mxu0 0.0
        %572 = vmatpush1.msra.mxu0 0.0
        %573 = vmatprep.subr.mxu0 0.0
        %574 = vmatpush1.msra.mxu0 0.0
        %575 = vmatprep.subr.mxu0 0.0
        %576 = vmatpush1.msra.mxu0 0.0
        %577 = vmatprep.subr.mxu0 0.0
        %578 = vmatpush1.msra.mxu0 0.0
        %579 = vmatprep.subr.mxu0 0.0
        %580 = vmatpush1.msra.mxu0 0.0
        %581 = vmatprep.mubr.f32.mxu0 0.0
        %582 = vmatmul.mubr.f32.gmra.mrb[0].mxu0 %v418
        %v583 = vpop.f32.mrb[0].mxu0
        %v584 = vadd.f32 0.0, %v583
        %v585 = vpop.f32.mrb[0].mxu0
        %586 = vmatprep.mubr.f32.mxu0 0.0
        %587 = vmatmul.mubr.f32.gmra.mrb[0].mxu0 %v421
        %v588 = vpop.f32.mrb[0].mxu0
        %v589 = vadd.f32 0.0, %v588
        %v590 = vpop.f32.mrb[0].mxu0
        %591 = vmatprep.mubr.f32.mxu0 0.0
        %592 = vmatmul.mubr.f32.gmra.mrb[0].mxu0 %v424
        %v593 = vpop.f32.mrb[0].mxu0
        %v594 = vadd.f32 0.0, %v593
        %v595 = vpop.f32.mrb[0].mxu0
        %596 = vmatprep.mubr.f32.mxu0 0.0
        %597 = vmatmul.mubr.f32.gmra.mrb[0].mxu0 %v427
        %v598 = vpop.f32.mrb[0].mxu0
        %v599 = vadd.f32 0.0, %v598
        %v600 = vpop.f32.mrb[0].mxu0
        %601 = vmatprep.mubr.f32.mxu0 0.0
        %602 = vmatmul.mubr.f32.gmra.mrb[0].mxu0 %v430
        %v603 = vpop.f32.mrb[0].mxu0
        %v604 = vadd.f32 0.0, %v603
        %v605 = vpop.f32.mrb[0].mxu0
        %606 = vmatprep.mubr.f32.mxu0 0.0
        %607 = vmatmul.mubr.f32.gmra.mrb[0].mxu0 %v433
        %v608 = vpop.f32.mrb[0].mxu0
        %v609 = vadd.f32 0.0, %v608
        %v610 = vpop.f32.mrb[0].mxu0
        %611 = vmatprep.mubr.f32.mxu0 0.0
        %612 = vmatmul.mubr.f32.gmra.mrb[0].mxu0 %v436
        %v613 = vpop.f32.mrb[0].mxu0
        %v614 = vadd.f32 0.0, %v613
        %v615 = vpop.f32.mrb[0].mxu0
        %616 = vmatprep.mubr.f32.mxu0 0.0
        %617 = vmatmul.mubr.f32.gmra.mrb[0].mxu0 %v439
        %v618 = vpop.f32.mrb[0].mxu0
        %v619 = vadd.f32 0.0, %v618
        %v620 = vpop.f32.mrb[0].mxu0
        %621 = vmatprep.mubr.f32.mxu0 0.0
        %622 = vmatmul.mubr.f32.gmra.mrb[0].mxu0 %v442
        %v623 = vpop.f32.mrb[0].mxu0
        %v624 = vadd.f32 0.0, %v623
        %v625 = vpop.f32.mrb[0].mxu0
        %626 = vmatprep.mubr.f32.mxu0 0.0
        %627 = vmatmul.mubr.f32.gmra.mrb[0].mxu0 %v445
        %v628 = vpop.f32.mrb[0].mxu0
        %v629 = vadd.f32 0.0, %v628
        %v630 = vpop.f32.mrb[0].mxu0
        %631 = vmatprep.mubr.f32.mxu0 0.0
        %632 = vmatmul.mubr.f32.gmra.mrb[0].mxu0 %v448
        %v633 = vpop.f32.mrb[0].mxu0
        %v634 = vadd.f32 0.0, %v633
        %v635 = vpop.f32.mrb[0].mxu0
        %636 = vmatprep.mubr.f32.mxu0 0.0
        %637 = vmatmul.mubr.f32.gmra.mrb[0].mxu0 %v451
        %v638 = vpop.f32.mrb[0].mxu0
        %v639 = vadd.f32 0.0, %v638
        %v640 = vpop.f32.mrb[0].mxu0
        %641 = vmatprep.mubr.f32.mxu0 0.0
        %642 = vmatmul.mubr.f32.gmra.mrb[0].mxu0 %v454
        %v643 = vpop.f32.mrb[0].mxu0
        %v644 = vadd.f32 0.0, %v643
        %v645 = vpop.f32.mrb[0].mxu0
        %646 = vmatprep.mubr.f32.mxu0 0.0
        %647 = vmatmul.mubr.f32.gmra.mrb[0].mxu0 %v457
        %v648 = vpop.f32.mrb[0].mxu0
        %v649 = vadd.f32 0.0, %v648
        %v650 = vpop.f32.mrb[0].mxu0
        %651 = vmatprep.mubr.f32.mxu0 0.0
        %652 = vmatmul.mubr.f32.gmra.mrb[0].mxu0 %v460
        %v653 = vpop.f32.mrb[0].mxu0
        %v654 = vadd.f32 0.0, %v653
        %v655 = vpop.f32.mrb[0].mxu0
        %656 = vmatprep.mubr.f32.mxu0 0.0
        %657 = vmatmul.mubr.f32.gmra.mrb[0].mxu0 %v463
        %v658 = vpop.f32.mrb[0].mxu0
        %v659 = vadd.f32 0.0, %v658
        %v660 = vpop.f32.mrb[0].mxu0
        %661 = vmatprep.mubr.f32.mxu0 0.0
        %662 = vmatmul.mubr.f32.gmra.mrb[0].mxu0 %v466
        %v663 = vpop.f32.mrb[0].mxu0
        %v664 = vadd.f32 0.0, %v663
        %v665 = vpop.f32.mrb[0].mxu0
        %666 = vmatprep.mubr.f32.mxu0 0.0
        %667 = vmatmul.mubr.f32.gmra.mrb[0].mxu0 %v469
        %v668 = vpop.f32.mrb[0].mxu0
        %v669 = vadd.f32 0.0, %v668
        %v670 = vpop.f32.mrb[0].mxu0
        %671 = vmatprep.mubr.f32.mxu0 0.0
        %672 = vmatmul.mubr.f32.gmra.mrb[0].mxu0 %v472
        %v673 = vpop.f32.mrb[0].mxu0
        %v674 = vadd.f32 0.0, %v673
        %v675 = vpop.f32.mrb[0].mxu0
        %676 = vmatprep.mubr.f32.mxu0 0.0
        %677 = vmatmul.mubr.f32.gmra.mrb[0].mxu0 %v475
        %v678 = vpop.f32.mrb[0].mxu0
        %v679 = vadd.f32 0.0, %v678
        %v680 = vpop.f32.mrb[0].mxu0
        %681 = vmatprep.mubr.f32.mxu0 0.0
        %682 = vmatmul.mubr.f32.gmra.mrb[0].mxu0 %v478
        %v683 = vpop.f32.mrb[0].mxu0
        %v684 = vadd.f32 0.0, %v683
        %v685 = vpop.f32.mrb[0].mxu0
        %686 = vmatprep.mubr.f32.mxu0 0.0
        %687 = vmatmul.mubr.f32.gmra.mrb[0].mxu0 %v481
        %v688 = vpop.f32.mrb[0].mxu0
        %v689 = vadd.f32 0.0, %v688
        %v690 = vpop.f32.mrb[0].mxu0
        %691 = vmatprep.mubr.f32.mxu0 0.0
        %692 = vmatmul.mubr.f32.gmra.mrb[0].mxu0 %v484
        %v693 = vpop.f32.mrb[0].mxu0
        %v694 = vadd.f32 0.0, %v693
        %v695 = vpop.f32.mrb[0].mxu0
        %696 = vmatprep.mubr.f32.mxu0 0.0
        %697 = vmatmul.mubr.f32.gmra.mrb[0].mxu0 %v487
        %v698 = vpop.f32.mrb[0].mxu0
        %v699 = vadd.f32 0.0, %v698
        %v700 = vpop.f32.mrb[0].mxu0
        %701 = vmatprep.mubr.f32.mxu0 0.0
        %702 = vmatmul.mubr.f32.gmra.mrb[0].mxu0 %v490
        %v703 = vpop.f32.mrb[0].mxu0
        %v704 = vadd.f32 0.0, %v703
        %v705 = vpop.f32.mrb[0].mxu0
        %706 = vmatprep.mubr.f32.mxu0 0.0
        %707 = vmatmul.mubr.f32.gmra.mrb[0].mxu0 %v493
        %v708 = vpop.f32.mrb[0].mxu0
        %v709 = vadd.f32 0.0, %v708
        %v710 = vpop.f32.mrb[0].mxu0
        %711 = vmatprep.mubr.f32.mxu0 0.0
        %712 = vmatmul.mubr.f32.gmra.mrb[0].mxu0 %v496
        %v713 = vpop.f32.mrb[0].mxu0
        %v714 = vadd.f32 0.0, %v713
        %v715 = vpop.f32.mrb[0].mxu0
        %716 = vmatprep.mubr.f32.mxu0 0.0
        %717 = vmatmul.mubr.f32.gmra.mrb[0].mxu0 %v499
        %v718 = vpop.f32.mrb[0].mxu0
        %v719 = vadd.f32 0.0, %v718
        %v720 = vpop.f32.mrb[0].mxu0
        %721 = vmatprep.mubr.f32.mxu0 0.0
        %722 = vmatmul.mubr.f32.gmra.mrb[0].mxu0 %v502
        %v723 = vpop.f32.mrb[0].mxu0
        %v724 = vadd.f32 0.0, %v723
        %v725 = vpop.f32.mrb[0].mxu0
        %726 = vmatprep.mubr.f32.mxu0 0.0
        %727 = vmatmul.mubr.f32.gmra.mrb[0].mxu0 %v505
        %v728 = vpop.f32.mrb[0].mxu0
        %v729 = vadd.f32 0.0, %v728
        %v730 = vpop.f32.mrb[0].mxu0
        %731 = vmatprep.mubr.f32.mxu0 0.0
        %732 = vmatmul.mubr.f32.gmra.mrb[0].mxu0 %v508
        %v733 = vpop.f32.mrb[0].mxu0
        %v734 = vadd.f32 0.0, %v733
        %v735 = vpop.f32.mrb[0].mxu0
        %736 = vmatprep.mubr.f32.mxu0 0.0
        %737 = vmatmul.mubr.f32.gmra.mrb[0].mxu0 %v511
        %v738 = vpop.f32.mrb[0].mxu0
        %v739 = vadd.f32 0.0, %v738
        %v740 = vpop.f32.mrb[0].mxu0
        %741 = vdwg.mxu0
        %v743 = vsel %vm229, %v350, 0
        %v746 = vsel %vm229, %v351, 0
        %v749 = vsel %vm229, %v352, 0
        %v752 = vsel %vm229, %v353, 0
        %v755 = vsel %vm229, %v354, 0
        %v758 = vsel %vm229, %v355, 0
        %v761 = vsel %vm229, %v356, 0
        %v764 = vsel %vm229, %v357, 0
        %v767 = vsel %vm229, %v358, 0
        %v770 = vsel %vm229, %v359, 0
        %v773 = vsel %vm229, %v360, 0
        %v776 = vsel %vm229, %v361, 0
        %v779 = vsel %vm229, %v362, 0
        %v782 = vsel %vm229, %v363, 0
        %v785 = vsel %vm229, %v364, 0
        %v788 = vsel %vm229, %v365, 0
        %v791 = vsel %vm229, %v366, 0
        %v794 = vsel %vm229, %v367, 0
        %v797 = vsel %vm229, %v368, 0
        %v800 = vsel %vm229, %v369, 0
        %v803 = vsel %vm229, %v370, 0
        %v806 = vsel %vm229, %v371, 0
        %v809 = vsel %vm229, %v372, 0
        %v812 = vsel %vm229, %v373, 0
        %v815 = vsel %vm229, %v374, 0
        %v818 = vsel %vm229, %v375, 0
        %v821 = vsel %vm229, %v376, 0
        %v824 = vsel %vm229, %v377, 0
        %v827 = vsel %vm229, %v378, 0
        %v830 = vsel %vm229, %v379, 0
        %v833 = vsel %vm229, %v380, 0
        %v836 = vsel %vm229, %v381, 0
        %v839 = vsel %vm513, %v382, 0
        %841 = vmatprep.subr.mxu0 0.0
        %842 = vmatpush1.msra.mxu0 %v839
        %843 = vmatprep.subr.mxu0 0.0
        %844 = vmatpush1.msra.mxu0 0.0
        %845 = vmatprep.subr.mxu0 0.0
        %846 = vmatpush1.msra.mxu0 0.0
        %847 = vmatprep.subr.mxu0 0.0
        %848 = vmatpush1.msra.mxu0 0.0
        %849 = vmatprep.subr.mxu0 0.0
        %850 = vmatpush1.msra.mxu0 0.0
        %851 = vmatprep.subr.mxu0 0.0
        %852 = vmatpush1.msra.mxu0 0.0
        %853 = vmatprep.subr.mxu0 0.0
        %854 = vmatpush1.msra.mxu0 0.0
        %855 = vmatprep.subr.mxu0 0.0
        %856 = vmatpush1.msra.mxu0 0.0
        %857 = vmatprep.subr.mxu0 0.0
        %858 = vmatpush1.msra.mxu0 0.0
        %859 = vmatprep.subr.mxu0 0.0
        %860 = vmatpush1.msra.mxu0 0.0
        %861 = vmatprep.subr.mxu0 0.0
        %862 = vmatpush1.msra.mxu0 0.0
        %863 = vmatprep.subr.mxu0 0.0
        %864 = vmatpush1.msra.mxu0 0.0
        %865 = vmatprep.subr.mxu0 0.0
        %866 = vmatpush1.msra.mxu0 0.0
        %867 = vmatprep.subr.mxu0 0.0
        %868 = vmatpush1.msra.mxu0 0.0
        %869 = vmatprep.subr.mxu0 0.0
        %870 = vmatpush1.msra.mxu0 0.0
        %871 = vmatprep.subr.mxu0 0.0
        %872 = vmatpush1.msra.mxu0 0.0
        %873 = vmatprep.subr.mxu0 0.0
        %874 = vmatpush1.msra.mxu0 0.0
        %875 = vmatprep.subr.mxu0 0.0
        %876 = vmatpush1.msra.mxu0 0.0
        %877 = vmatprep.subr.mxu0 0.0
        %878 = vmatpush1.msra.mxu0 0.0
        %879 = vmatprep.subr.mxu0 0.0
        %880 = vmatpush1.msra.mxu0 0.0
        %881 = vmatprep.subr.mxu0 0.0
        %882 = vmatpush1.msra.mxu0 0.0
        %883 = vmatprep.subr.mxu0 0.0
        %884 = vmatpush1.msra.mxu0 0.0
        %885 = vmatprep.subr.mxu0 0.0
        %886 = vmatpush1.msra.mxu0 0.0
        %887 = vmatprep.subr.mxu0 0.0
        %888 = vmatpush1.msra.mxu0 0.0
        %889 = vmatprep.subr.mxu0 0.0
        %890 = vmatpush1.msra.mxu0 0.0
        %891 = vmatprep.subr.mxu0 0.0
        %892 = vmatpush1.msra.mxu0 0.0
        %893 = vmatprep.subr.mxu0 0.0
        %894 = vmatpush1.msra.mxu0 0.0
        %895 = vmatprep.subr.mxu0 0.0
        %896 = vmatpush1.msra.mxu0 0.0
        %897 = vmatprep.subr.mxu0 0.0
        %898 = vmatpush1.msra.mxu0 0.0
        %899 = vmatprep.subr.mxu0 0.0
        %900 = vmatpush1.msra.mxu0 0.0
        %901 = vmatprep.subr.mxu0 0.0
        %902 = vmatpush1.msra.mxu0 0.0
        %903 = vmatprep.subr.mxu0 0.0
        %904 = vmatpush1.msra.mxu0 0.0
        %905 = vmatprep.mubr.f32.mxu0 0.0
        %906 = vmatmul.mubr.f32.gmra.mrb[0].mxu0 %v743
        %v907 = vpop.f32.mrb[0].mxu0
        %v908 = vadd.f32 %v584, %v907
        %v909 = vpop.f32.mrb[0].mxu0
        %910 = vmatprep.mubr.f32.mxu0 0.0
        %911 = vmatmul.mubr.f32.gmra.mrb[0].mxu0 %v746
        %v912 = vpop.f32.mrb[0].mxu0
        %v913 = vadd.f32 %v589, %v912
        %v914 = vpop.f32.mrb[0].mxu0
        %915 = vmatprep.mubr.f32.mxu0 0.0
        %916 = vmatmul.mubr.f32.gmra.mrb[0].mxu0 %v749
        %v917 = vpop.f32.mrb[0].mxu0
        %v918 = vadd.f32 %v594, %v917
        %v919 = vpop.f32.mrb[0].mxu0
        %920 = vmatprep.mubr.f32.mxu0 0.0
        %921 = vmatmul.mubr.f32.gmra.mrb[0].mxu0 %v752
        %v922 = vpop.f32.mrb[0].mxu0
        %v923 = vadd.f32 %v599, %v922
        %v924 = vpop.f32.mrb[0].mxu0
        %925 = vmatprep.mubr.f32.mxu0 0.0
        %926 = vmatmul.mubr.f32.gmra.mrb[0].mxu0 %v755
        %v927 = vpop.f32.mrb[0].mxu0
        %v928 = vadd.f32 %v604, %v927
        %v929 = vpop.f32.mrb[0].mxu0
        %930 = vmatprep.mubr.f32.mxu0 0.0
        %931 = vmatmul.mubr.f32.gmra.mrb[0].mxu0 %v758
        %v932 = vpop.f32.mrb[0].mxu0
        %v933 = vadd.f32 %v609, %v932
        %v934 = vpop.f32.mrb[0].mxu0
        %935 = vmatprep.mubr.f32.mxu0 0.0
        %936 = vmatmul.mubr.f32.gmra.mrb[0].mxu0 %v761
        %v937 = vpop.f32.mrb[0].mxu0
        %v938 = vadd.f32 %v614, %v937
        %v939 = vpop.f32.mrb[0].mxu0
        %940 = vmatprep.mubr.f32.mxu0 0.0
        %941 = vmatmul.mubr.f32.gmra.mrb[0].mxu0 %v764
        %v942 = vpop.f32.mrb[0].mxu0
        %v943 = vadd.f32 %v619, %v942
        %v944 = vpop.f32.mrb[0].mxu0
        %945 = vmatprep.mubr.f32.mxu0 0.0
        %946 = vmatmul.mubr.f32.gmra.mrb[0].mxu0 %v767
        %v947 = vpop.f32.mrb[0].mxu0
        %v948 = vadd.f32 %v624, %v947
        %v949 = vpop.f32.mrb[0].mxu0
        %950 = vmatprep.mubr.f32.mxu0 0.0
        %951 = vmatmul.mubr.f32.gmra.mrb[0].mxu0 %v770
        %v952 = vpop.f32.mrb[0].mxu0
        %v953 = vadd.f32 %v629, %v952
        %v954 = vpop.f32.mrb[0].mxu0
        %955 = vmatprep.mubr.f32.mxu0 0.0
        %956 = vmatmul.mubr.f32.gmra.mrb[0].mxu0 %v773
        %v957 = vpop.f32.mrb[0].mxu0
        %v958 = vadd.f32 %v634, %v957
        %v959 = vpop.f32.mrb[0].mxu0
        %960 = vmatprep.mubr.f32.mxu0 0.0
        %961 = vmatmul.mubr.f32.gmra.mrb[0].mxu0 %v776
        %v962 = vpop.f32.mrb[0].mxu0
        %v963 = vadd.f32 %v639, %v962
        %v964 = vpop.f32.mrb[0].mxu0
        %965 = vmatprep.mubr.f32.mxu0 0.0
        %966 = vmatmul.mubr.f32.gmra.mrb[0].mxu0 %v779
        %v967 = vpop.f32.mrb[0].mxu0
        %v968 = vadd.f32 %v644, %v967
        %v969 = vpop.f32.mrb[0].mxu0
        %970 = vmatprep.mubr.f32.mxu0 0.0
        %971 = vmatmul.mubr.f32.gmra.mrb[0].mxu0 %v782
        %v972 = vpop.f32.mrb[0].mxu0
        %v973 = vadd.f32 %v649, %v972
        %v974 = vpop.f32.mrb[0].mxu0
        %975 = vmatprep.mubr.f32.mxu0 0.0
        %976 = vmatmul.mubr.f32.gmra.mrb[0].mxu0 %v785
        %v977 = vpop.f32.mrb[0].mxu0
        %v978 = vadd.f32 %v654, %v977
        %v979 = vpop.f32.mrb[0].mxu0
        %980 = vmatprep.mubr.f32.mxu0 0.0
        %981 = vmatmul.mubr.f32.gmra.mrb[0].mxu0 %v788
        %v982 = vpop.f32.mrb[0].mxu0
        %v983 = vadd.f32 %v659, %v982
        %v984 = vpop.f32.mrb[0].mxu0
        %985 = vmatprep.mubr.f32.mxu0 0.0
        %986 = vmatmul.mubr.f32.gmra.mrb[0].mxu0 %v791
        %v987 = vpop.f32.mrb[0].mxu0
        %v988 = vadd.f32 %v664, %v987
        %v989 = vpop.f32.mrb[0].mxu0
        %990 = vmatprep.mubr.f32.mxu0 0.0
        %991 = vmatmul.mubr.f32.gmra.mrb[0].mxu0 %v794
        %v992 = vpop.f32.mrb[0].mxu0
        %v993 = vadd.f32 %v669, %v992
        %v994 = vpop.f32.mrb[0].mxu0
        %995 = vmatprep.mubr.f32.mxu0 0.0
        %996 = vmatmul.mubr.f32.gmra.mrb[0].mxu0 %v797
        %v997 = vpop.f32.mrb[0].mxu0
        %v998 = vadd.f32 %v674, %v997
        %v999 = vpop.f32.mrb[0].mxu0
        %1000 = vmatprep.mubr.f32.mxu0 0.0
        %1001 = vmatmul.mubr.f32.gmra.mrb[0].mxu0 %v800
        %v1002 = vpop.f32.mrb[0].mxu0
        %v1003 = vadd.f32 %v679, %v1002
        %v1004 = vpop.f32.mrb[0].mxu0
        %1005 = vmatprep.mubr.f32.mxu0 0.0
        %1006 = vmatmul.mubr.f32.gmra.mrb[0].mxu0 %v803
        %v1007 = vpop.f32.mrb[0].mxu0
        %v1008 = vadd.f32 %v684, %v1007
        %v1009 = vpop.f32.mrb[0].mxu0
        %1010 = vmatprep.mubr.f32.mxu0 0.0
        %1011 = vmatmul.mubr.f32.gmra.mrb[0].mxu0 %v806
        %v1012 = vpop.f32.mrb[0].mxu0
        %v1013 = vadd.f32 %v689, %v1012
        %v1014 = vpop.f32.mrb[0].mxu0
        %1015 = vmatprep.mubr.f32.mxu0 0.0
        %1016 = vmatmul.mubr.f32.gmra.mrb[0].mxu0 %v809
        %v1017 = vpop.f32.mrb[0].mxu0
        %v1018 = vadd.f32 %v694, %v1017
        %v1019 = vpop.f32.mrb[0].mxu0
        %1020 = vmatprep.mubr.f32.mxu0 0.0
        %1021 = vmatmul.mubr.f32.gmra.mrb[0].mxu0 %v812
        %v1022 = vpop.f32.mrb[0].mxu0
        %v1023 = vadd.f32 %v699, %v1022
        %v1024 = vpop.f32.mrb[0].mxu0
        %1025 = vmatprep.mubr.f32.mxu0 0.0
        %1026 = vmatmul.mubr.f32.gmra.mrb[0].mxu0 %v815
        %v1027 = vpop.f32.mrb[0].mxu0
        %v1028 = vadd.f32 %v704, %v1027
        %v1029 = vpop.f32.mrb[0].mxu0
        %1030 = vmatprep.mubr.f32.mxu0 0.0
        %1031 = vmatmul.mubr.f32.gmra.mrb[0].mxu0 %v818
        %v1032 = vpop.f32.mrb[0].mxu0
        %v1033 = vadd.f32 %v709, %v1032
        %v1034 = vpop.f32.mrb[0].mxu0
        %1035 = vmatprep.mubr.f32.mxu0 0.0
        %1036 = vmatmul.mubr.f32.gmra.mrb[0].mxu0 %v821
        %v1037 = vpop.f32.mrb[0].mxu0
        %v1038 = vadd.f32 %v714, %v1037
        %v1039 = vpop.f32.mrb[0].mxu0
        %1040 = vmatprep.mubr.f32.mxu0 0.0
        %1041 = vmatmul.mubr.f32.gmra.mrb[0].mxu0 %v824
        %v1042 = vpop.f32.mrb[0].mxu0
        %v1043 = vadd.f32 %v719, %v1042
        %v1044 = vpop.f32.mrb[0].mxu0
        %1045 = vmatprep.mubr.f32.mxu0 0.0
        %1046 = vmatmul.mubr.f32.gmra.mrb[0].mxu0 %v827
        %v1047 = vpop.f32.mrb[0].mxu0
        %v1048 = vadd.f32 %v724, %v1047
        %v1049 = vpop.f32.mrb[0].mxu0
        %1050 = vmatprep.mubr.f32.mxu0 0.0
        %1051 = vmatmul.mubr.f32.gmra.mrb[0].mxu0 %v830
        %v1052 = vpop.f32.mrb[0].mxu0
        %v1053 = vadd.f32 %v729, %v1052
        %v1054 = vpop.f32.mrb[0].mxu0
        %1055 = vmatprep.mubr.f32.mxu0 0.0
        %1056 = vmatmul.mubr.f32.gmra.mrb[0].mxu0 %v833
        %v1057 = vpop.f32.mrb[0].mxu0
        %v1058 = vadd.f32 %v734, %v1057
        %v1059 = vpop.f32.mrb[0].mxu0
        %1060 = vmatprep.mubr.f32.mxu0 0.0
        %1061 = vmatmul.mubr.f32.gmra.mrb[0].mxu0 %v836
        %v1062 = vpop.f32.mrb[0].mxu0
        %v1063 = vadd.f32 %v739, %v1062
        %v1064 = vpop.f32.mrb[0].mxu0
        %1065 = vdwg.mxu0
        %v1066 = vld [vmem:[#allocation2 + $0x2] sm:$0xff]
        %v1067 = vld [vmem:[#allocation2 + $0xa] sm:$0xff]
        %v1068 = vld [vmem:[#allocation2 + $0x1a] sm:$0xff]
        %v1069 = vld [vmem:[#allocation2 + $0x22] sm:$0xff]
        %v1070 = vld [vmem:[#allocation2 + $0x32] sm:$0xff]
        %v1071 = vld [vmem:[#allocation2 + $0x3a] sm:$0xff]
        %v1072 = vld [vmem:[#allocation2 + $0x4a] sm:$0xff]
        %v1073 = vld [vmem:[#allocation2 + $0x52] sm:$0xff]
        %v1074 = vld [vmem:[#allocation2 + $0x62] sm:$0xff]
        %v1075 = vld [vmem:[#allocation2 + $0x6a] sm:$0xff]
        %v1076 = vld [vmem:[#allocation2 + $0x7a] sm:$0xff]
        %v1077 = vld [vmem:[#allocation2 + $0x82] sm:$0xff]
        %v1078 = vld [vmem:[#allocation2 + $0x92] sm:$0xff]
        %v1079 = vld [vmem:[#allocation2 + $0x9a] sm:$0xff]
        %v1080 = vld [vmem:[#allocation2 + $0xaa] sm:$0xff]
        %v1081 = vld [vmem:[#allocation2 + $0xb2] sm:$0xff]
        %v1082 = vld [vmem:[#allocation2 + $0xc2] sm:$0xff]
        %v1083 = vld [vmem:[#allocation2 + $0xca] sm:$0xff]
        %v1084 = vld [vmem:[#allocation2 + $0xda] sm:$0xff]
        %v1085 = vld [vmem:[#allocation2 + $0xe2] sm:$0xff]
        %v1086 = vld [vmem:[#allocation2 + $0xf2] sm:$0xff]
        %v1087 = vld [vmem:[#allocation2 + $0xfa] sm:$0xff]
        %v1088 = vld [vmem:[#allocation2 + $0x10a] sm:$0xff]
        %v1089 = vld [vmem:[#allocation2 + $0x112] sm:$0xff]
        %v1090 = vld [vmem:[#allocation2 + $0x122] sm:$0xff]
        %v1091 = vld [vmem:[#allocation2 + $0x12a] sm:$0xff]
        %v1092 = vld [vmem:[#allocation2 + $0x13a] sm:$0xff]
        %v1093 = vld [vmem:[#allocation2 + $0x142] sm:$0xff]
        %v1094 = vld [vmem:[#allocation2 + $0x152] sm:$0xff]
        %v1095 = vld [vmem:[#allocation2 + $0x15a] sm:$0xff]
        %v1096 = vld [vmem:[#allocation2 + $0x16a] sm:$0xff]
        %v1097 = vld [vmem:[#allocation2 + $0x172] sm:$0xff]
        %s1098 = scalar_lea.vmem %s1, 8
        %v1099 = vld [vmem:[%s1098] sm:$0xf]
        %v1101 = vsel %vm229, %v1066, 0
        %v1104 = vsel %vm229, %v1067, 0
        %v1107 = vsel %vm229, %v1068, 0
        %v1110 = vsel %vm229, %v1069, 0
        %v1113 = vsel %vm229, %v1070, 0
        %v1116 = vsel %vm229, %v1071, 0
        %v1119 = vsel %vm229, %v1072, 0
        %v1122 = vsel %vm229, %v1073, 0
        %v1125 = vsel %vm229, %v1074, 0
        %v1128 = vsel %vm229, %v1075, 0
        %v1131 = vsel %vm229, %v1076, 0
        %v1134 = vsel %vm229, %v1077, 0
        %v1137 = vsel %vm229, %v1078, 0
        %v1140 = vsel %vm229, %v1079, 0
        %v1143 = vsel %vm229, %v1080, 0
        %v1146 = vsel %vm229, %v1081, 0
        %v1149 = vsel %vm229, %v1082, 0
        %v1152 = vsel %vm229, %v1083, 0
        %v1155 = vsel %vm229, %v1084, 0
        %v1158 = vsel %vm229, %v1085, 0
        %v1161 = vsel %vm229, %v1086, 0
        %v1164 = vsel %vm229, %v1087, 0
        %v1167 = vsel %vm229, %v1088, 0
        %v1170 = vsel %vm229, %v1089, 0
        %v1173 = vsel %vm229, %v1090, 0
        %v1176 = vsel %vm229, %v1091, 0
        %v1179 = vsel %vm229, %v1092, 0
        %v1182 = vsel %vm229, %v1093, 0
        %v1185 = vsel %vm229, %v1094, 0
        %v1188 = vsel %vm229, %v1095, 0
        %v1191 = vsel %vm229, %v1096, 0
        %v1194 = vsel %vm229, %v1097, 0
        %v1197 = vsel %vm513, %v1099, 0
        %1199 = vmatprep.subr.mxu0 0.0
        %1200 = vmatpush1.msra.mxu0 %v1197
        %1201 = vmatprep.subr.mxu0 0.0
        %1202 = vmatpush1.msra.mxu0 0.0
        %1203 = vmatprep.subr.mxu0 0.0
        %1204 = vmatpush1.msra.mxu0 0.0
        %1205 = vmatprep.subr.mxu0 0.0
        %1206 = vmatpush1.msra.mxu0 0.0
        %1207 = vmatprep.subr.mxu0 0.0
        %1208 = vmatpush1.msra.mxu0 0.0
        %1209 = vmatprep.subr.mxu0 0.0
        %1210 = vmatpush1.msra.mxu0 0.0
        %1211 = vmatprep.subr.mxu0 0.0
        %1212 = vmatpush1.msra.mxu0 0.0
        %1213 = vmatprep.subr.mxu0 0.0
        %1214 = vmatpush1.msra.mxu0 0.0
        %1215 = vmatprep.subr.mxu0 0.0
        %1216 = vmatpush1.msra.mxu0 0.0
        %1217 = vmatprep.subr.mxu0 0.0
        %1218 = vmatpush1.msra.mxu0 0.0
        %1219 = vmatprep.subr.mxu0 0.0
        %1220 = vmatpush1.msra.mxu0 0.0
        %1221 = vmatprep.subr.mxu0 0.0
        %1222 = vmatpush1.msra.mxu0 0.0
        %1223 = vmatprep.subr.mxu0 0.0
        %1224 = vmatpush1.msra.mxu0 0.0
        %1225 = vmatprep.subr.mxu0 0.0
        %1226 = vmatpush1.msra.mxu0 0.0
        %1227 = vmatprep.subr.mxu0 0.0
        %1228 = vmatpush1.msra.mxu0 0.0
        %1229 = vmatprep.subr.mxu0 0.0
        %1230 = vmatpush1.msra.mxu0 0.0
        %1231 = vmatprep.subr.mxu0 0.0
        %1232 = vmatpush1.msra.mxu0 0.0
        %1233 = vmatprep.subr.mxu0 0.0
        %1234 = vmatpush1.msra.mxu0 0.0
        %1235 = vmatprep.subr.mxu0 0.0
        %1236 = vmatpush1.msra.mxu0 0.0
        %1237 = vmatprep.subr.mxu0 0.0
        %1238 = vmatpush1.msra.mxu0 0.0
        %1239 = vmatprep.subr.mxu0 0.0
        %1240 = vmatpush1.msra.mxu0 0.0
        %1241 = vmatprep.subr.mxu0 0.0
        %1242 = vmatpush1.msra.mxu0 0.0
        %1243 = vmatprep.subr.mxu0 0.0
        %1244 = vmatpush1.msra.mxu0 0.0
        %1245 = vmatprep.subr.mxu0 0.0
        %1246 = vmatpush1.msra.mxu0 0.0
        %1247 = vmatprep.subr.mxu0 0.0
        %1248 = vmatpush1.msra.mxu0 0.0
        %1249 = vmatprep.subr.mxu0 0.0
        %1250 = vmatpush1.msra.mxu0 0.0
        %1251 = vmatprep.subr.mxu0 0.0
        %1252 = vmatpush1.msra.mxu0 0.0
        %1253 = vmatprep.subr.mxu0 0.0
        %1254 = vmatpush1.msra.mxu0 0.0
        %1255 = vmatprep.subr.mxu0 0.0
        %1256 = vmatpush1.msra.mxu0 0.0
        %1257 = vmatprep.subr.mxu0 0.0
        %1258 = vmatpush1.msra.mxu0 0.0
        %1259 = vmatprep.subr.mxu0 0.0
        %1260 = vmatpush1.msra.mxu0 0.0
        %1261 = vmatprep.subr.mxu0 0.0
        %1262 = vmatpush1.msra.mxu0 0.0
        %1263 = vmatprep.mubr.f32.mxu0 0.0
        %1264 = vmatmul.mubr.f32.gmra.mrb[0].mxu0 %v1101
        %v1265 = vpop.f32.mrb[0].mxu0
        %v1266 = vadd.f32 0.0, %v1265
        %v1267 = vpop.f32.mrb[0].mxu0
        %1268 = vmatprep.mubr.f32.mxu0 0.0
        %1269 = vmatmul.mubr.f32.gmra.mrb[0].mxu0 %v1104
        %v1270 = vpop.f32.mrb[0].mxu0
        %v1271 = vadd.f32 0.0, %v1270
        %v1272 = vpop.f32.mrb[0].mxu0
        %1273 = vmatprep.mubr.f32.mxu0 0.0
        %1274 = vmatmul.mubr.f32.gmra.mrb[0].mxu0 %v1107
        %v1275 = vpop.f32.mrb[0].mxu0
        %v1276 = vadd.f32 0.0, %v1275
        %v1277 = vpop.f32.mrb[0].mxu0
        %1278 = vmatprep.mubr.f32.mxu0 0.0
        %1279 = vmatmul.mubr.f32.gmra.mrb[0].mxu0 %v1110
        %v1280 = vpop.f32.mrb[0].mxu0
        %v1281 = vadd.f32 0.0, %v1280
        %v1282 = vpop.f32.mrb[0].mxu0
        %1283 = vmatprep.mubr.f32.mxu0 0.0
        %1284 = vmatmul.mubr.f32.gmra.mrb[0].mxu0 %v1113
        %v1285 = vpop.f32.mrb[0].mxu0
        %v1286 = vadd.f32 0.0, %v1285
        %v1287 = vpop.f32.mrb[0].mxu0
        %1288 = vmatprep.mubr.f32.mxu0 0.0
        %1289 = vmatmul.mubr.f32.gmra.mrb[0].mxu0 %v1116
        %v1290 = vpop.f32.mrb[0].mxu0
        %v1291 = vadd.f32 0.0, %v1290
        %v1292 = vpop.f32.mrb[0].mxu0
        %1293 = vmatprep.mubr.f32.mxu0 0.0
        %1294 = vmatmul.mubr.f32.gmra.mrb[0].mxu0 %v1119
        %v1295 = vpop.f32.mrb[0].mxu0
        %v1296 = vadd.f32 0.0, %v1295
        %v1297 = vpop.f32.mrb[0].mxu0
        %1298 = vmatprep.mubr.f32.mxu0 0.0
        %1299 = vmatmul.mubr.f32.gmra.mrb[0].mxu0 %v1122
        %v1300 = vpop.f32.mrb[0].mxu0
        %v1301 = vadd.f32 0.0, %v1300
        %v1302 = vpop.f32.mrb[0].mxu0
        %1303 = vmatprep.mubr.f32.mxu0 0.0
        %1304 = vmatmul.mubr.f32.gmra.mrb[0].mxu0 %v1125
        %v1305 = vpop.f32.mrb[0].mxu0
        %v1306 = vadd.f32 0.0, %v1305
        %v1307 = vpop.f32.mrb[0].mxu0
        %1308 = vmatprep.mubr.f32.mxu0 0.0
        %1309 = vmatmul.mubr.f32.gmra.mrb[0].mxu0 %v1128
        %v1310 = vpop.f32.mrb[0].mxu0
        %v1311 = vadd.f32 0.0, %v1310
        %v1312 = vpop.f32.mrb[0].mxu0
        %1313 = vmatprep.mubr.f32.mxu0 0.0
        %1314 = vmatmul.mubr.f32.gmra.mrb[0].mxu0 %v1131
        %v1315 = vpop.f32.mrb[0].mxu0
        %v1316 = vadd.f32 0.0, %v1315
        %v1317 = vpop.f32.mrb[0].mxu0
        %1318 = vmatprep.mubr.f32.mxu0 0.0
        %1319 = vmatmul.mubr.f32.gmra.mrb[0].mxu0 %v1134
        %v1320 = vpop.f32.mrb[0].mxu0
        %v1321 = vadd.f32 0.0, %v1320
        %v1322 = vpop.f32.mrb[0].mxu0
        %1323 = vmatprep.mubr.f32.mxu0 0.0
        %1324 = vmatmul.mubr.f32.gmra.mrb[0].mxu0 %v1137
        %v1325 = vpop.f32.mrb[0].mxu0
        %v1326 = vadd.f32 0.0, %v1325
        %v1327 = vpop.f32.mrb[0].mxu0
        %1328 = vmatprep.mubr.f32.mxu0 0.0
        %1329 = vmatmul.mubr.f32.gmra.mrb[0].mxu0 %v1140
        %v1330 = vpop.f32.mrb[0].mxu0
        %v1331 = vadd.f32 0.0, %v1330
        %v1332 = vpop.f32.mrb[0].mxu0
        %1333 = vmatprep.mubr.f32.mxu0 0.0
        %1334 = vmatmul.mubr.f32.gmra.mrb[0].mxu0 %v1143
        %v1335 = vpop.f32.mrb[0].mxu0
        %v1336 = vadd.f32 0.0, %v1335
        %v1337 = vpop.f32.mrb[0].mxu0
        %1338 = vmatprep.mubr.f32.mxu0 0.0
        %1339 = vmatmul.mubr.f32.gmra.mrb[0].mxu0 %v1146
        %v1340 = vpop.f32.mrb[0].mxu0
        %v1341 = vadd.f32 0.0, %v1340
        %v1342 = vpop.f32.mrb[0].mxu0
        %1343 = vmatprep.mubr.f32.mxu0 0.0
        %1344 = vmatmul.mubr.f32.gmra.mrb[0].mxu0 %v1149
        %v1345 = vpop.f32.mrb[0].mxu0
        %v1346 = vadd.f32 0.0, %v1345
        %v1347 = vpop.f32.mrb[0].mxu0
        %1348 = vmatprep.mubr.f32.mxu0 0.0
        %1349 = vmatmul.mubr.f32.gmra.mrb[0].mxu0 %v1152
        %v1350 = vpop.f32.mrb[0].mxu0
        %v1351 = vadd.f32 0.0, %v1350
        %v1352 = vpop.f32.mrb[0].mxu0
        %1353 = vmatprep.mubr.f32.mxu0 0.0
        %1354 = vmatmul.mubr.f32.gmra.mrb[0].mxu0 %v1155
        %v1355 = vpop.f32.mrb[0].mxu0
        %v1356 = vadd.f32 0.0, %v1355
        %v1357 = vpop.f32.mrb[0].mxu0
        %1358 = vmatprep.mubr.f32.mxu0 0.0
        %1359 = vmatmul.mubr.f32.gmra.mrb[0].mxu0 %v1158
        %v1360 = vpop.f32.mrb[0].mxu0
        %v1361 = vadd.f32 0.0, %v1360
        %v1362 = vpop.f32.mrb[0].mxu0
        %1363 = vmatprep.mubr.f32.mxu0 0.0
        %1364 = vmatmul.mubr.f32.gmra.mrb[0].mxu0 %v1161
        %v1365 = vpop.f32.mrb[0].mxu0
        %v1366 = vadd.f32 0.0, %v1365
        %v1367 = vpop.f32.mrb[0].mxu0
        %1368 = vmatprep.mubr.f32.mxu0 0.0
        %1369 = vmatmul.mubr.f32.gmra.mrb[0].mxu0 %v1164
        %v1370 = vpop.f32.mrb[0].mxu0
        %v1371 = vadd.f32 0.0, %v1370
        %v1372 = vpop.f32.mrb[0].mxu0
        %1373 = vmatprep.mubr.f32.mxu0 0.0
        %1374 = vmatmul.mubr.f32.gmra.mrb[0].mxu0 %v1167
        %v1375 = vpop.f32.mrb[0].mxu0
        %v1376 = vadd.f32 0.0, %v1375
        %v1377 = vpop.f32.mrb[0].mxu0
        %1378 = vmatprep.mubr.f32.mxu0 0.0
        %1379 = vmatmul.mubr.f32.gmra.mrb[0].mxu0 %v1170
        %v1380 = vpop.f32.mrb[0].mxu0
        %v1381 = vadd.f32 0.0, %v1380
        %v1382 = vpop.f32.mrb[0].mxu0
        %1383 = vmatprep.mubr.f32.mxu0 0.0
        %1384 = vmatmul.mubr.f32.gmra.mrb[0].mxu0 %v1173
        %v1385 = vpop.f32.mrb[0].mxu0
        %v1386 = vadd.f32 0.0, %v1385
        %v1387 = vpop.f32.mrb[0].mxu0
        %1388 = vmatprep.mubr.f32.mxu0 0.0
        %1389 = vmatmul.mubr.f32.gmra.mrb[0].mxu0 %v1176
        %v1390 = vpop.f32.mrb[0].mxu0
        %v1391 = vadd.f32 0.0, %v1390
        %v1392 = vpop.f32.mrb[0].mxu0
        %1393 = vmatprep.mubr.f32.mxu0 0.0
        %1394 = vmatmul.mubr.f32.gmra.mrb[0].mxu0 %v1179
        %v1395 = vpop.f32.mrb[0].mxu0
        %v1396 = vadd.f32 0.0, %v1395
        %v1397 = vpop.f32.mrb[0].mxu0
        %1398 = vmatprep.mubr.f32.mxu0 0.0
        %1399 = vmatmul.mubr.f32.gmra.mrb[0].mxu0 %v1182
        %v1400 = vpop.f32.mrb[0].mxu0
        %v1401 = vadd.f32 0.0, %v1400
        %v1402 = vpop.f32.mrb[0].mxu0
        %1403 = vmatprep.mubr.f32.mxu0 0.0
        %1404 = vmatmul.mubr.f32.gmra.mrb[0].mxu0 %v1185
        %v1405 = vpop.f32.mrb[0].mxu0
        %v1406 = vadd.f32 0.0, %v1405
        %v1407 = vpop.f32.mrb[0].mxu0
        %1408 = vmatprep.mubr.f32.mxu0 0.0
        %1409 = vmatmul.mubr.f32.gmra.mrb[0].mxu0 %v1188
        %v1410 = vpop.f32.mrb[0].mxu0
        %v1411 = vadd.f32 0.0, %v1410
        %v1412 = vpop.f32.mrb[0].mxu0
        %1413 = vmatprep.mubr.f32.mxu0 0.0
        %1414 = vmatmul.mubr.f32.gmra.mrb[0].mxu0 %v1191
        %v1415 = vpop.f32.mrb[0].mxu0
        %v1416 = vadd.f32 0.0, %v1415
        %v1417 = vpop.f32.mrb[0].mxu0
        %1418 = vmatprep.mubr.f32.mxu0 0.0
        %1419 = vmatmul.mubr.f32.gmra.mrb[0].mxu0 %v1194
        %v1420 = vpop.f32.mrb[0].mxu0
        %v1421 = vadd.f32 0.0, %v1420
        %v1422 = vpop.f32.mrb[0].mxu0
        %1423 = vdwg.mxu0
        %v1424 = vadd.f32 %v908, %v1266
        %v1425 = vadd.f32 %v913, %v1271
        %v1426 = vadd.f32 %v918, %v1276
        %v1427 = vadd.f32 %v923, %v1281
        %v1428 = vadd.f32 %v928, %v1286
        %v1429 = vadd.f32 %v933, %v1291
        %v1430 = vadd.f32 %v938, %v1296
        %v1431 = vadd.f32 %v943, %v1301
        %v1432 = vadd.f32 %v948, %v1306
        %v1433 = vadd.f32 %v953, %v1311
        %v1434 = vadd.f32 %v958, %v1316
        %v1435 = vadd.f32 %v963, %v1321
        %v1436 = vadd.f32 %v968, %v1326
        %v1437 = vadd.f32 %v973, %v1331
        %v1438 = vadd.f32 %v978, %v1336
        %v1439 = vadd.f32 %v983, %v1341
        %v1440 = vadd.f32 %v988, %v1346
        %v1441 = vadd.f32 %v993, %v1351
        %v1442 = vadd.f32 %v998, %v1356
        %v1443 = vadd.f32 %v1003, %v1361
        %v1444 = vadd.f32 %v1008, %v1366
        %v1445 = vadd.f32 %v1013, %v1371
        %v1446 = vadd.f32 %v1018, %v1376
        %v1447 = vadd.f32 %v1023, %v1381
        %v1448 = vadd.f32 %v1028, %v1386
        %v1449 = vadd.f32 %v1033, %v1391
        %v1450 = vadd.f32 %v1038, %v1396
        %v1451 = vadd.f32 %v1043, %v1401
        %v1452 = vadd.f32 %v1048, %v1406
        %v1453 = vadd.f32 %v1053, %v1411
        %v1454 = vadd.f32 %v1058, %v1416
        %v1455 = vadd.f32 %v1063, %v1421
        %v1456 = vld [vmem:[%s317] sm:$0xff]
        %v1457 = vld [vmem:[%s317 + $0x8] sm:$0xff]
        %v1458 = vld [vmem:[%s317 + $0x18] sm:$0xff]
        %v1459 = vld [vmem:[%s317 + $0x20] sm:$0xff]
        %v1460 = vld [vmem:[%s317 + $0x30] sm:$0xff]
        %v1461 = vld [vmem:[%s317 + $0x38] sm:$0xff]
        %v1462 = vld [vmem:[%s317 + $0x48] sm:$0xff]
        %v1463 = vld [vmem:[%s317 + $0x50] sm:$0xff]
        %v1464 = vld [vmem:[%s317 + $0x60] sm:$0xff]
        %v1465 = vld [vmem:[%s317 + $0x68] sm:$0xff]
        %v1466 = vld [vmem:[%s317 + $0x78] sm:$0xff]
        %v1467 = vld [vmem:[%s317 + $0x80] sm:$0xff]
        %v1468 = vld [vmem:[%s317 + $0x90] sm:$0xff]
        %v1469 = vld [vmem:[%s317 + $0x98] sm:$0xff]
        %v1470 = vld [vmem:[%s317 + $0xa8] sm:$0xff]
        %v1471 = vld [vmem:[%s317 + $0xb0] sm:$0xff]
        %v1472 = vld [vmem:[%s317 + $0xc0] sm:$0xff]
        %v1473 = vld [vmem:[%s317 + $0xc8] sm:$0xff]
        %v1474 = vld [vmem:[%s317 + $0xd8] sm:$0xff]
        %v1475 = vld [vmem:[%s317 + $0xe0] sm:$0xff]
        %v1476 = vld [vmem:[%s317 + $0xf0] sm:$0xff]
        %v1477 = vld [vmem:[%s317 + $0xf8] sm:$0xff]
        %v1478 = vld [vmem:[%s317 + $0x108] sm:$0xff]
        %v1479 = vld [vmem:[%s317 + $0x110] sm:$0xff]
        %v1480 = vld [vmem:[%s317 + $0x120] sm:$0xff]
        %v1481 = vld [vmem:[%s317 + $0x128] sm:$0xff]
        %v1482 = vld [vmem:[%s317 + $0x138] sm:$0xff]
        %v1483 = vld [vmem:[%s317 + $0x140] sm:$0xff]
        %v1484 = vld [vmem:[%s317 + $0x150] sm:$0xff]
        %v1485 = vld [vmem:[%s317 + $0x158] sm:$0xff]
        %v1486 = vld [vmem:[%s317 + $0x168] sm:$0xff]
        %v1487 = vld [vmem:[%s317 + $0x170] sm:$0xff]
        %s1488 = scalar_lea.vmem %s1, 12
        %v1489 = vld [vmem:[%s1488] sm:$0xf]
        %v1491 = vsel %vm229, %v1456, 0
        %v1494 = vsel %vm229, %v1457, 0
        %v1497 = vsel %vm229, %v1458, 0
        %v1500 = vsel %vm229, %v1459, 0
        %v1503 = vsel %vm229, %v1460, 0
        %v1506 = vsel %vm229, %v1461, 0
        %v1509 = vsel %vm229, %v1462, 0
        %v1512 = vsel %vm229, %v1463, 0
        %v1515 = vsel %vm229, %v1464, 0
        %v1518 = vsel %vm229, %v1465, 0
        %v1521 = vsel %vm229, %v1466, 0
        %v1524 = vsel %vm229, %v1467, 0
        %v1527 = vsel %vm229, %v1468, 0
        %v1530 = vsel %vm229, %v1469, 0
        %v1533 = vsel %vm229, %v1470, 0
        %v1536 = vsel %vm229, %v1471, 0
        %v1539 = vsel %vm229, %v1472, 0
        %v1542 = vsel %vm229, %v1473, 0
        %v1545 = vsel %vm229, %v1474, 0
        %v1548 = vsel %vm229, %v1475, 0
        %v1551 = vsel %vm229, %v1476, 0
        %v1554 = vsel %vm229, %v1477, 0
        %v1557 = vsel %vm229, %v1478, 0
        %v1560 = vsel %vm229, %v1479, 0
        %v1563 = vsel %vm229, %v1480, 0
        %v1566 = vsel %vm229, %v1481, 0
        %v1569 = vsel %vm229, %v1482, 0
        %v1572 = vsel %vm229, %v1483, 0
        %v1575 = vsel %vm229, %v1484, 0
        %v1578 = vsel %vm229, %v1485, 0
        %v1581 = vsel %vm229, %v1486, 0
        %v1584 = vsel %vm229, %v1487, 0
        %v1587 = vsel %vm513, %v1489, 0
        %1589 = vmatprep.subr.mxu0 0.0
        %1590 = vmatpush1.msra.mxu0 %v1587
        %1591 = vmatprep.subr.mxu0 0.0
        %1592 = vmatpush1.msra.mxu0 0.0
        %1593 = vmatprep.subr.mxu0 0.0
        %1594 = vmatpush1.msra.mxu0 0.0
        %1595 = vmatprep.subr.mxu0 0.0
        %1596 = vmatpush1.msra.mxu0 0.0
        %1597 = vmatprep.subr.mxu0 0.0
        %1598 = vmatpush1.msra.mxu0 0.0
        %1599 = vmatprep.subr.mxu0 0.0
        %1600 = vmatpush1.msra.mxu0 0.0
        %1601 = vmatprep.subr.mxu0 0.0
        %1602 = vmatpush1.msra.mxu0 0.0
        %1603 = vmatprep.subr.mxu0 0.0
        %1604 = vmatpush1.msra.mxu0 0.0
        %1605 = vmatprep.subr.mxu0 0.0
        %1606 = vmatpush1.msra.mxu0 0.0
        %1607 = vmatprep.subr.mxu0 0.0
        %1608 = vmatpush1.msra.mxu0 0.0
        %1609 = vmatprep.subr.mxu0 0.0
        %1610 = vmatpush1.msra.mxu0 0.0
        %1611 = vmatprep.subr.mxu0 0.0
        %1612 = vmatpush1.msra.mxu0 0.0
        %1613 = vmatprep.subr.mxu0 0.0
        %1614 = vmatpush1.msra.mxu0 0.0
        %1615 = vmatprep.subr.mxu0 0.0
        %1616 = vmatpush1.msra.mxu0 0.0
        %1617 = vmatprep.subr.mxu0 0.0
        %1618 = vmatpush1.msra.mxu0 0.0
        %1619 = vmatprep.subr.mxu0 0.0
        %1620 = vmatpush1.msra.mxu0 0.0
        %1621 = vmatprep.subr.mxu0 0.0
        %1622 = vmatpush1.msra.mxu0 0.0
        %1623 = vmatprep.subr.mxu0 0.0
        %1624 = vmatpush1.msra.mxu0 0.0
        %1625 = vmatprep.subr.mxu0 0.0
        %1626 = vmatpush1.msra.mxu0 0.0
        %1627 = vmatprep.subr.mxu0 0.0
        %1628 = vmatpush1.msra.mxu0 0.0
        %1629 = vmatprep.subr.mxu0 0.0
        %1630 = vmatpush1.msra.mxu0 0.0
        %1631 = vmatprep.subr.mxu0 0.0
        %1632 = vmatpush1.msra.mxu0 0.0
        %1633 = vmatprep.subr.mxu0 0.0
        %1634 = vmatpush1.msra.mxu0 0.0
        %1635 = vmatprep.subr.mxu0 0.0
        %1636 = vmatpush1.msra.mxu0 0.0
        %1637 = vmatprep.subr.mxu0 0.0
        %1638 = vmatpush1.msra.mxu0 0.0
        %1639 = vmatprep.subr.mxu0 0.0
        %1640 = vmatpush1.msra.mxu0 0.0
        %1641 = vmatprep.subr.mxu0 0.0
        %1642 = vmatpush1.msra.mxu0 0.0
        %1643 = vmatprep.subr.mxu0 0.0
        %1644 = vmatpush1.msra.mxu0 0.0
        %1645 = vmatprep.subr.mxu0 0.0
        %1646 = vmatpush1.msra.mxu0 0.0
        %1647 = vmatprep.subr.mxu0 0.0
        %1648 = vmatpush1.msra.mxu0 0.0
        %1649 = vmatprep.subr.mxu0 0.0
        %1650 = vmatpush1.msra.mxu0 0.0
        %1651 = vmatprep.subr.mxu0 0.0
        %1652 = vmatpush1.msra.mxu0 0.0
        %1653 = vmatprep.mubr.f32.mxu0 0.0
        %1654 = vmatmul.mubr.f32.gmra.mrb[0].mxu0 %v1491
        %v1655 = vpop.f32.mrb[0].mxu0
        %v1656 = vadd.f32 0.0, %v1655
        %v1657 = vpop.f32.mrb[0].mxu0
        %1658 = vmatprep.mubr.f32.mxu0 0.0
        %1659 = vmatmul.mubr.f32.gmra.mrb[0].mxu0 %v1494
        %v1660 = vpop.f32.mrb[0].mxu0
        %v1661 = vadd.f32 0.0, %v1660
        %v1662 = vpop.f32.mrb[0].mxu0
        %1663 = vmatprep.mubr.f32.mxu0 0.0
        %1664 = vmatmul.mubr.f32.gmra.mrb[0].mxu0 %v1497
        %v1665 = vpop.f32.mrb[0].mxu0
        %v1666 = vadd.f32 0.0, %v1665
        %v1667 = vpop.f32.mrb[0].mxu0
        %1668 = vmatprep.mubr.f32.mxu0 0.0
        %1669 = vmatmul.mubr.f32.gmra.mrb[0].mxu0 %v1500
        %v1670 = vpop.f32.mrb[0].mxu0
        %v1671 = vadd.f32 0.0, %v1670
        %v1672 = vpop.f32.mrb[0].mxu0
        %1673 = vmatprep.mubr.f32.mxu0 0.0
        %1674 = vmatmul.mubr.f32.gmra.mrb[0].mxu0 %v1503
        %v1675 = vpop.f32.mrb[0].mxu0
        %v1676 = vadd.f32 0.0, %v1675
        %v1677 = vpop.f32.mrb[0].mxu0
        %1678 = vmatprep.mubr.f32.mxu0 0.0
        %1679 = vmatmul.mubr.f32.gmra.mrb[0].mxu0 %v1506
        %v1680 = vpop.f32.mrb[0].mxu0
        %v1681 = vadd.f32 0.0, %v1680
        %v1682 = vpop.f32.mrb[0].mxu0
        %1683 = vmatprep.mubr.f32.mxu0 0.0
        %1684 = vmatmul.mubr.f32.gmra.mrb[0].mxu0 %v1509
        %v1685 = vpop.f32.mrb[0].mxu0
        %v1686 = vadd.f32 0.0, %v1685
        %v1687 = vpop.f32.mrb[0].mxu0
        %1688 = vmatprep.mubr.f32.mxu0 0.0
        %1689 = vmatmul.mubr.f32.gmra.mrb[0].mxu0 %v1512
        %v1690 = vpop.f32.mrb[0].mxu0
        %v1691 = vadd.f32 0.0, %v1690
        %v1692 = vpop.f32.mrb[0].mxu0
        %1693 = vmatprep.mubr.f32.mxu0 0.0
        %1694 = vmatmul.mubr.f32.gmra.mrb[0].mxu0 %v1515
        %v1695 = vpop.f32.mrb[0].mxu0
        %v1696 = vadd.f32 0.0, %v1695
        %v1697 = vpop.f32.mrb[0].mxu0
        %1698 = vmatprep.mubr.f32.mxu0 0.0
        %1699 = vmatmul.mubr.f32.gmra.mrb[0].mxu0 %v1518
        %v1700 = vpop.f32.mrb[0].mxu0
        %v1701 = vadd.f32 0.0, %v1700
        %v1702 = vpop.f32.mrb[0].mxu0
        %1703 = vmatprep.mubr.f32.mxu0 0.0
        %1704 = vmatmul.mubr.f32.gmra.mrb[0].mxu0 %v1521
        %v1705 = vpop.f32.mrb[0].mxu0
        %v1706 = vadd.f32 0.0, %v1705
        %v1707 = vpop.f32.mrb[0].mxu0
        %1708 = vmatprep.mubr.f32.mxu0 0.0
        %1709 = vmatmul.mubr.f32.gmra.mrb[0].mxu0 %v1524
        %v1710 = vpop.f32.mrb[0].mxu0
        %v1711 = vadd.f32 0.0, %v1710
        %v1712 = vpop.f32.mrb[0].mxu0
        %1713 = vmatprep.mubr.f32.mxu0 0.0
        %1714 = vmatmul.mubr.f32.gmra.mrb[0].mxu0 %v1527
        %v1715 = vpop.f32.mrb[0].mxu0
        %v1716 = vadd.f32 0.0, %v1715
        %v1717 = vpop.f32.mrb[0].mxu0
        %1718 = vmatprep.mubr.f32.mxu0 0.0
        %1719 = vmatmul.mubr.f32.gmra.mrb[0].mxu0 %v1530
        %v1720 = vpop.f32.mrb[0].mxu0
        %v1721 = vadd.f32 0.0, %v1720
        %v1722 = vpop.f32.mrb[0].mxu0
        %1723 = vmatprep.mubr.f32.mxu0 0.0
        %1724 = vmatmul.mubr.f32.gmra.mrb[0].mxu0 %v1533
        %v1725 = vpop.f32.mrb[0].mxu0
        %v1726 = vadd.f32 0.0, %v1725
        %v1727 = vpop.f32.mrb[0].mxu0
        %1728 = vmatprep.mubr.f32.mxu0 0.0
        %1729 = vmatmul.mubr.f32.gmra.mrb[0].mxu0 %v1536
        %v1730 = vpop.f32.mrb[0].mxu0
        %v1731 = vadd.f32 0.0, %v1730
        %v1732 = vpop.f32.mrb[0].mxu0
        %1733 = vmatprep.mubr.f32.mxu0 0.0
        %1734 = vmatmul.mubr.f32.gmra.mrb[0].mxu0 %v1539
        %v1735 = vpop.f32.mrb[0].mxu0
        %v1736 = vadd.f32 0.0, %v1735
        %v1737 = vpop.f32.mrb[0].mxu0
        %1738 = vmatprep.mubr.f32.mxu0 0.0
        %1739 = vmatmul.mubr.f32.gmra.mrb[0].mxu0 %v1542
        %v1740 = vpop.f32.mrb[0].mxu0
        %v1741 = vadd.f32 0.0, %v1740
        %v1742 = vpop.f32.mrb[0].mxu0
        %1743 = vmatprep.mubr.f32.mxu0 0.0
        %1744 = vmatmul.mubr.f32.gmra.mrb[0].mxu0 %v1545
        %v1745 = vpop.f32.mrb[0].mxu0
        %v1746 = vadd.f32 0.0, %v1745
        %v1747 = vpop.f32.mrb[0].mxu0
        %1748 = vmatprep.mubr.f32.mxu0 0.0
        %1749 = vmatmul.mubr.f32.gmra.mrb[0].mxu0 %v1548
        %v1750 = vpop.f32.mrb[0].mxu0
        %v1751 = vadd.f32 0.0, %v1750
        %v1752 = vpop.f32.mrb[0].mxu0
        %1753 = vmatprep.mubr.f32.mxu0 0.0
        %1754 = vmatmul.mubr.f32.gmra.mrb[0].mxu0 %v1551
        %v1755 = vpop.f32.mrb[0].mxu0
        %v1756 = vadd.f32 0.0, %v1755
        %v1757 = vpop.f32.mrb[0].mxu0
        %1758 = vmatprep.mubr.f32.mxu0 0.0
        %1759 = vmatmul.mubr.f32.gmra.mrb[0].mxu0 %v1554
        %v1760 = vpop.f32.mrb[0].mxu0
        %v1761 = vadd.f32 0.0, %v1760
        %v1762 = vpop.f32.mrb[0].mxu0
        %1763 = vmatprep.mubr.f32.mxu0 0.0
        %1764 = vmatmul.mubr.f32.gmra.mrb[0].mxu0 %v1557
        %v1765 = vpop.f32.mrb[0].mxu0
        %v1766 = vadd.f32 0.0, %v1765
        %v1767 = vpop.f32.mrb[0].mxu0
        %1768 = vmatprep.mubr.f32.mxu0 0.0
        %1769 = vmatmul.mubr.f32.gmra.mrb[0].mxu0 %v1560
        %v1770 = vpop.f32.mrb[0].mxu0
        %v1771 = vadd.f32 0.0, %v1770
        %v1772 = vpop.f32.mrb[0].mxu0
        %1773 = vmatprep.mubr.f32.mxu0 0.0
        %1774 = vmatmul.mubr.f32.gmra.mrb[0].mxu0 %v1563
        %v1775 = vpop.f32.mrb[0].mxu0
        %v1776 = vadd.f32 0.0, %v1775
        %v1777 = vpop.f32.mrb[0].mxu0
        %1778 = vmatprep.mubr.f32.mxu0 0.0
        %1779 = vmatmul.mubr.f32.gmra.mrb[0].mxu0 %v1566
        %v1780 = vpop.f32.mrb[0].mxu0
        %v1781 = vadd.f32 0.0, %v1780
        %v1782 = vpop.f32.mrb[0].mxu0
        %1783 = vmatprep.mubr.f32.mxu0 0.0
        %1784 = vmatmul.mubr.f32.gmra.mrb[0].mxu0 %v1569
        %v1785 = vpop.f32.mrb[0].mxu0
        %v1786 = vadd.f32 0.0, %v1785
        %v1787 = vpop.f32.mrb[0].mxu0
        %1788 = vmatprep.mubr.f32.mxu0 0.0
        %1789 = vmatmul.mubr.f32.gmra.mrb[0].mxu0 %v1572
        %v1790 = vpop.f32.mrb[0].mxu0
        %v1791 = vadd.f32 0.0, %v1790
        %v1792 = vpop.f32.mrb[0].mxu0
        %1793 = vmatprep.mubr.f32.mxu0 0.0
        %1794 = vmatmul.mubr.f32.gmra.mrb[0].mxu0 %v1575
        %v1795 = vpop.f32.mrb[0].mxu0
        %v1796 = vadd.f32 0.0, %v1795
        %v1797 = vpop.f32.mrb[0].mxu0
        %1798 = vmatprep.mubr.f32.mxu0 0.0
        %1799 = vmatmul.mubr.f32.gmra.mrb[0].mxu0 %v1578
        %v1800 = vpop.f32.mrb[0].mxu0
        %v1801 = vadd.f32 0.0, %v1800
        %v1802 = vpop.f32.mrb[0].mxu0
        %1803 = vmatprep.mubr.f32.mxu0 0.0
        %1804 = vmatmul.mubr.f32.gmra.mrb[0].mxu0 %v1581
        %v1805 = vpop.f32.mrb[0].mxu0
        %v1806 = vadd.f32 0.0, %v1805
        %v1807 = vpop.f32.mrb[0].mxu0
        %1808 = vmatprep.mubr.f32.mxu0 0.0
        %1809 = vmatmul.mubr.f32.gmra.mrb[0].mxu0 %v1584
        %v1810 = vpop.f32.mrb[0].mxu0
        %v1811 = vadd.f32 0.0, %v1810
        %v1812 = vpop.f32.mrb[0].mxu0
        %1813 = vdwg.mxu0
        %v1814 = vadd.f32 %v1424, %v1656
        %v1815 = vadd.f32 %v1425, %v1661
        %v1816 = vadd.f32 %v1426, %v1666
        %v1817 = vadd.f32 %v1427, %v1671
        %v1818 = vadd.f32 %v1428, %v1676
        %v1819 = vadd.f32 %v1429, %v1681
        %v1820 = vadd.f32 %v1430, %v1686
        %v1821 = vadd.f32 %v1431, %v1691
        %v1822 = vadd.f32 %v1432, %v1696
        %v1823 = vadd.f32 %v1433, %v1701
        %v1824 = vadd.f32 %v1434, %v1706
        %v1825 = vadd.f32 %v1435, %v1711
        %v1826 = vadd.f32 %v1436, %v1716
        %v1827 = vadd.f32 %v1437, %v1721
        %v1828 = vadd.f32 %v1438, %v1726
        %v1829 = vadd.f32 %v1439, %v1731
        %v1830 = vadd.f32 %v1440, %v1736
        %v1831 = vadd.f32 %v1441, %v1741
        %v1832 = vadd.f32 %v1442, %v1746
        %v1833 = vadd.f32 %v1443, %v1751
        %v1834 = vadd.f32 %v1444, %v1756
        %v1835 = vadd.f32 %v1445, %v1761
        %v1836 = vadd.f32 %v1446, %v1766
        %v1837 = vadd.f32 %v1447, %v1771
        %v1838 = vadd.f32 %v1448, %v1776
        %v1839 = vadd.f32 %v1449, %v1781
        %v1840 = vadd.f32 %v1450, %v1786
        %v1841 = vadd.f32 %v1451, %v1791
        %v1842 = vadd.f32 %v1452, %v1796
        %v1843 = vadd.f32 %v1453, %v1801
        %v1844 = vadd.f32 %v1454, %v1806
        %v1845 = vadd.f32 %v1455, %v1811
        %v1846 = vld [vmem:[%s317 + $0x1] sm:$0xff]
        %v1847 = vld [vmem:[%s317 + $0x9] sm:$0xff]
        %v1848 = vld [vmem:[%s317 + $0x19] sm:$0xff]
        %v1849 = vld [vmem:[%s317 + $0x21] sm:$0xff]
        %v1850 = vld [vmem:[%s317 + $0x31] sm:$0xff]
        %v1851 = vld [vmem:[%s317 + $0x39] sm:$0xff]
        %v1852 = vld [vmem:[%s317 + $0x49] sm:$0xff]
        %v1853 = vld [vmem:[%s317 + $0x51] sm:$0xff]
        %v1854 = vld [vmem:[%s317 + $0x61] sm:$0xff]
        %v1855 = vld [vmem:[%s317 + $0x69] sm:$0xff]
        %v1856 = vld [vmem:[%s317 + $0x79] sm:$0xff]
        %v1857 = vld [vmem:[%s317 + $0x81] sm:$0xff]
        %v1858 = vld [vmem:[%s317 + $0x91] sm:$0xff]
        %v1859 = vld [vmem:[%s317 + $0x99] sm:$0xff]
        %v1860 = vld [vmem:[%s317 + $0xa9] sm:$0xff]
        %v1861 = vld [vmem:[%s317 + $0xb1] sm:$0xff]
        %v1862 = vld [vmem:[%s317 + $0xc1] sm:$0xff]
        %v1863 = vld [vmem:[%s317 + $0xc9] sm:$0xff]
        %v1864 = vld [vmem:[%s317 + $0xd9] sm:$0xff]
        %v1865 = vld [vmem:[%s317 + $0xe1] sm:$0xff]
        %v1866 = vld [vmem:[%s317 + $0xf1] sm:$0xff]
        %v1867 = vld [vmem:[%s317 + $0xf9] sm:$0xff]
        %v1868 = vld [vmem:[%s317 + $0x109] sm:$0xff]
        %v1869 = vld [vmem:[%s317 + $0x111] sm:$0xff]
        %v1870 = vld [vmem:[%s317 + $0x121] sm:$0xff]
        %v1871 = vld [vmem:[%s317 + $0x129] sm:$0xff]
        %v1872 = vld [vmem:[%s317 + $0x139] sm:$0xff]
        %v1873 = vld [vmem:[%s317 + $0x141] sm:$0xff]
        %v1874 = vld [vmem:[%s317 + $0x151] sm:$0xff]
        %v1875 = vld [vmem:[%s317 + $0x159] sm:$0xff]
        %v1876 = vld [vmem:[%s317 + $0x169] sm:$0xff]
        %v1877 = vld [vmem:[%s317 + $0x171] sm:$0xff]
        %s1878 = scalar_lea.vmem %s1, 16
        %v1879 = vld [vmem:[%s1878] sm:$0xf]
        %v1881 = vsel %vm229, %v1846, 0
        %v1884 = vsel %vm229, %v1847, 0
        %v1887 = vsel %vm229, %v1848, 0
        %v1890 = vsel %vm229, %v1849, 0
        %v1893 = vsel %vm229, %v1850, 0
        %v1896 = vsel %vm229, %v1851, 0
        %v1899 = vsel %vm229, %v1852, 0
        %v1902 = vsel %vm229, %v1853, 0
        %v1905 = vsel %vm229, %v1854, 0
        %v1908 = vsel %vm229, %v1855, 0
        %v1911 = vsel %vm229, %v1856, 0
        %v1914 = vsel %vm229, %v1857, 0
        %v1917 = vsel %vm229, %v1858, 0
        %v1920 = vsel %vm229, %v1859, 0
        %v1923 = vsel %vm229, %v1860, 0
        %v1926 = vsel %vm229, %v1861, 0
        %v1929 = vsel %vm229, %v1862, 0
        %v1932 = vsel %vm229, %v1863, 0
        %v1935 = vsel %vm229, %v1864, 0
        %v1938 = vsel %vm229, %v1865, 0
        %v1941 = vsel %vm229, %v1866, 0
        %v1944 = vsel %vm229, %v1867, 0
        %v1947 = vsel %vm229, %v1868, 0
        %v1950 = vsel %vm229, %v1869, 0
        %v1953 = vsel %vm229, %v1870, 0
        %v1956 = vsel %vm229, %v1871, 0
        %v1959 = vsel %vm229, %v1872, 0
        %v1962 = vsel %vm229, %v1873, 0
        %v1965 = vsel %vm229, %v1874, 0
        %v1968 = vsel %vm229, %v1875, 0
        %v1971 = vsel %vm229, %v1876, 0
        %v1974 = vsel %vm229, %v1877, 0
        %v1977 = vsel %vm513, %v1879, 0
        %1979 = vmatprep.subr.mxu0 0.0
        %1980 = vmatpush1.msra.mxu0 %v1977
        %1981 = vmatprep.subr.mxu0 0.0
        %1982 = vmatpush1.msra.mxu0 0.0
        %1983 = vmatprep.subr.mxu0 0.0
        %1984 = vmatpush1.msra.mxu0 0.0
        %1985 = vmatprep.subr.mxu0 0.0
        %1986 = vmatpush1.msra.mxu0 0.0
        %1987 = vmatprep.subr.mxu0 0.0
        %1988 = vmatpush1.msra.mxu0 0.0
        %1989 = vmatprep.subr.mxu0 0.0
        %1990 = vmatpush1.msra.mxu0 0.0
        %1991 = vmatprep.subr.mxu0 0.0
        %1992 = vmatpush1.msra.mxu0 0.0
        %1993 = vmatprep.subr.mxu0 0.0
        %1994 = vmatpush1.msra.mxu0 0.0
        %1995 = vmatprep.subr.mxu0 0.0
        %1996 = vmatpush1.msra.mxu0 0.0
        %1997 = vmatprep.subr.mxu0 0.0
        %1998 = vmatpush1.msra.mxu0 0.0
        %1999 = vmatprep.subr.mxu0 0.0
        %2000 = vmatpush1.msra.mxu0 0.0
        %2001 = vmatprep.subr.mxu0 0.0
        %2002 = vmatpush1.msra.mxu0 0.0
        %2003 = vmatprep.subr.mxu0 0.0
        %2004 = vmatpush1.msra.mxu0 0.0
        %2005 = vmatprep.subr.mxu0 0.0
        %2006 = vmatpush1.msra.mxu0 0.0
        %2007 = vmatprep.subr.mxu0 0.0
        %2008 = vmatpush1.msra.mxu0 0.0
        %2009 = vmatprep.subr.mxu0 0.0
        %2010 = vmatpush1.msra.mxu0 0.0
        %2011 = vmatprep.subr.mxu0 0.0
        %2012 = vmatpush1.msra.mxu0 0.0
        %2013 = vmatprep.subr.mxu0 0.0
        %2014 = vmatpush1.msra.mxu0 0.0
        %2015 = vmatprep.subr.mxu0 0.0
        %2016 = vmatpush1.msra.mxu0 0.0
        %2017 = vmatprep.subr.mxu0 0.0
        %2018 = vmatpush1.msra.mxu0 0.0
        %2019 = vmatprep.subr.mxu0 0.0
        %2020 = vmatpush1.msra.mxu0 0.0
        %2021 = vmatprep.subr.mxu0 0.0
        %2022 = vmatpush1.msra.mxu0 0.0
        %2023 = vmatprep.subr.mxu0 0.0
        %2024 = vmatpush1.msra.mxu0 0.0
        %2025 = vmatprep.subr.mxu0 0.0
        %2026 = vmatpush1.msra.mxu0 0.0
        %2027 = vmatprep.subr.mxu0 0.0
        %2028 = vmatpush1.msra.mxu0 0.0
        %2029 = vmatprep.subr.mxu0 0.0
        %2030 = vmatpush1.msra.mxu0 0.0
        %2031 = vmatprep.subr.mxu0 0.0
        %2032 = vmatpush1.msra.mxu0 0.0
        %2033 = vmatprep.subr.mxu0 0.0
        %2034 = vmatpush1.msra.mxu0 0.0
        %2035 = vmatprep.subr.mxu0 0.0
        %2036 = vmatpush1.msra.mxu0 0.0
        %2037 = vmatprep.subr.mxu0 0.0
        %2038 = vmatpush1.msra.mxu0 0.0
        %2039 = vmatprep.subr.mxu0 0.0
        %2040 = vmatpush1.msra.mxu0 0.0
        %2041 = vmatprep.subr.mxu0 0.0
        %2042 = vmatpush1.msra.mxu0 0.0
        %2043 = vmatprep.mubr.f32.mxu0 0.0
        %2044 = vmatmul.mubr.f32.gmra.mrb[0].mxu0 %v1881
        %v2045 = vpop.f32.mrb[0].mxu0
        %v2046 = vadd.f32 0.0, %v2045
        %v2047 = vpop.f32.mrb[0].mxu0
        %2048 = vmatprep.mubr.f32.mxu0 0.0
        %2049 = vmatmul.mubr.f32.gmra.mrb[0].mxu0 %v1884
        %v2050 = vpop.f32.mrb[0].mxu0
        %v2051 = vadd.f32 0.0, %v2050
        %v2052 = vpop.f32.mrb[0].mxu0
        %2053 = vmatprep.mubr.f32.mxu0 0.0
        %2054 = vmatmul.mubr.f32.gmra.mrb[0].mxu0 %v1887
        %v2055 = vpop.f32.mrb[0].mxu0
        %v2056 = vadd.f32 0.0, %v2055
        %v2057 = vpop.f32.mrb[0].mxu0
        %2058 = vmatprep.mubr.f32.mxu0 0.0
        %2059 = vmatmul.mubr.f32.gmra.mrb[0].mxu0 %v1890
        %v2060 = vpop.f32.mrb[0].mxu0
        %v2061 = vadd.f32 0.0, %v2060
        %v2062 = vpop.f32.mrb[0].mxu0
        %2063 = vmatprep.mubr.f32.mxu0 0.0
        %2064 = vmatmul.mubr.f32.gmra.mrb[0].mxu0 %v1893
        %v2065 = vpop.f32.mrb[0].mxu0
        %v2066 = vadd.f32 0.0, %v2065
        %v2067 = vpop.f32.mrb[0].mxu0
        %2068 = vmatprep.mubr.f32.mxu0 0.0
        %2069 = vmatmul.mubr.f32.gmra.mrb[0].mxu0 %v1896
        %v2070 = vpop.f32.mrb[0].mxu0
        %v2071 = vadd.f32 0.0, %v2070
        %v2072 = vpop.f32.mrb[0].mxu0
        %2073 = vmatprep.mubr.f32.mxu0 0.0
        %2074 = vmatmul.mubr.f32.gmra.mrb[0].mxu0 %v1899
        %v2075 = vpop.f32.mrb[0].mxu0
        %v2076 = vadd.f32 0.0, %v2075
        %v2077 = vpop.f32.mrb[0].mxu0
        %2078 = vmatprep.mubr.f32.mxu0 0.0
        %2079 = vmatmul.mubr.f32.gmra.mrb[0].mxu0 %v1902
        %v2080 = vpop.f32.mrb[0].mxu0
        %v2081 = vadd.f32 0.0, %v2080
        %v2082 = vpop.f32.mrb[0].mxu0
        %2083 = vmatprep.mubr.f32.mxu0 0.0
        %2084 = vmatmul.mubr.f32.gmra.mrb[0].mxu0 %v1905
        %v2085 = vpop.f32.mrb[0].mxu0
        %v2086 = vadd.f32 0.0, %v2085
        %v2087 = vpop.f32.mrb[0].mxu0
        %2088 = vmatprep.mubr.f32.mxu0 0.0
        %2089 = vmatmul.mubr.f32.gmra.mrb[0].mxu0 %v1908
        %v2090 = vpop.f32.mrb[0].mxu0
        %v2091 = vadd.f32 0.0, %v2090
        %v2092 = vpop.f32.mrb[0].mxu0
        %2093 = vmatprep.mubr.f32.mxu0 0.0
        %2094 = vmatmul.mubr.f32.gmra.mrb[0].mxu0 %v1911
        %v2095 = vpop.f32.mrb[0].mxu0
        %v2096 = vadd.f32 0.0, %v2095
        %v2097 = vpop.f32.mrb[0].mxu0
        %2098 = vmatprep.mubr.f32.mxu0 0.0
        %2099 = vmatmul.mubr.f32.gmra.mrb[0].mxu0 %v1914
        %v2100 = vpop.f32.mrb[0].mxu0
        %v2101 = vadd.f32 0.0, %v2100
        %v2102 = vpop.f32.mrb[0].mxu0
        %2103 = vmatprep.mubr.f32.mxu0 0.0
        %2104 = vmatmul.mubr.f32.gmra.mrb[0].mxu0 %v1917
        %v2105 = vpop.f32.mrb[0].mxu0
        %v2106 = vadd.f32 0.0, %v2105
        %v2107 = vpop.f32.mrb[0].mxu0
        %2108 = vmatprep.mubr.f32.mxu0 0.0
        %2109 = vmatmul.mubr.f32.gmra.mrb[0].mxu0 %v1920
        %v2110 = vpop.f32.mrb[0].mxu0
        %v2111 = vadd.f32 0.0, %v2110
        %v2112 = vpop.f32.mrb[0].mxu0
        %2113 = vmatprep.mubr.f32.mxu0 0.0
        %2114 = vmatmul.mubr.f32.gmra.mrb[0].mxu0 %v1923
        %v2115 = vpop.f32.mrb[0].mxu0
        %v2116 = vadd.f32 0.0, %v2115
        %v2117 = vpop.f32.mrb[0].mxu0
        %2118 = vmatprep.mubr.f32.mxu0 0.0
        %2119 = vmatmul.mubr.f32.gmra.mrb[0].mxu0 %v1926
        %v2120 = vpop.f32.mrb[0].mxu0
        %v2121 = vadd.f32 0.0, %v2120
        %v2122 = vpop.f32.mrb[0].mxu0
        %2123 = vmatprep.mubr.f32.mxu0 0.0
        %2124 = vmatmul.mubr.f32.gmra.mrb[0].mxu0 %v1929
        %v2125 = vpop.f32.mrb[0].mxu0
        %v2126 = vadd.f32 0.0, %v2125
        %v2127 = vpop.f32.mrb[0].mxu0
        %2128 = vmatprep.mubr.f32.mxu0 0.0
        %2129 = vmatmul.mubr.f32.gmra.mrb[0].mxu0 %v1932
        %v2130 = vpop.f32.mrb[0].mxu0
        %v2131 = vadd.f32 0.0, %v2130
        %v2132 = vpop.f32.mrb[0].mxu0
        %2133 = vmatprep.mubr.f32.mxu0 0.0
        %2134 = vmatmul.mubr.f32.gmra.mrb[0].mxu0 %v1935
        %v2135 = vpop.f32.mrb[0].mxu0
        %v2136 = vadd.f32 0.0, %v2135
        %v2137 = vpop.f32.mrb[0].mxu0
        %2138 = vmatprep.mubr.f32.mxu0 0.0
        %2139 = vmatmul.mubr.f32.gmra.mrb[0].mxu0 %v1938
        %v2140 = vpop.f32.mrb[0].mxu0
        %v2141 = vadd.f32 0.0, %v2140
        %v2142 = vpop.f32.mrb[0].mxu0
        %2143 = vmatprep.mubr.f32.mxu0 0.0
        %2144 = vmatmul.mubr.f32.gmra.mrb[0].mxu0 %v1941
        %v2145 = vpop.f32.mrb[0].mxu0
        %v2146 = vadd.f32 0.0, %v2145
        %v2147 = vpop.f32.mrb[0].mxu0
        %2148 = vmatprep.mubr.f32.mxu0 0.0
        %2149 = vmatmul.mubr.f32.gmra.mrb[0].mxu0 %v1944
        %v2150 = vpop.f32.mrb[0].mxu0
        %v2151 = vadd.f32 0.0, %v2150
        %v2152 = vpop.f32.mrb[0].mxu0
        %2153 = vmatprep.mubr.f32.mxu0 0.0
        %2154 = vmatmul.mubr.f32.gmra.mrb[0].mxu0 %v1947
        %v2155 = vpop.f32.mrb[0].mxu0
        %v2156 = vadd.f32 0.0, %v2155
        %v2157 = vpop.f32.mrb[0].mxu0
        %2158 = vmatprep.mubr.f32.mxu0 0.0
        %2159 = vmatmul.mubr.f32.gmra.mrb[0].mxu0 %v1950
        %v2160 = vpop.f32.mrb[0].mxu0
        %v2161 = vadd.f32 0.0, %v2160
        %v2162 = vpop.f32.mrb[0].mxu0
        %2163 = vmatprep.mubr.f32.mxu0 0.0
        %2164 = vmatmul.mubr.f32.gmra.mrb[0].mxu0 %v1953
        %v2165 = vpop.f32.mrb[0].mxu0
        %v2166 = vadd.f32 0.0, %v2165
        %v2167 = vpop.f32.mrb[0].mxu0
        %2168 = vmatprep.mubr.f32.mxu0 0.0
        %2169 = vmatmul.mubr.f32.gmra.mrb[0].mxu0 %v1956
        %v2170 = vpop.f32.mrb[0].mxu0
        %v2171 = vadd.f32 0.0, %v2170
        %v2172 = vpop.f32.mrb[0].mxu0
        %2173 = vmatprep.mubr.f32.mxu0 0.0
        %2174 = vmatmul.mubr.f32.gmra.mrb[0].mxu0 %v1959
        %v2175 = vpop.f32.mrb[0].mxu0
        %v2176 = vadd.f32 0.0, %v2175
        %v2177 = vpop.f32.mrb[0].mxu0
        %2178 = vmatprep.mubr.f32.mxu0 0.0
        %2179 = vmatmul.mubr.f32.gmra.mrb[0].mxu0 %v1962
        %v2180 = vpop.f32.mrb[0].mxu0
        %v2181 = vadd.f32 0.0, %v2180
        %v2182 = vpop.f32.mrb[0].mxu0
        %2183 = vmatprep.mubr.f32.mxu0 0.0
        %2184 = vmatmul.mubr.f32.gmra.mrb[0].mxu0 %v1965
        %v2185 = vpop.f32.mrb[0].mxu0
        %v2186 = vadd.f32 0.0, %v2185
        %v2187 = vpop.f32.mrb[0].mxu0
        %2188 = vmatprep.mubr.f32.mxu0 0.0
        %2189 = vmatmul.mubr.f32.gmra.mrb[0].mxu0 %v1968
        %v2190 = vpop.f32.mrb[0].mxu0
        %v2191 = vadd.f32 0.0, %v2190
        %v2192 = vpop.f32.mrb[0].mxu0
        %2193 = vmatprep.mubr.f32.mxu0 0.0
        %2194 = vmatmul.mubr.f32.gmra.mrb[0].mxu0 %v1971
        %v2195 = vpop.f32.mrb[0].mxu0
        %v2196 = vadd.f32 0.0, %v2195
        %v2197 = vpop.f32.mrb[0].mxu0
        %2198 = vmatprep.mubr.f32.mxu0 0.0
        %2199 = vmatmul.mubr.f32.gmra.mrb[0].mxu0 %v1974
        %v2200 = vpop.f32.mrb[0].mxu0
        %v2201 = vadd.f32 0.0, %v2200
        %v2202 = vpop.f32.mrb[0].mxu0
        %2203 = vdwg.mxu0
        %v2204 = vadd.f32 %v1814, %v2046
        %v2205 = vadd.f32 %v1815, %v2051
        %v2206 = vadd.f32 %v1816, %v2056
        %v2207 = vadd.f32 %v1817, %v2061
        %v2208 = vadd.f32 %v1818, %v2066
        %v2209 = vadd.f32 %v1819, %v2071
        %v2210 = vadd.f32 %v1820, %v2076
        %v2211 = vadd.f32 %v1821, %v2081
        %v2212 = vadd.f32 %v1822, %v2086
        %v2213 = vadd.f32 %v1823, %v2091
        %v2214 = vadd.f32 %v1824, %v2096
        %v2215 = vadd.f32 %v1825, %v2101
        %v2216 = vadd.f32 %v1826, %v2106
        %v2217 = vadd.f32 %v1827, %v2111
        %v2218 = vadd.f32 %v1828, %v2116
        %v2219 = vadd.f32 %v1829, %v2121
        %v2220 = vadd.f32 %v1830, %v2126
        %v2221 = vadd.f32 %v1831, %v2131
        %v2222 = vadd.f32 %v1832, %v2136
        %v2223 = vadd.f32 %v1833, %v2141
        %v2224 = vadd.f32 %v1834, %v2146
        %v2225 = vadd.f32 %v1835, %v2151
        %v2226 = vadd.f32 %v1836, %v2156
        %v2227 = vadd.f32 %v1837, %v2161
        %v2228 = vadd.f32 %v1838, %v2166
        %v2229 = vadd.f32 %v1839, %v2171
        %v2230 = vadd.f32 %v1840, %v2176
        %v2231 = vadd.f32 %v1841, %v2181
        %v2232 = vadd.f32 %v1842, %v2186
        %v2233 = vadd.f32 %v1843, %v2191
        %v2234 = vadd.f32 %v1844, %v2196
        %v2235 = vadd.f32 %v1845, %v2201
        %v2236 = vld [vmem:[%s317 + $0x2] sm:$0xff]
        %v2237 = vld [vmem:[%s317 + $0xa] sm:$0xff]
        %v2238 = vld [vmem:[%s317 + $0x1a] sm:$0xff]
        %v2239 = vld [vmem:[%s317 + $0x22] sm:$0xff]
        %v2240 = vld [vmem:[%s317 + $0x32] sm:$0xff]
        %v2241 = vld [vmem:[%s317 + $0x3a] sm:$0xff]
        %v2242 = vld [vmem:[%s317 + $0x4a] sm:$0xff]
        %v2243 = vld [vmem:[%s317 + $0x52] sm:$0xff]
        %v2244 = vld [vmem:[%s317 + $0x62] sm:$0xff]
        %v2245 = vld [vmem:[%s317 + $0x6a] sm:$0xff]
        %v2246 = vld [vmem:[%s317 + $0x7a] sm:$0xff]
        %v2247 = vld [vmem:[%s317 + $0x82] sm:$0xff]
        %v2248 = vld [vmem:[%s317 + $0x92] sm:$0xff]
        %v2249 = vld [vmem:[%s317 + $0x9a] sm:$0xff]
        %v2250 = vld [vmem:[%s317 + $0xaa] sm:$0xff]
        %v2251 = vld [vmem:[%s317 + $0xb2] sm:$0xff]
        %v2252 = vld [vmem:[%s317 + $0xc2] sm:$0xff]
        %v2253 = vld [vmem:[%s317 + $0xca] sm:$0xff]
        %v2254 = vld [vmem:[%s317 + $0xda] sm:$0xff]
        %v2255 = vld [vmem:[%s317 + $0xe2] sm:$0xff]
        %v2256 = vld [vmem:[%s317 + $0xf2] sm:$0xff]
        %v2257 = vld [vmem:[%s317 + $0xfa] sm:$0xff]
        %v2258 = vld [vmem:[%s317 + $0x10a] sm:$0xff]
        %v2259 = vld [vmem:[%s317 + $0x112] sm:$0xff]
        %v2260 = vld [vmem:[%s317 + $0x122] sm:$0xff]
        %v2261 = vld [vmem:[%s317 + $0x12a] sm:$0xff]
        %v2262 = vld [vmem:[%s317 + $0x13a] sm:$0xff]
        %v2263 = vld [vmem:[%s317 + $0x142] sm:$0xff]
        %v2264 = vld [vmem:[%s317 + $0x152] sm:$0xff]
        %v2265 = vld [vmem:[%s317 + $0x15a] sm:$0xff]
        %v2266 = vld [vmem:[%s317 + $0x16a] sm:$0xff]
        %v2267 = vld [vmem:[%s317 + $0x172] sm:$0xff]
        %s2268 = scalar_lea.vmem %s1, 20
        %v2269 = vld [vmem:[%s2268] sm:$0xf]
        %v2271 = vsel %vm229, %v2236, 0
        %v2274 = vsel %vm229, %v2237, 0
        %v2277 = vsel %vm229, %v2238, 0
        %v2280 = vsel %vm229, %v2239, 0
        %v2283 = vsel %vm229, %v2240, 0
        %v2286 = vsel %vm229, %v2241, 0
        %v2289 = vsel %vm229, %v2242, 0
        %v2292 = vsel %vm229, %v2243, 0
        %v2295 = vsel %vm229, %v2244, 0
        %v2298 = vsel %vm229, %v2245, 0
        %v2301 = vsel %vm229, %v2246, 0
        %v2304 = vsel %vm229, %v2247, 0
        %v2307 = vsel %vm229, %v2248, 0
        %v2310 = vsel %vm229, %v2249, 0
        %v2313 = vsel %vm229, %v2250, 0
        %v2316 = vsel %vm229, %v2251, 0
        %v2319 = vsel %vm229, %v2252, 0
        %v2322 = vsel %vm229, %v2253, 0
        %v2325 = vsel %vm229, %v2254, 0
        %v2328 = vsel %vm229, %v2255, 0
        %v2331 = vsel %vm229, %v2256, 0
        %v2334 = vsel %vm229, %v2257, 0
        %v2337 = vsel %vm229, %v2258, 0
        %v2340 = vsel %vm229, %v2259, 0
        %v2343 = vsel %vm229, %v2260, 0
        %v2346 = vsel %vm229, %v2261, 0
        %v2349 = vsel %vm229, %v2262, 0
        %v2352 = vsel %vm229, %v2263, 0
        %v2355 = vsel %vm229, %v2264, 0
        %v2358 = vsel %vm229, %v2265, 0
        %v2361 = vsel %vm229, %v2266, 0
        %v2364 = vsel %vm229, %v2267, 0
        %v2367 = vsel %vm513, %v2269, 0
        %2369 = vmatprep.subr.mxu0 0.0
        %2370 = vmatpush1.msra.mxu0 %v2367
        %2371 = vmatprep.subr.mxu0 0.0
        %2372 = vmatpush1.msra.mxu0 0.0
        %2373 = vmatprep.subr.mxu0 0.0
        %2374 = vmatpush1.msra.mxu0 0.0
        %2375 = vmatprep.subr.mxu0 0.0
        %2376 = vmatpush1.msra.mxu0 0.0
        %2377 = vmatprep.subr.mxu0 0.0
        %2378 = vmatpush1.msra.mxu0 0.0
        %2379 = vmatprep.subr.mxu0 0.0
        %2380 = vmatpush1.msra.mxu0 0.0
        %2381 = vmatprep.subr.mxu0 0.0
        %2382 = vmatpush1.msra.mxu0 0.0
        %2383 = vmatprep.subr.mxu0 0.0
        %2384 = vmatpush1.msra.mxu0 0.0
        %2385 = vmatprep.subr.mxu0 0.0
        %2386 = vmatpush1.msra.mxu0 0.0
        %2387 = vmatprep.subr.mxu0 0.0
        %2388 = vmatpush1.msra.mxu0 0.0
        %2389 = vmatprep.subr.mxu0 0.0
        %2390 = vmatpush1.msra.mxu0 0.0
        %2391 = vmatprep.subr.mxu0 0.0
        %2392 = vmatpush1.msra.mxu0 0.0
        %2393 = vmatprep.subr.mxu0 0.0
        %2394 = vmatpush1.msra.mxu0 0.0
        %2395 = vmatprep.subr.mxu0 0.0
        %2396 = vmatpush1.msra.mxu0 0.0
        %2397 = vmatprep.subr.mxu0 0.0
        %2398 = vmatpush1.msra.mxu0 0.0
        %2399 = vmatprep.subr.mxu0 0.0
        %2400 = vmatpush1.msra.mxu0 0.0
        %2401 = vmatprep.subr.mxu0 0.0
        %2402 = vmatpush1.msra.mxu0 0.0
        %2403 = vmatprep.subr.mxu0 0.0
        %2404 = vmatpush1.msra.mxu0 0.0
        %2405 = vmatprep.subr.mxu0 0.0
        %2406 = vmatpush1.msra.mxu0 0.0
        %2407 = vmatprep.subr.mxu0 0.0
        %2408 = vmatpush1.msra.mxu0 0.0
        %2409 = vmatprep.subr.mxu0 0.0
        %2410 = vmatpush1.msra.mxu0 0.0
        %2411 = vmatprep.subr.mxu0 0.0
        %2412 = vmatpush1.msra.mxu0 0.0
        %2413 = vmatprep.subr.mxu0 0.0
        %2414 = vmatpush1.msra.mxu0 0.0
        %2415 = vmatprep.subr.mxu0 0.0
        %2416 = vmatpush1.msra.mxu0 0.0
        %2417 = vmatprep.subr.mxu0 0.0
        %2418 = vmatpush1.msra.mxu0 0.0
        %2419 = vmatprep.subr.mxu0 0.0
        %2420 = vmatpush1.msra.mxu0 0.0
        %2421 = vmatprep.subr.mxu0 0.0
        %2422 = vmatpush1.msra.mxu0 0.0
        %2423 = vmatprep.subr.mxu0 0.0
        %2424 = vmatpush1.msra.mxu0 0.0
        %2425 = vmatprep.subr.mxu0 0.0
        %2426 = vmatpush1.msra.mxu0 0.0
        %2427 = vmatprep.subr.mxu0 0.0
        %2428 = vmatpush1.msra.mxu0 0.0
        %2429 = vmatprep.subr.mxu0 0.0
        %2430 = vmatpush1.msra.mxu0 0.0
        %2431 = vmatprep.subr.mxu0 0.0
        %2432 = vmatpush1.msra.mxu0 0.0
        %2433 = vmatprep.mubr.f32.mxu0 0.0
        %2434 = vmatmul.mubr.f32.gmra.mrb[0].mxu0 %v2271
        %v2435 = vpop.f32.mrb[0].mxu0
        %v2436 = vadd.f32 0.0, %v2435
        %v2437 = vpop.f32.mrb[0].mxu0
        %2438 = vmatprep.mubr.f32.mxu0 0.0
        %2439 = vmatmul.mubr.f32.gmra.mrb[0].mxu0 %v2274
        %v2440 = vpop.f32.mrb[0].mxu0
        %v2441 = vadd.f32 0.0, %v2440
        %v2442 = vpop.f32.mrb[0].mxu0
        %2443 = vmatprep.mubr.f32.mxu0 0.0
        %2444 = vmatmul.mubr.f32.gmra.mrb[0].mxu0 %v2277
        %v2445 = vpop.f32.mrb[0].mxu0
        %v2446 = vadd.f32 0.0, %v2445
        %v2447 = vpop.f32.mrb[0].mxu0
        %2448 = vmatprep.mubr.f32.mxu0 0.0
        %2449 = vmatmul.mubr.f32.gmra.mrb[0].mxu0 %v2280
        %v2450 = vpop.f32.mrb[0].mxu0
        %v2451 = vadd.f32 0.0, %v2450
        %v2452 = vpop.f32.mrb[0].mxu0
        %2453 = vmatprep.mubr.f32.mxu0 0.0
        %2454 = vmatmul.mubr.f32.gmra.mrb[0].mxu0 %v2283
        %v2455 = vpop.f32.mrb[0].mxu0
        %v2456 = vadd.f32 0.0, %v2455
        %v2457 = vpop.f32.mrb[0].mxu0
        %2458 = vmatprep.mubr.f32.mxu0 0.0
        %2459 = vmatmul.mubr.f32.gmra.mrb[0].mxu0 %v2286
        %v2460 = vpop.f32.mrb[0].mxu0
        %v2461 = vadd.f32 0.0, %v2460
        %v2462 = vpop.f32.mrb[0].mxu0
        %2463 = vmatprep.mubr.f32.mxu0 0.0
        %2464 = vmatmul.mubr.f32.gmra.mrb[0].mxu0 %v2289
        %v2465 = vpop.f32.mrb[0].mxu0
        %v2466 = vadd.f32 0.0, %v2465
        %v2467 = vpop.f32.mrb[0].mxu0
        %2468 = vmatprep.mubr.f32.mxu0 0.0
        %2469 = vmatmul.mubr.f32.gmra.mrb[0].mxu0 %v2292
        %v2470 = vpop.f32.mrb[0].mxu0
        %v2471 = vadd.f32 0.0, %v2470
        %v2472 = vpop.f32.mrb[0].mxu0
        %2473 = vmatprep.mubr.f32.mxu0 0.0
        %2474 = vmatmul.mubr.f32.gmra.mrb[0].mxu0 %v2295
        %v2475 = vpop.f32.mrb[0].mxu0
        %v2476 = vadd.f32 0.0, %v2475
        %v2477 = vpop.f32.mrb[0].mxu0
        %2478 = vmatprep.mubr.f32.mxu0 0.0
        %2479 = vmatmul.mubr.f32.gmra.mrb[0].mxu0 %v2298
        %v2480 = vpop.f32.mrb[0].mxu0
        %v2481 = vadd.f32 0.0, %v2480
        %v2482 = vpop.f32.mrb[0].mxu0
        %2483 = vmatprep.mubr.f32.mxu0 0.0
        %2484 = vmatmul.mubr.f32.gmra.mrb[0].mxu0 %v2301
        %v2485 = vpop.f32.mrb[0].mxu0
        %v2486 = vadd.f32 0.0, %v2485
        %v2487 = vpop.f32.mrb[0].mxu0
        %2488 = vmatprep.mubr.f32.mxu0 0.0
        %2489 = vmatmul.mubr.f32.gmra.mrb[0].mxu0 %v2304
        %v2490 = vpop.f32.mrb[0].mxu0
        %v2491 = vadd.f32 0.0, %v2490
        %v2492 = vpop.f32.mrb[0].mxu0
        %2493 = vmatprep.mubr.f32.mxu0 0.0
        %2494 = vmatmul.mubr.f32.gmra.mrb[0].mxu0 %v2307
        %v2495 = vpop.f32.mrb[0].mxu0
        %v2496 = vadd.f32 0.0, %v2495
        %v2497 = vpop.f32.mrb[0].mxu0
        %2498 = vmatprep.mubr.f32.mxu0 0.0
        %2499 = vmatmul.mubr.f32.gmra.mrb[0].mxu0 %v2310
        %v2500 = vpop.f32.mrb[0].mxu0
        %v2501 = vadd.f32 0.0, %v2500
        %v2502 = vpop.f32.mrb[0].mxu0
        %2503 = vmatprep.mubr.f32.mxu0 0.0
        %2504 = vmatmul.mubr.f32.gmra.mrb[0].mxu0 %v2313
        %v2505 = vpop.f32.mrb[0].mxu0
        %v2506 = vadd.f32 0.0, %v2505
        %v2507 = vpop.f32.mrb[0].mxu0
        %2508 = vmatprep.mubr.f32.mxu0 0.0
        %2509 = vmatmul.mubr.f32.gmra.mrb[0].mxu0 %v2316
        %v2510 = vpop.f32.mrb[0].mxu0
        %v2511 = vadd.f32 0.0, %v2510
        %v2512 = vpop.f32.mrb[0].mxu0
        %2513 = vmatprep.mubr.f32.mxu0 0.0
        %2514 = vmatmul.mubr.f32.gmra.mrb[0].mxu0 %v2319
        %v2515 = vpop.f32.mrb[0].mxu0
        %v2516 = vadd.f32 0.0, %v2515
        %v2517 = vpop.f32.mrb[0].mxu0
        %2518 = vmatprep.mubr.f32.mxu0 0.0
        %2519 = vmatmul.mubr.f32.gmra.mrb[0].mxu0 %v2322
        %v2520 = vpop.f32.mrb[0].mxu0
        %v2521 = vadd.f32 0.0, %v2520
        %v2522 = vpop.f32.mrb[0].mxu0
        %2523 = vmatprep.mubr.f32.mxu0 0.0
        %2524 = vmatmul.mubr.f32.gmra.mrb[0].mxu0 %v2325
        %v2525 = vpop.f32.mrb[0].mxu0
        %v2526 = vadd.f32 0.0, %v2525
        %v2527 = vpop.f32.mrb[0].mxu0
        %2528 = vmatprep.mubr.f32.mxu0 0.0
        %2529 = vmatmul.mubr.f32.gmra.mrb[0].mxu0 %v2328
        %v2530 = vpop.f32.mrb[0].mxu0
        %v2531 = vadd.f32 0.0, %v2530
        %v2532 = vpop.f32.mrb[0].mxu0
        %2533 = vmatprep.mubr.f32.mxu0 0.0
        %2534 = vmatmul.mubr.f32.gmra.mrb[0].mxu0 %v2331
        %v2535 = vpop.f32.mrb[0].mxu0
        %v2536 = vadd.f32 0.0, %v2535
        %v2537 = vpop.f32.mrb[0].mxu0
        %2538 = vmatprep.mubr.f32.mxu0 0.0
        %2539 = vmatmul.mubr.f32.gmra.mrb[0].mxu0 %v2334
        %v2540 = vpop.f32.mrb[0].mxu0
        %v2541 = vadd.f32 0.0, %v2540
        %v2542 = vpop.f32.mrb[0].mxu0
        %2543 = vmatprep.mubr.f32.mxu0 0.0
        %2544 = vmatmul.mubr.f32.gmra.mrb[0].mxu0 %v2337
        %v2545 = vpop.f32.mrb[0].mxu0
        %v2546 = vadd.f32 0.0, %v2545
        %v2547 = vpop.f32.mrb[0].mxu0
        %2548 = vmatprep.mubr.f32.mxu0 0.0
        %2549 = vmatmul.mubr.f32.gmra.mrb[0].mxu0 %v2340
        %v2550 = vpop.f32.mrb[0].mxu0
        %v2551 = vadd.f32 0.0, %v2550
        %v2552 = vpop.f32.mrb[0].mxu0
        %2553 = vmatprep.mubr.f32.mxu0 0.0
        %2554 = vmatmul.mubr.f32.gmra.mrb[0].mxu0 %v2343
        %v2555 = vpop.f32.mrb[0].mxu0
        %v2556 = vadd.f32 0.0, %v2555
        %v2557 = vpop.f32.mrb[0].mxu0
        %2558 = vmatprep.mubr.f32.mxu0 0.0
        %2559 = vmatmul.mubr.f32.gmra.mrb[0].mxu0 %v2346
        %v2560 = vpop.f32.mrb[0].mxu0
        %v2561 = vadd.f32 0.0, %v2560
        %v2562 = vpop.f32.mrb[0].mxu0
        %2563 = vmatprep.mubr.f32.mxu0 0.0
        %2564 = vmatmul.mubr.f32.gmra.mrb[0].mxu0 %v2349
        %v2565 = vpop.f32.mrb[0].mxu0
        %v2566 = vadd.f32 0.0, %v2565
        %v2567 = vpop.f32.mrb[0].mxu0
        %2568 = vmatprep.mubr.f32.mxu0 0.0
        %2569 = vmatmul.mubr.f32.gmra.mrb[0].mxu0 %v2352
        %v2570 = vpop.f32.mrb[0].mxu0
        %v2571 = vadd.f32 0.0, %v2570
        %v2572 = vpop.f32.mrb[0].mxu0
        %2573 = vmatprep.mubr.f32.mxu0 0.0
        %2574 = vmatmul.mubr.f32.gmra.mrb[0].mxu0 %v2355
        %v2575 = vpop.f32.mrb[0].mxu0
        %v2576 = vadd.f32 0.0, %v2575
        %v2577 = vpop.f32.mrb[0].mxu0
        %2578 = vmatprep.mubr.f32.mxu0 0.0
        %2579 = vmatmul.mubr.f32.gmra.mrb[0].mxu0 %v2358
        %v2580 = vpop.f32.mrb[0].mxu0
        %v2581 = vadd.f32 0.0, %v2580
        %v2582 = vpop.f32.mrb[0].mxu0
        %2583 = vmatprep.mubr.f32.mxu0 0.0
        %2584 = vmatmul.mubr.f32.gmra.mrb[0].mxu0 %v2361
        %v2585 = vpop.f32.mrb[0].mxu0
        %v2586 = vadd.f32 0.0, %v2585
        %v2587 = vpop.f32.mrb[0].mxu0
        %2588 = vmatprep.mubr.f32.mxu0 0.0
        %2589 = vmatmul.mubr.f32.gmra.mrb[0].mxu0 %v2364
        %v2590 = vpop.f32.mrb[0].mxu0
        %v2591 = vadd.f32 0.0, %v2590
        %v2592 = vpop.f32.mrb[0].mxu0
        %2593 = vdwg.mxu0
        %v2594 = vadd.f32 %v2204, %v2436
        %v2595 = vadd.f32 %v2205, %v2441
        %v2596 = vadd.f32 %v2206, %v2446
        %v2597 = vadd.f32 %v2207, %v2451
        %v2598 = vadd.f32 %v2208, %v2456
        %v2599 = vadd.f32 %v2209, %v2461
        %v2600 = vadd.f32 %v2210, %v2466
        %v2601 = vadd.f32 %v2211, %v2471
        %v2602 = vadd.f32 %v2212, %v2476
        %v2603 = vadd.f32 %v2213, %v2481
        %v2604 = vadd.f32 %v2214, %v2486
        %v2605 = vadd.f32 %v2215, %v2491
        %v2606 = vadd.f32 %v2216, %v2496
        %v2607 = vadd.f32 %v2217, %v2501
        %v2608 = vadd.f32 %v2218, %v2506
        %v2609 = vadd.f32 %v2219, %v2511
        %v2610 = vadd.f32 %v2220, %v2516
        %v2611 = vadd.f32 %v2221, %v2521
        %v2612 = vadd.f32 %v2222, %v2526
        %v2613 = vadd.f32 %v2223, %v2531
        %v2614 = vadd.f32 %v2224, %v2536
        %v2615 = vadd.f32 %v2225, %v2541
        %v2616 = vadd.f32 %v2226, %v2546
        %v2617 = vadd.f32 %v2227, %v2551
        %v2618 = vadd.f32 %v2228, %v2556
        %v2619 = vadd.f32 %v2229, %v2561
        %v2620 = vadd.f32 %v2230, %v2566
        %v2621 = vadd.f32 %v2231, %v2571
        %v2622 = vadd.f32 %v2232, %v2576
        %v2623 = vadd.f32 %v2233, %v2581
        %v2624 = vadd.f32 %v2234, %v2586
        %v2625 = vadd.f32 %v2235, %v2591
        %s2626 = scalar_lea.vmem [#allocation2], 48
        %v2627 = vld [vmem:[%s2626] sm:$0xff]
        %v2628 = vld [vmem:[%s2626 + $0x8] sm:$0xff]
        %v2629 = vld [vmem:[%s2626 + $0x18] sm:$0xff]
        %v2630 = vld [vmem:[%s2626 + $0x20] sm:$0xff]
        %v2631 = vld [vmem:[%s2626 + $0x30] sm:$0xff]
        %v2632 = vld [vmem:[%s2626 + $0x38] sm:$0xff]
        %v2633 = vld [vmem:[%s2626 + $0x48] sm:$0xff]
        %v2634 = vld [vmem:[%s2626 + $0x50] sm:$0xff]
        %v2635 = vld [vmem:[%s2626 + $0x60] sm:$0xff]
        %v2636 = vld [vmem:[%s2626 + $0x68] sm:$0xff]
        %v2637 = vld [vmem:[%s2626 + $0x78] sm:$0xff]
        %v2638 = vld [vmem:[%s2626 + $0x80] sm:$0xff]
        %v2639 = vld [vmem:[%s2626 + $0x90] sm:$0xff]
        %v2640 = vld [vmem:[%s2626 + $0x98] sm:$0xff]
        %v2641 = vld [vmem:[%s2626 + $0xa8] sm:$0xff]
        %v2642 = vld [vmem:[%s2626 + $0xb0] sm:$0xff]
        %v2643 = vld [vmem:[%s2626 + $0xc0] sm:$0xff]
        %v2644 = vld [vmem:[%s2626 + $0xc8] sm:$0xff]
        %v2645 = vld [vmem:[%s2626 + $0xd8] sm:$0xff]
        %v2646 = vld [vmem:[%s2626 + $0xe0] sm:$0xff]
        %v2647 = vld [vmem:[%s2626 + $0xf0] sm:$0xff]
        %v2648 = vld [vmem:[%s2626 + $0xf8] sm:$0xff]
        %v2649 = vld [vmem:[%s2626 + $0x108] sm:$0xff]
        %v2650 = vld [vmem:[%s2626 + $0x110] sm:$0xff]
        %v2651 = vld [vmem:[%s2626 + $0x120] sm:$0xff]
        %v2652 = vld [vmem:[%s2626 + $0x128] sm:$0xff]
        %v2653 = vld [vmem:[%s2626 + $0x138] sm:$0xff]
        %v2654 = vld [vmem:[%s2626 + $0x140] sm:$0xff]
        %v2655 = vld [vmem:[%s2626 + $0x150] sm:$0xff]
        %v2656 = vld [vmem:[%s2626 + $0x158] sm:$0xff]
        %v2657 = vld [vmem:[%s2626 + $0x168] sm:$0xff]
        %v2658 = vld [vmem:[%s2626 + $0x170] sm:$0xff]
        %s2659 = scalar_lea.vmem %s1, 24
        %v2660 = vld [vmem:[%s2659] sm:$0xf]
        %v2662 = vsel %vm229, %v2627, 0
        %v2665 = vsel %vm229, %v2628, 0
        %v2668 = vsel %vm229, %v2629, 0
        %v2671 = vsel %vm229, %v2630, 0
        %v2674 = vsel %vm229, %v2631, 0
        %v2677 = vsel %vm229, %v2632, 0
        %v2680 = vsel %vm229, %v2633, 0
        %v2683 = vsel %vm229, %v2634, 0
        %v2686 = vsel %vm229, %v2635, 0
        %v2689 = vsel %vm229, %v2636, 0
        %v2692 = vsel %vm229, %v2637, 0
        %v2695 = vsel %vm229, %v2638, 0
        %v2698 = vsel %vm229, %v2639, 0
        %v2701 = vsel %vm229, %v2640, 0
        %v2704 = vsel %vm229, %v2641, 0
        %v2707 = vsel %vm229, %v2642, 0
        %v2710 = vsel %vm229, %v2643, 0
        %v2713 = vsel %vm229, %v2644, 0
        %v2716 = vsel %vm229, %v2645, 0
        %v2719 = vsel %vm229, %v2646, 0
        %v2722 = vsel %vm229, %v2647, 0
        %v2725 = vsel %vm229, %v2648, 0
        %v2728 = vsel %vm229, %v2649, 0
        %v2731 = vsel %vm229, %v2650, 0
        %v2734 = vsel %vm229, %v2651, 0
        %v2737 = vsel %vm229, %v2652, 0
        %v2740 = vsel %vm229, %v2653, 0
        %v2743 = vsel %vm229, %v2654, 0
        %v2746 = vsel %vm229, %v2655, 0
        %v2749 = vsel %vm229, %v2656, 0
        %v2752 = vsel %vm229, %v2657, 0
        %v2755 = vsel %vm229, %v2658, 0
        %v2758 = vsel %vm513, %v2660, 0
        %2760 = vmatprep.subr.mxu0 0.0
        %2761 = vmatpush1.msra.mxu0 %v2758
        %2762 = vmatprep.subr.mxu0 0.0
        %2763 = vmatpush1.msra.mxu0 0.0
        %2764 = vmatprep.subr.mxu0 0.0
        %2765 = vmatpush1.msra.mxu0 0.0
        %2766 = vmatprep.subr.mxu0 0.0
        %2767 = vmatpush1.msra.mxu0 0.0
        %2768 = vmatprep.subr.mxu0 0.0
        %2769 = vmatpush1.msra.mxu0 0.0
        %2770 = vmatprep.subr.mxu0 0.0
        %2771 = vmatpush1.msra.mxu0 0.0
        %2772 = vmatprep.subr.mxu0 0.0
        %2773 = vmatpush1.msra.mxu0 0.0
        %2774 = vmatprep.subr.mxu0 0.0
        %2775 = vmatpush1.msra.mxu0 0.0
        %2776 = vmatprep.subr.mxu0 0.0
        %2777 = vmatpush1.msra.mxu0 0.0
        %2778 = vmatprep.subr.mxu0 0.0
        %2779 = vmatpush1.msra.mxu0 0.0
        %2780 = vmatprep.subr.mxu0 0.0
        %2781 = vmatpush1.msra.mxu0 0.0
        %2782 = vmatprep.subr.mxu0 0.0
        %2783 = vmatpush1.msra.mxu0 0.0
        %2784 = vmatprep.subr.mxu0 0.0
        %2785 = vmatpush1.msra.mxu0 0.0
        %2786 = vmatprep.subr.mxu0 0.0
        %2787 = vmatpush1.msra.mxu0 0.0
        %2788 = vmatprep.subr.mxu0 0.0
        %2789 = vmatpush1.msra.mxu0 0.0
        %2790 = vmatprep.subr.mxu0 0.0
        %2791 = vmatpush1.msra.mxu0 0.0
        %2792 = vmatprep.subr.mxu0 0.0
        %2793 = vmatpush1.msra.mxu0 0.0
        %2794 = vmatprep.subr.mxu0 0.0
        %2795 = vmatpush1.msra.mxu0 0.0
        %2796 = vmatprep.subr.mxu0 0.0
        %2797 = vmatpush1.msra.mxu0 0.0
        %2798 = vmatprep.subr.mxu0 0.0
        %2799 = vmatpush1.msra.mxu0 0.0
        %2800 = vmatprep.subr.mxu0 0.0
        %2801 = vmatpush1.msra.mxu0 0.0
        %2802 = vmatprep.subr.mxu0 0.0
        %2803 = vmatpush1.msra.mxu0 0.0
        %2804 = vmatprep.subr.mxu0 0.0
        %2805 = vmatpush1.msra.mxu0 0.0
        %2806 = vmatprep.subr.mxu0 0.0
        %2807 = vmatpush1.msra.mxu0 0.0
        %2808 = vmatprep.subr.mxu0 0.0
        %2809 = vmatpush1.msra.mxu0 0.0
        %2810 = vmatprep.subr.mxu0 0.0
        %2811 = vmatpush1.msra.mxu0 0.0
        %2812 = vmatprep.subr.mxu0 0.0
        %2813 = vmatpush1.msra.mxu0 0.0
        %2814 = vmatprep.subr.mxu0 0.0
        %2815 = vmatpush1.msra.mxu0 0.0
        %2816 = vmatprep.subr.mxu0 0.0
        %2817 = vmatpush1.msra.mxu0 0.0
        %2818 = vmatprep.subr.mxu0 0.0
        %2819 = vmatpush1.msra.mxu0 0.0
        %2820 = vmatprep.subr.mxu0 0.0
        %2821 = vmatpush1.msra.mxu0 0.0
        %2822 = vmatprep.subr.mxu0 0.0
        %2823 = vmatpush1.msra.mxu0 0.0
        %2824 = vmatprep.mubr.f32.mxu0 0.0
        %2825 = vmatmul.mubr.f32.gmra.mrb[0].mxu0 %v2662
        %v2826 = vpop.f32.mrb[0].mxu0
        %v2827 = vadd.f32 0.0, %v2826
        %v2828 = vpop.f32.mrb[0].mxu0
        %2829 = vmatprep.mubr.f32.mxu0 0.0
        %2830 = vmatmul.mubr.f32.gmra.mrb[0].mxu0 %v2665
        %v2831 = vpop.f32.mrb[0].mxu0
        %v2832 = vadd.f32 0.0, %v2831
        %v2833 = vpop.f32.mrb[0].mxu0
        %2834 = vmatprep.mubr.f32.mxu0 0.0
        %2835 = vmatmul.mubr.f32.gmra.mrb[0].mxu0 %v2668
        %v2836 = vpop.f32.mrb[0].mxu0
        %v2837 = vadd.f32 0.0, %v2836
        %v2838 = vpop.f32.mrb[0].mxu0
        %2839 = vmatprep.mubr.f32.mxu0 0.0
        %2840 = vmatmul.mubr.f32.gmra.mrb[0].mxu0 %v2671
        %v2841 = vpop.f32.mrb[0].mxu0
        %v2842 = vadd.f32 0.0, %v2841
        %v2843 = vpop.f32.mrb[0].mxu0
        %2844 = vmatprep.mubr.f32.mxu0 0.0
        %2845 = vmatmul.mubr.f32.gmra.mrb[0].mxu0 %v2674
        %v2846 = vpop.f32.mrb[0].mxu0
        %v2847 = vadd.f32 0.0, %v2846
        %v2848 = vpop.f32.mrb[0].mxu0
        %2849 = vmatprep.mubr.f32.mxu0 0.0
        %2850 = vmatmul.mubr.f32.gmra.mrb[0].mxu0 %v2677
        %v2851 = vpop.f32.mrb[0].mxu0
        %v2852 = vadd.f32 0.0, %v2851
        %v2853 = vpop.f32.mrb[0].mxu0
        %2854 = vmatprep.mubr.f32.mxu0 0.0
        %2855 = vmatmul.mubr.f32.gmra.mrb[0].mxu0 %v2680
        %v2856 = vpop.f32.mrb[0].mxu0
        %v2857 = vadd.f32 0.0, %v2856
        %v2858 = vpop.f32.mrb[0].mxu0
        %2859 = vmatprep.mubr.f32.mxu0 0.0
        %2860 = vmatmul.mubr.f32.gmra.mrb[0].mxu0 %v2683
        %v2861 = vpop.f32.mrb[0].mxu0
        %v2862 = vadd.f32 0.0, %v2861
        %v2863 = vpop.f32.mrb[0].mxu0
        %2864 = vmatprep.mubr.f32.mxu0 0.0
        %2865 = vmatmul.mubr.f32.gmra.mrb[0].mxu0 %v2686
        %v2866 = vpop.f32.mrb[0].mxu0
        %v2867 = vadd.f32 0.0, %v2866
        %v2868 = vpop.f32.mrb[0].mxu0
        %2869 = vmatprep.mubr.f32.mxu0 0.0
        %2870 = vmatmul.mubr.f32.gmra.mrb[0].mxu0 %v2689
        %v2871 = vpop.f32.mrb[0].mxu0
        %v2872 = vadd.f32 0.0, %v2871
        %v2873 = vpop.f32.mrb[0].mxu0
        %2874 = vmatprep.mubr.f32.mxu0 0.0
        %2875 = vmatmul.mubr.f32.gmra.mrb[0].mxu0 %v2692
        %v2876 = vpop.f32.mrb[0].mxu0
        %v2877 = vadd.f32 0.0, %v2876
        %v2878 = vpop.f32.mrb[0].mxu0
        %2879 = vmatprep.mubr.f32.mxu0 0.0
        %2880 = vmatmul.mubr.f32.gmra.mrb[0].mxu0 %v2695
        %v2881 = vpop.f32.mrb[0].mxu0
        %v2882 = vadd.f32 0.0, %v2881
        %v2883 = vpop.f32.mrb[0].mxu0
        %2884 = vmatprep.mubr.f32.mxu0 0.0
        %2885 = vmatmul.mubr.f32.gmra.mrb[0].mxu0 %v2698
        %v2886 = vpop.f32.mrb[0].mxu0
        %v2887 = vadd.f32 0.0, %v2886
        %v2888 = vpop.f32.mrb[0].mxu0
        %2889 = vmatprep.mubr.f32.mxu0 0.0
        %2890 = vmatmul.mubr.f32.gmra.mrb[0].mxu0 %v2701
        %v2891 = vpop.f32.mrb[0].mxu0
        %v2892 = vadd.f32 0.0, %v2891
        %v2893 = vpop.f32.mrb[0].mxu0
        %2894 = vmatprep.mubr.f32.mxu0 0.0
        %2895 = vmatmul.mubr.f32.gmra.mrb[0].mxu0 %v2704
        %v2896 = vpop.f32.mrb[0].mxu0
        %v2897 = vadd.f32 0.0, %v2896
        %v2898 = vpop.f32.mrb[0].mxu0
        %2899 = vmatprep.mubr.f32.mxu0 0.0
        %2900 = vmatmul.mubr.f32.gmra.mrb[0].mxu0 %v2707
        %v2901 = vpop.f32.mrb[0].mxu0
        %v2902 = vadd.f32 0.0, %v2901
        %v2903 = vpop.f32.mrb[0].mxu0
        %2904 = vmatprep.mubr.f32.mxu0 0.0
        %2905 = vmatmul.mubr.f32.gmra.mrb[0].mxu0 %v2710
        %v2906 = vpop.f32.mrb[0].mxu0
        %v2907 = vadd.f32 0.0, %v2906
        %v2908 = vpop.f32.mrb[0].mxu0
        %2909 = vmatprep.mubr.f32.mxu0 0.0
        %2910 = vmatmul.mubr.f32.gmra.mrb[0].mxu0 %v2713
        %v2911 = vpop.f32.mrb[0].mxu0
        %v2912 = vadd.f32 0.0, %v2911
        %v2913 = vpop.f32.mrb[0].mxu0
        %2914 = vmatprep.mubr.f32.mxu0 0.0
        %2915 = vmatmul.mubr.f32.gmra.mrb[0].mxu0 %v2716
        %v2916 = vpop.f32.mrb[0].mxu0
        %v2917 = vadd.f32 0.0, %v2916
        %v2918 = vpop.f32.mrb[0].mxu0
        %2919 = vmatprep.mubr.f32.mxu0 0.0
        %2920 = vmatmul.mubr.f32.gmra.mrb[0].mxu0 %v2719
        %v2921 = vpop.f32.mrb[0].mxu0
        %v2922 = vadd.f32 0.0, %v2921
        %v2923 = vpop.f32.mrb[0].mxu0
        %2924 = vmatprep.mubr.f32.mxu0 0.0
        %2925 = vmatmul.mubr.f32.gmra.mrb[0].mxu0 %v2722
        %v2926 = vpop.f32.mrb[0].mxu0
        %v2927 = vadd.f32 0.0, %v2926
        %v2928 = vpop.f32.mrb[0].mxu0
        %2929 = vmatprep.mubr.f32.mxu0 0.0
        %2930 = vmatmul.mubr.f32.gmra.mrb[0].mxu0 %v2725
        %v2931 = vpop.f32.mrb[0].mxu0
        %v2932 = vadd.f32 0.0, %v2931
        %v2933 = vpop.f32.mrb[0].mxu0
        %2934 = vmatprep.mubr.f32.mxu0 0.0
        %2935 = vmatmul.mubr.f32.gmra.mrb[0].mxu0 %v2728
        %v2936 = vpop.f32.mrb[0].mxu0
        %v2937 = vadd.f32 0.0, %v2936
        %v2938 = vpop.f32.mrb[0].mxu0
        %2939 = vmatprep.mubr.f32.mxu0 0.0
        %2940 = vmatmul.mubr.f32.gmra.mrb[0].mxu0 %v2731
        %v2941 = vpop.f32.mrb[0].mxu0
        %v2942 = vadd.f32 0.0, %v2941
        %v2943 = vpop.f32.mrb[0].mxu0
        %2944 = vmatprep.mubr.f32.mxu0 0.0
        %2945 = vmatmul.mubr.f32.gmra.mrb[0].mxu0 %v2734
        %v2946 = vpop.f32.mrb[0].mxu0
        %v2947 = vadd.f32 0.0, %v2946
        %v2948 = vpop.f32.mrb[0].mxu0
        %2949 = vmatprep.mubr.f32.mxu0 0.0
        %2950 = vmatmul.mubr.f32.gmra.mrb[0].mxu0 %v2737
        %v2951 = vpop.f32.mrb[0].mxu0
        %v2952 = vadd.f32 0.0, %v2951
        %v2953 = vpop.f32.mrb[0].mxu0
        %2954 = vmatprep.mubr.f32.mxu0 0.0
        %2955 = vmatmul.mubr.f32.gmra.mrb[0].mxu0 %v2740
        %v2956 = vpop.f32.mrb[0].mxu0
        %v2957 = vadd.f32 0.0, %v2956
        %v2958 = vpop.f32.mrb[0].mxu0
        %2959 = vmatprep.mubr.f32.mxu0 0.0
        %2960 = vmatmul.mubr.f32.gmra.mrb[0].mxu0 %v2743
        %v2961 = vpop.f32.mrb[0].mxu0
        %v2962 = vadd.f32 0.0, %v2961
        %v2963 = vpop.f32.mrb[0].mxu0
        %2964 = vmatprep.mubr.f32.mxu0 0.0
        %2965 = vmatmul.mubr.f32.gmra.mrb[0].mxu0 %v2746
        %v2966 = vpop.f32.mrb[0].mxu0
        %v2967 = vadd.f32 0.0, %v2966
        %v2968 = vpop.f32.mrb[0].mxu0
        %2969 = vmatprep.mubr.f32.mxu0 0.0
        %2970 = vmatmul.mubr.f32.gmra.mrb[0].mxu0 %v2749
        %v2971 = vpop.f32.mrb[0].mxu0
        %v2972 = vadd.f32 0.0, %v2971
        %v2973 = vpop.f32.mrb[0].mxu0
        %2974 = vmatprep.mubr.f32.mxu0 0.0
        %2975 = vmatmul.mubr.f32.gmra.mrb[0].mxu0 %v2752
        %v2976 = vpop.f32.mrb[0].mxu0
        %v2977 = vadd.f32 0.0, %v2976
        %v2978 = vpop.f32.mrb[0].mxu0
        %2979 = vmatprep.mubr.f32.mxu0 0.0
        %2980 = vmatmul.mubr.f32.gmra.mrb[0].mxu0 %v2755
        %v2981 = vpop.f32.mrb[0].mxu0
        %v2982 = vadd.f32 0.0, %v2981
        %v2983 = vpop.f32.mrb[0].mxu0
        %2984 = vdwg.mxu0
        %v2985 = vadd.f32 %v2594, %v2827
        %v2986 = vadd.f32 %v2595, %v2832
        %v2987 = vadd.f32 %v2596, %v2837
        %v2988 = vadd.f32 %v2597, %v2842
        %v2989 = vadd.f32 %v2598, %v2847
        %v2990 = vadd.f32 %v2599, %v2852
        %v2991 = vadd.f32 %v2600, %v2857
        %v2992 = vadd.f32 %v2601, %v2862
        %v2993 = vadd.f32 %v2602, %v2867
        %v2994 = vadd.f32 %v2603, %v2872
        %v2995 = vadd.f32 %v2604, %v2877
        %v2996 = vadd.f32 %v2605, %v2882
        %v2997 = vadd.f32 %v2606, %v2887
        %v2998 = vadd.f32 %v2607, %v2892
        %v2999 = vadd.f32 %v2608, %v2897
        %v3000 = vadd.f32 %v2609, %v2902
        %v3001 = vadd.f32 %v2610, %v2907
        %v3002 = vadd.f32 %v2611, %v2912
        %v3003 = vadd.f32 %v2612, %v2917
        %v3004 = vadd.f32 %v2613, %v2922
        %v3005 = vadd.f32 %v2614, %v2927
        %v3006 = vadd.f32 %v2615, %v2932
        %v3007 = vadd.f32 %v2616, %v2937
        %v3008 = vadd.f32 %v2617, %v2942
        %v3009 = vadd.f32 %v2618, %v2947
        %v3010 = vadd.f32 %v2619, %v2952
        %v3011 = vadd.f32 %v2620, %v2957
        %v3012 = vadd.f32 %v2621, %v2962
        %v3013 = vadd.f32 %v2622, %v2967
        %v3014 = vadd.f32 %v2623, %v2972
        %v3015 = vadd.f32 %v2624, %v2977
        %v3016 = vadd.f32 %v2625, %v2982
        %v3017 = vld [vmem:[%s2626 + $0x1] sm:$0xff]
        %v3018 = vld [vmem:[%s2626 + $0x9] sm:$0xff]
        %v3019 = vld [vmem:[%s2626 + $0x19] sm:$0xff]
        %v3020 = vld [vmem:[%s2626 + $0x21] sm:$0xff]
        %v3021 = vld [vmem:[%s2626 + $0x31] sm:$0xff]
        %v3022 = vld [vmem:[%s2626 + $0x39] sm:$0xff]
        %v3023 = vld [vmem:[%s2626 + $0x49] sm:$0xff]
        %v3024 = vld [vmem:[%s2626 + $0x51] sm:$0xff]
        %v3025 = vld [vmem:[%s2626 + $0x61] sm:$0xff]
        %v3026 = vld [vmem:[%s2626 + $0x69] sm:$0xff]
        %v3027 = vld [vmem:[%s2626 + $0x79] sm:$0xff]
        %v3028 = vld [vmem:[%s2626 + $0x81] sm:$0xff]
        %v3029 = vld [vmem:[%s2626 + $0x91] sm:$0xff]
        %v3030 = vld [vmem:[%s2626 + $0x99] sm:$0xff]
        %v3031 = vld [vmem:[%s2626 + $0xa9] sm:$0xff]
        %v3032 = vld [vmem:[%s2626 + $0xb1] sm:$0xff]
        %v3033 = vld [vmem:[%s2626 + $0xc1] sm:$0xff]
        %v3034 = vld [vmem:[%s2626 + $0xc9] sm:$0xff]
        %v3035 = vld [vmem:[%s2626 + $0xd9] sm:$0xff]
        %v3036 = vld [vmem:[%s2626 + $0xe1] sm:$0xff]
        %v3037 = vld [vmem:[%s2626 + $0xf1] sm:$0xff]
        %v3038 = vld [vmem:[%s2626 + $0xf9] sm:$0xff]
        %v3039 = vld [vmem:[%s2626 + $0x109] sm:$0xff]
        %v3040 = vld [vmem:[%s2626 + $0x111] sm:$0xff]
        %v3041 = vld [vmem:[%s2626 + $0x121] sm:$0xff]
        %v3042 = vld [vmem:[%s2626 + $0x129] sm:$0xff]
        %v3043 = vld [vmem:[%s2626 + $0x139] sm:$0xff]
        %v3044 = vld [vmem:[%s2626 + $0x141] sm:$0xff]
        %v3045 = vld [vmem:[%s2626 + $0x151] sm:$0xff]
        %v3046 = vld [vmem:[%s2626 + $0x159] sm:$0xff]
        %v3047 = vld [vmem:[%s2626 + $0x169] sm:$0xff]
        %v3048 = vld [vmem:[%s2626 + $0x171] sm:$0xff]
        %s3049 = scalar_lea.vmem %s1, 28
        %v3050 = vld [vmem:[%s3049] sm:$0xf]
        %v3052 = vsel %vm229, %v3017, 0
        %v3055 = vsel %vm229, %v3018, 0
        %v3058 = vsel %vm229, %v3019, 0
        %v3061 = vsel %vm229, %v3020, 0
        %v3064 = vsel %vm229, %v3021, 0
        %v3067 = vsel %vm229, %v3022, 0
        %v3070 = vsel %vm229, %v3023, 0
        %v3073 = vsel %vm229, %v3024, 0
        %v3076 = vsel %vm229, %v3025, 0
        %v3079 = vsel %vm229, %v3026, 0
        %v3082 = vsel %vm229, %v3027, 0
        %v3085 = vsel %vm229, %v3028, 0
        %v3088 = vsel %vm229, %v3029, 0
        %v3091 = vsel %vm229, %v3030, 0
        %v3094 = vsel %vm229, %v3031, 0
        %v3097 = vsel %vm229, %v3032, 0
        %v3100 = vsel %vm229, %v3033, 0
        %v3103 = vsel %vm229, %v3034, 0
        %v3106 = vsel %vm229, %v3035, 0
        %v3109 = vsel %vm229, %v3036, 0
        %v3112 = vsel %vm229, %v3037, 0
        %v3115 = vsel %vm229, %v3038, 0
        %v3118 = vsel %vm229, %v3039, 0
        %v3121 = vsel %vm229, %v3040, 0
        %v3124 = vsel %vm229, %v3041, 0
        %v3127 = vsel %vm229, %v3042, 0
        %v3130 = vsel %vm229, %v3043, 0
        %v3133 = vsel %vm229, %v3044, 0
        %v3136 = vsel %vm229, %v3045, 0
        %v3139 = vsel %vm229, %v3046, 0
        %v3142 = vsel %vm229, %v3047, 0
        %v3145 = vsel %vm229, %v3048, 0
        %v3148 = vsel %vm513, %v3050, 0
        %3150 = vmatprep.subr.mxu0 0.0
        %3151 = vmatpush1.msra.mxu0 %v3148
        %3152 = vmatprep.subr.mxu0 0.0
        %3153 = vmatpush1.msra.mxu0 0.0
        %3154 = vmatprep.subr.mxu0 0.0
        %3155 = vmatpush1.msra.mxu0 0.0
        %3156 = vmatprep.subr.mxu0 0.0
        %3157 = vmatpush1.msra.mxu0 0.0
        %3158 = vmatprep.subr.mxu0 0.0
        %3159 = vmatpush1.msra.mxu0 0.0
        %3160 = vmatprep.subr.mxu0 0.0
        %3161 = vmatpush1.msra.mxu0 0.0
        %3162 = vmatprep.subr.mxu0 0.0
        %3163 = vmatpush1.msra.mxu0 0.0
        %3164 = vmatprep.subr.mxu0 0.0
        %3165 = vmatpush1.msra.mxu0 0.0
        %3166 = vmatprep.subr.mxu0 0.0
        %3167 = vmatpush1.msra.mxu0 0.0
        %3168 = vmatprep.subr.mxu0 0.0
        %3169 = vmatpush1.msra.mxu0 0.0
        %3170 = vmatprep.subr.mxu0 0.0
        %3171 = vmatpush1.msra.mxu0 0.0
        %3172 = vmatprep.subr.mxu0 0.0
        %3173 = vmatpush1.msra.mxu0 0.0
        %3174 = vmatprep.subr.mxu0 0.0
        %3175 = vmatpush1.msra.mxu0 0.0
        %3176 = vmatprep.subr.mxu0 0.0
        %3177 = vmatpush1.msra.mxu0 0.0
        %3178 = vmatprep.subr.mxu0 0.0
        %3179 = vmatpush1.msra.mxu0 0.0
        %3180 = vmatprep.subr.mxu0 0.0
        %3181 = vmatpush1.msra.mxu0 0.0
        %3182 = vmatprep.subr.mxu0 0.0
        %3183 = vmatpush1.msra.mxu0 0.0
        %3184 = vmatprep.subr.mxu0 0.0
        %3185 = vmatpush1.msra.mxu0 0.0
        %3186 = vmatprep.subr.mxu0 0.0
        %3187 = vmatpush1.msra.mxu0 0.0
        %3188 = vmatprep.subr.mxu0 0.0
        %3189 = vmatpush1.msra.mxu0 0.0
        %3190 = vmatprep.subr.mxu0 0.0
        %3191 = vmatpush1.msra.mxu0 0.0
        %3192 = vmatprep.subr.mxu0 0.0
        %3193 = vmatpush1.msra.mxu0 0.0
        %3194 = vmatprep.subr.mxu0 0.0
        %3195 = vmatpush1.msra.mxu0 0.0
        %3196 = vmatprep.subr.mxu0 0.0
        %3197 = vmatpush1.msra.mxu0 0.0
        %3198 = vmatprep.subr.mxu0 0.0
        %3199 = vmatpush1.msra.mxu0 0.0
        %3200 = vmatprep.subr.mxu0 0.0
        %3201 = vmatpush1.msra.mxu0 0.0
        %3202 = vmatprep.subr.mxu0 0.0
        %3203 = vmatpush1.msra.mxu0 0.0
        %3204 = vmatprep.subr.mxu0 0.0
        %3205 = vmatpush1.msra.mxu0 0.0
        %3206 = vmatprep.subr.mxu0 0.0
        %3207 = vmatpush1.msra.mxu0 0.0
        %3208 = vmatprep.subr.mxu0 0.0
        %3209 = vmatpush1.msra.mxu0 0.0
        %3210 = vmatprep.subr.mxu0 0.0
        %3211 = vmatpush1.msra.mxu0 0.0
        %3212 = vmatprep.subr.mxu0 0.0
        %3213 = vmatpush1.msra.mxu0 0.0
        %3214 = vmatprep.mubr.f32.mxu0 0.0
        %3215 = vmatmul.mubr.f32.gmra.mrb[0].mxu0 %v3052
        %v3216 = vpop.f32.mrb[0].mxu0
        %v3217 = vadd.f32 0.0, %v3216
        %v3218 = vpop.f32.mrb[0].mxu0
        %3219 = vmatprep.mubr.f32.mxu0 0.0
        %3220 = vmatmul.mubr.f32.gmra.mrb[0].mxu0 %v3055
        %v3221 = vpop.f32.mrb[0].mxu0
        %v3222 = vadd.f32 0.0, %v3221
        %v3223 = vpop.f32.mrb[0].mxu0
        %3224 = vmatprep.mubr.f32.mxu0 0.0
        %3225 = vmatmul.mubr.f32.gmra.mrb[0].mxu0 %v3058
        %v3226 = vpop.f32.mrb[0].mxu0
        %v3227 = vadd.f32 0.0, %v3226
        %v3228 = vpop.f32.mrb[0].mxu0
        %3229 = vmatprep.mubr.f32.mxu0 0.0
        %3230 = vmatmul.mubr.f32.gmra.mrb[0].mxu0 %v3061
        %v3231 = vpop.f32.mrb[0].mxu0
        %v3232 = vadd.f32 0.0, %v3231
        %v3233 = vpop.f32.mrb[0].mxu0
        %3234 = vmatprep.mubr.f32.mxu0 0.0
        %3235 = vmatmul.mubr.f32.gmra.mrb[0].mxu0 %v3064
        %v3236 = vpop.f32.mrb[0].mxu0
        %v3237 = vadd.f32 0.0, %v3236
        %v3238 = vpop.f32.mrb[0].mxu0
        %3239 = vmatprep.mubr.f32.mxu0 0.0
        %3240 = vmatmul.mubr.f32.gmra.mrb[0].mxu0 %v3067
        %v3241 = vpop.f32.mrb[0].mxu0
        %v3242 = vadd.f32 0.0, %v3241
        %v3243 = vpop.f32.mrb[0].mxu0
        %3244 = vmatprep.mubr.f32.mxu0 0.0
        %3245 = vmatmul.mubr.f32.gmra.mrb[0].mxu0 %v3070
        %v3246 = vpop.f32.mrb[0].mxu0
        %v3247 = vadd.f32 0.0, %v3246
        %v3248 = vpop.f32.mrb[0].mxu0
        %3249 = vmatprep.mubr.f32.mxu0 0.0
        %3250 = vmatmul.mubr.f32.gmra.mrb[0].mxu0 %v3073
        %v3251 = vpop.f32.mrb[0].mxu0
        %v3252 = vadd.f32 0.0, %v3251
        %v3253 = vpop.f32.mrb[0].mxu0
        %3254 = vmatprep.mubr.f32.mxu0 0.0
        %3255 = vmatmul.mubr.f32.gmra.mrb[0].mxu0 %v3076
        %v3256 = vpop.f32.mrb[0].mxu0
        %v3257 = vadd.f32 0.0, %v3256
        %v3258 = vpop.f32.mrb[0].mxu0
        %3259 = vmatprep.mubr.f32.mxu0 0.0
        %3260 = vmatmul.mubr.f32.gmra.mrb[0].mxu0 %v3079
        %v3261 = vpop.f32.mrb[0].mxu0
        %v3262 = vadd.f32 0.0, %v3261
        %v3263 = vpop.f32.mrb[0].mxu0
        %3264 = vmatprep.mubr.f32.mxu0 0.0
        %3265 = vmatmul.mubr.f32.gmra.mrb[0].mxu0 %v3082
        %v3266 = vpop.f32.mrb[0].mxu0
        %v3267 = vadd.f32 0.0, %v3266
        %v3268 = vpop.f32.mrb[0].mxu0
        %3269 = vmatprep.mubr.f32.mxu0 0.0
        %3270 = vmatmul.mubr.f32.gmra.mrb[0].mxu0 %v3085
        %v3271 = vpop.f32.mrb[0].mxu0
        %v3272 = vadd.f32 0.0, %v3271
        %v3273 = vpop.f32.mrb[0].mxu0
        %3274 = vmatprep.mubr.f32.mxu0 0.0
        %3275 = vmatmul.mubr.f32.gmra.mrb[0].mxu0 %v3088
        %v3276 = vpop.f32.mrb[0].mxu0
        %v3277 = vadd.f32 0.0, %v3276
        %v3278 = vpop.f32.mrb[0].mxu0
        %3279 = vmatprep.mubr.f32.mxu0 0.0
        %3280 = vmatmul.mubr.f32.gmra.mrb[0].mxu0 %v3091
        %v3281 = vpop.f32.mrb[0].mxu0
        %v3282 = vadd.f32 0.0, %v3281
        %v3283 = vpop.f32.mrb[0].mxu0
        %3284 = vmatprep.mubr.f32.mxu0 0.0
        %3285 = vmatmul.mubr.f32.gmra.mrb[0].mxu0 %v3094
        %v3286 = vpop.f32.mrb[0].mxu0
        %v3287 = vadd.f32 0.0, %v3286
        %v3288 = vpop.f32.mrb[0].mxu0
        %3289 = vmatprep.mubr.f32.mxu0 0.0
        %3290 = vmatmul.mubr.f32.gmra.mrb[0].mxu0 %v3097
        %v3291 = vpop.f32.mrb[0].mxu0
        %v3292 = vadd.f32 0.0, %v3291
        %v3293 = vpop.f32.mrb[0].mxu0
        %3294 = vmatprep.mubr.f32.mxu0 0.0
        %3295 = vmatmul.mubr.f32.gmra.mrb[0].mxu0 %v3100
        %v3296 = vpop.f32.mrb[0].mxu0
        %v3297 = vadd.f32 0.0, %v3296
        %v3298 = vpop.f32.mrb[0].mxu0
        %3299 = vmatprep.mubr.f32.mxu0 0.0
        %3300 = vmatmul.mubr.f32.gmra.mrb[0].mxu0 %v3103
        %v3301 = vpop.f32.mrb[0].mxu0
        %v3302 = vadd.f32 0.0, %v3301
        %v3303 = vpop.f32.mrb[0].mxu0
        %3304 = vmatprep.mubr.f32.mxu0 0.0
        %3305 = vmatmul.mubr.f32.gmra.mrb[0].mxu0 %v3106
        %v3306 = vpop.f32.mrb[0].mxu0
        %v3307 = vadd.f32 0.0, %v3306
        %v3308 = vpop.f32.mrb[0].mxu0
        %3309 = vmatprep.mubr.f32.mxu0 0.0
        %3310 = vmatmul.mubr.f32.gmra.mrb[0].mxu0 %v3109
        %v3311 = vpop.f32.mrb[0].mxu0
        %v3312 = vadd.f32 0.0, %v3311
        %v3313 = vpop.f32.mrb[0].mxu0
        %3314 = vmatprep.mubr.f32.mxu0 0.0
        %3315 = vmatmul.mubr.f32.gmra.mrb[0].mxu0 %v3112
        %v3316 = vpop.f32.mrb[0].mxu0
        %v3317 = vadd.f32 0.0, %v3316
        %v3318 = vpop.f32.mrb[0].mxu0
        %3319 = vmatprep.mubr.f32.mxu0 0.0
        %3320 = vmatmul.mubr.f32.gmra.mrb[0].mxu0 %v3115
        %v3321 = vpop.f32.mrb[0].mxu0
        %v3322 = vadd.f32 0.0, %v3321
        %v3323 = vpop.f32.mrb[0].mxu0
        %3324 = vmatprep.mubr.f32.mxu0 0.0
        %3325 = vmatmul.mubr.f32.gmra.mrb[0].mxu0 %v3118
        %v3326 = vpop.f32.mrb[0].mxu0
        %v3327 = vadd.f32 0.0, %v3326
        %v3328 = vpop.f32.mrb[0].mxu0
        %3329 = vmatprep.mubr.f32.mxu0 0.0
        %3330 = vmatmul.mubr.f32.gmra.mrb[0].mxu0 %v3121
        %v3331 = vpop.f32.mrb[0].mxu0
        %v3332 = vadd.f32 0.0, %v3331
        %v3333 = vpop.f32.mrb[0].mxu0
        %3334 = vmatprep.mubr.f32.mxu0 0.0
        %3335 = vmatmul.mubr.f32.gmra.mrb[0].mxu0 %v3124
        %v3336 = vpop.f32.mrb[0].mxu0
        %v3337 = vadd.f32 0.0, %v3336
        %v3338 = vpop.f32.mrb[0].mxu0
        %3339 = vmatprep.mubr.f32.mxu0 0.0
        %3340 = vmatmul.mubr.f32.gmra.mrb[0].mxu0 %v3127
        %v3341 = vpop.f32.mrb[0].mxu0
        %v3342 = vadd.f32 0.0, %v3341
        %v3343 = vpop.f32.mrb[0].mxu0
        %3344 = vmatprep.mubr.f32.mxu0 0.0
        %3345 = vmatmul.mubr.f32.gmra.mrb[0].mxu0 %v3130
        %v3346 = vpop.f32.mrb[0].mxu0
        %v3347 = vadd.f32 0.0, %v3346
        %v3348 = vpop.f32.mrb[0].mxu0
        %3349 = vmatprep.mubr.f32.mxu0 0.0
        %3350 = vmatmul.mubr.f32.gmra.mrb[0].mxu0 %v3133
        %v3351 = vpop.f32.mrb[0].mxu0
        %v3352 = vadd.f32 0.0, %v3351
        %v3353 = vpop.f32.mrb[0].mxu0
        %3354 = vmatprep.mubr.f32.mxu0 0.0
        %3355 = vmatmul.mubr.f32.gmra.mrb[0].mxu0 %v3136
        %v3356 = vpop.f32.mrb[0].mxu0
        %v3357 = vadd.f32 0.0, %v3356
        %v3358 = vpop.f32.mrb[0].mxu0
        %3359 = vmatprep.mubr.f32.mxu0 0.0
        %3360 = vmatmul.mubr.f32.gmra.mrb[0].mxu0 %v3139
        %v3361 = vpop.f32.mrb[0].mxu0
        %v3362 = vadd.f32 0.0, %v3361
        %v3363 = vpop.f32.mrb[0].mxu0
        %3364 = vmatprep.mubr.f32.mxu0 0.0
        %3365 = vmatmul.mubr.f32.gmra.mrb[0].mxu0 %v3142
        %v3366 = vpop.f32.mrb[0].mxu0
        %v3367 = vadd.f32 0.0, %v3366
        %v3368 = vpop.f32.mrb[0].mxu0
        %3369 = vmatprep.mubr.f32.mxu0 0.0
        %3370 = vmatmul.mubr.f32.gmra.mrb[0].mxu0 %v3145
        %v3371 = vpop.f32.mrb[0].mxu0
        %v3372 = vadd.f32 0.0, %v3371
        %v3373 = vpop.f32.mrb[0].mxu0
        %3374 = vdwg.mxu0
        %v3375 = vadd.f32 %v2985, %v3217
        %v3376 = vadd.f32 %v2986, %v3222
        %v3377 = vadd.f32 %v2987, %v3227
        %v3378 = vadd.f32 %v2988, %v3232
        %v3379 = vadd.f32 %v2989, %v3237
        %v3380 = vadd.f32 %v2990, %v3242
        %v3381 = vadd.f32 %v2991, %v3247
        %v3382 = vadd.f32 %v2992, %v3252
        %v3383 = vadd.f32 %v2993, %v3257
        %v3384 = vadd.f32 %v2994, %v3262
        %v3385 = vadd.f32 %v2995, %v3267
        %v3386 = vadd.f32 %v2996, %v3272
        %v3387 = vadd.f32 %v2997, %v3277
        %v3388 = vadd.f32 %v2998, %v3282
        %v3389 = vadd.f32 %v2999, %v3287
        %v3390 = vadd.f32 %v3000, %v3292
        %v3391 = vadd.f32 %v3001, %v3297
        %v3392 = vadd.f32 %v3002, %v3302
        %v3393 = vadd.f32 %v3003, %v3307
        %v3394 = vadd.f32 %v3004, %v3312
        %v3395 = vadd.f32 %v3005, %v3317
        %v3396 = vadd.f32 %v3006, %v3322
        %v3397 = vadd.f32 %v3007, %v3327
        %v3398 = vadd.f32 %v3008, %v3332
        %v3399 = vadd.f32 %v3009, %v3337
        %v3400 = vadd.f32 %v3010, %v3342
        %v3401 = vadd.f32 %v3011, %v3347
        %v3402 = vadd.f32 %v3012, %v3352
        %v3403 = vadd.f32 %v3013, %v3357
        %v3404 = vadd.f32 %v3014, %v3362
        %v3405 = vadd.f32 %v3015, %v3367
        %v3406 = vadd.f32 %v3016, %v3372
        %v3407 = vld [vmem:[%s2626 + $0x2] sm:$0xff]
        %v3408 = vld [vmem:[%s2626 + $0xa] sm:$0xff]
        %v3409 = vld [vmem:[%s2626 + $0x1a] sm:$0xff]
        %v3410 = vld [vmem:[%s2626 + $0x22] sm:$0xff]
        %v3411 = vld [vmem:[%s2626 + $0x32] sm:$0xff]
        %v3412 = vld [vmem:[%s2626 + $0x3a] sm:$0xff]
        %v3413 = vld [vmem:[%s2626 + $0x4a] sm:$0xff]
        %v3414 = vld [vmem:[%s2626 + $0x52] sm:$0xff]
        %v3415 = vld [vmem:[%s2626 + $0x62] sm:$0xff]
        %v3416 = vld [vmem:[%s2626 + $0x6a] sm:$0xff]
        %v3417 = vld [vmem:[%s2626 + $0x7a] sm:$0xff]
        %v3418 = vld [vmem:[%s2626 + $0x82] sm:$0xff]
        %v3419 = vld [vmem:[%s2626 + $0x92] sm:$0xff]
        %v3420 = vld [vmem:[%s2626 + $0x9a] sm:$0xff]
        %v3421 = vld [vmem:[%s2626 + $0xaa] sm:$0xff]
        %v3422 = vld [vmem:[%s2626 + $0xb2] sm:$0xff]
        %v3423 = vld [vmem:[%s2626 + $0xc2] sm:$0xff]
        %v3424 = vld [vmem:[%s2626 + $0xca] sm:$0xff]
        %v3425 = vld [vmem:[%s2626 + $0xda] sm:$0xff]
        %v3426 = vld [vmem:[%s2626 + $0xe2] sm:$0xff]
        %v3427 = vld [vmem:[%s2626 + $0xf2] sm:$0xff]
        %v3428 = vld [vmem:[%s2626 + $0xfa] sm:$0xff]
        %v3429 = vld [vmem:[%s2626 + $0x10a] sm:$0xff]
        %v3430 = vld [vmem:[%s2626 + $0x112] sm:$0xff]
        %v3431 = vld [vmem:[%s2626 + $0x122] sm:$0xff]
        %v3432 = vld [vmem:[%s2626 + $0x12a] sm:$0xff]
        %v3433 = vld [vmem:[%s2626 + $0x13a] sm:$0xff]
        %v3434 = vld [vmem:[%s2626 + $0x142] sm:$0xff]
        %v3435 = vld [vmem:[%s2626 + $0x152] sm:$0xff]
        %v3436 = vld [vmem:[%s2626 + $0x15a] sm:$0xff]
        %v3437 = vld [vmem:[%s2626 + $0x16a] sm:$0xff]
        %v3438 = vld [vmem:[%s2626 + $0x172] sm:$0xff]
        %s3439 = scalar_lea.vmem %s1, 32
        %v3440 = vld [vmem:[%s3439] sm:$0xf]
        %v3442 = vsel %vm229, %v3407, 0
        %v3445 = vsel %vm229, %v3408, 0
        %v3448 = vsel %vm229, %v3409, 0
        %v3451 = vsel %vm229, %v3410, 0
        %v3454 = vsel %vm229, %v3411, 0
        %v3457 = vsel %vm229, %v3412, 0
        %v3460 = vsel %vm229, %v3413, 0
        %v3463 = vsel %vm229, %v3414, 0
        %v3466 = vsel %vm229, %v3415, 0
        %v3469 = vsel %vm229, %v3416, 0
        %v3472 = vsel %vm229, %v3417, 0
        %v3475 = vsel %vm229, %v3418, 0
        %v3478 = vsel %vm229, %v3419, 0
        %v3481 = vsel %vm229, %v3420, 0
        %v3484 = vsel %vm229, %v3421, 0
        %v3487 = vsel %vm229, %v3422, 0
        %v3490 = vsel %vm229, %v3423, 0
        %v3493 = vsel %vm229, %v3424, 0
        %v3496 = vsel %vm229, %v3425, 0
        %v3499 = vsel %vm229, %v3426, 0
        %v3502 = vsel %vm229, %v3427, 0
        %v3505 = vsel %vm229, %v3428, 0
        %v3508 = vsel %vm229, %v3429, 0
        %v3511 = vsel %vm229, %v3430, 0
        %v3514 = vsel %vm229, %v3431, 0
        %v3517 = vsel %vm229, %v3432, 0
        %v3520 = vsel %vm229, %v3433, 0
        %v3523 = vsel %vm229, %v3434, 0
        %v3526 = vsel %vm229, %v3435, 0
        %v3529 = vsel %vm229, %v3436, 0
        %v3532 = vsel %vm229, %v3437, 0
        %v3535 = vsel %vm229, %v3438, 0
        %v3538 = vsel %vm513, %v3440, 0
        %3540 = vmatprep.subr.mxu0 0.0
        %3541 = vmatpush1.msra.mxu0 %v3538
        %3542 = vmatprep.subr.mxu0 0.0
        %3543 = vmatpush1.msra.mxu0 0.0
        %3544 = vmatprep.subr.mxu0 0.0
        %3545 = vmatpush1.msra.mxu0 0.0
        %3546 = vmatprep.subr.mxu0 0.0
        %3547 = vmatpush1.msra.mxu0 0.0
        %3548 = vmatprep.subr.mxu0 0.0
        %3549 = vmatpush1.msra.mxu0 0.0
        %3550 = vmatprep.subr.mxu0 0.0
        %3551 = vmatpush1.msra.mxu0 0.0
        %3552 = vmatprep.subr.mxu0 0.0
        %3553 = vmatpush1.msra.mxu0 0.0
        %3554 = vmatprep.subr.mxu0 0.0
        %3555 = vmatpush1.msra.mxu0 0.0
        %3556 = vmatprep.subr.mxu0 0.0
        %3557 = vmatpush1.msra.mxu0 0.0
        %3558 = vmatprep.subr.mxu0 0.0
        %3559 = vmatpush1.msra.mxu0 0.0
        %3560 = vmatprep.subr.mxu0 0.0
        %3561 = vmatpush1.msra.mxu0 0.0
        %3562 = vmatprep.subr.mxu0 0.0
        %3563 = vmatpush1.msra.mxu0 0.0
        %3564 = vmatprep.subr.mxu0 0.0
        %3565 = vmatpush1.msra.mxu0 0.0
        %3566 = vmatprep.subr.mxu0 0.0
        %3567 = vmatpush1.msra.mxu0 0.0
        %3568 = vmatprep.subr.mxu0 0.0
        %3569 = vmatpush1.msra.mxu0 0.0
        %3570 = vmatprep.subr.mxu0 0.0
        %3571 = vmatpush1.msra.mxu0 0.0
        %3572 = vmatprep.subr.mxu0 0.0
        %3573 = vmatpush1.msra.mxu0 0.0
        %3574 = vmatprep.subr.mxu0 0.0
        %3575 = vmatpush1.msra.mxu0 0.0
        %3576 = vmatprep.subr.mxu0 0.0
        %3577 = vmatpush1.msra.mxu0 0.0
        %3578 = vmatprep.subr.mxu0 0.0
        %3579 = vmatpush1.msra.mxu0 0.0
        %3580 = vmatprep.subr.mxu0 0.0
        %3581 = vmatpush1.msra.mxu0 0.0
        %3582 = vmatprep.subr.mxu0 0.0
        %3583 = vmatpush1.msra.mxu0 0.0
        %3584 = vmatprep.subr.mxu0 0.0
        %3585 = vmatpush1.msra.mxu0 0.0
        %3586 = vmatprep.subr.mxu0 0.0
        %3587 = vmatpush1.msra.mxu0 0.0
        %3588 = vmatprep.subr.mxu0 0.0
        %3589 = vmatpush1.msra.mxu0 0.0
        %3590 = vmatprep.subr.mxu0 0.0
        %3591 = vmatpush1.msra.mxu0 0.0
        %3592 = vmatprep.subr.mxu0 0.0
        %3593 = vmatpush1.msra.mxu0 0.0
        %3594 = vmatprep.subr.mxu0 0.0
        %3595 = vmatpush1.msra.mxu0 0.0
        %3596 = vmatprep.subr.mxu0 0.0
        %3597 = vmatpush1.msra.mxu0 0.0
        %3598 = vmatprep.subr.mxu0 0.0
        %3599 = vmatpush1.msra.mxu0 0.0
        %3600 = vmatprep.subr.mxu0 0.0
        %3601 = vmatpush1.msra.mxu0 0.0
        %3602 = vmatprep.subr.mxu0 0.0
        %3603 = vmatpush1.msra.mxu0 0.0
        %3604 = vmatprep.mubr.f32.mxu0 0.0
        %3605 = vmatmul.mubr.f32.gmra.mrb[0].mxu0 %v3442
        %v3606 = vpop.f32.mrb[0].mxu0
        %v3607 = vadd.f32 0.0, %v3606
        %v3608 = vpop.f32.mrb[0].mxu0
        %3609 = vmatprep.mubr.f32.mxu0 0.0
        %3610 = vmatmul.mubr.f32.gmra.mrb[0].mxu0 %v3445
        %v3611 = vpop.f32.mrb[0].mxu0
        %v3612 = vadd.f32 0.0, %v3611
        %v3613 = vpop.f32.mrb[0].mxu0
        %3614 = vmatprep.mubr.f32.mxu0 0.0
        %3615 = vmatmul.mubr.f32.gmra.mrb[0].mxu0 %v3448
        %v3616 = vpop.f32.mrb[0].mxu0
        %v3617 = vadd.f32 0.0, %v3616
        %v3618 = vpop.f32.mrb[0].mxu0
        %3619 = vmatprep.mubr.f32.mxu0 0.0
        %3620 = vmatmul.mubr.f32.gmra.mrb[0].mxu0 %v3451
        %v3621 = vpop.f32.mrb[0].mxu0
        %v3622 = vadd.f32 0.0, %v3621
        %v3623 = vpop.f32.mrb[0].mxu0
        %3624 = vmatprep.mubr.f32.mxu0 0.0
        %3625 = vmatmul.mubr.f32.gmra.mrb[0].mxu0 %v3454
        %v3626 = vpop.f32.mrb[0].mxu0
        %v3627 = vadd.f32 0.0, %v3626
        %v3628 = vpop.f32.mrb[0].mxu0
        %3629 = vmatprep.mubr.f32.mxu0 0.0
        %3630 = vmatmul.mubr.f32.gmra.mrb[0].mxu0 %v3457
        %v3631 = vpop.f32.mrb[0].mxu0
        %v3632 = vadd.f32 0.0, %v3631
        %v3633 = vpop.f32.mrb[0].mxu0
        %3634 = vmatprep.mubr.f32.mxu0 0.0
        %3635 = vmatmul.mubr.f32.gmra.mrb[0].mxu0 %v3460
        %v3636 = vpop.f32.mrb[0].mxu0
        %v3637 = vadd.f32 0.0, %v3636
        %v3638 = vpop.f32.mrb[0].mxu0
        %3639 = vmatprep.mubr.f32.mxu0 0.0
        %3640 = vmatmul.mubr.f32.gmra.mrb[0].mxu0 %v3463
        %v3641 = vpop.f32.mrb[0].mxu0
        %v3642 = vadd.f32 0.0, %v3641
        %v3643 = vpop.f32.mrb[0].mxu0
        %3644 = vmatprep.mubr.f32.mxu0 0.0
        %3645 = vmatmul.mubr.f32.gmra.mrb[0].mxu0 %v3466
        %v3646 = vpop.f32.mrb[0].mxu0
        %v3647 = vadd.f32 0.0, %v3646
        %v3648 = vpop.f32.mrb[0].mxu0
        %3649 = vmatprep.mubr.f32.mxu0 0.0
        %3650 = vmatmul.mubr.f32.gmra.mrb[0].mxu0 %v3469
        %v3651 = vpop.f32.mrb[0].mxu0
        %v3652 = vadd.f32 0.0, %v3651
        %v3653 = vpop.f32.mrb[0].mxu0
        %3654 = vmatprep.mubr.f32.mxu0 0.0
        %3655 = vmatmul.mubr.f32.gmra.mrb[0].mxu0 %v3472
        %v3656 = vpop.f32.mrb[0].mxu0
        %v3657 = vadd.f32 0.0, %v3656
        %v3658 = vpop.f32.mrb[0].mxu0
        %3659 = vmatprep.mubr.f32.mxu0 0.0
        %3660 = vmatmul.mubr.f32.gmra.mrb[0].mxu0 %v3475
        %v3661 = vpop.f32.mrb[0].mxu0
        %v3662 = vadd.f32 0.0, %v3661
        %v3663 = vpop.f32.mrb[0].mxu0
        %3664 = vmatprep.mubr.f32.mxu0 0.0
        %3665 = vmatmul.mubr.f32.gmra.mrb[0].mxu0 %v3478
        %v3666 = vpop.f32.mrb[0].mxu0
        %v3667 = vadd.f32 0.0, %v3666
        %v3668 = vpop.f32.mrb[0].mxu0
        %3669 = vmatprep.mubr.f32.mxu0 0.0
        %3670 = vmatmul.mubr.f32.gmra.mrb[0].mxu0 %v3481
        %v3671 = vpop.f32.mrb[0].mxu0
        %v3672 = vadd.f32 0.0, %v3671
        %v3673 = vpop.f32.mrb[0].mxu0
        %3674 = vmatprep.mubr.f32.mxu0 0.0
        %3675 = vmatmul.mubr.f32.gmra.mrb[0].mxu0 %v3484
        %v3676 = vpop.f32.mrb[0].mxu0
        %v3677 = vadd.f32 0.0, %v3676
        %v3678 = vpop.f32.mrb[0].mxu0
        %3679 = vmatprep.mubr.f32.mxu0 0.0
        %3680 = vmatmul.mubr.f32.gmra.mrb[0].mxu0 %v3487
        %v3681 = vpop.f32.mrb[0].mxu0
        %v3682 = vadd.f32 0.0, %v3681
        %v3683 = vpop.f32.mrb[0].mxu0
        %3684 = vmatprep.mubr.f32.mxu0 0.0
        %3685 = vmatmul.mubr.f32.gmra.mrb[0].mxu0 %v3490
        %v3686 = vpop.f32.mrb[0].mxu0
        %v3687 = vadd.f32 0.0, %v3686
        %v3688 = vpop.f32.mrb[0].mxu0
        %3689 = vmatprep.mubr.f32.mxu0 0.0
        %3690 = vmatmul.mubr.f32.gmra.mrb[0].mxu0 %v3493
        %v3691 = vpop.f32.mrb[0].mxu0
        %v3692 = vadd.f32 0.0, %v3691
        %v3693 = vpop.f32.mrb[0].mxu0
        %3694 = vmatprep.mubr.f32.mxu0 0.0
        %3695 = vmatmul.mubr.f32.gmra.mrb[0].mxu0 %v3496
        %v3696 = vpop.f32.mrb[0].mxu0
        %v3697 = vadd.f32 0.0, %v3696
        %v3698 = vpop.f32.mrb[0].mxu0
        %3699 = vmatprep.mubr.f32.mxu0 0.0
        %3700 = vmatmul.mubr.f32.gmra.mrb[0].mxu0 %v3499
        %v3701 = vpop.f32.mrb[0].mxu0
        %v3702 = vadd.f32 0.0, %v3701
        %v3703 = vpop.f32.mrb[0].mxu0
        %3704 = vmatprep.mubr.f32.mxu0 0.0
        %3705 = vmatmul.mubr.f32.gmra.mrb[0].mxu0 %v3502
        %v3706 = vpop.f32.mrb[0].mxu0
        %v3707 = vadd.f32 0.0, %v3706
        %v3708 = vpop.f32.mrb[0].mxu0
        %3709 = vmatprep.mubr.f32.mxu0 0.0
        %3710 = vmatmul.mubr.f32.gmra.mrb[0].mxu0 %v3505
        %v3711 = vpop.f32.mrb[0].mxu0
        %v3712 = vadd.f32 0.0, %v3711
        %v3713 = vpop.f32.mrb[0].mxu0
        %3714 = vmatprep.mubr.f32.mxu0 0.0
        %3715 = vmatmul.mubr.f32.gmra.mrb[0].mxu0 %v3508
        %v3716 = vpop.f32.mrb[0].mxu0
        %v3717 = vadd.f32 0.0, %v3716
        %v3718 = vpop.f32.mrb[0].mxu0
        %3719 = vmatprep.mubr.f32.mxu0 0.0
        %3720 = vmatmul.mubr.f32.gmra.mrb[0].mxu0 %v3511
        %v3721 = vpop.f32.mrb[0].mxu0
        %v3722 = vadd.f32 0.0, %v3721
        %v3723 = vpop.f32.mrb[0].mxu0
        %3724 = vmatprep.mubr.f32.mxu0 0.0
        %3725 = vmatmul.mubr.f32.gmra.mrb[0].mxu0 %v3514
        %v3726 = vpop.f32.mrb[0].mxu0
        %v3727 = vadd.f32 0.0, %v3726
        %v3728 = vpop.f32.mrb[0].mxu0
        %3729 = vmatprep.mubr.f32.mxu0 0.0
        %3730 = vmatmul.mubr.f32.gmra.mrb[0].mxu0 %v3517
        %v3731 = vpop.f32.mrb[0].mxu0
        %v3732 = vadd.f32 0.0, %v3731
        %v3733 = vpop.f32.mrb[0].mxu0
        %3734 = vmatprep.mubr.f32.mxu0 0.0
        %3735 = vmatmul.mubr.f32.gmra.mrb[0].mxu0 %v3520
        %v3736 = vpop.f32.mrb[0].mxu0
        %v3737 = vadd.f32 0.0, %v3736
        %v3738 = vpop.f32.mrb[0].mxu0
        %3739 = vmatprep.mubr.f32.mxu0 0.0
        %3740 = vmatmul.mubr.f32.gmra.mrb[0].mxu0 %v3523
        %v3741 = vpop.f32.mrb[0].mxu0
        %v3742 = vadd.f32 0.0, %v3741
        %v3743 = vpop.f32.mrb[0].mxu0
        %3744 = vmatprep.mubr.f32.mxu0 0.0
        %3745 = vmatmul.mubr.f32.gmra.mrb[0].mxu0 %v3526
        %v3746 = vpop.f32.mrb[0].mxu0
        %v3747 = vadd.f32 0.0, %v3746
        %v3748 = vpop.f32.mrb[0].mxu0
        %3749 = vmatprep.mubr.f32.mxu0 0.0
        %3750 = vmatmul.mubr.f32.gmra.mrb[0].mxu0 %v3529
        %v3751 = vpop.f32.mrb[0].mxu0
        %v3752 = vadd.f32 0.0, %v3751
        %v3753 = vpop.f32.mrb[0].mxu0
        %3754 = vmatprep.mubr.f32.mxu0 0.0
        %3755 = vmatmul.mubr.f32.gmra.mrb[0].mxu0 %v3532
        %v3756 = vpop.f32.mrb[0].mxu0
        %v3757 = vadd.f32 0.0, %v3756
        %v3758 = vpop.f32.mrb[0].mxu0
        %3759 = vmatprep.mubr.f32.mxu0 0.0
        %3760 = vmatmul.mubr.f32.gmra.mrb[0].mxu0 %v3535
        %v3761 = vpop.f32.mrb[0].mxu0
        %v3762 = vadd.f32 0.0, %v3761
        %v3763 = vpop.f32.mrb[0].mxu0
        %3764 = vdwg.mxu0
        %v3765 = vadd.f32 %v3375, %v3607
        %v3766 = vadd.f32 %v3376, %v3612
        %v3767 = vadd.f32 %v3377, %v3617
        %v3768 = vadd.f32 %v3378, %v3622
        %v3769 = vadd.f32 %v3379, %v3627
        %v3770 = vadd.f32 %v3380, %v3632
        %v3771 = vadd.f32 %v3381, %v3637
        %v3772 = vadd.f32 %v3382, %v3642
        %v3773 = vadd.f32 %v3383, %v3647
        %v3774 = vadd.f32 %v3384, %v3652
        %v3775 = vadd.f32 %v3385, %v3657
        %v3776 = vadd.f32 %v3386, %v3662
        %v3777 = vadd.f32 %v3387, %v3667
        %v3778 = vadd.f32 %v3388, %v3672
        %v3779 = vadd.f32 %v3389, %v3677
        %v3780 = vadd.f32 %v3390, %v3682
        %v3781 = vadd.f32 %v3391, %v3687
        %v3782 = vadd.f32 %v3392, %v3692
        %v3783 = vadd.f32 %v3393, %v3697
        %v3784 = vadd.f32 %v3394, %v3702
        %v3785 = vadd.f32 %v3395, %v3707
        %v3786 = vadd.f32 %v3396, %v3712
        %v3787 = vadd.f32 %v3397, %v3717
        %v3788 = vadd.f32 %v3398, %v3722
        %v3789 = vadd.f32 %v3399, %v3727
        %v3790 = vadd.f32 %v3400, %v3732
        %v3791 = vadd.f32 %v3401, %v3737
        %v3792 = vadd.f32 %v3402, %v3742
        %v3793 = vadd.f32 %v3403, %v3747
        %v3794 = vadd.f32 %v3404, %v3752
        %v3795 = vadd.f32 %v3405, %v3757
        %v3796 = vadd.f32 %v3406, %v3762
        %v3797 = vlaneseq
        %v3798 = vshrl.u32 %v3797, 7
        %v3799 = vsub.s32 0, %v3798
        %v3800 = vrot.slane %v223, %v3799
        %v3801 = vmul.f32 %v3765, %v3800
        %v3802 = vmul.f32 %v3766, %v3800
        %v3803 = vmul.f32 %v3767, %v3800
        %v3804 = vmul.f32 %v3768, %v3800
        %v3805 = vmul.f32 %v3769, %v3800
        %v3806 = vmul.f32 %v3770, %v3800
        %v3807 = vmul.f32 %v3771, %v3800
        %v3808 = vmul.f32 %v3772, %v3800
        %v3809 = vmul.f32 %v3773, %v3800
        %v3810 = vmul.f32 %v3774, %v3800
        %v3811 = vmul.f32 %v3775, %v3800
        %v3812 = vmul.f32 %v3776, %v3800
        %v3813 = vmul.f32 %v3777, %v3800
        %v3814 = vmul.f32 %v3778, %v3800
        %v3815 = vmul.f32 %v3779, %v3800
        %v3816 = vmul.f32 %v3780, %v3800
        %v3817 = vmul.f32 %v3781, %v3800
        %v3818 = vmul.f32 %v3782, %v3800
        %v3819 = vmul.f32 %v3783, %v3800
        %v3820 = vmul.f32 %v3784, %v3800
        %v3821 = vmul.f32 %v3785, %v3800
        %v3822 = vmul.f32 %v3786, %v3800
        %v3823 = vmul.f32 %v3787, %v3800
        %v3824 = vmul.f32 %v3788, %v3800
        %v3825 = vmul.f32 %v3789, %v3800
        %v3826 = vmul.f32 %v3790, %v3800
        %v3827 = vmul.f32 %v3791, %v3800
        %v3828 = vmul.f32 %v3792, %v3800
        %v3829 = vmul.f32 %v3793, %v3800
        %v3830 = vmul.f32 %v3794, %v3800
        %v3831 = vmul.f32 %v3795, %v3800
        %v3832 = vmul.f32 %v3796, %v3800
        %v3833 = vlaneseq
        %v3834 = vshrl.u32 %v3833, 7
        %v3835 = vsub.s32 0, %v3834
        %v3836 = vrot.slane %v224, %v3835
        %v3837 = vadd.f32 %v3801, %v3836
        %v3838 = vadd.f32 %v3802, %v3836
        %v3839 = vadd.f32 %v3803, %v3836
        %v3840 = vadd.f32 %v3804, %v3836
        %v3841 = vadd.f32 %v3805, %v3836
        %v3842 = vadd.f32 %v3806, %v3836
        %v3843 = vadd.f32 %v3807, %v3836
        %v3844 = vadd.f32 %v3808, %v3836
        %v3845 = vadd.f32 %v3809, %v3836
        %v3846 = vadd.f32 %v3810, %v3836
        %v3847 = vadd.f32 %v3811, %v3836
        %v3848 = vadd.f32 %v3812, %v3836
        %v3849 = vadd.f32 %v3813, %v3836
        %v3850 = vadd.f32 %v3814, %v3836
        %v3851 = vadd.f32 %v3815, %v3836
        %v3852 = vadd.f32 %v3816, %v3836
        %v3853 = vadd.f32 %v3817, %v3836
        %v3854 = vadd.f32 %v3818, %v3836
        %v3855 = vadd.f32 %v3819, %v3836
        %v3856 = vadd.f32 %v3820, %v3836
        %v3857 = vadd.f32 %v3821, %v3836
        %v3858 = vadd.f32 %v3822, %v3836
        %v3859 = vadd.f32 %v3823, %v3836
        %v3860 = vadd.f32 %v3824, %v3836
        %v3861 = vadd.f32 %v3825, %v3836
        %v3862 = vadd.f32 %v3826, %v3836
        %v3863 = vadd.f32 %v3827, %v3836
        %v3864 = vadd.f32 %v3828, %v3836
        %v3865 = vadd.f32 %v3829, %v3836
        %v3866 = vadd.f32 %v3830, %v3836
        %v3867 = vadd.f32 %v3831, %v3836
        %v3868 = vadd.f32 %v3832, %v3836
        %vm3869 = vcmask 64512
        %3870 = vst.msk [vmem:[#allocation3] sm:$0xff] %vm3869, %v3837
        %3871 = vst.msk [vmem:[#allocation3 + $0x8] sm:$0xff] %vm3869, %v3838
        %3872 = vst.msk [vmem:[#allocation3 + $0x10] sm:$0xff] %vm3869, %v3839
        %3873 = vst.msk [vmem:[#allocation3 + $0x18] sm:$0xff] %vm3869, %v3840
        %3874 = vst.msk [vmem:[#allocation3 + $0x20] sm:$0xff] %vm3869, %v3841
        %3875 = vst.msk [vmem:[#allocation3 + $0x28] sm:$0xff] %vm3869, %v3842
        %3876 = vst.msk [vmem:[#allocation3 + $0x30] sm:$0xff] %vm3869, %v3843
        %3877 = vst.msk [vmem:[#allocation3 + $0x38] sm:$0xff] %vm3869, %v3844
        %3878 = vst.msk [vmem:[#allocation3 + $0x40] sm:$0xff] %vm3869, %v3845
        %3879 = vst.msk [vmem:[#allocation3 + $0x48] sm:$0xff] %vm3869, %v3846
        %3880 = vst.msk [vmem:[#allocation3 + $0x50] sm:$0xff] %vm3869, %v3847
        %3881 = vst.msk [vmem:[#allocation3 + $0x58] sm:$0xff] %vm3869, %v3848
        %3882 = vst.msk [vmem:[#allocation3 + $0x60] sm:$0xff] %vm3869, %v3849
        %3883 = vst.msk [vmem:[#allocation3 + $0x68] sm:$0xff] %vm3869, %v3850
        %3884 = vst.msk [vmem:[#allocation3 + $0x70] sm:$0xff] %vm3869, %v3851
        %3885 = vst.msk [vmem:[#allocation3 + $0x78] sm:$0xff] %vm3869, %v3852
        %3886 = vst.msk [vmem:[#allocation3 + $0x80] sm:$0xff] %vm3869, %v3853
        %3887 = vst.msk [vmem:[#allocation3 + $0x88] sm:$0xff] %vm3869, %v3854
        %3888 = vst.msk [vmem:[#allocation3 + $0x90] sm:$0xff] %vm3869, %v3855
        %3889 = vst.msk [vmem:[#allocation3 + $0x98] sm:$0xff] %vm3869, %v3856
        %3890 = vst.msk [vmem:[#allocation3 + $0xa0] sm:$0xff] %vm3869, %v3857
        %3891 = vst.msk [vmem:[#allocation3 + $0xa8] sm:$0xff] %vm3869, %v3858
        %3892 = vst.msk [vmem:[#allocation3 + $0xb0] sm:$0xff] %vm3869, %v3859
        %3893 = vst.msk [vmem:[#allocation3 + $0xb8] sm:$0xff] %vm3869, %v3860
        %3894 = vst.msk [vmem:[#allocation3 + $0xc0] sm:$0xff] %vm3869, %v3861
        %3895 = vst.msk [vmem:[#allocation3 + $0xc8] sm:$0xff] %vm3869, %v3862
        %3896 = vst.msk [vmem:[#allocation3 + $0xd0] sm:$0xff] %vm3869, %v3863
        %3897 = vst.msk [vmem:[#allocation3 + $0xd8] sm:$0xff] %vm3869, %v3864
        %3898 = vst.msk [vmem:[#allocation3 + $0xe0] sm:$0xff] %vm3869, %v3865
        %3899 = vst.msk [vmem:[#allocation3 + $0xe8] sm:$0xff] %vm3869, %v3866
        %3900 = vst.msk [vmem:[#allocation3 + $0xf0] sm:$0xff] %vm3869, %v3867
        %3901 = vst.msk [vmem:[#allocation3 + $0xf8] sm:$0xff] %vm3869, %v3868
        %v3902 = vld [vmem:[#allocation3] ss:$2 sm:$0xff]
        %s3903 = scalar_lea.vmem [#allocation3], 32
        %v3904 = vld [vmem:[%s3903] ss:$2 sm:$0xff]
        %s3905 = scalar_lea.vmem [#allocation3], 64
        %v3906 = vld [vmem:[%s3905] ss:$2 sm:$0xff]
        %s3907 = scalar_lea.vmem [#allocation3], 96
        %v3908 = vld [vmem:[%s3907] ss:$2 sm:$0xff]
        %s3909 = scalar_lea.vmem [#allocation3], 128
        %v3910 = vld [vmem:[%s3909] ss:$2 sm:$0xff]
        %s3911 = scalar_lea.vmem [#allocation3], 160
        %v3912 = vld [vmem:[%s3911] ss:$2 sm:$0xff]
        %s3913 = scalar_lea.vmem [#allocation3], 192
        %v3914 = vld [vmem:[%s3913] ss:$2 sm:$0xff]
        %s3915 = scalar_lea.vmem [#allocation3], 224
        %v3916 = vld [vmem:[%s3915] ss:$2 sm:$0xff]
        %s3917 = scalar_lea.vmem [#allocation3], 1
        %v3918 = vld [vmem:[%s3917] ss:$2 sm:$0xff]
        %s3919 = scalar_lea.vmem [#allocation3], 33
        %v3920 = vld [vmem:[%s3919] ss:$2 sm:$0xff]
        %s3921 = scalar_lea.vmem [#allocation3], 65
        %v3922 = vld [vmem:[%s3921] ss:$2 sm:$0xff]
        %s3923 = scalar_lea.vmem [#allocation3], 97
        %v3924 = vld [vmem:[%s3923] ss:$2 sm:$0xff]
        %s3925 = scalar_lea.vmem [#allocation3], 129
        %v3926 = vld [vmem:[%s3925] ss:$2 sm:$0xff]
        %s3927 = scalar_lea.vmem [#allocation3], 161
        %v3928 = vld [vmem:[%s3927] ss:$2 sm:$0xff]
        %s3929 = scalar_lea.vmem [#allocation3], 193
        %v3930 = vld [vmem:[%s3929] ss:$2 sm:$0xff]
        %s3931 = scalar_lea.vmem [#allocation3], 225
        %v3932 = vld [vmem:[%s3931] ss:$2 sm:$0xff]
        %s3933 = scalar_lea.vmem [#allocation3], 16
        %v3934 = vld [vmem:[%s3933] ss:$2 sm:$0xff]
        %s3935 = scalar_lea.vmem %s3933, 32 [#allocation3]
        %v3936 = vld [vmem:[%s3935] ss:$2 sm:$0xff]
        %s3937 = scalar_lea.vmem %s3933, 64 [#allocation3]
        %v3938 = vld [vmem:[%s3937] ss:$2 sm:$0xff]
        %s3939 = scalar_lea.vmem %s3933, 96 [#allocation3]
        %v3940 = vld [vmem:[%s3939] ss:$2 sm:$0xff]
        %s3941 = scalar_lea.vmem %s3933, 128 [#allocation3]
        %v3942 = vld [vmem:[%s3941] ss:$2 sm:$0xff]
        %s3943 = scalar_lea.vmem %s3933, 160 [#allocation3]
        %v3944 = vld [vmem:[%s3943] ss:$2 sm:$0xff]
        %s3945 = scalar_lea.vmem %s3933, 192 [#allocation3]
        %v3946 = vld [vmem:[%s3945] ss:$2 sm:$0xff]
        %s3947 = scalar_lea.vmem %s3933, 224 [#allocation3]
        %v3948 = vld [vmem:[%s3947] ss:$2 sm:$0xff]
        %s3949 = scalar_lea.vmem %s3933, 1 [#allocation3]
        %v3950 = vld [vmem:[%s3949] ss:$2 sm:$0xff]
        %s3951 = scalar_lea.vmem %s3933, 33 [#allocation3]
        %v3952 = vld [vmem:[%s3951] ss:$2 sm:$0xff]
        %s3953 = scalar_lea.vmem %s3933, 65 [#allocation3]
        %v3954 = vld [vmem:[%s3953] ss:$2 sm:$0xff]
        %s3955 = scalar_lea.vmem %s3933, 97 [#allocation3]
        %v3956 = vld [vmem:[%s3955] ss:$2 sm:$0xff]
        %s3957 = scalar_lea.vmem %s3933, 129 [#allocation3]
        %v3958 = vld [vmem:[%s3957] ss:$2 sm:$0xff]
        %s3959 = scalar_lea.vmem %s3933, 161 [#allocation3]
        %v3960 = vld [vmem:[%s3959] ss:$2 sm:$0xff]
        %s3961 = scalar_lea.vmem %s3933, 193 [#allocation3]
        %v3962 = vld [vmem:[%s3961] ss:$2 sm:$0xff]
        %s3963 = scalar_lea.vmem %s3933, 225 [#allocation3]
        %v3964 = vld [vmem:[%s3963] ss:$2 sm:$0xff]
        %v3965 = vmax.f32 %v3902, %v3918
        %v3966 = vmax.f32 %v3904, %v3920
        %v3967 = vmax.f32 %v3906, %v3922
        %v3968 = vmax.f32 %v3908, %v3924
        %v3969 = vmax.f32 %v3910, %v3926
        %v3970 = vmax.f32 %v3912, %v3928
        %v3971 = vmax.f32 %v3914, %v3930
        %v3972 = vmax.f32 %v3916, %v3932
        %v3973 = vmax.f32 %v3934, %v3950
        %v3974 = vmax.f32 %v3936, %v3952
        %v3975 = vmax.f32 %v3938, %v3954
        %v3976 = vmax.f32 %v3940, %v3956
        %v3977 = vmax.f32 %v3942, %v3958
        %v3978 = vmax.f32 %v3944, %v3960
        %v3979 = vmax.f32 %v3946, %v3962
        %v3980 = vmax.f32 %v3948, %v3964
        %v3981 = vmax.f32 %v3965, %v3973
        %v3982 = vmax.f32 %v3966, %v3974
        %v3983 = vmax.f32 %v3967, %v3975
        %v3984 = vmax.f32 %v3968, %v3976
        %v3985 = vmax.f32 %v3969, %v3977
        %v3986 = vmax.f32 %v3970, %v3978
        %v3987 = vmax.f32 %v3971, %v3979
        %v3988 = vmax.f32 %v3972, %v3980
        %v3989 = vmax.f32 %v3981, 0.0
        %v3990 = vmax.f32 %v3982, 0.0
        %v3991 = vmax.f32 %v3983, 0.0
        %v3992 = vmax.f32 %v3984, 0.0
        %v3993 = vmax.f32 %v3985, 0.0
        %v3994 = vmax.f32 %v3986, 0.0
        %v3995 = vmax.f32 %v3987, 0.0
        %v3996 = vmax.f32 %v3988, 0.0
        %3997 = vst.msk [vmem:[#allocation4] sm:$0xff] %vm3869, 0.0
        %vm3998 = vcmask 58368
        %3999 = vst.msk [vmem:[#allocation4 + $0x8] sm:$0x3] %vm3998, 0.0
        %4000 = vst.msk [vmem:[#allocation4 + $0x10] sm:$0xff] %vm3869, 0.0
        %4001 = vst.msk [vmem:[#allocation4 + $0x18] sm:$0x3] %vm3998, 0.0
        %4002 = vst.msk [vmem:[#allocation4 + $0x20] sm:$0xff] %vm3869, 0.0
        %4003 = vst.msk [vmem:[#allocation4 + $0x28] sm:$0x3] %vm3998, 0.0
        %4004 = vst.msk [vmem:[#allocation4 + $0x30] sm:$0xff] %vm3869, 0.0
        %4005 = vst.msk [vmem:[#allocation4 + $0x38] sm:$0x3] %vm3998, 0.0
        %4006 = vst.msk [vmem:[#allocation4 + $0x40] sm:$0xff] %vm3869, 0.0
        %4007 = vst.msk [vmem:[#allocation4 + $0x48] sm:$0x3] %vm3998, 0.0
        %4008 = vst.msk [vmem:[#allocation4 + $0x50] sm:$0xff] %vm3869, 0.0
        %4009 = vst.msk [vmem:[#allocation4 + $0x58] sm:$0x3] %vm3998, 0.0
        %4010 = vst.msk [vmem:[#allocation4 + $0x60] sm:$0xff] %vm3869, 0.0
        %4011 = vst.msk [vmem:[#allocation4 + $0x68] sm:$0x3] %vm3998, 0.0
        %4012 = vst.msk [vmem:[#allocation4 + $0x70] sm:$0xff] %vm3869, 0.0
        %4013 = vst.msk [vmem:[#allocation4 + $0x78] sm:$0x3] %vm3998, 0.0
        %4014 = vst.msk [vmem:[#allocation4 + $0x80] sm:$0xff] %vm3869, 0.0
        %4015 = vst.msk [vmem:[#allocation4 + $0x88] sm:$0x3] %vm3998, 0.0
        %4016 = vst.msk [vmem:[#allocation4 + $0x90] sm:$0xff] %vm3869, 0.0
        %4017 = vst.msk [vmem:[#allocation4 + $0x98] sm:$0x3] %vm3998, 0.0
        %s4018 = scalar_lea.vmem [#allocation4], 16
        %4019 = vst.msk [vmem:[%s4018 + $0x1] sm:$0xff] %vm3869, %v3989
        %4020 = vst.msk [vmem:[%s4018 + $0x11] sm:$0xff] %vm3869, %v3990
        %4021 = vst.msk [vmem:[%s4018 + $0x21] sm:$0xff] %vm3869, %v3991
        %4022 = vst.msk [vmem:[%s4018 + $0x31] sm:$0xff] %vm3869, %v3992
        %4023 = vst.msk [vmem:[%s4018 + $0x41] sm:$0xff] %vm3869, %v3993
        %4024 = vst.msk [vmem:[%s4018 + $0x51] sm:$0xff] %vm3869, %v3994
        %4025 = vst.msk [vmem:[%s4018 + $0x61] sm:$0xff] %vm3869, %v3995
        %4026 = vst.msk [vmem:[%s4018 + $0x71] sm:$0xff] %vm3869, %v3996
        %v4027 = vld [vmem:[#allocation4] sm:$0xff]
        %v4028 = vld [vmem:[#allocation4 + $0x10] sm:$0xff]
        %v4029 = vld [vmem:[#allocation4 + $0x20] sm:$0xff]
        %v4030 = vld [vmem:[#allocation4 + $0x30] sm:$0xff]
        %v4031 = vld [vmem:[#allocation4 + $0x40] sm:$0xff]
        %v4032 = vld [vmem:[#allocation4 + $0x50] sm:$0xff]
        %v4033 = vld [vmem:[#allocation4 + $0x60] sm:$0xff]
        %v4034 = vld [vmem:[#allocation4 + $0x70] sm:$0xff]
        %v4035 = vld [vmem:[%s2] sm:$0xff]
        %v4036 = vld [vmem:[#allocation4 + $0x1] sm:$0xff]
        %v4037 = vld [vmem:[#allocation4 + $0x11] sm:$0xff]
        %v4038 = vld [vmem:[#allocation4 + $0x21] sm:$0xff]
        %v4039 = vld [vmem:[#allocation4 + $0x31] sm:$0xff]
        %v4040 = vld [vmem:[#allocation4 + $0x41] sm:$0xff]
        %v4041 = vld [vmem:[#allocation4 + $0x51] sm:$0xff]
        %v4042 = vld [vmem:[#allocation4 + $0x61] sm:$0xff]
        %v4043 = vld [vmem:[#allocation4 + $0x71] sm:$0xff]
        %s4044 = scalar_lea.vmem %s2, 8
        %v4045 = vld [vmem:[%s4044] sm:$0xff]
        %v4047 = vsel %vm3869, %v4036, 0
        %v4050 = vsel %vm3869, %v4037, 0
        %v4053 = vsel %vm3869, %v4038, 0
        %v4056 = vsel %vm3869, %v4039, 0
        %v4059 = vsel %vm3869, %v4040, 0
        %v4062 = vsel %vm3869, %v4041, 0
        %v4065 = vsel %vm3869, %v4042, 0
        %v4068 = vsel %vm3869, %v4043, 0
        %4070 = vmatprep.subr.mxu0 0.0
        %4071 = vmatpush1.msra.mxu0 %v4045
        %4072 = vmatprep.subr.mxu0 0.0
        %4073 = vmatpush1.msra.mxu0 0.0
        %4074 = vmatprep.subr.mxu0 0.0
        %4075 = vmatpush1.msra.mxu0 0.0
        %4076 = vmatprep.subr.mxu0 0.0
        %4077 = vmatpush1.msra.mxu0 0.0
        %4078 = vmatprep.subr.mxu0 0.0
        %4079 = vmatpush1.msra.mxu0 0.0
        %4080 = vmatprep.subr.mxu0 0.0
        %4081 = vmatpush1.msra.mxu0 0.0
        %4082 = vmatprep.subr.mxu0 0.0
        %4083 = vmatpush1.msra.mxu0 0.0
        %4084 = vmatprep.subr.mxu0 0.0
        %4085 = vmatpush1.msra.mxu0 0.0
        %4086 = vmatprep.subr.mxu0 0.0
        %4087 = vmatpush1.msra.mxu0 0.0
        %4088 = vmatprep.subr.mxu0 0.0
        %4089 = vmatpush1.msra.mxu0 0.0
        %4090 = vmatprep.subr.mxu0 0.0
        %4091 = vmatpush1.msra.mxu0 0.0
        %4092 = vmatprep.subr.mxu0 0.0
        %4093 = vmatpush1.msra.mxu0 0.0
        %4094 = vmatprep.subr.mxu0 0.0
        %4095 = vmatpush1.msra.mxu0 0.0
        %4096 = vmatprep.subr.mxu0 0.0
        %4097 = vmatpush1.msra.mxu0 0.0
        %4098 = vmatprep.subr.mxu0 0.0
        %4099 = vmatpush1.msra.mxu0 0.0
        %4100 = vmatprep.subr.mxu0 0.0
        %4101 = vmatpush1.msra.mxu0 0.0
        %4102 = vmatprep.subr.mxu0 0.0
        %4103 = vmatpush1.msra.mxu0 0.0
        %4104 = vmatprep.subr.mxu0 0.0
        %4105 = vmatpush1.msra.mxu0 0.0
        %4106 = vmatprep.subr.mxu0 0.0
        %4107 = vmatpush1.msra.mxu0 0.0
        %4108 = vmatprep.subr.mxu0 0.0
        %4109 = vmatpush1.msra.mxu0 0.0
        %4110 = vmatprep.subr.mxu0 0.0
        %4111 = vmatpush1.msra.mxu0 0.0
        %4112 = vmatprep.subr.mxu0 0.0
        %4113 = vmatpush1.msra.mxu0 0.0
        %4114 = vmatprep.subr.mxu0 0.0
        %4115 = vmatpush1.msra.mxu0 0.0
        %4116 = vmatprep.subr.mxu0 0.0
        %4117 = vmatpush1.msra.mxu0 0.0
        %4118 = vmatprep.subr.mxu0 0.0
        %4119 = vmatpush1.msra.mxu0 0.0
        %4120 = vmatprep.subr.mxu0 0.0
        %4121 = vmatpush1.msra.mxu0 0.0
        %4122 = vmatprep.subr.mxu0 0.0
        %4123 = vmatpush1.msra.mxu0 0.0
        %4124 = vmatprep.subr.mxu0 0.0
        %4125 = vmatpush1.msra.mxu0 0.0
        %4126 = vmatprep.subr.mxu0 0.0
        %4127 = vmatpush1.msra.mxu0 0.0
        %4128 = vmatprep.subr.mxu0 0.0
        %4129 = vmatpush1.msra.mxu0 0.0
        %4130 = vmatprep.subr.mxu0 0.0
        %4131 = vmatpush1.msra.mxu0 0.0
        %4132 = vmatprep.subr.mxu0 0.0
        %4133 = vmatpush1.msra.mxu0 0.0
        %4134 = vmatprep.mubr.f32.mxu0 0.0
        %4135 = vmatmul.mubr.f32.gmra.mrb[0].mxu0 %v4047
        %v4136 = vpop.f32.mrb[0].mxu0
        %v4137 = vadd.f32 0.0, %v4136
        %v4138 = vpop.f32.mrb[0].mxu0
        %4139 = vmatprep.mubr.f32.mxu0 0.0
        %4140 = vmatmul.mubr.f32.gmra.mrb[0].mxu0 %v4050
        %v4141 = vpop.f32.mrb[0].mxu0
        %v4142 = vadd.f32 0.0, %v4141
        %v4143 = vpop.f32.mrb[0].mxu0
        %4144 = vmatprep.mubr.f32.mxu0 0.0
        %4145 = vmatmul.mubr.f32.gmra.mrb[0].mxu0 %v4053
        %v4146 = vpop.f32.mrb[0].mxu0
        %v4147 = vadd.f32 0.0, %v4146
        %v4148 = vpop.f32.mrb[0].mxu0
        %4149 = vmatprep.mubr.f32.mxu0 0.0
        %4150 = vmatmul.mubr.f32.gmra.mrb[0].mxu0 %v4056
        %v4151 = vpop.f32.mrb[0].mxu0
        %v4152 = vadd.f32 0.0, %v4151
        %v4153 = vpop.f32.mrb[0].mxu0
        %4154 = vmatprep.mubr.f32.mxu0 0.0
        %4155 = vmatmul.mubr.f32.gmra.mrb[0].mxu0 %v4059
        %v4156 = vpop.f32.mrb[0].mxu0
        %v4157 = vadd.f32 0.0, %v4156
        %v4158 = vpop.f32.mrb[0].mxu0
        %4159 = vmatprep.mubr.f32.mxu0 0.0
        %4160 = vmatmul.mubr.f32.gmra.mrb[0].mxu0 %v4062
        %v4161 = vpop.f32.mrb[0].mxu0
        %v4162 = vadd.f32 0.0, %v4161
        %v4163 = vpop.f32.mrb[0].mxu0
        %4164 = vmatprep.mubr.f32.mxu0 0.0
        %4165 = vmatmul.mubr.f32.gmra.mrb[0].mxu0 %v4065
        %v4166 = vpop.f32.mrb[0].mxu0
        %v4167 = vadd.f32 0.0, %v4166
        %v4168 = vpop.f32.mrb[0].mxu0
        %4169 = vmatprep.mubr.f32.mxu0 0.0
        %4170 = vmatmul.mubr.f32.gmra.mrb[0].mxu0 %v4068
        %v4171 = vpop.f32.mrb[0].mxu0
        %v4172 = vadd.f32 0.0, %v4171
        %v4173 = vpop.f32.mrb[0].mxu0
        %4174 = vdwg.mxu0
        %v4176 = vsel %vm3869, %v4027, 0
        %v4179 = vsel %vm3869, %v4028, 0
        %v4182 = vsel %vm3869, %v4029, 0
        %v4185 = vsel %vm3869, %v4030, 0
        %v4188 = vsel %vm3869, %v4031, 0
        %v4191 = vsel %vm3869, %v4032, 0
        %v4194 = vsel %vm3869, %v4033, 0
        %v4197 = vsel %vm3869, %v4034, 0
        %4199 = vmatprep.subr.mxu0 0.0
        %4200 = vmatpush1.msra.mxu0 %v4035
        %4201 = vmatprep.subr.mxu0 0.0
        %4202 = vmatpush1.msra.mxu0 0.0
        %4203 = vmatprep.subr.mxu0 0.0
        %4204 = vmatpush1.msra.mxu0 0.0
        %4205 = vmatprep.subr.mxu0 0.0
        %4206 = vmatpush1.msra.mxu0 0.0
        %4207 = vmatprep.subr.mxu0 0.0
        %4208 = vmatpush1.msra.mxu0 0.0
        %4209 = vmatprep.subr.mxu0 0.0
        %4210 = vmatpush1.msra.mxu0 0.0
        %4211 = vmatprep.subr.mxu0 0.0
        %4212 = vmatpush1.msra.mxu0 0.0
        %4213 = vmatprep.subr.mxu0 0.0
        %4214 = vmatpush1.msra.mxu0 0.0
        %4215 = vmatprep.subr.mxu0 0.0
        %4216 = vmatpush1.msra.mxu0 0.0
        %4217 = vmatprep.subr.mxu0 0.0
        %4218 = vmatpush1.msra.mxu0 0.0
        %4219 = vmatprep.subr.mxu0 0.0
        %4220 = vmatpush1.msra.mxu0 0.0
        %4221 = vmatprep.subr.mxu0 0.0
        %4222 = vmatpush1.msra.mxu0 0.0
        %4223 = vmatprep.subr.mxu0 0.0
        %4224 = vmatpush1.msra.mxu0 0.0
        %4225 = vmatprep.subr.mxu0 0.0
        %4226 = vmatpush1.msra.mxu0 0.0
        %4227 = vmatprep.subr.mxu0 0.0
        %4228 = vmatpush1.msra.mxu0 0.0
        %4229 = vmatprep.subr.mxu0 0.0
        %4230 = vmatpush1.msra.mxu0 0.0
        %4231 = vmatprep.subr.mxu0 0.0
        %4232 = vmatpush1.msra.mxu0 0.0
        %4233 = vmatprep.subr.mxu0 0.0
        %4234 = vmatpush1.msra.mxu0 0.0
        %4235 = vmatprep.subr.mxu0 0.0
        %4236 = vmatpush1.msra.mxu0 0.0
        %4237 = vmatprep.subr.mxu0 0.0
        %4238 = vmatpush1.msra.mxu0 0.0
        %4239 = vmatprep.subr.mxu0 0.0
        %4240 = vmatpush1.msra.mxu0 0.0
        %4241 = vmatprep.subr.mxu0 0.0
        %4242 = vmatpush1.msra.mxu0 0.0
        %4243 = vmatprep.subr.mxu0 0.0
        %4244 = vmatpush1.msra.mxu0 0.0
        %4245 = vmatprep.subr.mxu0 0.0
        %4246 = vmatpush1.msra.mxu0 0.0
        %4247 = vmatprep.subr.mxu0 0.0
        %4248 = vmatpush1.msra.mxu0 0.0
        %4249 = vmatprep.subr.mxu0 0.0
        %4250 = vmatpush1.msra.mxu0 0.0
        %4251 = vmatprep.subr.mxu0 0.0
        %4252 = vmatpush1.msra.mxu0 0.0
        %4253 = vmatprep.subr.mxu0 0.0
        %4254 = vmatpush1.msra.mxu0 0.0
        %4255 = vmatprep.subr.mxu0 0.0
        %4256 = vmatpush1.msra.mxu0 0.0
        %4257 = vmatprep.subr.mxu0 0.0
        %4258 = vmatpush1.msra.mxu0 0.0
        %4259 = vmatprep.subr.mxu0 0.0
        %4260 = vmatpush1.msra.mxu0 0.0
        %4261 = vmatprep.subr.mxu0 0.0
        %4262 = vmatpush1.msra.mxu0 0.0
        %4263 = vmatprep.mubr.f32.mxu0 0.0
        %4264 = vmatmul.mubr.f32.gmra.mrb[0].mxu0 %v4176
        %v4265 = vpop.f32.mrb[0].mxu0
        %v4266 = vadd.f32 %v4137, %v4265
        %v4267 = vpop.f32.mrb[0].mxu0
        %4268 = vmatprep.mubr.f32.mxu0 0.0
        %4269 = vmatmul.mubr.f32.gmra.mrb[0].mxu0 %v4179
        %v4270 = vpop.f32.mrb[0].mxu0
        %v4271 = vadd.f32 %v4142, %v4270
        %v4272 = vpop.f32.mrb[0].mxu0
        %4273 = vmatprep.mubr.f32.mxu0 0.0
        %4274 = vmatmul.mubr.f32.gmra.mrb[0].mxu0 %v4182
        %v4275 = vpop.f32.mrb[0].mxu0
        %v4276 = vadd.f32 %v4147, %v4275
        %v4277 = vpop.f32.mrb[0].mxu0
        %4278 = vmatprep.mubr.f32.mxu0 0.0
        %4279 = vmatmul.mubr.f32.gmra.mrb[0].mxu0 %v4185
        %v4280 = vpop.f32.mrb[0].mxu0
        %v4281 = vadd.f32 %v4152, %v4280
        %v4282 = vpop.f32.mrb[0].mxu0
        %4283 = vmatprep.mubr.f32.mxu0 0.0
        %4284 = vmatmul.mubr.f32.gmra.mrb[0].mxu0 %v4188
        %v4285 = vpop.f32.mrb[0].mxu0
        %v4286 = vadd.f32 %v4157, %v4285
        %v4287 = vpop.f32.mrb[0].mxu0
        %4288 = vmatprep.mubr.f32.mxu0 0.0
        %4289 = vmatmul.mubr.f32.gmra.mrb[0].mxu0 %v4191
        %v4290 = vpop.f32.mrb[0].mxu0
        %v4291 = vadd.f32 %v4162, %v4290
        %v4292 = vpop.f32.mrb[0].mxu0
        %4293 = vmatprep.mubr.f32.mxu0 0.0
        %4294 = vmatmul.mubr.f32.gmra.mrb[0].mxu0 %v4194
        %v4295 = vpop.f32.mrb[0].mxu0
        %v4296 = vadd.f32 %v4167, %v4295
        %v4297 = vpop.f32.mrb[0].mxu0
        %4298 = vmatprep.mubr.f32.mxu0 0.0
        %4299 = vmatmul.mubr.f32.gmra.mrb[0].mxu0 %v4197
        %v4300 = vpop.f32.mrb[0].mxu0
        %v4301 = vadd.f32 %v4172, %v4300
        %v4302 = vpop.f32.mrb[0].mxu0
        %4303 = vdwg.mxu0
        %v4304 = vld [vmem:[#allocation4 + $0x2] sm:$0xff]
        %v4305 = vld [vmem:[#allocation4 + $0x12] sm:$0xff]
        %v4306 = vld [vmem:[#allocation4 + $0x22] sm:$0xff]
        %v4307 = vld [vmem:[#allocation4 + $0x32] sm:$0xff]
        %v4308 = vld [vmem:[#allocation4 + $0x42] sm:$0xff]
        %v4309 = vld [vmem:[#allocation4 + $0x52] sm:$0xff]
        %v4310 = vld [vmem:[#allocation4 + $0x62] sm:$0xff]
        %v4311 = vld [vmem:[#allocation4 + $0x72] sm:$0xff]
        %s4312 = scalar_lea.vmem %s2, 16
        %v4313 = vld [vmem:[%s4312] sm:$0xff]
        %v4315 = vsel %vm3869, %v4304, 0
        %v4318 = vsel %vm3869, %v4305, 0
        %v4321 = vsel %vm3869, %v4306, 0
        %v4324 = vsel %vm3869, %v4307, 0
        %v4327 = vsel %vm3869, %v4308, 0
        %v4330 = vsel %vm3869, %v4309, 0
        %v4333 = vsel %vm3869, %v4310, 0
        %v4336 = vsel %vm3869, %v4311, 0
        %4338 = vmatprep.subr.mxu0 0.0
        %4339 = vmatpush1.msra.mxu0 %v4313
        %4340 = vmatprep.subr.mxu0 0.0
        %4341 = vmatpush1.msra.mxu0 0.0
        %4342 = vmatprep.subr.mxu0 0.0
        %4343 = vmatpush1.msra.mxu0 0.0
        %4344 = vmatprep.subr.mxu0 0.0
        %4345 = vmatpush1.msra.mxu0 0.0
        %4346 = vmatprep.subr.mxu0 0.0
        %4347 = vmatpush1.msra.mxu0 0.0
        %4348 = vmatprep.subr.mxu0 0.0
        %4349 = vmatpush1.msra.mxu0 0.0
        %4350 = vmatprep.subr.mxu0 0.0
        %4351 = vmatpush1.msra.mxu0 0.0
        %4352 = vmatprep.subr.mxu0 0.0
        %4353 = vmatpush1.msra.mxu0 0.0
        %4354 = vmatprep.subr.mxu0 0.0
        %4355 = vmatpush1.msra.mxu0 0.0
        %4356 = vmatprep.subr.mxu0 0.0
        %4357 = vmatpush1.msra.mxu0 0.0
        %4358 = vmatprep.subr.mxu0 0.0
        %4359 = vmatpush1.msra.mxu0 0.0
        %4360 = vmatprep.subr.mxu0 0.0
        %4361 = vmatpush1.msra.mxu0 0.0
        %4362 = vmatprep.subr.mxu0 0.0
        %4363 = vmatpush1.msra.mxu0 0.0
        %4364 = vmatprep.subr.mxu0 0.0
        %4365 = vmatpush1.msra.mxu0 0.0
        %4366 = vmatprep.subr.mxu0 0.0
        %4367 = vmatpush1.msra.mxu0 0.0
        %4368 = vmatprep.subr.mxu0 0.0
        %4369 = vmatpush1.msra.mxu0 0.0
        %4370 = vmatprep.subr.mxu0 0.0
        %4371 = vmatpush1.msra.mxu0 0.0
        %4372 = vmatprep.subr.mxu0 0.0
        %4373 = vmatpush1.msra.mxu0 0.0
        %4374 = vmatprep.subr.mxu0 0.0
        %4375 = vmatpush1.msra.mxu0 0.0
        %4376 = vmatprep.subr.mxu0 0.0
        %4377 = vmatpush1.msra.mxu0 0.0
        %4378 = vmatprep.subr.mxu0 0.0
        %4379 = vmatpush1.msra.mxu0 0.0
        %4380 = vmatprep.subr.mxu0 0.0
        %4381 = vmatpush1.msra.mxu0 0.0
        %4382 = vmatprep.subr.mxu0 0.0
        %4383 = vmatpush1.msra.mxu0 0.0
        %4384 = vmatprep.subr.mxu0 0.0
        %4385 = vmatpush1.msra.mxu0 0.0
        %4386 = vmatprep.subr.mxu0 0.0
        %4387 = vmatpush1.msra.mxu0 0.0
        %4388 = vmatprep.subr.mxu0 0.0
        %4389 = vmatpush1.msra.mxu0 0.0
        %4390 = vmatprep.subr.mxu0 0.0
        %4391 = vmatpush1.msra.mxu0 0.0
        %4392 = vmatprep.subr.mxu0 0.0
        %4393 = vmatpush1.msra.mxu0 0.0
        %4394 = vmatprep.subr.mxu0 0.0
        %4395 = vmatpush1.msra.mxu0 0.0
        %4396 = vmatprep.subr.mxu0 0.0
        %4397 = vmatpush1.msra.mxu0 0.0
        %4398 = vmatprep.subr.mxu0 0.0
        %4399 = vmatpush1.msra.mxu0 0.0
        %4400 = vmatprep.subr.mxu0 0.0
        %4401 = vmatpush1.msra.mxu0 0.0
        %4402 = vmatprep.mubr.f32.mxu0 0.0
        %4403 = vmatmul.mubr.f32.gmra.mrb[0].mxu0 %v4315
        %v4404 = vpop.f32.mrb[0].mxu0
        %v4405 = vadd.f32 0.0, %v4404
        %v4406 = vpop.f32.mrb[0].mxu0
        %4407 = vmatprep.mubr.f32.mxu0 0.0
        %4408 = vmatmul.mubr.f32.gmra.mrb[0].mxu0 %v4318
        %v4409 = vpop.f32.mrb[0].mxu0
        %v4410 = vadd.f32 0.0, %v4409
        %v4411 = vpop.f32.mrb[0].mxu0
        %4412 = vmatprep.mubr.f32.mxu0 0.0
        %4413 = vmatmul.mubr.f32.gmra.mrb[0].mxu0 %v4321
        %v4414 = vpop.f32.mrb[0].mxu0
        %v4415 = vadd.f32 0.0, %v4414
        %v4416 = vpop.f32.mrb[0].mxu0
        %4417 = vmatprep.mubr.f32.mxu0 0.0
        %4418 = vmatmul.mubr.f32.gmra.mrb[0].mxu0 %v4324
        %v4419 = vpop.f32.mrb[0].mxu0
        %v4420 = vadd.f32 0.0, %v4419
        %v4421 = vpop.f32.mrb[0].mxu0
        %4422 = vmatprep.mubr.f32.mxu0 0.0
        %4423 = vmatmul.mubr.f32.gmra.mrb[0].mxu0 %v4327
        %v4424 = vpop.f32.mrb[0].mxu0
        %v4425 = vadd.f32 0.0, %v4424
        %v4426 = vpop.f32.mrb[0].mxu0
        %4427 = vmatprep.mubr.f32.mxu0 0.0
        %4428 = vmatmul.mubr.f32.gmra.mrb[0].mxu0 %v4330
        %v4429 = vpop.f32.mrb[0].mxu0
        %v4430 = vadd.f32 0.0, %v4429
        %v4431 = vpop.f32.mrb[0].mxu0
        %4432 = vmatprep.mubr.f32.mxu0 0.0
        %4433 = vmatmul.mubr.f32.gmra.mrb[0].mxu0 %v4333
        %v4434 = vpop.f32.mrb[0].mxu0
        %v4435 = vadd.f32 0.0, %v4434
        %v4436 = vpop.f32.mrb[0].mxu0
        %4437 = vmatprep.mubr.f32.mxu0 0.0
        %4438 = vmatmul.mubr.f32.gmra.mrb[0].mxu0 %v4336
        %v4439 = vpop.f32.mrb[0].mxu0
        %v4440 = vadd.f32 0.0, %v4439
        %v4441 = vpop.f32.mrb[0].mxu0
        %4442 = vdwg.mxu0
        %v4443 = vadd.f32 %v4266, %v4405
        %v4444 = vadd.f32 %v4271, %v4410
        %v4445 = vadd.f32 %v4276, %v4415
        %v4446 = vadd.f32 %v4281, %v4420
        %v4447 = vadd.f32 %v4286, %v4425
        %v4448 = vadd.f32 %v4291, %v4430
        %v4449 = vadd.f32 %v4296, %v4435
        %v4450 = vadd.f32 %v4301, %v4440
        %v4451 = vld [vmem:[%s4018] sm:$0xff]
        %v4452 = vld [vmem:[%s4018 + $0x10] sm:$0xff]
        %v4453 = vld [vmem:[%s4018 + $0x20] sm:$0xff]
        %v4454 = vld [vmem:[%s4018 + $0x30] sm:$0xff]
        %v4455 = vld [vmem:[%s4018 + $0x40] sm:$0xff]
        %v4456 = vld [vmem:[%s4018 + $0x50] sm:$0xff]
        %v4457 = vld [vmem:[%s4018 + $0x60] sm:$0xff]
        %v4458 = vld [vmem:[%s4018 + $0x70] sm:$0xff]
        %s4459 = scalar_lea.vmem %s2, 24
        %v4460 = vld [vmem:[%s4459] sm:$0xff]
        %v4462 = vsel %vm3869, %v4451, 0
        %v4465 = vsel %vm3869, %v4452, 0
        %v4468 = vsel %vm3869, %v4453, 0
        %v4471 = vsel %vm3869, %v4454, 0
        %v4474 = vsel %vm3869, %v4455, 0
        %v4477 = vsel %vm3869, %v4456, 0
        %v4480 = vsel %vm3869, %v4457, 0
        %v4483 = vsel %vm3869, %v4458, 0
        %4485 = vmatprep.subr.mxu0 0.0
        %4486 = vmatpush1.msra.mxu0 %v4460
        %4487 = vmatprep.subr.mxu0 0.0
        %4488 = vmatpush1.msra.mxu0 0.0
        %4489 = vmatprep.subr.mxu0 0.0
        %4490 = vmatpush1.msra.mxu0 0.0
        %4491 = vmatprep.subr.mxu0 0.0
        %4492 = vmatpush1.msra.mxu0 0.0
        %4493 = vmatprep.subr.mxu0 0.0
        %4494 = vmatpush1.msra.mxu0 0.0
        %4495 = vmatprep.subr.mxu0 0.0
        %4496 = vmatpush1.msra.mxu0 0.0
        %4497 = vmatprep.subr.mxu0 0.0
        %4498 = vmatpush1.msra.mxu0 0.0
        %4499 = vmatprep.subr.mxu0 0.0
        %4500 = vmatpush1.msra.mxu0 0.0
        %4501 = vmatprep.subr.mxu0 0.0
        %4502 = vmatpush1.msra.mxu0 0.0
        %4503 = vmatprep.subr.mxu0 0.0
        %4504 = vmatpush1.msra.mxu0 0.0
        %4505 = vmatprep.subr.mxu0 0.0
        %4506 = vmatpush1.msra.mxu0 0.0
        %4507 = vmatprep.subr.mxu0 0.0
        %4508 = vmatpush1.msra.mxu0 0.0
        %4509 = vmatprep.subr.mxu0 0.0
        %4510 = vmatpush1.msra.mxu0 0.0
        %4511 = vmatprep.subr.mxu0 0.0
        %4512 = vmatpush1.msra.mxu0 0.0
        %4513 = vmatprep.subr.mxu0 0.0
        %4514 = vmatpush1.msra.mxu0 0.0
        %4515 = vmatprep.subr.mxu0 0.0
        %4516 = vmatpush1.msra.mxu0 0.0
        %4517 = vmatprep.subr.mxu0 0.0
        %4518 = vmatpush1.msra.mxu0 0.0
        %4519 = vmatprep.subr.mxu0 0.0
        %4520 = vmatpush1.msra.mxu0 0.0
        %4521 = vmatprep.subr.mxu0 0.0
        %4522 = vmatpush1.msra.mxu0 0.0
        %4523 = vmatprep.subr.mxu0 0.0
        %4524 = vmatpush1.msra.mxu0 0.0
        %4525 = vmatprep.subr.mxu0 0.0
        %4526 = vmatpush1.msra.mxu0 0.0
        %4527 = vmatprep.subr.mxu0 0.0
        %4528 = vmatpush1.msra.mxu0 0.0
        %4529 = vmatprep.subr.mxu0 0.0
        %4530 = vmatpush1.msra.mxu0 0.0
        %4531 = vmatprep.subr.mxu0 0.0
        %4532 = vmatpush1.msra.mxu0 0.0
        %4533 = vmatprep.subr.mxu0 0.0
        %4534 = vmatpush1.msra.mxu0 0.0
        %4535 = vmatprep.subr.mxu0 0.0
        %4536 = vmatpush1.msra.mxu0 0.0
        %4537 = vmatprep.subr.mxu0 0.0
        %4538 = vmatpush1.msra.mxu0 0.0
        %4539 = vmatprep.subr.mxu0 0.0
        %4540 = vmatpush1.msra.mxu0 0.0
        %4541 = vmatprep.subr.mxu0 0.0
        %4542 = vmatpush1.msra.mxu0 0.0
        %4543 = vmatprep.subr.mxu0 0.0
        %4544 = vmatpush1.msra.mxu0 0.0
        %4545 = vmatprep.subr.mxu0 0.0
        %4546 = vmatpush1.msra.mxu0 0.0
        %4547 = vmatprep.subr.mxu0 0.0
        %4548 = vmatpush1.msra.mxu0 0.0
        %4549 = vmatprep.mubr.f32.mxu0 0.0
        %4550 = vmatmul.mubr.f32.gmra.mrb[0].mxu0 %v4462
        %v4551 = vpop.f32.mrb[0].mxu0
        %v4552 = vadd.f32 0.0, %v4551
        %v4553 = vpop.f32.mrb[0].mxu0
        %4554 = vmatprep.mubr.f32.mxu0 0.0
        %4555 = vmatmul.mubr.f32.gmra.mrb[0].mxu0 %v4465
        %v4556 = vpop.f32.mrb[0].mxu0
        %v4557 = vadd.f32 0.0, %v4556
        %v4558 = vpop.f32.mrb[0].mxu0
        %4559 = vmatprep.mubr.f32.mxu0 0.0
        %4560 = vmatmul.mubr.f32.gmra.mrb[0].mxu0 %v4468
        %v4561 = vpop.f32.mrb[0].mxu0
        %v4562 = vadd.f32 0.0, %v4561
        %v4563 = vpop.f32.mrb[0].mxu0
        %4564 = vmatprep.mubr.f32.mxu0 0.0
        %4565 = vmatmul.mubr.f32.gmra.mrb[0].mxu0 %v4471
        %v4566 = vpop.f32.mrb[0].mxu0
        %v4567 = vadd.f32 0.0, %v4566
        %v4568 = vpop.f32.mrb[0].mxu0
        %4569 = vmatprep.mubr.f32.mxu0 0.0
        %4570 = vmatmul.mubr.f32.gmra.mrb[0].mxu0 %v4474
        %v4571 = vpop.f32.mrb[0].mxu0
        %v4572 = vadd.f32 0.0, %v4571
        %v4573 = vpop.f32.mrb[0].mxu0
        %4574 = vmatprep.mubr.f32.mxu0 0.0
        %4575 = vmatmul.mubr.f32.gmra.mrb[0].mxu0 %v4477
        %v4576 = vpop.f32.mrb[0].mxu0
        %v4577 = vadd.f32 0.0, %v4576
        %v4578 = vpop.f32.mrb[0].mxu0
        %4579 = vmatprep.mubr.f32.mxu0 0.0
        %4580 = vmatmul.mubr.f32.gmra.mrb[0].mxu0 %v4480
        %v4581 = vpop.f32.mrb[0].mxu0
        %v4582 = vadd.f32 0.0, %v4581
        %v4583 = vpop.f32.mrb[0].mxu0
        %4584 = vmatprep.mubr.f32.mxu0 0.0
        %4585 = vmatmul.mubr.f32.gmra.mrb[0].mxu0 %v4483
        %v4586 = vpop.f32.mrb[0].mxu0
        %v4587 = vadd.f32 0.0, %v4586
        %v4588 = vpop.f32.mrb[0].mxu0
        %4589 = vdwg.mxu0
        %v4590 = vadd.f32 %v4443, %v4552
        %v4591 = vadd.f32 %v4444, %v4557
        %v4592 = vadd.f32 %v4445, %v4562
        %v4593 = vadd.f32 %v4446, %v4567
        %v4594 = vadd.f32 %v4447, %v4572
        %v4595 = vadd.f32 %v4448, %v4577
        %v4596 = vadd.f32 %v4449, %v4582
        %v4597 = vadd.f32 %v4450, %v4587
        %v4598 = vld [vmem:[%s4018 + $0x1] sm:$0xff]
        %v4599 = vld [vmem:[%s4018 + $0x11] sm:$0xff]
        %v4600 = vld [vmem:[%s4018 + $0x21] sm:$0xff]
        %v4601 = vld [vmem:[%s4018 + $0x31] sm:$0xff]
        %v4602 = vld [vmem:[%s4018 + $0x41] sm:$0xff]
        %v4603 = vld [vmem:[%s4018 + $0x51] sm:$0xff]
        %v4604 = vld [vmem:[%s4018 + $0x61] sm:$0xff]
        %v4605 = vld [vmem:[%s4018 + $0x71] sm:$0xff]
        %s4606 = scalar_lea.vmem %s2, 32
        %v4607 = vld [vmem:[%s4606] sm:$0xff]
        %v4609 = vsel %vm3869, %v4598, 0
        %v4612 = vsel %vm3869, %v4599, 0
        %v4615 = vsel %vm3869, %v4600, 0
        %v4618 = vsel %vm3869, %v4601, 0
        %v4621 = vsel %vm3869, %v4602, 0
        %v4624 = vsel %vm3869, %v4603, 0
        %v4627 = vsel %vm3869, %v4604, 0
        %v4630 = vsel %vm3869, %v4605, 0
        %4632 = vmatprep.subr.mxu0 0.0
        %4633 = vmatpush1.msra.mxu0 %v4607
        %4634 = vmatprep.subr.mxu0 0.0
        %4635 = vmatpush1.msra.mxu0 0.0
        %4636 = vmatprep.subr.mxu0 0.0
        %4637 = vmatpush1.msra.mxu0 0.0
        %4638 = vmatprep.subr.mxu0 0.0
        %4639 = vmatpush1.msra.mxu0 0.0
        %4640 = vmatprep.subr.mxu0 0.0
        %4641 = vmatpush1.msra.mxu0 0.0
        %4642 = vmatprep.subr.mxu0 0.0
        %4643 = vmatpush1.msra.mxu0 0.0
        %4644 = vmatprep.subr.mxu0 0.0
        %4645 = vmatpush1.msra.mxu0 0.0
        %4646 = vmatprep.subr.mxu0 0.0
        %4647 = vmatpush1.msra.mxu0 0.0
        %4648 = vmatprep.subr.mxu0 0.0
        %4649 = vmatpush1.msra.mxu0 0.0
        %4650 = vmatprep.subr.mxu0 0.0
        %4651 = vmatpush1.msra.mxu0 0.0
        %4652 = vmatprep.subr.mxu0 0.0
        %4653 = vmatpush1.msra.mxu0 0.0
        %4654 = vmatprep.subr.mxu0 0.0
        %4655 = vmatpush1.msra.mxu0 0.0
        %4656 = vmatprep.subr.mxu0 0.0
        %4657 = vmatpush1.msra.mxu0 0.0
        %4658 = vmatprep.subr.mxu0 0.0
        %4659 = vmatpush1.msra.mxu0 0.0
        %4660 = vmatprep.subr.mxu0 0.0
        %4661 = vmatpush1.msra.mxu0 0.0
        %4662 = vmatprep.subr.mxu0 0.0
        %4663 = vmatpush1.msra.mxu0 0.0
        %4664 = vmatprep.subr.mxu0 0.0
        %4665 = vmatpush1.msra.mxu0 0.0
        %4666 = vmatprep.subr.mxu0 0.0
        %4667 = vmatpush1.msra.mxu0 0.0
        %4668 = vmatprep.subr.mxu0 0.0
        %4669 = vmatpush1.msra.mxu0 0.0
        %4670 = vmatprep.subr.mxu0 0.0
        %4671 = vmatpush1.msra.mxu0 0.0
        %4672 = vmatprep.subr.mxu0 0.0
        %4673 = vmatpush1.msra.mxu0 0.0
        %4674 = vmatprep.subr.mxu0 0.0
        %4675 = vmatpush1.msra.mxu0 0.0
        %4676 = vmatprep.subr.mxu0 0.0
        %4677 = vmatpush1.msra.mxu0 0.0
        %4678 = vmatprep.subr.mxu0 0.0
        %4679 = vmatpush1.msra.mxu0 0.0
        %4680 = vmatprep.subr.mxu0 0.0
        %4681 = vmatpush1.msra.mxu0 0.0
        %4682 = vmatprep.subr.mxu0 0.0
        %4683 = vmatpush1.msra.mxu0 0.0
        %4684 = vmatprep.subr.mxu0 0.0
        %4685 = vmatpush1.msra.mxu0 0.0
        %4686 = vmatprep.subr.mxu0 0.0
        %4687 = vmatpush1.msra.mxu0 0.0
        %4688 = vmatprep.subr.mxu0 0.0
        %4689 = vmatpush1.msra.mxu0 0.0
        %4690 = vmatprep.subr.mxu0 0.0
        %4691 = vmatpush1.msra.mxu0 0.0
        %4692 = vmatprep.subr.mxu0 0.0
        %4693 = vmatpush1.msra.mxu0 0.0
        %4694 = vmatprep.subr.mxu0 0.0
        %4695 = vmatpush1.msra.mxu0 0.0
        %4696 = vmatprep.mubr.f32.mxu0 0.0
        %4697 = vmatmul.mubr.f32.gmra.mrb[0].mxu0 %v4609
        %v4698 = vpop.f32.mrb[0].mxu0
        %v4699 = vadd.f32 0.0, %v4698
        %v4700 = vpop.f32.mrb[0].mxu0
        %4701 = vmatprep.mubr.f32.mxu0 0.0
        %4702 = vmatmul.mubr.f32.gmra.mrb[0].mxu0 %v4612
        %v4703 = vpop.f32.mrb[0].mxu0
        %v4704 = vadd.f32 0.0, %v4703
        %v4705 = vpop.f32.mrb[0].mxu0
        %4706 = vmatprep.mubr.f32.mxu0 0.0
        %4707 = vmatmul.mubr.f32.gmra.mrb[0].mxu0 %v4615
        %v4708 = vpop.f32.mrb[0].mxu0
        %v4709 = vadd.f32 0.0, %v4708
        %v4710 = vpop.f32.mrb[0].mxu0
        %4711 = vmatprep.mubr.f32.mxu0 0.0
        %4712 = vmatmul.mubr.f32.gmra.mrb[0].mxu0 %v4618
        %v4713 = vpop.f32.mrb[0].mxu0
        %v4714 = vadd.f32 0.0, %v4713
        %v4715 = vpop.f32.mrb[0].mxu0
        %4716 = vmatprep.mubr.f32.mxu0 0.0
        %4717 = vmatmul.mubr.f32.gmra.mrb[0].mxu0 %v4621
        %v4718 = vpop.f32.mrb[0].mxu0
        %v4719 = vadd.f32 0.0, %v4718
        %v4720 = vpop.f32.mrb[0].mxu0
        %4721 = vmatprep.mubr.f32.mxu0 0.0
        %4722 = vmatmul.mubr.f32.gmra.mrb[0].mxu0 %v4624
        %v4723 = vpop.f32.mrb[0].mxu0
        %v4724 = vadd.f32 0.0, %v4723
        %v4725 = vpop.f32.mrb[0].mxu0
        %4726 = vmatprep.mubr.f32.mxu0 0.0
        %4727 = vmatmul.mubr.f32.gmra.mrb[0].mxu0 %v4627
        %v4728 = vpop.f32.mrb[0].mxu0
        %v4729 = vadd.f32 0.0, %v4728
        %v4730 = vpop.f32.mrb[0].mxu0
        %4731 = vmatprep.mubr.f32.mxu0 0.0
        %4732 = vmatmul.mubr.f32.gmra.mrb[0].mxu0 %v4630
        %v4733 = vpop.f32.mrb[0].mxu0
        %v4734 = vadd.f32 0.0, %v4733
        %v4735 = vpop.f32.mrb[0].mxu0
        %4736 = vdwg.mxu0
        %v4737 = vadd.f32 %v4590, %v4699
        %v4738 = vadd.f32 %v4591, %v4704
        %v4739 = vadd.f32 %v4592, %v4709
        %v4740 = vadd.f32 %v4593, %v4714
        %v4741 = vadd.f32 %v4594, %v4719
        %v4742 = vadd.f32 %v4595, %v4724
        %v4743 = vadd.f32 %v4596, %v4729
        %v4744 = vadd.f32 %v4597, %v4734
        %v4745 = vld [vmem:[%s4018 + $0x2] sm:$0xff]
        %v4746 = vld [vmem:[%s4018 + $0x12] sm:$0xff]
        %v4747 = vld [vmem:[%s4018 + $0x22] sm:$0xff]
        %v4748 = vld [vmem:[%s4018 + $0x32] sm:$0xff]
        %v4749 = vld [vmem:[%s4018 + $0x42] sm:$0xff]
        %v4750 = vld [vmem:[%s4018 + $0x52] sm:$0xff]
        %v4751 = vld [vmem:[%s4018 + $0x62] sm:$0xff]
        %v4752 = vld [vmem:[%s4018 + $0x72] sm:$0xff]
        %s4753 = scalar_lea.vmem %s2, 40
        %v4754 = vld [vmem:[%s4753] sm:$0xff]
        %v4756 = vsel %vm3869, %v4745, 0
        %v4759 = vsel %vm3869, %v4746, 0
        %v4762 = vsel %vm3869, %v4747, 0
        %v4765 = vsel %vm3869, %v4748, 0
        %v4768 = vsel %vm3869, %v4749, 0
        %v4771 = vsel %vm3869, %v4750, 0
        %v4774 = vsel %vm3869, %v4751, 0
        %v4777 = vsel %vm3869, %v4752, 0
        %4779 = vmatprep.subr.mxu0 0.0
        %4780 = vmatpush1.msra.mxu0 %v4754
        %4781 = vmatprep.subr.mxu0 0.0
        %4782 = vmatpush1.msra.mxu0 0.0
        %4783 = vmatprep.subr.mxu0 0.0
        %4784 = vmatpush1.msra.mxu0 0.0
        %4785 = vmatprep.subr.mxu0 0.0
        %4786 = vmatpush1.msra.mxu0 0.0
        %4787 = vmatprep.subr.mxu0 0.0
        %4788 = vmatpush1.msra.mxu0 0.0
        %4789 = vmatprep.subr.mxu0 0.0
        %4790 = vmatpush1.msra.mxu0 0.0
        %4791 = vmatprep.subr.mxu0 0.0
        %4792 = vmatpush1.msra.mxu0 0.0
        %4793 = vmatprep.subr.mxu0 0.0
        %4794 = vmatpush1.msra.mxu0 0.0
        %4795 = vmatprep.subr.mxu0 0.0
        %4796 = vmatpush1.msra.mxu0 0.0
        %4797 = vmatprep.subr.mxu0 0.0
        %4798 = vmatpush1.msra.mxu0 0.0
        %4799 = vmatprep.subr.mxu0 0.0
        %4800 = vmatpush1.msra.mxu0 0.0
        %4801 = vmatprep.subr.mxu0 0.0
        %4802 = vmatpush1.msra.mxu0 0.0
        %4803 = vmatprep.subr.mxu0 0.0
        %4804 = vmatpush1.msra.mxu0 0.0
        %4805 = vmatprep.subr.mxu0 0.0
        %4806 = vmatpush1.msra.mxu0 0.0
        %4807 = vmatprep.subr.mxu0 0.0
        %4808 = vmatpush1.msra.mxu0 0.0
        %4809 = vmatprep.subr.mxu0 0.0
        %4810 = vmatpush1.msra.mxu0 0.0
        %4811 = vmatprep.subr.mxu0 0.0
        %4812 = vmatpush1.msra.mxu0 0.0
        %4813 = vmatprep.subr.mxu0 0.0
        %4814 = vmatpush1.msra.mxu0 0.0
        %4815 = vmatprep.subr.mxu0 0.0
        %4816 = vmatpush1.msra.mxu0 0.0
        %4817 = vmatprep.subr.mxu0 0.0
        %4818 = vmatpush1.msra.mxu0 0.0
        %4819 = vmatprep.subr.mxu0 0.0
        %4820 = vmatpush1.msra.mxu0 0.0
        %4821 = vmatprep.subr.mxu0 0.0
        %4822 = vmatpush1.msra.mxu0 0.0
        %4823 = vmatprep.subr.mxu0 0.0
        %4824 = vmatpush1.msra.mxu0 0.0
        %4825 = vmatprep.subr.mxu0 0.0
        %4826 = vmatpush1.msra.mxu0 0.0
        %4827 = vmatprep.subr.mxu0 0.0
        %4828 = vmatpush1.msra.mxu0 0.0
        %4829 = vmatprep.subr.mxu0 0.0
        %4830 = vmatpush1.msra.mxu0 0.0
        %4831 = vmatprep.subr.mxu0 0.0
        %4832 = vmatpush1.msra.mxu0 0.0
        %4833 = vmatprep.subr.mxu0 0.0
        %4834 = vmatpush1.msra.mxu0 0.0
        %4835 = vmatprep.subr.mxu0 0.0
        %4836 = vmatpush1.msra.mxu0 0.0
        %4837 = vmatprep.subr.mxu0 0.0
        %4838 = vmatpush1.msra.mxu0 0.0
        %4839 = vmatprep.subr.mxu0 0.0
        %4840 = vmatpush1.msra.mxu0 0.0
        %4841 = vmatprep.subr.mxu0 0.0
        %4842 = vmatpush1.msra.mxu0 0.0
        %4843 = vmatprep.mubr.f32.mxu0 0.0
        %4844 = vmatmul.mubr.f32.gmra.mrb[0].mxu0 %v4756
        %v4845 = vpop.f32.mrb[0].mxu0
        %v4846 = vadd.f32 0.0, %v4845
        %v4847 = vpop.f32.mrb[0].mxu0
        %4848 = vmatprep.mubr.f32.mxu0 0.0
        %4849 = vmatmul.mubr.f32.gmra.mrb[0].mxu0 %v4759
        %v4850 = vpop.f32.mrb[0].mxu0
        %v4851 = vadd.f32 0.0, %v4850
        %v4852 = vpop.f32.mrb[0].mxu0
        %4853 = vmatprep.mubr.f32.mxu0 0.0
        %4854 = vmatmul.mubr.f32.gmra.mrb[0].mxu0 %v4762
        %v4855 = vpop.f32.mrb[0].mxu0
        %v4856 = vadd.f32 0.0, %v4855
        %v4857 = vpop.f32.mrb[0].mxu0
        %4858 = vmatprep.mubr.f32.mxu0 0.0
        %4859 = vmatmul.mubr.f32.gmra.mrb[0].mxu0 %v4765
        %v4860 = vpop.f32.mrb[0].mxu0
        %v4861 = vadd.f32 0.0, %v4860
        %v4862 = vpop.f32.mrb[0].mxu0
        %4863 = vmatprep.mubr.f32.mxu0 0.0
        %4864 = vmatmul.mubr.f32.gmra.mrb[0].mxu0 %v4768
        %v4865 = vpop.f32.mrb[0].mxu0
        %v4866 = vadd.f32 0.0, %v4865
        %v4867 = vpop.f32.mrb[0].mxu0
        %4868 = vmatprep.mubr.f32.mxu0 0.0
        %4869 = vmatmul.mubr.f32.gmra.mrb[0].mxu0 %v4771
        %v4870 = vpop.f32.mrb[0].mxu0
        %v4871 = vadd.f32 0.0, %v4870
        %v4872 = vpop.f32.mrb[0].mxu0
        %4873 = vmatprep.mubr.f32.mxu0 0.0
        %4874 = vmatmul.mubr.f32.gmra.mrb[0].mxu0 %v4774
        %v4875 = vpop.f32.mrb[0].mxu0
        %v4876 = vadd.f32 0.0, %v4875
        %v4877 = vpop.f32.mrb[0].mxu0
        %4878 = vmatprep.mubr.f32.mxu0 0.0
        %4879 = vmatmul.mubr.f32.gmra.mrb[0].mxu0 %v4777
        %v4880 = vpop.f32.mrb[0].mxu0
        %v4881 = vadd.f32 0.0, %v4880
        %v4882 = vpop.f32.mrb[0].mxu0
        %4883 = vdwg.mxu0
        %v4884 = vadd.f32 %v4737, %v4846
        %v4885 = vadd.f32 %v4738, %v4851
        %v4886 = vadd.f32 %v4739, %v4856
        %v4887 = vadd.f32 %v4740, %v4861
        %v4888 = vadd.f32 %v4741, %v4866
        %v4889 = vadd.f32 %v4742, %v4871
        %v4890 = vadd.f32 %v4743, %v4876
        %v4891 = vadd.f32 %v4744, %v4881
        %s4892 = scalar_lea.vmem [#allocation4], 32
        %v4893 = vld [vmem:[%s4892] sm:$0xff]
        %v4894 = vld [vmem:[%s4892 + $0x10] sm:$0xff]
        %v4895 = vld [vmem:[%s4892 + $0x20] sm:$0xff]
        %v4896 = vld [vmem:[%s4892 + $0x30] sm:$0xff]
        %v4897 = vld [vmem:[%s4892 + $0x40] sm:$0xff]
        %v4898 = vld [vmem:[%s4892 + $0x50] sm:$0xff]
        %v4899 = vld [vmem:[%s4892 + $0x60] sm:$0xff]
        %v4900 = vld [vmem:[%s4892 + $0x70] sm:$0xff]
        %s4901 = scalar_lea.vmem %s2, 48
        %v4902 = vld [vmem:[%s4901] sm:$0xff]
        %v4904 = vsel %vm3869, %v4893, 0
        %v4907 = vsel %vm3869, %v4894, 0
        %v4910 = vsel %vm3869, %v4895, 0
        %v4913 = vsel %vm3869, %v4896, 0
        %v4916 = vsel %vm3869, %v4897, 0
        %v4919 = vsel %vm3869, %v4898, 0
        %v4922 = vsel %vm3869, %v4899, 0
        %v4925 = vsel %vm3869, %v4900, 0
        %4927 = vmatprep.subr.mxu0 0.0
        %4928 = vmatpush1.msra.mxu0 %v4902
        %4929 = vmatprep.subr.mxu0 0.0
        %4930 = vmatpush1.msra.mxu0 0.0
        %4931 = vmatprep.subr.mxu0 0.0
        %4932 = vmatpush1.msra.mxu0 0.0
        %4933 = vmatprep.subr.mxu0 0.0
        %4934 = vmatpush1.msra.mxu0 0.0
        %4935 = vmatprep.subr.mxu0 0.0
        %4936 = vmatpush1.msra.mxu0 0.0
        %4937 = vmatprep.subr.mxu0 0.0
        %4938 = vmatpush1.msra.mxu0 0.0
        %4939 = vmatprep.subr.mxu0 0.0
        %4940 = vmatpush1.msra.mxu0 0.0
        %4941 = vmatprep.subr.mxu0 0.0
        %4942 = vmatpush1.msra.mxu0 0.0
        %4943 = vmatprep.subr.mxu0 0.0
        %4944 = vmatpush1.msra.mxu0 0.0
        %4945 = vmatprep.subr.mxu0 0.0
        %4946 = vmatpush1.msra.mxu0 0.0
        %4947 = vmatprep.subr.mxu0 0.0
        %4948 = vmatpush1.msra.mxu0 0.0
        %4949 = vmatprep.subr.mxu0 0.0
        %4950 = vmatpush1.msra.mxu0 0.0
        %4951 = vmatprep.subr.mxu0 0.0
        %4952 = vmatpush1.msra.mxu0 0.0
        %4953 = vmatprep.subr.mxu0 0.0
        %4954 = vmatpush1.msra.mxu0 0.0
        %4955 = vmatprep.subr.mxu0 0.0
        %4956 = vmatpush1.msra.mxu0 0.0
        %4957 = vmatprep.subr.mxu0 0.0
        %4958 = vmatpush1.msra.mxu0 0.0
        %4959 = vmatprep.subr.mxu0 0.0
        %4960 = vmatpush1.msra.mxu0 0.0
        %4961 = vmatprep.subr.mxu0 0.0
        %4962 = vmatpush1.msra.mxu0 0.0
        %4963 = vmatprep.subr.mxu0 0.0
        %4964 = vmatpush1.msra.mxu0 0.0
        %4965 = vmatprep.subr.mxu0 0.0
        %4966 = vmatpush1.msra.mxu0 0.0
        %4967 = vmatprep.subr.mxu0 0.0
        %4968 = vmatpush1.msra.mxu0 0.0
        %4969 = vmatprep.subr.mxu0 0.0
        %4970 = vmatpush1.msra.mxu0 0.0
        %4971 = vmatprep.subr.mxu0 0.0
        %4972 = vmatpush1.msra.mxu0 0.0
        %4973 = vmatprep.subr.mxu0 0.0
        %4974 = vmatpush1.msra.mxu0 0.0
        %4975 = vmatprep.subr.mxu0 0.0
        %4976 = vmatpush1.msra.mxu0 0.0
        %4977 = vmatprep.subr.mxu0 0.0
        %4978 = vmatpush1.msra.mxu0 0.0
        %4979 = vmatprep.subr.mxu0 0.0
        %4980 = vmatpush1.msra.mxu0 0.0
        %4981 = vmatprep.subr.mxu0 0.0
        %4982 = vmatpush1.msra.mxu0 0.0
        %4983 = vmatprep.subr.mxu0 0.0
        %4984 = vmatpush1.msra.mxu0 0.0
        %4985 = vmatprep.subr.mxu0 0.0
        %4986 = vmatpush1.msra.mxu0 0.0
        %4987 = vmatprep.subr.mxu0 0.0
        %4988 = vmatpush1.msra.mxu0 0.0
        %4989 = vmatprep.subr.mxu0 0.0
        %4990 = vmatpush1.msra.mxu0 0.0
        %4991 = vmatprep.mubr.f32.mxu0 0.0
        %4992 = vmatmul.mubr.f32.gmra.mrb[0].mxu0 %v4904
        %v4993 = vpop.f32.mrb[0].mxu0
        %v4994 = vadd.f32 0.0, %v4993
        %v4995 = vpop.f32.mrb[0].mxu0
        %4996 = vmatprep.mubr.f32.mxu0 0.0
        %4997 = vmatmul.mubr.f32.gmra.mrb[0].mxu0 %v4907
        %v4998 = vpop.f32.mrb[0].mxu0
        %v4999 = vadd.f32 0.0, %v4998
        %v5000 = vpop.f32.mrb[0].mxu0
        %5001 = vmatprep.mubr.f32.mxu0 0.0
        %5002 = vmatmul.mubr.f32.gmra.mrb[0].mxu0 %v4910
        %v5003 = vpop.f32.mrb[0].mxu0
        %v5004 = vadd.f32 0.0, %v5003
        %v5005 = vpop.f32.mrb[0].mxu0
        %5006 = vmatprep.mubr.f32.mxu0 0.0
        %5007 = vmatmul.mubr.f32.gmra.mrb[0].mxu0 %v4913
        %v5008 = vpop.f32.mrb[0].mxu0
        %v5009 = vadd.f32 0.0, %v5008
        %v5010 = vpop.f32.mrb[0].mxu0
        %5011 = vmatprep.mubr.f32.mxu0 0.0
        %5012 = vmatmul.mubr.f32.gmra.mrb[0].mxu0 %v4916
        %v5013 = vpop.f32.mrb[0].mxu0
        %v5014 = vadd.f32 0.0, %v5013
        %v5015 = vpop.f32.mrb[0].mxu0
        %5016 = vmatprep.mubr.f32.mxu0 0.0
        %5017 = vmatmul.mubr.f32.gmra.mrb[0].mxu0 %v4919
        %v5018 = vpop.f32.mrb[0].mxu0
        %v5019 = vadd.f32 0.0, %v5018
        %v5020 = vpop.f32.mrb[0].mxu0
        %5021 = vmatprep.mubr.f32.mxu0 0.0
        %5022 = vmatmul.mubr.f32.gmra.mrb[0].mxu0 %v4922
        %v5023 = vpop.f32.mrb[0].mxu0
        %v5024 = vadd.f32 0.0, %v5023
        %v5025 = vpop.f32.mrb[0].mxu0
        %5026 = vmatprep.mubr.f32.mxu0 0.0
        %5027 = vmatmul.mubr.f32.gmra.mrb[0].mxu0 %v4925
        %v5028 = vpop.f32.mrb[0].mxu0
        %v5029 = vadd.f32 0.0, %v5028
        %v5030 = vpop.f32.mrb[0].mxu0
        %5031 = vdwg.mxu0
        %v5032 = vadd.f32 %v4884, %v4994
        %v5033 = vadd.f32 %v4885, %v4999
        %v5034 = vadd.f32 %v4886, %v5004
        %v5035 = vadd.f32 %v4887, %v5009
        %v5036 = vadd.f32 %v4888, %v5014
        %v5037 = vadd.f32 %v4889, %v5019
        %v5038 = vadd.f32 %v4890, %v5024
        %v5039 = vadd.f32 %v4891, %v5029
        %v5040 = vld [vmem:[%s4892 + $0x1] sm:$0xff]
        %v5041 = vld [vmem:[%s4892 + $0x11] sm:$0xff]
        %v5042 = vld [vmem:[%s4892 + $0x21] sm:$0xff]
        %v5043 = vld [vmem:[%s4892 + $0x31] sm:$0xff]
        %v5044 = vld [vmem:[%s4892 + $0x41] sm:$0xff]
        %v5045 = vld [vmem:[%s4892 + $0x51] sm:$0xff]
        %v5046 = vld [vmem:[%s4892 + $0x61] sm:$0xff]
        %v5047 = vld [vmem:[%s4892 + $0x71] sm:$0xff]
        %s5048 = scalar_lea.vmem %s2, 56
        %v5049 = vld [vmem:[%s5048] sm:$0xff]
        %v5051 = vsel %vm3869, %v5040, 0
        %v5054 = vsel %vm3869, %v5041, 0
        %v5057 = vsel %vm3869, %v5042, 0
        %v5060 = vsel %vm3869, %v5043, 0
        %v5063 = vsel %vm3869, %v5044, 0
        %v5066 = vsel %vm3869, %v5045, 0
        %v5069 = vsel %vm3869, %v5046, 0
        %v5072 = vsel %vm3869, %v5047, 0
        %5074 = vmatprep.subr.mxu0 0.0
        %5075 = vmatpush1.msra.mxu0 %v5049
        %5076 = vmatprep.subr.mxu0 0.0
        %5077 = vmatpush1.msra.mxu0 0.0
        %5078 = vmatprep.subr.mxu0 0.0
        %5079 = vmatpush1.msra.mxu0 0.0
        %5080 = vmatprep.subr.mxu0 0.0
        %5081 = vmatpush1.msra.mxu0 0.0
        %5082 = vmatprep.subr.mxu0 0.0
        %5083 = vmatpush1.msra.mxu0 0.0
        %5084 = vmatprep.subr.mxu0 0.0
        %5085 = vmatpush1.msra.mxu0 0.0
        %5086 = vmatprep.subr.mxu0 0.0
        %5087 = vmatpush1.msra.mxu0 0.0
        %5088 = vmatprep.subr.mxu0 0.0
        %5089 = vmatpush1.msra.mxu0 0.0
        %5090 = vmatprep.subr.mxu0 0.0
        %5091 = vmatpush1.msra.mxu0 0.0
        %5092 = vmatprep.subr.mxu0 0.0
        %5093 = vmatpush1.msra.mxu0 0.0
        %5094 = vmatprep.subr.mxu0 0.0
        %5095 = vmatpush1.msra.mxu0 0.0
        %5096 = vmatprep.subr.mxu0 0.0
        %5097 = vmatpush1.msra.mxu0 0.0
        %5098 = vmatprep.subr.mxu0 0.0
        %5099 = vmatpush1.msra.mxu0 0.0
        %5100 = vmatprep.subr.mxu0 0.0
        %5101 = vmatpush1.msra.mxu0 0.0
        %5102 = vmatprep.subr.mxu0 0.0
        %5103 = vmatpush1.msra.mxu0 0.0
        %5104 = vmatprep.subr.mxu0 0.0
        %5105 = vmatpush1.msra.mxu0 0.0
        %5106 = vmatprep.subr.mxu0 0.0
        %5107 = vmatpush1.msra.mxu0 0.0
        %5108 = vmatprep.subr.mxu0 0.0
        %5109 = vmatpush1.msra.mxu0 0.0
        %5110 = vmatprep.subr.mxu0 0.0
        %5111 = vmatpush1.msra.mxu0 0.0
        %5112 = vmatprep.subr.mxu0 0.0
        %5113 = vmatpush1.msra.mxu0 0.0
        %5114 = vmatprep.subr.mxu0 0.0
        %5115 = vmatpush1.msra.mxu0 0.0
        %5116 = vmatprep.subr.mxu0 0.0
        %5117 = vmatpush1.msra.mxu0 0.0
        %5118 = vmatprep.subr.mxu0 0.0
        %5119 = vmatpush1.msra.mxu0 0.0
        %5120 = vmatprep.subr.mxu0 0.0
        %5121 = vmatpush1.msra.mxu0 0.0
        %5122 = vmatprep.subr.mxu0 0.0
        %5123 = vmatpush1.msra.mxu0 0.0
        %5124 = vmatprep.subr.mxu0 0.0
        %5125 = vmatpush1.msra.mxu0 0.0
        %5126 = vmatprep.subr.mxu0 0.0
        %5127 = vmatpush1.msra.mxu0 0.0
        %5128 = vmatprep.subr.mxu0 0.0
        %5129 = vmatpush1.msra.mxu0 0.0
        %5130 = vmatprep.subr.mxu0 0.0
        %5131 = vmatpush1.msra.mxu0 0.0
        %5132 = vmatprep.subr.mxu0 0.0
        %5133 = vmatpush1.msra.mxu0 0.0
        %5134 = vmatprep.subr.mxu0 0.0
        %5135 = vmatpush1.msra.mxu0 0.0
        %5136 = vmatprep.subr.mxu0 0.0
        %5137 = vmatpush1.msra.mxu0 0.0
        %5138 = vmatprep.mubr.f32.mxu0 0.0
        %5139 = vmatmul.mubr.f32.gmra.mrb[0].mxu0 %v5051
        %v5140 = vpop.f32.mrb[0].mxu0
        %v5141 = vadd.f32 0.0, %v5140
        %v5142 = vpop.f32.mrb[0].mxu0
        %5143 = vmatprep.mubr.f32.mxu0 0.0
        %5144 = vmatmul.mubr.f32.gmra.mrb[0].mxu0 %v5054
        %v5145 = vpop.f32.mrb[0].mxu0
        %v5146 = vadd.f32 0.0, %v5145
        %v5147 = vpop.f32.mrb[0].mxu0
        %5148 = vmatprep.mubr.f32.mxu0 0.0
        %5149 = vmatmul.mubr.f32.gmra.mrb[0].mxu0 %v5057
        %v5150 = vpop.f32.mrb[0].mxu0
        %v5151 = vadd.f32 0.0, %v5150
        %v5152 = vpop.f32.mrb[0].mxu0
        %5153 = vmatprep.mubr.f32.mxu0 0.0
        %5154 = vmatmul.mubr.f32.gmra.mrb[0].mxu0 %v5060
        %v5155 = vpop.f32.mrb[0].mxu0
        %v5156 = vadd.f32 0.0, %v5155
        %v5157 = vpop.f32.mrb[0].mxu0
        %5158 = vmatprep.mubr.f32.mxu0 0.0
        %5159 = vmatmul.mubr.f32.gmra.mrb[0].mxu0 %v5063
        %v5160 = vpop.f32.mrb[0].mxu0
        %v5161 = vadd.f32 0.0, %v5160
        %v5162 = vpop.f32.mrb[0].mxu0
        %5163 = vmatprep.mubr.f32.mxu0 0.0
        %5164 = vmatmul.mubr.f32.gmra.mrb[0].mxu0 %v5066
        %v5165 = vpop.f32.mrb[0].mxu0
        %v5166 = vadd.f32 0.0, %v5165
        %v5167 = vpop.f32.mrb[0].mxu0
        %5168 = vmatprep.mubr.f32.mxu0 0.0
        %5169 = vmatmul.mubr.f32.gmra.mrb[0].mxu0 %v5069
        %v5170 = vpop.f32.mrb[0].mxu0
        %v5171 = vadd.f32 0.0, %v5170
        %v5172 = vpop.f32.mrb[0].mxu0
        %5173 = vmatprep.mubr.f32.mxu0 0.0
        %5174 = vmatmul.mubr.f32.gmra.mrb[0].mxu0 %v5072
        %v5175 = vpop.f32.mrb[0].mxu0
        %v5176 = vadd.f32 0.0, %v5175
        %v5177 = vpop.f32.mrb[0].mxu0
        %5178 = vdwg.mxu0
        %v5179 = vadd.f32 %v5032, %v5141
        %v5180 = vadd.f32 %v5033, %v5146
        %v5181 = vadd.f32 %v5034, %v5151
        %v5182 = vadd.f32 %v5035, %v5156
        %v5183 = vadd.f32 %v5036, %v5161
        %v5184 = vadd.f32 %v5037, %v5166
        %v5185 = vadd.f32 %v5038, %v5171
        %v5186 = vadd.f32 %v5039, %v5176
        %v5187 = vld [vmem:[%s4892 + $0x2] sm:$0xff]
        %v5188 = vld [vmem:[%s4892 + $0x12] sm:$0xff]
        %v5189 = vld [vmem:[%s4892 + $0x22] sm:$0xff]
        %v5190 = vld [vmem:[%s4892 + $0x32] sm:$0xff]
        %v5191 = vld [vmem:[%s4892 + $0x42] sm:$0xff]
        %v5192 = vld [vmem:[%s4892 + $0x52] sm:$0xff]
        %v5193 = vld [vmem:[%s4892 + $0x62] sm:$0xff]
        %v5194 = vld [vmem:[%s4892 + $0x72] sm:$0xff]
        %s5195 = scalar_lea.vmem %s2, 64
        %v5196 = vld [vmem:[%s5195] sm:$0xff]
        %v5198 = vsel %vm3869, %v5187, 0
        %v5201 = vsel %vm3869, %v5188, 0
        %v5204 = vsel %vm3869, %v5189, 0
        %v5207 = vsel %vm3869, %v5190, 0
        %v5210 = vsel %vm3869, %v5191, 0
        %v5213 = vsel %vm3869, %v5192, 0
        %v5216 = vsel %vm3869, %v5193, 0
        %v5219 = vsel %vm3869, %v5194, 0
        %5221 = vmatprep.subr.mxu0 0.0
        %5222 = vmatpush1.msra.mxu0 %v5196
        %5223 = vmatprep.subr.mxu0 0.0
        %5224 = vmatpush1.msra.mxu0 0.0
        %5225 = vmatprep.subr.mxu0 0.0
        %5226 = vmatpush1.msra.mxu0 0.0
        %5227 = vmatprep.subr.mxu0 0.0
        %5228 = vmatpush1.msra.mxu0 0.0
        %5229 = vmatprep.subr.mxu0 0.0
        %5230 = vmatpush1.msra.mxu0 0.0
        %5231 = vmatprep.subr.mxu0 0.0
        %5232 = vmatpush1.msra.mxu0 0.0
        %5233 = vmatprep.subr.mxu0 0.0
        %5234 = vmatpush1.msra.mxu0 0.0
        %5235 = vmatprep.subr.mxu0 0.0
        %5236 = vmatpush1.msra.mxu0 0.0
        %5237 = vmatprep.subr.mxu0 0.0
        %5238 = vmatpush1.msra.mxu0 0.0
        %5239 = vmatprep.subr.mxu0 0.0
        %5240 = vmatpush1.msra.mxu0 0.0
        %5241 = vmatprep.subr.mxu0 0.0
        %5242 = vmatpush1.msra.mxu0 0.0
        %5243 = vmatprep.subr.mxu0 0.0
        %5244 = vmatpush1.msra.mxu0 0.0
        %5245 = vmatprep.subr.mxu0 0.0
        %5246 = vmatpush1.msra.mxu0 0.0
        %5247 = vmatprep.subr.mxu0 0.0
        %5248 = vmatpush1.msra.mxu0 0.0
        %5249 = vmatprep.subr.mxu0 0.0
        %5250 = vmatpush1.msra.mxu0 0.0
        %5251 = vmatprep.subr.mxu0 0.0
        %5252 = vmatpush1.msra.mxu0 0.0
        %5253 = vmatprep.subr.mxu0 0.0
        %5254 = vmatpush1.msra.mxu0 0.0
        %5255 = vmatprep.subr.mxu0 0.0
        %5256 = vmatpush1.msra.mxu0 0.0
        %5257 = vmatprep.subr.mxu0 0.0
        %5258 = vmatpush1.msra.mxu0 0.0
        %5259 = vmatprep.subr.mxu0 0.0
        %5260 = vmatpush1.msra.mxu0 0.0
        %5261 = vmatprep.subr.mxu0 0.0
        %5262 = vmatpush1.msra.mxu0 0.0
        %5263 = vmatprep.subr.mxu0 0.0
        %5264 = vmatpush1.msra.mxu0 0.0
        %5265 = vmatprep.subr.mxu0 0.0
        %5266 = vmatpush1.msra.mxu0 0.0
        %5267 = vmatprep.subr.mxu0 0.0
        %5268 = vmatpush1.msra.mxu0 0.0
        %5269 = vmatprep.subr.mxu0 0.0
        %5270 = vmatpush1.msra.mxu0 0.0
        %5271 = vmatprep.subr.mxu0 0.0
        %5272 = vmatpush1.msra.mxu0 0.0
        %5273 = vmatprep.subr.mxu0 0.0
        %5274 = vmatpush1.msra.mxu0 0.0
        %5275 = vmatprep.subr.mxu0 0.0
        %5276 = vmatpush1.msra.mxu0 0.0
        %5277 = vmatprep.subr.mxu0 0.0
        %5278 = vmatpush1.msra.mxu0 0.0
        %5279 = vmatprep.subr.mxu0 0.0
        %5280 = vmatpush1.msra.mxu0 0.0
        %5281 = vmatprep.subr.mxu0 0.0
        %5282 = vmatpush1.msra.mxu0 0.0
        %5283 = vmatprep.subr.mxu0 0.0
        %5284 = vmatpush1.msra.mxu0 0.0
        %5285 = vmatprep.mubr.f32.mxu0 0.0
        %5286 = vmatmul.mubr.f32.gmra.mrb[0].mxu0 %v5198
        %v5287 = vpop.f32.mrb[0].mxu0
        %v5288 = vadd.f32 0.0, %v5287
        %v5289 = vpop.f32.mrb[0].mxu0
        %5290 = vmatprep.mubr.f32.mxu0 0.0
        %5291 = vmatmul.mubr.f32.gmra.mrb[0].mxu0 %v5201
        %v5292 = vpop.f32.mrb[0].mxu0
        %v5293 = vadd.f32 0.0, %v5292
        %v5294 = vpop.f32.mrb[0].mxu0
        %5295 = vmatprep.mubr.f32.mxu0 0.0
        %5296 = vmatmul.mubr.f32.gmra.mrb[0].mxu0 %v5204
        %v5297 = vpop.f32.mrb[0].mxu0
        %v5298 = vadd.f32 0.0, %v5297
        %v5299 = vpop.f32.mrb[0].mxu0
        %5300 = vmatprep.mubr.f32.mxu0 0.0
        %5301 = vmatmul.mubr.f32.gmra.mrb[0].mxu0 %v5207
        %v5302 = vpop.f32.mrb[0].mxu0
        %v5303 = vadd.f32 0.0, %v5302
        %v5304 = vpop.f32.mrb[0].mxu0
        %5305 = vmatprep.mubr.f32.mxu0 0.0
        %5306 = vmatmul.mubr.f32.gmra.mrb[0].mxu0 %v5210
        %v5307 = vpop.f32.mrb[0].mxu0
        %v5308 = vadd.f32 0.0, %v5307
        %v5309 = vpop.f32.mrb[0].mxu0
        %5310 = vmatprep.mubr.f32.mxu0 0.0
        %5311 = vmatmul.mubr.f32.gmra.mrb[0].mxu0 %v5213
        %v5312 = vpop.f32.mrb[0].mxu0
        %v5313 = vadd.f32 0.0, %v5312
        %v5314 = vpop.f32.mrb[0].mxu0
        %5315 = vmatprep.mubr.f32.mxu0 0.0
        %5316 = vmatmul.mubr.f32.gmra.mrb[0].mxu0 %v5216
        %v5317 = vpop.f32.mrb[0].mxu0
        %v5318 = vadd.f32 0.0, %v5317
        %v5319 = vpop.f32.mrb[0].mxu0
        %5320 = vmatprep.mubr.f32.mxu0 0.0
        %5321 = vmatmul.mubr.f32.gmra.mrb[0].mxu0 %v5219
        %v5322 = vpop.f32.mrb[0].mxu0
        %v5323 = vadd.f32 0.0, %v5322
        %v5324 = vpop.f32.mrb[0].mxu0
        %5325 = vdwg.mxu0
        %v5326 = vadd.f32 %v5179, %v5288
        %v5327 = vadd.f32 %v5180, %v5293
        %v5328 = vadd.f32 %v5181, %v5298
        %v5329 = vadd.f32 %v5182, %v5303
        %v5330 = vadd.f32 %v5183, %v5308
        %v5331 = vadd.f32 %v5184, %v5313
        %v5332 = vadd.f32 %v5185, %v5318
        %v5333 = vadd.f32 %v5186, %v5323
        %v5334 = vlaneseq
        %v5335 = vshrl.u32 %v5334, 7
        %v5336 = vsub.s32 0, %v5335
        %v5337 = vrot.slane %v225, %v5336
        %v5338 = vmul.f32 %v5326, %v5337
        %v5339 = vmul.f32 %v5327, %v5337
        %v5340 = vmul.f32 %v5328, %v5337
        %v5341 = vmul.f32 %v5329, %v5337
        %v5342 = vmul.f32 %v5330, %v5337
        %v5343 = vmul.f32 %v5331, %v5337
        %v5344 = vmul.f32 %v5332, %v5337
        %v5345 = vmul.f32 %v5333, %v5337
        %v5346 = vlaneseq
        %v5347 = vshrl.u32 %v5346, 7
        %v5348 = vsub.s32 0, %v5347
        %v5349 = vrot.slane %v226, %v5348
        %v5350 = vadd.f32 %v5338, %v5349
        %v5351 = vadd.f32 %v5339, %v5349
        %v5352 = vadd.f32 %v5340, %v5349
        %v5353 = vadd.f32 %v5341, %v5349
        %v5354 = vadd.f32 %v5342, %v5349
        %v5355 = vadd.f32 %v5343, %v5349
        %v5356 = vadd.f32 %v5344, %v5349
        %v5357 = vadd.f32 %v5345, %v5349
        %v5358 = vld [vmem:[%s222] sm:$0xff]
        %v5359 = vld [vmem:[%s222 + $0x8] sm:$0xff]
        %v5360 = vld [vmem:[%s222 + $0x10] sm:$0xff]
        %v5361 = vld [vmem:[%s222 + $0x18] sm:$0xff]
        %v5362 = vld [vmem:[%s222 + $0x20] sm:$0xff]
        %v5363 = vld [vmem:[%s222 + $0x28] sm:$0xff]
        %v5364 = vld [vmem:[%s222 + $0x30] sm:$0xff]
        %v5365 = vld [vmem:[%s222 + $0x38] sm:$0xff]
        %v5366 = vld [vmem:[%s222 + $0x40] sm:$0xff]
        %v5367 = vld [vmem:[%s222 + $0x48] sm:$0xff]
        %v5368 = vld [vmem:[%s222 + $0x50] sm:$0xff]
        %v5369 = vld [vmem:[%s222 + $0x58] sm:$0xff]
        %v5370 = vld [vmem:[%s222 + $0x60] sm:$0xff]
        %v5371 = vld [vmem:[%s222 + $0x68] sm:$0xff]
        %v5372 = vld [vmem:[%s222 + $0x70] sm:$0xff]
        %v5373 = vld [vmem:[%s222 + $0x78] sm:$0xff]
        %v5374 = vld [vmem:[%s222 + $0x80] sm:$0xff]
        %v5375 = vld [vmem:[%s222 + $0x88] sm:$0xff]
        %v5376 = vld [vmem:[%s222 + $0x90] sm:$0xff]
        %v5377 = vld [vmem:[%s222 + $0x98] sm:$0xff]
        %v5378 = vld [vmem:[%s222 + $0xa0] sm:$0xff]
        %v5379 = vld [vmem:[%s222 + $0xa8] sm:$0xff]
        %v5380 = vld [vmem:[%s222 + $0xb0] sm:$0xff]
        %v5381 = vld [vmem:[%s222 + $0xb8] sm:$0xff]
        %v5382 = vld [vmem:[%s222 + $0xc0] sm:$0xff]
        %v5383 = vld [vmem:[%s222 + $0xc8] sm:$0xff]
        %v5384 = vld [vmem:[%s222 + $0xd0] sm:$0xff]
        %v5385 = vld [vmem:[%s222 + $0xd8] sm:$0xff]
        %v5386 = vld [vmem:[%s222 + $0xe0] sm:$0xff]
        %v5387 = vld [vmem:[%s222 + $0xe8] sm:$0xff]
        %v5388 = vld [vmem:[%s222 + $0xf0] sm:$0xff]
        %v5389 = vld [vmem:[%s222 + $0xf8] sm:$0xff]
        %v5390 = vld [vmem:[%s3] sm:$0x1]
        %5392 = vset.pattern.permute.xlu0 0
        %5393 = vperm.xlu0 %5392, %v5358
        %v5394 = vpop.permute.xlu0 %5393
        %5397 = vset.pattern.permute.xlu0 0
        %5398 = vperm.xlu0 %5397, %v5359
        %v5399 = vpop.permute.xlu0 %5398
        %5402 = vset.pattern.permute.xlu0 0
        %5403 = vperm.xlu0 %5402, %v5360
        %v5404 = vpop.permute.xlu0 %5403
        %5407 = vset.pattern.permute.xlu0 0
        %5408 = vperm.xlu0 %5407, %v5361
        %v5409 = vpop.permute.xlu0 %5408
        %5412 = vset.pattern.permute.xlu0 0
        %5413 = vperm.xlu0 %5412, %v5362
        %v5414 = vpop.permute.xlu0 %5413
        %5417 = vset.pattern.permute.xlu0 0
        %5418 = vperm.xlu0 %5417, %v5363
        %v5419 = vpop.permute.xlu0 %5418
        %5422 = vset.pattern.permute.xlu0 0
        %5423 = vperm.xlu0 %5422, %v5364
        %v5424 = vpop.permute.xlu0 %5423
        %5427 = vset.pattern.permute.xlu0 0
        %5428 = vperm.xlu0 %5427, %v5365
        %v5429 = vpop.permute.xlu0 %5428
        %5432 = vset.pattern.permute.xlu0 0
        %5433 = vperm.xlu0 %5432, %v5366
        %v5434 = vpop.permute.xlu0 %5433
        %5437 = vset.pattern.permute.xlu0 0
        %5438 = vperm.xlu0 %5437, %v5367
        %v5439 = vpop.permute.xlu0 %5438
        %5442 = vset.pattern.permute.xlu0 0
        %5443 = vperm.xlu0 %5442, %v5368
        %v5444 = vpop.permute.xlu0 %5443
        %5447 = vset.pattern.permute.xlu0 0
        %5448 = vperm.xlu0 %5447, %v5369
        %v5449 = vpop.permute.xlu0 %5448
        %5452 = vset.pattern.permute.xlu0 0
        %5453 = vperm.xlu0 %5452, %v5370
        %v5454 = vpop.permute.xlu0 %5453
        %5457 = vset.pattern.permute.xlu0 0
        %5458 = vperm.xlu0 %5457, %v5371
        %v5459 = vpop.permute.xlu0 %5458
        %5462 = vset.pattern.permute.xlu0 0
        %5463 = vperm.xlu0 %5462, %v5372
        %v5464 = vpop.permute.xlu0 %5463
        %5467 = vset.pattern.permute.xlu0 0
        %5468 = vperm.xlu0 %5467, %v5373
        %v5469 = vpop.permute.xlu0 %5468
        %5472 = vset.pattern.permute.xlu0 0
        %5473 = vperm.xlu0 %5472, %v5374
        %v5474 = vpop.permute.xlu0 %5473
        %5477 = vset.pattern.permute.xlu0 0
        %5478 = vperm.xlu0 %5477, %v5375
        %v5479 = vpop.permute.xlu0 %5478
        %5482 = vset.pattern.permute.xlu0 0
        %5483 = vperm.xlu0 %5482, %v5376
        %v5484 = vpop.permute.xlu0 %5483
        %5487 = vset.pattern.permute.xlu0 0
        %5488 = vperm.xlu0 %5487, %v5377
        %v5489 = vpop.permute.xlu0 %5488
        %5492 = vset.pattern.permute.xlu0 0
        %5493 = vperm.xlu0 %5492, %v5378
        %v5494 = vpop.permute.xlu0 %5493
        %5497 = vset.pattern.permute.xlu0 0
        %5498 = vperm.xlu0 %5497, %v5379
        %v5499 = vpop.permute.xlu0 %5498
        %5502 = vset.pattern.permute.xlu0 0
        %5503 = vperm.xlu0 %5502, %v5380
        %v5504 = vpop.permute.xlu0 %5503
        %5507 = vset.pattern.permute.xlu0 0
        %5508 = vperm.xlu0 %5507, %v5381
        %v5509 = vpop.permute.xlu0 %5508
        %5512 = vset.pattern.permute.xlu0 0
        %5513 = vperm.xlu0 %5512, %v5382
        %v5514 = vpop.permute.xlu0 %5513
        %5517 = vset.pattern.permute.xlu0 0
        %5518 = vperm.xlu0 %5517, %v5383
        %v5519 = vpop.permute.xlu0 %5518
        %5522 = vset.pattern.permute.xlu0 0
        %5523 = vperm.xlu0 %5522, %v5384
        %v5524 = vpop.permute.xlu0 %5523
        %5527 = vset.pattern.permute.xlu0 0
        %5528 = vperm.xlu0 %5527, %v5385
        %v5529 = vpop.permute.xlu0 %5528
        %5532 = vset.pattern.permute.xlu0 0
        %5533 = vperm.xlu0 %5532, %v5386
        %v5534 = vpop.permute.xlu0 %5533
        %5537 = vset.pattern.permute.xlu0 0
        %5538 = vperm.xlu0 %5537, %v5387
        %v5539 = vpop.permute.xlu0 %5538
        %5542 = vset.pattern.permute.xlu0 0
        %5543 = vperm.xlu0 %5542, %v5388
        %v5544 = vpop.permute.xlu0 %5543
        %5547 = vset.pattern.permute.xlu0 0
        %5548 = vperm.xlu0 %5547, %v5389
        %v5549 = vpop.permute.xlu0 %5548
        %v5551 = vlaneseq
        %v5552 = vshrl.u32 %v5551, 7
        %v5553 = vsub.s32 0, %v5552
        %v5554 = vrot.slane %v5390, %v5553
        %v5555 = vmul.f32 %v5394, %v5554
        %v5556 = vmul.f32 %v5399, %v5554
        %v5557 = vmul.f32 %v5404, %v5554
        %v5558 = vmul.f32 %v5409, %v5554
        %v5559 = vmul.f32 %v5414, %v5554
        %v5560 = vmul.f32 %v5419, %v5554
        %v5561 = vmul.f32 %v5424, %v5554
        %v5562 = vmul.f32 %v5429, %v5554
        %v5563 = vmul.f32 %v5434, %v5554
        %v5564 = vmul.f32 %v5439, %v5554
        %v5565 = vmul.f32 %v5444, %v5554
        %v5566 = vmul.f32 %v5449, %v5554
        %v5567 = vmul.f32 %v5454, %v5554
        %v5568 = vmul.f32 %v5459, %v5554
        %v5569 = vmul.f32 %v5464, %v5554
        %v5570 = vmul.f32 %v5469, %v5554
        %v5571 = vmul.f32 %v5474, %v5554
        %v5572 = vmul.f32 %v5479, %v5554
        %v5573 = vmul.f32 %v5484, %v5554
        %v5574 = vmul.f32 %v5489, %v5554
        %v5575 = vmul.f32 %v5494, %v5554
        %v5576 = vmul.f32 %v5499, %v5554
        %v5577 = vmul.f32 %v5504, %v5554
        %v5578 = vmul.f32 %v5509, %v5554
        %v5579 = vmul.f32 %v5514, %v5554
        %v5580 = vmul.f32 %v5519, %v5554
        %v5581 = vmul.f32 %v5524, %v5554
        %v5582 = vmul.f32 %v5529, %v5554
        %v5583 = vmul.f32 %v5534, %v5554
        %v5584 = vmul.f32 %v5539, %v5554
        %v5585 = vmul.f32 %v5544, %v5554
        %v5586 = vmul.f32 %v5549, %v5554
        %v5587 = vadd.f32 %v5555, 0.0
        %v5588 = vadd.f32 %v5556, 0.0
        %v5589 = vadd.f32 %v5557, 0.0
        %v5590 = vadd.f32 %v5558, 0.0
        %v5591 = vadd.f32 %v5559, 0.0
        %v5592 = vadd.f32 %v5560, 0.0
        %v5593 = vadd.f32 %v5561, 0.0
        %v5594 = vadd.f32 %v5562, 0.0
        %v5595 = vadd.f32 %v5563, 0.0
        %v5596 = vadd.f32 %v5564, 0.0
        %v5597 = vadd.f32 %v5565, 0.0
        %v5598 = vadd.f32 %v5566, 0.0
        %v5599 = vadd.f32 %v5567, 0.0
        %v5600 = vadd.f32 %v5568, 0.0
        %v5601 = vadd.f32 %v5569, 0.0
        %v5602 = vadd.f32 %v5570, 0.0
        %v5603 = vadd.f32 %v5571, 0.0
        %v5604 = vadd.f32 %v5572, 0.0
        %v5605 = vadd.f32 %v5573, 0.0
        %v5606 = vadd.f32 %v5574, 0.0
        %v5607 = vadd.f32 %v5575, 0.0
        %v5608 = vadd.f32 %v5576, 0.0
        %v5609 = vadd.f32 %v5577, 0.0
        %v5610 = vadd.f32 %v5578, 0.0
        %v5611 = vadd.f32 %v5579, 0.0
        %v5612 = vadd.f32 %v5580, 0.0
        %v5613 = vadd.f32 %v5581, 0.0
        %v5614 = vadd.f32 %v5582, 0.0
        %v5615 = vadd.f32 %v5583, 0.0
        %v5616 = vadd.f32 %v5584, 0.0
        %v5617 = vadd.f32 %v5585, 0.0
        %v5618 = vadd.f32 %v5586, 0.0
        %v5619 = vld [vmem:[%s3 + $0x1] sm:$0x1]
        %5620 = vset.pattern.permute.xlu0 1
        %5621 = vperm.xlu0 %5620, %v5358
        %v5622 = vpop.permute.xlu0 %5621
        %5624 = vset.pattern.permute.xlu0 1
        %5625 = vperm.xlu0 %5624, %v5359
        %v5626 = vpop.permute.xlu0 %5625
        %5628 = vset.pattern.permute.xlu0 1
        %5629 = vperm.xlu0 %5628, %v5360
        %v5630 = vpop.permute.xlu0 %5629
        %5632 = vset.pattern.permute.xlu0 1
        %5633 = vperm.xlu0 %5632, %v5361
        %v5634 = vpop.permute.xlu0 %5633
        %5636 = vset.pattern.permute.xlu0 1
        %5637 = vperm.xlu0 %5636, %v5362
        %v5638 = vpop.permute.xlu0 %5637
        %5640 = vset.pattern.permute.xlu0 1
        %5641 = vperm.xlu0 %5640, %v5363
        %v5642 = vpop.permute.xlu0 %5641
        %5644 = vset.pattern.permute.xlu0 1
        %5645 = vperm.xlu0 %5644, %v5364
        %v5646 = vpop.permute.xlu0 %5645
        %5648 = vset.pattern.permute.xlu0 1
        %5649 = vperm.xlu0 %5648, %v5365
        %v5650 = vpop.permute.xlu0 %5649
        %5652 = vset.pattern.permute.xlu0 1
        %5653 = vperm.xlu0 %5652, %v5366
        %v5654 = vpop.permute.xlu0 %5653
        %5656 = vset.pattern.permute.xlu0 1
        %5657 = vperm.xlu0 %5656, %v5367
        %v5658 = vpop.permute.xlu0 %5657
        %5660 = vset.pattern.permute.xlu0 1
        %5661 = vperm.xlu0 %5660, %v5368
        %v5662 = vpop.permute.xlu0 %5661
        %5664 = vset.pattern.permute.xlu0 1
        %5665 = vperm.xlu0 %5664, %v5369
        %v5666 = vpop.permute.xlu0 %5665
        %5668 = vset.pattern.permute.xlu0 1
        %5669 = vperm.xlu0 %5668, %v5370
        %v5670 = vpop.permute.xlu0 %5669
        %5672 = vset.pattern.permute.xlu0 1
        %5673 = vperm.xlu0 %5672, %v5371
        %v5674 = vpop.permute.xlu0 %5673
        %5676 = vset.pattern.permute.xlu0 1
        %5677 = vperm.xlu0 %5676, %v5372
        %v5678 = vpop.permute.xlu0 %5677
        %5680 = vset.pattern.permute.xlu0 1
        %5681 = vperm.xlu0 %5680, %v5373
        %v5682 = vpop.permute.xlu0 %5681
        %5684 = vset.pattern.permute.xlu0 1
        %5685 = vperm.xlu0 %5684, %v5374
        %v5686 = vpop.permute.xlu0 %5685
        %5688 = vset.pattern.permute.xlu0 1
        %5689 = vperm.xlu0 %5688, %v5375
        %v5690 = vpop.permute.xlu0 %5689
        %5692 = vset.pattern.permute.xlu0 1
        %5693 = vperm.xlu0 %5692, %v5376
        %v5694 = vpop.permute.xlu0 %5693
        %5696 = vset.pattern.permute.xlu0 1
        %5697 = vperm.xlu0 %5696, %v5377
        %v5698 = vpop.permute.xlu0 %5697
        %5700 = vset.pattern.permute.xlu0 1
        %5701 = vperm.xlu0 %5700, %v5378
        %v5702 = vpop.permute.xlu0 %5701
        %5704 = vset.pattern.permute.xlu0 1
        %5705 = vperm.xlu0 %5704, %v5379
        %v5706 = vpop.permute.xlu0 %5705
        %5708 = vset.pattern.permute.xlu0 1
        %5709 = vperm.xlu0 %5708, %v5380
        %v5710 = vpop.permute.xlu0 %5709
        %5712 = vset.pattern.permute.xlu0 1
        %5713 = vperm.xlu0 %5712, %v5381
        %v5714 = vpop.permute.xlu0 %5713
        %5716 = vset.pattern.permute.xlu0 1
        %5717 = vperm.xlu0 %5716, %v5382
        %v5718 = vpop.permute.xlu0 %5717
        %5720 = vset.pattern.permute.xlu0 1
        %5721 = vperm.xlu0 %5720, %v5383
        %v5722 = vpop.permute.xlu0 %5721
        %5724 = vset.pattern.permute.xlu0 1
        %5725 = vperm.xlu0 %5724, %v5384
        %v5726 = vpop.permute.xlu0 %5725
        %5728 = vset.pattern.permute.xlu0 1
        %5729 = vperm.xlu0 %5728, %v5385
        %v5730 = vpop.permute.xlu0 %5729
        %5732 = vset.pattern.permute.xlu0 1
        %5733 = vperm.xlu0 %5732, %v5386
        %v5734 = vpop.permute.xlu0 %5733
        %5736 = vset.pattern.permute.xlu0 1
        %5737 = vperm.xlu0 %5736, %v5387
        %v5738 = vpop.permute.xlu0 %5737
        %5740 = vset.pattern.permute.xlu0 1
        %5741 = vperm.xlu0 %5740, %v5388
        %v5742 = vpop.permute.xlu0 %5741
        %5744 = vset.pattern.permute.xlu0 1
        %5745 = vperm.xlu0 %5744, %v5389
        %v5746 = vpop.permute.xlu0 %5745
        %v5748 = vlaneseq
        %v5749 = vshrl.u32 %v5748, 7
        %v5750 = vsub.s32 0, %v5749
        %v5751 = vrot.slane %v5619, %v5750
        %v5752 = vmul.f32 %v5622, %v5751
        %v5753 = vmul.f32 %v5626, %v5751
        %v5754 = vmul.f32 %v5630, %v5751
        %v5755 = vmul.f32 %v5634, %v5751
        %v5756 = vmul.f32 %v5638, %v5751
        %v5757 = vmul.f32 %v5642, %v5751
        %v5758 = vmul.f32 %v5646, %v5751
        %v5759 = vmul.f32 %v5650, %v5751
        %v5760 = vmul.f32 %v5654, %v5751
        %v5761 = vmul.f32 %v5658, %v5751
        %v5762 = vmul.f32 %v5662, %v5751
        %v5763 = vmul.f32 %v5666, %v5751
        %v5764 = vmul.f32 %v5670, %v5751
        %v5765 = vmul.f32 %v5674, %v5751
        %v5766 = vmul.f32 %v5678, %v5751
        %v5767 = vmul.f32 %v5682, %v5751
        %v5768 = vmul.f32 %v5686, %v5751
        %v5769 = vmul.f32 %v5690, %v5751
        %v5770 = vmul.f32 %v5694, %v5751
        %v5771 = vmul.f32 %v5698, %v5751
        %v5772 = vmul.f32 %v5702, %v5751
        %v5773 = vmul.f32 %v5706, %v5751
        %v5774 = vmul.f32 %v5710, %v5751
        %v5775 = vmul.f32 %v5714, %v5751
        %v5776 = vmul.f32 %v5718, %v5751
        %v5777 = vmul.f32 %v5722, %v5751
        %v5778 = vmul.f32 %v5726, %v5751
        %v5779 = vmul.f32 %v5730, %v5751
        %v5780 = vmul.f32 %v5734, %v5751
        %v5781 = vmul.f32 %v5738, %v5751
        %v5782 = vmul.f32 %v5742, %v5751
        %v5783 = vmul.f32 %v5746, %v5751
        %v5784 = vadd.f32 %v5587, %v5752
        %v5785 = vadd.f32 %v5588, %v5753
        %v5786 = vadd.f32 %v5589, %v5754
        %v5787 = vadd.f32 %v5590, %v5755
        %v5788 = vadd.f32 %v5591, %v5756
        %v5789 = vadd.f32 %v5592, %v5757
        %v5790 = vadd.f32 %v5593, %v5758
        %v5791 = vadd.f32 %v5594, %v5759
        %v5792 = vadd.f32 %v5595, %v5760
        %v5793 = vadd.f32 %v5596, %v5761
        %v5794 = vadd.f32 %v5597, %v5762
        %v5795 = vadd.f32 %v5598, %v5763
        %v5796 = vadd.f32 %v5599, %v5764
        %v5797 = vadd.f32 %v5600, %v5765
        %v5798 = vadd.f32 %v5601, %v5766
        %v5799 = vadd.f32 %v5602, %v5767
        %v5800 = vadd.f32 %v5603, %v5768
        %v5801 = vadd.f32 %v5604, %v5769
        %v5802 = vadd.f32 %v5605, %v5770
        %v5803 = vadd.f32 %v5606, %v5771
        %v5804 = vadd.f32 %v5607, %v5772
        %v5805 = vadd.f32 %v5608, %v5773
        %v5806 = vadd.f32 %v5609, %v5774
        %v5807 = vadd.f32 %v5610, %v5775
        %v5808 = vadd.f32 %v5611, %v5776
        %v5809 = vadd.f32 %v5612, %v5777
        %v5810 = vadd.f32 %v5613, %v5778
        %v5811 = vadd.f32 %v5614, %v5779
        %v5812 = vadd.f32 %v5615, %v5780
        %v5813 = vadd.f32 %v5616, %v5781
        %v5814 = vadd.f32 %v5617, %v5782
        %v5815 = vadd.f32 %v5618, %v5783
        %v5816 = vld [vmem:[%s3 + $0x2] sm:$0x1]
        %5817 = vset.pattern.permute.xlu0 2
        %5818 = vperm.xlu0 %5817, %v5358
        %v5819 = vpop.permute.xlu0 %5818
        %5821 = vset.pattern.permute.xlu0 2
        %5822 = vperm.xlu0 %5821, %v5359
        %v5823 = vpop.permute.xlu0 %5822
        %5825 = vset.pattern.permute.xlu0 2
        %5826 = vperm.xlu0 %5825, %v5360
        %v5827 = vpop.permute.xlu0 %5826
        %5829 = vset.pattern.permute.xlu0 2
        %5830 = vperm.xlu0 %5829, %v5361
        %v5831 = vpop.permute.xlu0 %5830
        %5833 = vset.pattern.permute.xlu0 2
        %5834 = vperm.xlu0 %5833, %v5362
        %v5835 = vpop.permute.xlu0 %5834
        %5837 = vset.pattern.permute.xlu0 2
        %5838 = vperm.xlu0 %5837, %v5363
        %v5839 = vpop.permute.xlu0 %5838
        %5841 = vset.pattern.permute.xlu0 2
        %5842 = vperm.xlu0 %5841, %v5364
        %v5843 = vpop.permute.xlu0 %5842
        %5845 = vset.pattern.permute.xlu0 2
        %5846 = vperm.xlu0 %5845, %v5365
        %v5847 = vpop.permute.xlu0 %5846
        %5849 = vset.pattern.permute.xlu0 2
        %5850 = vperm.xlu0 %5849, %v5366
        %v5851 = vpop.permute.xlu0 %5850
        %5853 = vset.pattern.permute.xlu0 2
        %5854 = vperm.xlu0 %5853, %v5367
        %v5855 = vpop.permute.xlu0 %5854
        %5857 = vset.pattern.permute.xlu0 2
        %5858 = vperm.xlu0 %5857, %v5368
        %v5859 = vpop.permute.xlu0 %5858
        %5861 = vset.pattern.permute.xlu0 2
        %5862 = vperm.xlu0 %5861, %v5369
        %v5863 = vpop.permute.xlu0 %5862
        %5865 = vset.pattern.permute.xlu0 2
        %5866 = vperm.xlu0 %5865, %v5370
        %v5867 = vpop.permute.xlu0 %5866
        %5869 = vset.pattern.permute.xlu0 2
        %5870 = vperm.xlu0 %5869, %v5371
        %v5871 = vpop.permute.xlu0 %5870
        %5873 = vset.pattern.permute.xlu0 2
        %5874 = vperm.xlu0 %5873, %v5372
        %v5875 = vpop.permute.xlu0 %5874
        %5877 = vset.pattern.permute.xlu0 2
        %5878 = vperm.xlu0 %5877, %v5373
        %v5879 = vpop.permute.xlu0 %5878
        %5881 = vset.pattern.permute.xlu0 2
        %5882 = vperm.xlu0 %5881, %v5374
        %v5883 = vpop.permute.xlu0 %5882
        %5885 = vset.pattern.permute.xlu0 2
        %5886 = vperm.xlu0 %5885, %v5375
        %v5887 = vpop.permute.xlu0 %5886
        %5889 = vset.pattern.permute.xlu0 2
        %5890 = vperm.xlu0 %5889, %v5376
        %v5891 = vpop.permute.xlu0 %5890
        %5893 = vset.pattern.permute.xlu0 2
        %5894 = vperm.xlu0 %5893, %v5377
        %v5895 = vpop.permute.xlu0 %5894
        %5897 = vset.pattern.permute.xlu0 2
        %5898 = vperm.xlu0 %5897, %v5378
        %v5899 = vpop.permute.xlu0 %5898
        %5901 = vset.pattern.permute.xlu0 2
        %5902 = vperm.xlu0 %5901, %v5379
        %v5903 = vpop.permute.xlu0 %5902
        %5905 = vset.pattern.permute.xlu0 2
        %5906 = vperm.xlu0 %5905, %v5380
        %v5907 = vpop.permute.xlu0 %5906
        %5909 = vset.pattern.permute.xlu0 2
        %5910 = vperm.xlu0 %5909, %v5381
        %v5911 = vpop.permute.xlu0 %5910
        %5913 = vset.pattern.permute.xlu0 2
        %5914 = vperm.xlu0 %5913, %v5382
        %v5915 = vpop.permute.xlu0 %5914
        %5917 = vset.pattern.permute.xlu0 2
        %5918 = vperm.xlu0 %5917, %v5383
        %v5919 = vpop.permute.xlu0 %5918
        %5921 = vset.pattern.permute.xlu0 2
        %5922 = vperm.xlu0 %5921, %v5384
        %v5923 = vpop.permute.xlu0 %5922
        %5925 = vset.pattern.permute.xlu0 2
        %5926 = vperm.xlu0 %5925, %v5385
        %v5927 = vpop.permute.xlu0 %5926
        %5929 = vset.pattern.permute.xlu0 2
        %5930 = vperm.xlu0 %5929, %v5386
        %v5931 = vpop.permute.xlu0 %5930
        %5933 = vset.pattern.permute.xlu0 2
        %5934 = vperm.xlu0 %5933, %v5387
        %v5935 = vpop.permute.xlu0 %5934
        %5937 = vset.pattern.permute.xlu0 2
        %5938 = vperm.xlu0 %5937, %v5388
        %v5939 = vpop.permute.xlu0 %5938
        %5941 = vset.pattern.permute.xlu0 2
        %5942 = vperm.xlu0 %5941, %v5389
        %v5943 = vpop.permute.xlu0 %5942
        %v5945 = vlaneseq
        %v5946 = vshrl.u32 %v5945, 7
        %v5947 = vsub.s32 0, %v5946
        %v5948 = vrot.slane %v5816, %v5947
        %v5949 = vmul.f32 %v5819, %v5948
        %v5950 = vmul.f32 %v5823, %v5948
        %v5951 = vmul.f32 %v5827, %v5948
        %v5952 = vmul.f32 %v5831, %v5948
        %v5953 = vmul.f32 %v5835, %v5948
        %v5954 = vmul.f32 %v5839, %v5948
        %v5955 = vmul.f32 %v5843, %v5948
        %v5956 = vmul.f32 %v5847, %v5948
        %v5957 = vmul.f32 %v5851, %v5948
        %v5958 = vmul.f32 %v5855, %v5948
        %v5959 = vmul.f32 %v5859, %v5948
        %v5960 = vmul.f32 %v5863, %v5948
        %v5961 = vmul.f32 %v5867, %v5948
        %v5962 = vmul.f32 %v5871, %v5948
        %v5963 = vmul.f32 %v5875, %v5948
        %v5964 = vmul.f32 %v5879, %v5948
        %v5965 = vmul.f32 %v5883, %v5948
        %v5966 = vmul.f32 %v5887, %v5948
        %v5967 = vmul.f32 %v5891, %v5948
        %v5968 = vmul.f32 %v5895, %v5948
        %v5969 = vmul.f32 %v5899, %v5948
        %v5970 = vmul.f32 %v5903, %v5948
        %v5971 = vmul.f32 %v5907, %v5948
        %v5972 = vmul.f32 %v5911, %v5948
        %v5973 = vmul.f32 %v5915, %v5948
        %v5974 = vmul.f32 %v5919, %v5948
        %v5975 = vmul.f32 %v5923, %v5948
        %v5976 = vmul.f32 %v5927, %v5948
        %v5977 = vmul.f32 %v5931, %v5948
        %v5978 = vmul.f32 %v5935, %v5948
        %v5979 = vmul.f32 %v5939, %v5948
        %v5980 = vmul.f32 %v5943, %v5948
        %v5981 = vadd.f32 %v5784, %v5949
        %v5982 = vadd.f32 %v5785, %v5950
        %v5983 = vadd.f32 %v5786, %v5951
        %v5984 = vadd.f32 %v5787, %v5952
        %v5985 = vadd.f32 %v5788, %v5953
        %v5986 = vadd.f32 %v5789, %v5954
        %v5987 = vadd.f32 %v5790, %v5955
        %v5988 = vadd.f32 %v5791, %v5956
        %v5989 = vadd.f32 %v5792, %v5957
        %v5990 = vadd.f32 %v5793, %v5958
        %v5991 = vadd.f32 %v5794, %v5959
        %v5992 = vadd.f32 %v5795, %v5960
        %v5993 = vadd.f32 %v5796, %v5961
        %v5994 = vadd.f32 %v5797, %v5962
        %v5995 = vadd.f32 %v5798, %v5963
        %v5996 = vadd.f32 %v5799, %v5964
        %v5997 = vadd.f32 %v5800, %v5965
        %v5998 = vadd.f32 %v5801, %v5966
        %v5999 = vadd.f32 %v5802, %v5967
        %v6000 = vadd.f32 %v5803, %v5968
        %v6001 = vadd.f32 %v5804, %v5969
        %v6002 = vadd.f32 %v5805, %v5970
        %v6003 = vadd.f32 %v5806, %v5971
        %v6004 = vadd.f32 %v5807, %v5972
        %v6005 = vadd.f32 %v5808, %v5973
        %v6006 = vadd.f32 %v5809, %v5974
        %v6007 = vadd.f32 %v5810, %v5975
        %v6008 = vadd.f32 %v5811, %v5976
        %v6009 = vadd.f32 %v5812, %v5977
        %v6010 = vadd.f32 %v5813, %v5978
        %v6011 = vadd.f32 %v5814, %v5979
        %v6012 = vadd.f32 %v5815, %v5980
        %v6013 = vld [vmem:[%s3 + $0x3] sm:$0x1]
        %6014 = vset.pattern.permute.xlu0 3
        %6015 = vperm.xlu0 %6014, %v5358
        %v6016 = vpop.permute.xlu0 %6015
        %6018 = vset.pattern.permute.xlu0 3
        %6019 = vperm.xlu0 %6018, %v5359
        %v6020 = vpop.permute.xlu0 %6019
        %6022 = vset.pattern.permute.xlu0 3
        %6023 = vperm.xlu0 %6022, %v5360
        %v6024 = vpop.permute.xlu0 %6023
        %6026 = vset.pattern.permute.xlu0 3
        %6027 = vperm.xlu0 %6026, %v5361
        %v6028 = vpop.permute.xlu0 %6027
        %6030 = vset.pattern.permute.xlu0 3
        %6031 = vperm.xlu0 %6030, %v5362
        %v6032 = vpop.permute.xlu0 %6031
        %6034 = vset.pattern.permute.xlu0 3
        %6035 = vperm.xlu0 %6034, %v5363
        %v6036 = vpop.permute.xlu0 %6035
        %6038 = vset.pattern.permute.xlu0 3
        %6039 = vperm.xlu0 %6038, %v5364
        %v6040 = vpop.permute.xlu0 %6039
        %6042 = vset.pattern.permute.xlu0 3
        %6043 = vperm.xlu0 %6042, %v5365
        %v6044 = vpop.permute.xlu0 %6043
        %6046 = vset.pattern.permute.xlu0 3
        %6047 = vperm.xlu0 %6046, %v5366
        %v6048 = vpop.permute.xlu0 %6047
        %6050 = vset.pattern.permute.xlu0 3
        %6051 = vperm.xlu0 %6050, %v5367
        %v6052 = vpop.permute.xlu0 %6051
        %6054 = vset.pattern.permute.xlu0 3
        %6055 = vperm.xlu0 %6054, %v5368
        %v6056 = vpop.permute.xlu0 %6055
        %6058 = vset.pattern.permute.xlu0 3
        %6059 = vperm.xlu0 %6058, %v5369
        %v6060 = vpop.permute.xlu0 %6059
        %6062 = vset.pattern.permute.xlu0 3
        %6063 = vperm.xlu0 %6062, %v5370
        %v6064 = vpop.permute.xlu0 %6063
        %6066 = vset.pattern.permute.xlu0 3
        %6067 = vperm.xlu0 %6066, %v5371
        %v6068 = vpop.permute.xlu0 %6067
        %6070 = vset.pattern.permute.xlu0 3
        %6071 = vperm.xlu0 %6070, %v5372
        %v6072 = vpop.permute.xlu0 %6071
        %6074 = vset.pattern.permute.xlu0 3
        %6075 = vperm.xlu0 %6074, %v5373
        %v6076 = vpop.permute.xlu0 %6075
        %6078 = vset.pattern.permute.xlu0 3
        %6079 = vperm.xlu0 %6078, %v5374
        %v6080 = vpop.permute.xlu0 %6079
        %6082 = vset.pattern.permute.xlu0 3
        %6083 = vperm.xlu0 %6082, %v5375
        %v6084 = vpop.permute.xlu0 %6083
        %6086 = vset.pattern.permute.xlu0 3
        %6087 = vperm.xlu0 %6086, %v5376
        %v6088 = vpop.permute.xlu0 %6087
        %6090 = vset.pattern.permute.xlu0 3
        %6091 = vperm.xlu0 %6090, %v5377
        %v6092 = vpop.permute.xlu0 %6091
        %6094 = vset.pattern.permute.xlu0 3
        %6095 = vperm.xlu0 %6094, %v5378
        %v6096 = vpop.permute.xlu0 %6095
        %6098 = vset.pattern.permute.xlu0 3
        %6099 = vperm.xlu0 %6098, %v5379
        %v6100 = vpop.permute.xlu0 %6099
        %6102 = vset.pattern.permute.xlu0 3
        %6103 = vperm.xlu0 %6102, %v5380
        %v6104 = vpop.permute.xlu0 %6103
        %6106 = vset.pattern.permute.xlu0 3
        %6107 = vperm.xlu0 %6106, %v5381
        %v6108 = vpop.permute.xlu0 %6107
        %6110 = vset.pattern.permute.xlu0 3
        %6111 = vperm.xlu0 %6110, %v5382
        %v6112 = vpop.permute.xlu0 %6111
        %6114 = vset.pattern.permute.xlu0 3
        %6115 = vperm.xlu0 %6114, %v5383
        %v6116 = vpop.permute.xlu0 %6115
        %6118 = vset.pattern.permute.xlu0 3
        %6119 = vperm.xlu0 %6118, %v5384
        %v6120 = vpop.permute.xlu0 %6119
        %6122 = vset.pattern.permute.xlu0 3
        %6123 = vperm.xlu0 %6122, %v5385
        %v6124 = vpop.permute.xlu0 %6123
        %6126 = vset.pattern.permute.xlu0 3
        %6127 = vperm.xlu0 %6126, %v5386
        %v6128 = vpop.permute.xlu0 %6127
        %6130 = vset.pattern.permute.xlu0 3
        %6131 = vperm.xlu0 %6130, %v5387
        %v6132 = vpop.permute.xlu0 %6131
        %6134 = vset.pattern.permute.xlu0 3
        %6135 = vperm.xlu0 %6134, %v5388
        %v6136 = vpop.permute.xlu0 %6135
        %6138 = vset.pattern.permute.xlu0 3
        %6139 = vperm.xlu0 %6138, %v5389
        %v6140 = vpop.permute.xlu0 %6139
        %v6142 = vlaneseq
        %v6143 = vshrl.u32 %v6142, 7
        %v6144 = vsub.s32 0, %v6143
        %v6145 = vrot.slane %v6013, %v6144
        %v6146 = vmul.f32 %v6016, %v6145
        %v6147 = vmul.f32 %v6020, %v6145
        %v6148 = vmul.f32 %v6024, %v6145
        %v6149 = vmul.f32 %v6028, %v6145
        %v6150 = vmul.f32 %v6032, %v6145
        %v6151 = vmul.f32 %v6036, %v6145
        %v6152 = vmul.f32 %v6040, %v6145
        %v6153 = vmul.f32 %v6044, %v6145
        %v6154 = vmul.f32 %v6048, %v6145
        %v6155 = vmul.f32 %v6052, %v6145
        %v6156 = vmul.f32 %v6056, %v6145
        %v6157 = vmul.f32 %v6060, %v6145
        %v6158 = vmul.f32 %v6064, %v6145
        %v6159 = vmul.f32 %v6068, %v6145
        %v6160 = vmul.f32 %v6072, %v6145
        %v6161 = vmul.f32 %v6076, %v6145
        %v6162 = vmul.f32 %v6080, %v6145
        %v6163 = vmul.f32 %v6084, %v6145
        %v6164 = vmul.f32 %v6088, %v6145
        %v6165 = vmul.f32 %v6092, %v6145
        %v6166 = vmul.f32 %v6096, %v6145
        %v6167 = vmul.f32 %v6100, %v6145
        %v6168 = vmul.f32 %v6104, %v6145
        %v6169 = vmul.f32 %v6108, %v6145
        %v6170 = vmul.f32 %v6112, %v6145
        %v6171 = vmul.f32 %v6116, %v6145
        %v6172 = vmul.f32 %v6120, %v6145
        %v6173 = vmul.f32 %v6124, %v6145
        %v6174 = vmul.f32 %v6128, %v6145
        %v6175 = vmul.f32 %v6132, %v6145
        %v6176 = vmul.f32 %v6136, %v6145
        %v6177 = vmul.f32 %v6140, %v6145
        %v6178 = vadd.f32 %v5981, %v6146
        %v6179 = vadd.f32 %v5982, %v6147
        %v6180 = vadd.f32 %v5983, %v6148
        %v6181 = vadd.f32 %v5984, %v6149
        %v6182 = vadd.f32 %v5985, %v6150
        %v6183 = vadd.f32 %v5986, %v6151
        %v6184 = vadd.f32 %v5987, %v6152
        %v6185 = vadd.f32 %v5988, %v6153
        %v6186 = vadd.f32 %v5989, %v6154
        %v6187 = vadd.f32 %v5990, %v6155
        %v6188 = vadd.f32 %v5991, %v6156
        %v6189 = vadd.f32 %v5992, %v6157
        %v6190 = vadd.f32 %v5993, %v6158
        %v6191 = vadd.f32 %v5994, %v6159
        %v6192 = vadd.f32 %v5995, %v6160
        %v6193 = vadd.f32 %v5996, %v6161
        %v6194 = vadd.f32 %v5997, %v6162
        %v6195 = vadd.f32 %v5998, %v6163
        %v6196 = vadd.f32 %v5999, %v6164
        %v6197 = vadd.f32 %v6000, %v6165
        %v6198 = vadd.f32 %v6001, %v6166
        %v6199 = vadd.f32 %v6002, %v6167
        %v6200 = vadd.f32 %v6003, %v6168
        %v6201 = vadd.f32 %v6004, %v6169
        %v6202 = vadd.f32 %v6005, %v6170
        %v6203 = vadd.f32 %v6006, %v6171
        %v6204 = vadd.f32 %v6007, %v6172
        %v6205 = vadd.f32 %v6008, %v6173
        %v6206 = vadd.f32 %v6009, %v6174
        %v6207 = vadd.f32 %v6010, %v6175
        %v6208 = vadd.f32 %v6011, %v6176
        %v6209 = vadd.f32 %v6012, %v6177
        %v6210 = vlaneseq
        %v6211 = vshrl.u32 %v6210, 7
        %v6212 = vsub.s32 0, %v6211
        %v6213 = vrot.slane %v227, %v6212
        %v6214 = vmul.f32 %v6178, %v6213
        %v6215 = vmul.f32 %v6179, %v6213
        %v6216 = vmul.f32 %v6180, %v6213
        %v6217 = vmul.f32 %v6181, %v6213
        %v6218 = vmul.f32 %v6182, %v6213
        %v6219 = vmul.f32 %v6183, %v6213
        %v6220 = vmul.f32 %v6184, %v6213
        %v6221 = vmul.f32 %v6185, %v6213
        %v6222 = vmul.f32 %v6186, %v6213
        %v6223 = vmul.f32 %v6187, %v6213
        %v6224 = vmul.f32 %v6188, %v6213
        %v6225 = vmul.f32 %v6189, %v6213
        %v6226 = vmul.f32 %v6190, %v6213
        %v6227 = vmul.f32 %v6191, %v6213
        %v6228 = vmul.f32 %v6192, %v6213
        %v6229 = vmul.f32 %v6193, %v6213
        %v6230 = vmul.f32 %v6194, %v6213
        %v6231 = vmul.f32 %v6195, %v6213
        %v6232 = vmul.f32 %v6196, %v6213
        %v6233 = vmul.f32 %v6197, %v6213
        %v6234 = vmul.f32 %v6198, %v6213
        %v6235 = vmul.f32 %v6199, %v6213
        %v6236 = vmul.f32 %v6200, %v6213
        %v6237 = vmul.f32 %v6201, %v6213
        %v6238 = vmul.f32 %v6202, %v6213
        %v6239 = vmul.f32 %v6203, %v6213
        %v6240 = vmul.f32 %v6204, %v6213
        %v6241 = vmul.f32 %v6205, %v6213
        %v6242 = vmul.f32 %v6206, %v6213
        %v6243 = vmul.f32 %v6207, %v6213
        %v6244 = vmul.f32 %v6208, %v6213
        %v6245 = vmul.f32 %v6209, %v6213
        %v6246 = vlaneseq
        %v6247 = vshrl.u32 %v6246, 7
        %v6248 = vsub.s32 0, %v6247
        %v6249 = vrot.slane %v228, %v6248
        %v6250 = vadd.f32 %v6214, %v6249
        %v6251 = vadd.f32 %v6215, %v6249
        %v6252 = vadd.f32 %v6216, %v6249
        %v6253 = vadd.f32 %v6217, %v6249
        %v6254 = vadd.f32 %v6218, %v6249
        %v6255 = vadd.f32 %v6219, %v6249
        %v6256 = vadd.f32 %v6220, %v6249
        %v6257 = vadd.f32 %v6221, %v6249
        %v6258 = vadd.f32 %v6222, %v6249
        %v6259 = vadd.f32 %v6223, %v6249
        %v6260 = vadd.f32 %v6224, %v6249
        %v6261 = vadd.f32 %v6225, %v6249
        %v6262 = vadd.f32 %v6226, %v6249
        %v6263 = vadd.f32 %v6227, %v6249
        %v6264 = vadd.f32 %v6228, %v6249
        %v6265 = vadd.f32 %v6229, %v6249
        %v6266 = vadd.f32 %v6230, %v6249
        %v6267 = vadd.f32 %v6231, %v6249
        %v6268 = vadd.f32 %v6232, %v6249
        %v6269 = vadd.f32 %v6233, %v6249
        %v6270 = vadd.f32 %v6234, %v6249
        %v6271 = vadd.f32 %v6235, %v6249
        %v6272 = vadd.f32 %v6236, %v6249
        %v6273 = vadd.f32 %v6237, %v6249
        %v6274 = vadd.f32 %v6238, %v6249
        %v6275 = vadd.f32 %v6239, %v6249
        %v6276 = vadd.f32 %v6240, %v6249
        %v6277 = vadd.f32 %v6241, %v6249
        %v6278 = vadd.f32 %v6242, %v6249
        %v6279 = vadd.f32 %v6243, %v6249
        %v6280 = vadd.f32 %v6244, %v6249
        %v6281 = vadd.f32 %v6245, %v6249
        %6282 = vst.msk [vmem:[#allocation3] sm:$0xff] %vm3869, %v6250
        %6283 = vst.msk [vmem:[#allocation3 + $0x8] sm:$0xff] %vm3869, %v6251
        %6284 = vst.msk [vmem:[#allocation3 + $0x10] sm:$0xff] %vm3869, %v6252
        %6285 = vst.msk [vmem:[#allocation3 + $0x18] sm:$0xff] %vm3869, %v6253
        %6286 = vst.msk [vmem:[#allocation3 + $0x20] sm:$0xff] %vm3869, %v6254
        %6287 = vst.msk [vmem:[#allocation3 + $0x28] sm:$0xff] %vm3869, %v6255
        %6288 = vst.msk [vmem:[#allocation3 + $0x30] sm:$0xff] %vm3869, %v6256
        %6289 = vst.msk [vmem:[#allocation3 + $0x38] sm:$0xff] %vm3869, %v6257
        %6290 = vst.msk [vmem:[#allocation3 + $0x40] sm:$0xff] %vm3869, %v6258
        %6291 = vst.msk [vmem:[#allocation3 + $0x48] sm:$0xff] %vm3869, %v6259
        %6292 = vst.msk [vmem:[#allocation3 + $0x50] sm:$0xff] %vm3869, %v6260
        %6293 = vst.msk [vmem:[#allocation3 + $0x58] sm:$0xff] %vm3869, %v6261
        %6294 = vst.msk [vmem:[#allocation3 + $0x60] sm:$0xff] %vm3869, %v6262
        %6295 = vst.msk [vmem:[#allocation3 + $0x68] sm:$0xff] %vm3869, %v6263
        %6296 = vst.msk [vmem:[#allocation3 + $0x70] sm:$0xff] %vm3869, %v6264
        %6297 = vst.msk [vmem:[#allocation3 + $0x78] sm:$0xff] %vm3869, %v6265
        %6298 = vst.msk [vmem:[#allocation3 + $0x80] sm:$0xff] %vm3869, %v6266
        %6299 = vst.msk [vmem:[#allocation3 + $0x88] sm:$0xff] %vm3869, %v6267
        %6300 = vst.msk [vmem:[#allocation3 + $0x90] sm:$0xff] %vm3869, %v6268
        %6301 = vst.msk [vmem:[#allocation3 + $0x98] sm:$0xff] %vm3869, %v6269
        %6302 = vst.msk [vmem:[#allocation3 + $0xa0] sm:$0xff] %vm3869, %v6270
        %6303 = vst.msk [vmem:[#allocation3 + $0xa8] sm:$0xff] %vm3869, %v6271
        %6304 = vst.msk [vmem:[#allocation3 + $0xb0] sm:$0xff] %vm3869, %v6272
        %6305 = vst.msk [vmem:[#allocation3 + $0xb8] sm:$0xff] %vm3869, %v6273
        %6306 = vst.msk [vmem:[#allocation3 + $0xc0] sm:$0xff] %vm3869, %v6274
        %6307 = vst.msk [vmem:[#allocation3 + $0xc8] sm:$0xff] %vm3869, %v6275
        %6308 = vst.msk [vmem:[#allocation3 + $0xd0] sm:$0xff] %vm3869, %v6276
        %6309 = vst.msk [vmem:[#allocation3 + $0xd8] sm:$0xff] %vm3869, %v6277
        %6310 = vst.msk [vmem:[#allocation3 + $0xe0] sm:$0xff] %vm3869, %v6278
        %6311 = vst.msk [vmem:[#allocation3 + $0xe8] sm:$0xff] %vm3869, %v6279
        %6312 = vst.msk [vmem:[#allocation3 + $0xf0] sm:$0xff] %vm3869, %v6280
        %6313 = vst.msk [vmem:[#allocation3 + $0xf8] sm:$0xff] %vm3869, %v6281
        %v6314 = vld [vmem:[#allocation3] ss:$2 sm:$0xff]
        %v6315 = vld [vmem:[%s3903] ss:$2 sm:$0xff]
        %v6316 = vld [vmem:[%s3905] ss:$2 sm:$0xff]
        %v6317 = vld [vmem:[%s3907] ss:$2 sm:$0xff]
        %v6318 = vld [vmem:[%s3909] ss:$2 sm:$0xff]
        %v6319 = vld [vmem:[%s3911] ss:$2 sm:$0xff]
        %v6320 = vld [vmem:[%s3913] ss:$2 sm:$0xff]
        %v6321 = vld [vmem:[%s3915] ss:$2 sm:$0xff]
        %v6322 = vld [vmem:[%s3917] ss:$2 sm:$0xff]
        %v6323 = vld [vmem:[%s3919] ss:$2 sm:$0xff]
        %v6324 = vld [vmem:[%s3921] ss:$2 sm:$0xff]
        %v6325 = vld [vmem:[%s3923] ss:$2 sm:$0xff]
        %v6326 = vld [vmem:[%s3925] ss:$2 sm:$0xff]
        %v6327 = vld [vmem:[%s3927] ss:$2 sm:$0xff]
        %v6328 = vld [vmem:[%s3929] ss:$2 sm:$0xff]
        %v6329 = vld [vmem:[%s3931] ss:$2 sm:$0xff]
        %v6330 = vld [vmem:[%s3933] ss:$2 sm:$0xff]
        %v6331 = vld [vmem:[%s3935] ss:$2 sm:$0xff]
        %v6332 = vld [vmem:[%s3937] ss:$2 sm:$0xff]
        %v6333 = vld [vmem:[%s3939] ss:$2 sm:$0xff]
        %v6334 = vld [vmem:[%s3941] ss:$2 sm:$0xff]
        %v6335 = vld [vmem:[%s3943] ss:$2 sm:$0xff]
        %v6336 = vld [vmem:[%s3945] ss:$2 sm:$0xff]
        %v6337 = vld [vmem:[%s3947] ss:$2 sm:$0xff]
        %v6338 = vld [vmem:[%s3949] ss:$2 sm:$0xff]
        %v6339 = vld [vmem:[%s3951] ss:$2 sm:$0xff]
        %v6340 = vld [vmem:[%s3953] ss:$2 sm:$0xff]
        %v6341 = vld [vmem:[%s3955] ss:$2 sm:$0xff]
        %v6342 = vld [vmem:[%s3957] ss:$2 sm:$0xff]
        %v6343 = vld [vmem:[%s3959] ss:$2 sm:$0xff]
        %v6344 = vld [vmem:[%s3961] ss:$2 sm:$0xff]
        %v6345 = vld [vmem:[%s3963] ss:$2 sm:$0xff]
        %v6346 = vmax.f32 %v6314, %v6322
        %v6347 = vmax.f32 %v6315, %v6323
        %v6348 = vmax.f32 %v6316, %v6324
        %v6349 = vmax.f32 %v6317, %v6325
        %v6350 = vmax.f32 %v6318, %v6326
        %v6351 = vmax.f32 %v6319, %v6327
        %v6352 = vmax.f32 %v6320, %v6328
        %v6353 = vmax.f32 %v6321, %v6329
        %v6354 = vmax.f32 %v6330, %v6338
        %v6355 = vmax.f32 %v6331, %v6339
        %v6356 = vmax.f32 %v6332, %v6340
        %v6357 = vmax.f32 %v6333, %v6341
        %v6358 = vmax.f32 %v6334, %v6342
        %v6359 = vmax.f32 %v6335, %v6343
        %v6360 = vmax.f32 %v6336, %v6344
        %v6361 = vmax.f32 %v6337, %v6345
        %v6362 = vmax.f32 %v6346, %v6354
        %v6363 = vmax.f32 %v6347, %v6355
        %v6364 = vmax.f32 %v6348, %v6356
        %v6365 = vmax.f32 %v6349, %v6357
        %v6366 = vmax.f32 %v6350, %v6358
        %v6367 = vmax.f32 %v6351, %v6359
        %v6368 = vmax.f32 %v6352, %v6360
        %v6369 = vmax.f32 %v6353, %v6361
        %v6370 = vadd.f32 %v5350, %v6362
        %v6371 = vadd.f32 %v5351, %v6363
        %v6372 = vadd.f32 %v5352, %v6364
        %v6373 = vadd.f32 %v5353, %v6365
        %v6374 = vadd.f32 %v5354, %v6366
        %v6375 = vadd.f32 %v5355, %v6367
        %v6376 = vadd.f32 %v5356, %v6368
        %v6377 = vadd.f32 %v5357, %v6369
        %v6378 = vmax.f32 %v6370, 0.0
        %v6379 = vmax.f32 %v6371, 0.0
        %v6380 = vmax.f32 %v6372, 0.0
        %v6381 = vmax.f32 %v6373, 0.0
        %v6382 = vmax.f32 %v6374, 0.0
        %v6383 = vmax.f32 %v6375, 0.0
        %v6384 = vmax.f32 %v6376, 0.0
        %v6385 = vmax.f32 %v6377, 0.0
        %6386 = vst.msk [vmem:[%s217] sm:$0xff] %vm3869, %v6378
        %6387 = vst.msk [vmem:[%s217 + $0x8] sm:$0xff] %vm3869, %v6379
        %6388 = vst.msk [vmem:[%s217 + $0x10] sm:$0xff] %vm3869, %v6380
        %6389 = vst.msk [vmem:[%s217 + $0x18] sm:$0xff] %vm3869, %v6381
        %6390 = vst.msk [vmem:[%s217 + $0x20] sm:$0xff] %vm3869, %v6382
        %6391 = vst.msk [vmem:[%s217 + $0x28] sm:$0xff] %vm3869, %v6383
        %6392 = vst.msk [vmem:[%s217 + $0x30] sm:$0xff] %vm3869, %v6384
        %6393 = vst.msk [vmem:[%s217 + $0x38] sm:$0xff] %vm3869, %v6385
        %s6394 = sand.u32 %s137, 1
        %s6395 = scalar_lea.sflag [#allocation6], %s6394
        %s6396 = sand.u32 %s137, 1
        %s6397 = smul.addr %s6396, 64
        %s6398 = scalar_lea.vmem [#allocation5], %s6397
        // Predicated region
        $region41: #{tpu_custom_call.1} parent=39 // pred_check
          %p6399 = pneg %p147
        $region42: #{tpu_custom_call.1} parent=39 // pred_check_branch
          %6401 = sbr.rel (%p6399) target = $region44
        $region43: #{tpu_custom_call.1} parent=39 // pred_region
          %s6403 = ssub.s32 1024, 1024
          %6404 = vsyncadd %s6395, %s6403
          %s6405 = smul.addr %s19, 8
          %s6406 = smul.addr %s6405, 128
          %s6407 = scalar_lea.hbm %s5, %s6406
          %s6408 = sshll.u32 %s6398, 4
          %s6409 = int_to_ptr.vmem [resolvable:$true] %s6408
          %6414 = dma.vmem_to_hbm [thread:$0]  %s6409, 1024, %s6407, %s6395, 128, 128, 8
        $region44: #{tpu_custom_call.1} parent=39 // pred_fallthru
          _
      $region40: #{tpu_custom_call.1} parent=5 // pred_fallthru
        _
      %p6415 = scmp.le.s32.totalorder 2, %s14
      // Predicated region
      $region45: #{tpu_custom_call.1} parent=5 // pred_check
        %p6416 = pneg %p6415
      $region46: #{tpu_custom_call.1} parent=5 // pred_check_branch
        %6418 = sbr.rel (%p6416) target = $region48
      $region47: #{tpu_custom_call.1} parent=5 // pred_region
        %s6419 = ssub.s32 %s14, 2
        // Predicated region
        $region49: #{tpu_custom_call.1} parent=47 // pred_check
          %p6420 = pneg %p153
        $region50: #{tpu_custom_call.1} parent=47 // pred_check_branch
          %6422 = sbr.rel (%p6420) target = $region52
        $region51: #{tpu_custom_call.1} parent=47 // pred_region
          %s6423 = sand.u32 %s138, 1
          %s6424 = scalar_lea.sflag [#allocation6], %s6423
          %s6425 = sand.u32 %s138, 1
          %s6426 = smul.addr %s6425, 64
          %s6427 = scalar_lea.vmem [#allocation5], %s6426
          %6428 = dma.done %s6424, 1024
        $region52: #{tpu_custom_call.1} parent=47 // pred_fallthru
          _
      $region48: #{tpu_custom_call.1} parent=5 // pred_fallthru
        _
    $region6: #{tpu_custom_call.1} parent=1 // loop_footer
      %s18 = sadd.s32 1, %s14
    $region7: #{tpu_custom_call.1} parent=1 // loop_footer_branch
      %13 = sbr.rel target = $region3
    $region8: #{tpu_custom_call.1} parent=1 // loop_exit
      _
    %6429 = vsyncpa [#allocation6], 1
    %s6430 = scalar_lea.sflag [#allocation6], 1
    %6431 = vsyncpa %s6430, 1

</llo_original>
